<compile_context>
chip_gen: v7x
topology: tpu7x:2x2x1
jax: 0.10.0
libtpu: 0.0.40
codegen_flags: <defaults>
</compile_context>

<pallas_src>
import jax
import jax.numpy as jnp
from jax.experimental import pallas as pl
from jax.experimental.pallas import tpu as pltpu


# ----------------------------------------------------------------------------
# Fused forward kernel: Linear+LeakyReLU -> merged mu/logvar heads (+ReLU)
# -> reparameterize -> Linear+LeakyReLU -> Linear -> BatchNorm1d -> ReLU.
# Everything resident in VMEM, single invocation (no grid).
# ----------------------------------------------------------------------------
def _fused_vae_kernel(x_ref, attr_ref, attr_pad_ref, eps_pad_ref,
                      w1x_ref, w1a_ref, b1_ref,
                      wh_ref, bh_ref,
                      w3_ref, b3_ref,
                      w4_ref, b4_ref, gamma_ref, beta_ref,
                      ml_ref, recon_ref):
    f32 = jnp.float32
    bf16 = jnp.bfloat16
    B, L = attr_ref.shape          # (batch, latent_dim)
    P2 = 2 * L                     # width of the merged [mu | logvar] slab

    # ---- encoder layer: LeakyReLU([x|attr] @ W1 + b1), concat folded as
    #      a split-K pair of dots (bf16 MXU inputs, f32 accumulate).
    h = jnp.dot(x_ref[...].astype(bf16), w1x_ref[...],
                preferred_element_type=f32)
    h = h + jnp.dot(attr_ref[...].astype(bf16), w1a_ref[...],
                    preferred_element_type=f32)
    h = h + b1_ref[...]
    h = jnp.where(h > 0, h, 0.01 * h)            # LeakyReLU (default slope)

    # ---- merged mu|logvar heads: a single (4096, 2L) matmul + ReLU.
    heads = jnp.dot(h.astype(bf16), wh_ref[...], preferred_element_type=f32)
    heads = jnp.maximum(heads + bh_ref[...], 0.0)  # ReLU on both heads
    ml_ref[...] = heads                            # [mu | logvar]; wrapper slices

    # ---- reparameterize fully in VMEM (z never leaves the chip).
    # Align the logvar lanes [L:2L) onto [0:L) with an exact 0/1 permutation
    # matmul built from iota (no HBM traffic, no unaligned lane slices).
    r = jax.lax.broadcasted_iota(jnp.int32, (P2, P2), 0)
    c = jax.lax.broadcasted_iota(jnp.int32, (P2, P2), 1)
    perm = (r == c + L).astype(f32)                # perm[L+j, j] = 1
    lv_al = jnp.dot(heads, perm, preferred_element_type=f32)  # lanes [0:L)=logvar
    # eps_pad is [eps | 0], so lanes >= L stay untouched (junk, masked below).
    z_all = heads + eps_pad_ref[...] * jnp.exp(0.5 * lv_al)   # lanes [0:L) = z

    # ---- decoder input [z | attr] assembled lane-wise (no concatenate).
    lane = jax.lax.broadcasted_iota(jnp.int32, (B, P2), 1)
    za = jnp.where(lane < L, z_all, attr_pad_ref[...])        # [z | attr]

    # ---- decoder layer 1: LeakyReLU(za @ W3 + b3)
    h2 = jnp.dot(za.astype(bf16), w3_ref[...], preferred_element_type=f32)
    h2 = h2 + b3_ref[...]
    h2 = jnp.where(h2 > 0, h2, 0.01 * h2)

    # ---- decoder layer 2 + BatchNorm1d (training-mode batch stats) + ReLU
    y = jnp.dot(h2.astype(bf16), w4_ref[...], preferred_element_type=f32)
    y = y + b4_ref[...]
    mean = jnp.mean(y, axis=0, keepdims=True)
    var = jnp.mean((y - mean) ** 2, axis=0, keepdims=True)    # biased variance
    yhat = (y - mean) * jax.lax.rsqrt(var + 1e-5)
    recon_ref[...] = jnp.maximum(gamma_ref[...] * yhat + beta_ref[...], 0.0)


# ----------------------------------------------------------------------------
# Wrapper: single fused pallas_call, whole arrays resident in VMEM.
# ----------------------------------------------------------------------------
@jax.jit
def feats_vae_forward(packed, x, attr, eps):
    B, L = attr.shape
    x_dim = x.shape[1]
    P2 = 2 * L

    # Tiny (8 x 64) helpers built outside the kernel (a few KiB of HBM traffic):
    eps_pad = jnp.pad(eps, ((0, 0), (0, L)))      # [eps | 0]   -> (B, 2L)
    attr_pad = jnp.pad(attr, ((0, 0), (L, 0)))    # [0  | attr] -> (B, 2L)

    vmem = pl.BlockSpec(memory_space=pltpu.MemorySpace.VMEM)
    ml, recon = pl.pallas_call(
        _fused_vae_kernel,
        out_shape=(jax.ShapeDtypeStruct((B, P2), jnp.float32),     # [mu|logvar]
                   jax.ShapeDtypeStruct((B, x_dim), jnp.float32)),  # recon
        in_specs=[vmem] * 15,
        out_specs=(vmem, vmem),
    )(x, attr, attr_pad, eps_pad,
      packed["w1x"], packed["w1a"], packed["b1"],
      packed["wh"], packed["bh"],
      packed["w3"], packed["b3"],
      packed["w4"], packed["b4"], packed["gamma"], packed["beta"])

    mu = ml[:, :L]
    logvar = ml[:, L:]
    return mu, logvar, recon


# ----------------------------------------------------------------------------
# Parameter init (PyTorch layout, f32) and packing into kernel layout (bf16
# weights, pre-split / pre-merged).
# ----------------------------------------------------------------------------
def init_params(key, x_dim, latent_dim, hidden=4096):
    # PyTorch init: all Linear weights/biases ~ N(0, 0.02); BN gamma=1, beta=0.
    ks = jax.random.split(key, 8)
    n = lambda k, shape: (0.02 * jax.random.normal(k, shape)).astype(jnp.float32)
    return {
        "w1": n(ks[0], (x_dim + latent_dim, hidden)),
        "b1": n(ks[1], (1, hidden)),
        "wmu": n(ks[2], (hidden, latent_dim)),
        "bmu": n(ks[3], (1, latent_dim)),
        "wlv": n(ks[4], (hidden, latent_dim)),
        "blv": n(ks[5], (1, latent_dim)),
        "w3": n(ks[6], (2 * latent_dim, hidden)),
        "b3": n(ks[7], (1, hidden)),
        "w4": n(jax.random.fold_in(key, 100), (hidden, x_dim)),
        "b4": n(jax.random.fold_in(key, 101), (1, x_dim)),
        "bn_gamma": jnp.ones((1, x_dim), jnp.float32),
        "bn_beta": jnp.zeros((1, x_dim), jnp.float32),
    }


def pack_params(p, x_dim, latent_dim):
    bf = jnp.bfloat16
    return {
        # layer 1 weight pre-split so the concat never materializes
        "w1x": p["w1"][:x_dim].astype(bf),
        "w1a": p["w1"][x_dim:].astype(bf),
        "b1": p["b1"],
        # merged [mu | logvar] head weight / bias
        "wh": jnp.concatenate([p["wmu"], p["wlv"]], axis=1).astype(bf),
        "bh": jnp.concatenate([p["bmu"], p["blv"]], axis=1),
        "w3": p["w3"].astype(bf),
        "b3": p["b3"],
        "w4": p["w4"].astype(bf),
        "b4": p["b4"],
        "gamma": p["bn_gamma"],
        "beta": p["bn_beta"],
    }


# ----------------------------------------------------------------------------
# Plain-JAX reference (mirrors the kernel's bf16-matmul / f32-epilogue numerics)
# ----------------------------------------------------------------------------
def _reference(p, x, attr, eps):
    bf = jnp.bfloat16
    dot = lambda a, w: jnp.dot(a.astype(bf), w.astype(bf),
                               preferred_element_type=jnp.float32)
    leaky = lambda v: jnp.where(v > 0, v, 0.01 * v)
    h = leaky(dot(jnp.concatenate([x, attr], axis=1), p["w1"]) + p["b1"])
    mu = jnp.maximum(dot(h, p["wmu"]) + p["bmu"], 0.0)
    lv = jnp.maximum(dot(h, p["wlv"]) + p["blv"], 0.0)
    z = mu + eps * jnp.exp(0.5 * lv)
    h2 = leaky(dot(jnp.concatenate([z, attr], axis=1), p["w3"]) + p["b3"])
    y = dot(h2, p["w4"]) + p["b4"]
    mean = y.mean(0, keepdims=True)
    var = ((y - mean) ** 2).mean(0, keepdims=True)
    recon = jnp.maximum(
        p["bn_gamma"] * (y - mean) * jax.lax.rsqrt(var + 1e-5) + p["bn_beta"], 0.0)
    return mu, lv, recon


if __name__ == "__main__":
    B, X_DIM, LATENT_DIM = 8, 64, 32

    key = jax.random.PRNGKey(0)
    kp, kx, ka, ke = jax.random.split(key, 4)
    params = init_params(kp, X_DIM, LATENT_DIM)
    packed = pack_params(params, X_DIM, LATENT_DIM)

    x = jax.random.normal(kx, (B, X_DIM), jnp.float32)
    attr = jax.random.normal(ka, (B, LATENT_DIM), jnp.float32)
    eps = jax.random.normal(ke, (B, LATENT_DIM), jnp.float32)  # torch.randn_like(std)

    mu, logvar, recon = jax.block_until_ready(feats_vae_forward(packed, x, attr, eps))

    # sanity check against a plain-JAX reference using the same bf16 matmul
    # inputs (tolerance covers MXU accumulation-order differences).
    rmu, rlv, rrec = _reference(params, x, attr, eps)
    assert jnp.allclose(mu, rmu, atol=5e-3, rtol=5e-3)
    assert jnp.allclose(logvar, rlv, atol=5e-3, rtol=5e-3)
    assert jnp.allclose(recon, rrec, atol=5e-3, rtol=5e-3)

    print("KERNEL_OK")
</pallas_src>

<mosaic_0001>
module attributes {stable_mosaic.version = 11 : i64} {
  func.func @_fused_vae_kernel(%arg0: memref<8x64xf32, #tpu.memory_space<vmem>>, %arg1: memref<8x32xf32, #tpu.memory_space<vmem>>, %arg2: memref<8x64xf32, #tpu.memory_space<vmem>>, %arg3: memref<8x64xf32, #tpu.memory_space<vmem>>, %arg4: memref<64x4096xbf16, #tpu.memory_space<vmem>>, %arg5: memref<32x4096xbf16, #tpu.memory_space<vmem>>, %arg6: memref<1x4096xf32, #tpu.memory_space<vmem>>, %arg7: memref<4096x64xbf16, #tpu.memory_space<vmem>>, %arg8: memref<1x64xf32, #tpu.memory_space<vmem>>, %arg9: memref<64x4096xbf16, #tpu.memory_space<vmem>>, %arg10: memref<1x4096xf32, #tpu.memory_space<vmem>>, %arg11: memref<4096x64xbf16, #tpu.memory_space<vmem>>, %arg12: memref<1x64xf32, #tpu.memory_space<vmem>>, %arg13: memref<1x64xf32, #tpu.memory_space<vmem>>, %arg14: memref<1x64xf32, #tpu.memory_space<vmem>>, %arg15: memref<8x64xf32, #tpu.memory_space<vmem>>, %arg16: memref<8x64xf32, #tpu.memory_space<vmem>>) attributes {dimension_semantics = [], scalar_prefetch = 0 : i64, scratch_operands = 0 : i64, tpu.core_type = #tpu.core_type<tc>} {
    %c0 = arith.constant 0 : index
    %c0_0 = arith.constant 0 : index
    %0 = vector.load %arg0[%c0, %c0_0] : memref<8x64xf32, #tpu.memory_space<vmem>>, vector<8x64xf32>
    %1 = arith.truncf %0 : vector<8x64xf32> to vector<8x64xbf16>
    %c0_1 = arith.constant 0 : index
    %c0_2 = arith.constant 0 : index
    %2 = vector.load %arg4[%c0_1, %c0_2] : memref<64x4096xbf16, #tpu.memory_space<vmem>>, vector<64x4096xbf16>
    %cst = arith.constant dense<0.000000e+00> : vector<8x4096xf32>
    %3 = tpu.matmul %1, %2, %cst {dimension_numbers = #tpu.dot_dimension_numbers<[1], [0], [0], [1], [0, 0, 1, 1], [], []>} : vector<8x64xbf16>, vector<64x4096xbf16>, vector<8x4096xf32> -> vector<8x4096xf32>
    %c0_3 = arith.constant 0 : index
    %c0_4 = arith.constant 0 : index
    %4 = vector.load %arg1[%c0_3, %c0_4] : memref<8x32xf32, #tpu.memory_space<vmem>>, vector<8x32xf32>
    %5 = arith.truncf %4 : vector<8x32xf32> to vector<8x32xbf16>
    %c0_5 = arith.constant 0 : index
    %c0_6 = arith.constant 0 : index
    %6 = vector.load %arg5[%c0_5, %c0_6] : memref<32x4096xbf16, #tpu.memory_space<vmem>>, vector<32x4096xbf16>
    %cst_7 = arith.constant dense<0.000000e+00> : vector<8x4096xf32>
    %7 = tpu.matmul %5, %6, %cst_7 {dimension_numbers = #tpu.dot_dimension_numbers<[1], [0], [0], [1], [0, 0, 1, 1], [], []>} : vector<8x32xbf16>, vector<32x4096xbf16>, vector<8x4096xf32> -> vector<8x4096xf32>
    %8 = arith.addf %3, %7 : vector<8x4096xf32>
    %c0_8 = arith.constant 0 : index
    %c0_9 = arith.constant 0 : index
    %9 = vector.load %arg6[%c0_8, %c0_9] : memref<1x4096xf32, #tpu.memory_space<vmem>>, vector<1x4096xf32>
    %10 = vector.broadcast %9 : vector<1x4096xf32> to vector<8x4096xf32>
    %11 = arith.addf %8, %10 : vector<8x4096xf32>
    %cst_10 = arith.constant 0.000000e+00 : f32
    %12 = vector.broadcast %cst_10 : f32 to vector<8x4096xf32>
    %13 = arith.cmpf ogt, %11, %12 : vector<8x4096xf32>
    %cst_11 = arith.constant 0.00999999977 : f32
    %14 = vector.broadcast %cst_11 : f32 to vector<8x4096xf32>
    %15 = arith.mulf %14, %11 : vector<8x4096xf32>
    %16 = arith.select %13, %11, %15 : vector<8x4096xi1>, vector<8x4096xf32>
    %17 = arith.truncf %16 : vector<8x4096xf32> to vector<8x4096xbf16>
    %c0_12 = arith.constant 0 : index
    %c0_13 = arith.constant 0 : index
    %18 = vector.load %arg7[%c0_12, %c0_13] : memref<4096x64xbf16, #tpu.memory_space<vmem>>, vector<4096x64xbf16>
    %cst_14 = arith.constant dense<0.000000e+00> : vector<8x64xf32>
    %19 = tpu.matmul %17, %18, %cst_14 {dimension_numbers = #tpu.dot_dimension_numbers<[1], [0], [0], [1], [0, 0, 1, 1], [], []>} : vector<8x4096xbf16>, vector<4096x64xbf16>, vector<8x64xf32> -> vector<8x64xf32>
    %c0_15 = arith.constant 0 : index
    %c0_16 = arith.constant 0 : index
    %20 = vector.load %arg8[%c0_15, %c0_16] : memref<1x64xf32, #tpu.memory_space<vmem>>, vector<1x64xf32>
    %21 = vector.broadcast %20 : vector<1x64xf32> to vector<8x64xf32>
    %22 = arith.addf %19, %21 : vector<8x64xf32>
    %cst_17 = arith.constant 0.000000e+00 : f32
    %23 = vector.broadcast %cst_17 : f32 to vector<8x64xf32>
    %24 = arith.maximumf %22, %23 : vector<8x64xf32>
    %c0_18 = arith.constant 0 : index
    %c0_19 = arith.constant 0 : index
    %25 = vector.load %arg15[%c0_18, %c0_19] : memref<8x64xf32, #tpu.memory_space<vmem>>, vector<8x64xf32>
    tpu.vector_store %arg15[%c0_18, %c0_19], %24 {strides = array<i32>} : memref<8x64xf32, #tpu.memory_space<vmem>>, vector<8x64xf32>,
    %26 = tpu.iota {dimensions = array<i32: 0>} : vector<64x64xi32>
    %27 = tpu.iota {dimensions = array<i32: 1>} : vector<64x64xi32>
    %c32_i32 = arith.constant 32 : i32
    %28 = vector.broadcast %c32_i32 : i32 to vector<64x64xi32>
    %29 = arith.addi %27, %28 : vector<64x64xi32>
    %30 = arith.cmpi eq, %26, %29 : vector<64x64xi32>
    %31 = arith.extui %30 : vector<64x64xi1> to vector<64x64xi32>
    %32 = arith.sitofp %31 : vector<64x64xi32> to vector<64x64xf32>
    %cst_20 = arith.constant dense<0.000000e+00> : vector<8x64xf32>
    %33 = tpu.matmul %24, %32, %cst_20 {dimension_numbers = #tpu.dot_dimension_numbers<[1], [0], [0], [1], [0, 0, 1, 1], [], []>} : vector<8x64xf32>, vector<64x64xf32>, vector<8x64xf32> -> vector<8x64xf32>
    %c0_21 = arith.constant 0 : index
    %c0_22 = arith.constant 0 : index
    %34 = vector.load %arg3[%c0_21, %c0_22] : memref<8x64xf32, #tpu.memory_space<vmem>>, vector<8x64xf32>
    %cst_23 = arith.constant 5.000000e-01 : f32
    %35 = vector.broadcast %cst_23 : f32 to vector<8x64xf32>
    %36 = arith.mulf %35, %33 : vector<8x64xf32>
    %37 = math.exp %36 : vector<8x64xf32>
    %38 = arith.mulf %34, %37 : vector<8x64xf32>
    %39 = arith.addf %24, %38 : vector<8x64xf32>
    %40 = tpu.iota {dimensions = array<i32: 1>} : vector<8x64xi32>
    %c32_i32_24 = arith.constant 32 : i32
    %41 = vector.broadcast %c32_i32_24 : i32 to vector<8x64xi32>
    %42 = arith.cmpi slt, %40, %41 : vector<8x64xi32>
    %c0_25 = arith.constant 0 : index
    %c0_26 = arith.constant 0 : index
    %43 = vector.load %arg2[%c0_25, %c0_26] : memref<8x64xf32, #tpu.memory_space<vmem>>, vector<8x64xf32>
    %44 = arith.select %42, %39, %43 : vector<8x64xi1>, vector<8x64xf32>
    %45 = arith.truncf %44 : vector<8x64xf32> to vector<8x64xbf16>
    %c0_27 = arith.constant 0 : index
    %c0_28 = arith.constant 0 : index
    %46 = vector.load %arg9[%c0_27, %c0_28] : memref<64x4096xbf16, #tpu.memory_space<vmem>>, vector<64x4096xbf16>
    %cst_29 = arith.constant dense<0.000000e+00> : vector<8x4096xf32>
    %47 = tpu.matmul %45, %46, %cst_29 {dimension_numbers = #tpu.dot_dimension_numbers<[1], [0], [0], [1], [0, 0, 1, 1], [], []>} : vector<8x64xbf16>, vector<64x4096xbf16>, vector<8x4096xf32> -> vector<8x4096xf32>
    %c0_30 = arith.constant 0 : index
    %c0_31 = arith.constant 0 : index
    %48 = vector.load %arg10[%c0_30, %c0_31] : memref<1x4096xf32, #tpu.memory_space<vmem>>, vector<1x4096xf32>
    %49 = vector.broadcast %48 : vector<1x4096xf32> to vector<8x4096xf32>
    %50 = arith.addf %47, %49 : vector<8x4096xf32>
    %cst_32 = arith.constant 0.000000e+00 : f32
    %51 = vector.broadcast %cst_32 : f32 to vector<8x4096xf32>
    %52 = arith.cmpf ogt, %50, %51 : vector<8x4096xf32>
    %cst_33 = arith.constant 0.00999999977 : f32
    %53 = vector.broadcast %cst_33 : f32 to vector<8x4096xf32>
    %54 = arith.mulf %53, %50 : vector<8x4096xf32>
    %55 = arith.select %52, %50, %54 : vector<8x4096xi1>, vector<8x4096xf32>
    %56 = arith.truncf %55 : vector<8x4096xf32> to vector<8x4096xbf16>
    %c0_34 = arith.constant 0 : index
    %c0_35 = arith.constant 0 : index
    %57 = vector.load %arg11[%c0_34, %c0_35] : memref<4096x64xbf16, #tpu.memory_space<vmem>>, vector<4096x64xbf16>
    %cst_36 = arith.constant dense<0.000000e+00> : vector<8x64xf32>
    %58 = tpu.matmul %56, %57, %cst_36 {dimension_numbers = #tpu.dot_dimension_numbers<[1], [0], [0], [1], [0, 0, 1, 1], [], []>} : vector<8x4096xbf16>, vector<4096x64xbf16>, vector<8x64xf32> -> vector<8x64xf32>
    %c0_37 = arith.constant 0 : index
    %c0_38 = arith.constant 0 : index
    %59 = vector.load %arg12[%c0_37, %c0_38] : memref<1x64xf32, #tpu.memory_space<vmem>>, vector<1x64xf32>
    %60 = vector.broadcast %59 : vector<1x64xf32> to vector<8x64xf32>
    %61 = arith.addf %58, %60 : vector<8x64xf32>
    %cst_39 = arith.constant dense<0.000000e+00> : vector<64xf32>
    %62 = vector.multi_reduction <add>, %61, %cst_39 [0] : vector<8x64xf32> to vector<64xf32>
    %63 = vector.shape_cast %62 : vector<64xf32> to vector<1x64xf32>
    %cst_40 = arith.constant 8.000000e+00 : f32
    %64 = vector.broadcast %cst_40 : f32 to vector<1x64xf32>
    %65 = arith.divf %63, %64 : vector<1x64xf32>
    %66 = vector.broadcast %65 : vector<1x64xf32> to vector<8x64xf32>
    %67 = arith.subf %61, %66 : vector<8x64xf32>
    %68 = arith.mulf %67, %67 : vector<8x64xf32>
    %cst_41 = arith.constant dense<0.000000e+00> : vector<64xf32>
    %69 = vector.multi_reduction <add>, %68, %cst_41 [0] : vector<8x64xf32> to vector<64xf32>
    %70 = vector.shape_cast %69 : vector<64xf32> to vector<1x64xf32>
    %cst_42 = arith.constant 8.000000e+00 : f32
    %71 = vector.broadcast %cst_42 : f32 to vector<1x64xf32>
    %72 = arith.divf %70, %71 : vector<1x64xf32>
    %73 = vector.broadcast %65 : vector<1x64xf32> to vector<8x64xf32>
    %74 = arith.subf %61, %73 : vector<8x64xf32>
    %cst_43 = arith.constant 9.99999974E-6 : f32
    %75 = vector.broadcast %cst_43 : f32 to vector<1x64xf32>
    %76 = arith.addf %72, %75 : vector<1x64xf32>
    %77 = math.rsqrt %76 : vector<1x64xf32>
    %78 = vector.broadcast %77 : vector<1x64xf32> to vector<8x64xf32>
    %79 = arith.mulf %74, %78 : vector<8x64xf32>
    %c0_44 = arith.constant 0 : index
    %c0_45 = arith.constant 0 : index
    %80 = vector.load %arg13[%c0_44, %c0_45] : memref<1x64xf32, #tpu.memory_space<vmem>>, vector<1x64xf32>
    %81 = vector.broadcast %80 : vector<1x64xf32> to vector<8x64xf32>
    %82 = arith.mulf %81, %79 : vector<8x64xf32>
    %c0_46 = arith.constant 0 : index
    %c0_47 = arith.constant 0 : index
    %83 = vector.load %arg14[%c0_46, %c0_47] : memref<1x64xf32, #tpu.memory_space<vmem>>, vector<1x64xf32>
    %84 = vector.broadcast %83 : vector<1x64xf32> to vector<8x64xf32>
    %85 = arith.addf %82, %84 : vector<8x64xf32>
    %cst_48 = arith.constant 0.000000e+00 : f32
    %86 = vector.broadcast %cst_48 : f32 to vector<8x64xf32>
    %87 = arith.maximumf %85, %86 : vector<8x64xf32>
    %c0_49 = arith.constant 0 : index
    %c0_50 = arith.constant 0 : index
    %88 = vector.load %arg16[%c0_49, %c0_50] : memref<8x64xf32, #tpu.memory_space<vmem>>, vector<8x64xf32>
    tpu.vector_store %arg16[%c0_49, %c0_50], %87 {strides = array<i32>} : memref<8x64xf32, #tpu.memory_space<vmem>>, vector<8x64xf32>,
    return
  }
}

</mosaic_0001>

<llo_original>
// kernel: feats_vae_forward.1
$region0: #{feats_vae_forward.1}
  #allocation0 [shape = 'u32[]', space=smem, size = 0x4, offset = 0x4, fixed_abs, tag = 'smem constant byte address 0x4 - core index']
  #allocation1 [shape = 'u32[144,128]{1,0:T(1,128)}', space=vmem, size = 0x12000, scoped, tag = 'internal scratch']
  %s0 = inlined_call_operand.vmem [shape: f32[8,64], index: 0, kind: input, shape index: {}]
  %s1 = inlined_call_operand.vmem [shape: f32[8,32], index: 1, kind: input, shape index: {}]
  %s2 = inlined_call_operand.vmem [shape: f32[8,64], index: 2, kind: input, shape index: {}]
  %s3 = inlined_call_operand.vmem [shape: f32[8,64], index: 3, kind: input, shape index: {}]
  %s4 = inlined_call_operand.vmem [shape: bf16[64,4096], index: 4, kind: input, shape index: {}]
  %s5 = inlined_call_operand.vmem [shape: bf16[32,4096], index: 5, kind: input, shape index: {}]
  %s6 = inlined_call_operand.vmem [shape: f32[1,4096], index: 6, kind: input, shape index: {}]
  %s7 = inlined_call_operand.vmem [shape: bf16[4096,64], index: 7, kind: input, shape index: {}]
  %s8 = inlined_call_operand.vmem [shape: f32[1,64], index: 8, kind: input, shape index: {}]
  %s9 = inlined_call_operand.vmem [shape: bf16[64,4096], index: 9, kind: input, shape index: {}]
  %s10 = inlined_call_operand.vmem [shape: f32[1,4096], index: 10, kind: input, shape index: {}]
  %s11 = inlined_call_operand.vmem [shape: bf16[4096,64], index: 11, kind: input, shape index: {}]
  %s12 = inlined_call_operand.vmem [shape: f32[1,64], index: 12, kind: input, shape index: {}]
  %s13 = inlined_call_operand.vmem [shape: f32[1,64], index: 13, kind: input, shape index: {}]
  %s14 = inlined_call_operand.vmem [shape: f32[1,64], index: 14, kind: input, shape index: {}]
  %s15 = inlined_call_operand.vmem [shape: f32[8,64], index: 15, kind: output, shape index: {0}]
  %s16 = inlined_call_operand.hbm [shape: f32[8,64], index: 16, kind: output, shape index: {1}]
  %17 = xla_tuple %s15, %s16
  %s18 = sld [smem:[#allocation0]]
  $region78: #{feats_vae_forward.1} parent=0
    _
  %s20 = ssub.s32 1, %s18
  %s21 = scalar_select 0, %s20, %s18
  $region1: #{feats_vae_forward.1} parent=0
    #allocation2 [shape = 'u8[4096]{0}', space=vmem, size = 0x1000, scoped, tag = 'output window, operand 1, single buffered']
    #allocation3 [shape = 's32[1]{0}', space=sflag, size = 0x4, scoped, tag = 'scoped memory for feats_vae_forward.1']
    %22 = vsyncpa [#allocation3], 0
    // Predicated region
    $region2: #{feats_vae_forward.1} parent=1 // pred_check
      _
    $region3: #{feats_vae_forward.1} parent=1 // pred_check_branch
      %24 = sbr.rel (0) target = $region5
    $region4: #{feats_vae_forward.1} parent=1 // pred_region
      _
    $region5: #{feats_vae_forward.1} parent=1 // pred_fallthru
      _
    // Predicated region
    $region6: #{feats_vae_forward.1} parent=1 // pred_check
      _
    $region7: #{feats_vae_forward.1} parent=1 // pred_check_branch
      %26 = sbr.rel (0) target = $region9
    $region8: #{feats_vae_forward.1} parent=1 // pred_region
      _
    $region9: #{feats_vae_forward.1} parent=1 // pred_fallthru
      _
    // Predicated region
    $region10: #{feats_vae_forward.1} parent=1 // pred_check
      _
    $region11: #{feats_vae_forward.1} parent=1 // pred_check_branch
      %28 = sbr.rel (0) target = $region13
    $region12: #{feats_vae_forward.1} parent=1 // pred_region
      _
    $region13: #{feats_vae_forward.1} parent=1 // pred_fallthru
      _
    // Predicated region
    $region14: #{feats_vae_forward.1} parent=1 // pred_check
      _
    $region15: #{feats_vae_forward.1} parent=1 // pred_check_branch
      %30 = sbr.rel (0) target = $region17
    $region16: #{feats_vae_forward.1} parent=1 // pred_region
      _
    $region17: #{feats_vae_forward.1} parent=1 // pred_fallthru
      _
    // Predicated region
    $region18: #{feats_vae_forward.1} parent=1 // pred_check
      _
    $region19: #{feats_vae_forward.1} parent=1 // pred_check_branch
      %32 = sbr.rel (0) target = $region21
    $region20: #{feats_vae_forward.1} parent=1 // pred_region
      _
    $region21: #{feats_vae_forward.1} parent=1 // pred_fallthru
      _
    // Predicated region
    $region22: #{feats_vae_forward.1} parent=1 // pred_check
      _
    $region23: #{feats_vae_forward.1} parent=1 // pred_check_branch
      %34 = sbr.rel (0) target = $region25
    $region24: #{feats_vae_forward.1} parent=1 // pred_region
      _
    $region25: #{feats_vae_forward.1} parent=1 // pred_fallthru
      _
    // Predicated region
    $region26: #{feats_vae_forward.1} parent=1 // pred_check
      _
    $region27: #{feats_vae_forward.1} parent=1 // pred_check_branch
      %36 = sbr.rel (0) target = $region29
    $region28: #{feats_vae_forward.1} parent=1 // pred_region
      _
    $region29: #{feats_vae_forward.1} parent=1 // pred_fallthru
      _
    // Predicated region
    $region30: #{feats_vae_forward.1} parent=1 // pred_check
      _
    $region31: #{feats_vae_forward.1} parent=1 // pred_check_branch
      %38 = sbr.rel (0) target = $region33
    $region32: #{feats_vae_forward.1} parent=1 // pred_region
      _
    $region33: #{feats_vae_forward.1} parent=1 // pred_fallthru
      _
    // Predicated region
    $region34: #{feats_vae_forward.1} parent=1 // pred_check
      _
    $region35: #{feats_vae_forward.1} parent=1 // pred_check_branch
      %40 = sbr.rel (0) target = $region37
    $region36: #{feats_vae_forward.1} parent=1 // pred_region
      _
    $region37: #{feats_vae_forward.1} parent=1 // pred_fallthru
      _
    // Predicated region
    $region38: #{feats_vae_forward.1} parent=1 // pred_check
      _
    $region39: #{feats_vae_forward.1} parent=1 // pred_check_branch
      %42 = sbr.rel (0) target = $region41
    $region40: #{feats_vae_forward.1} parent=1 // pred_region
      _
    $region41: #{feats_vae_forward.1} parent=1 // pred_fallthru
      _
    // Predicated region
    $region42: #{feats_vae_forward.1} parent=1 // pred_check
      _
    $region43: #{feats_vae_forward.1} parent=1 // pred_check_branch
      %44 = sbr.rel (0) target = $region45
    $region44: #{feats_vae_forward.1} parent=1 // pred_region
      _
    $region45: #{feats_vae_forward.1} parent=1 // pred_fallthru
      _
    // Predicated region
    $region46: #{feats_vae_forward.1} parent=1 // pred_check
      _
    $region47: #{feats_vae_forward.1} parent=1 // pred_check_branch
      %46 = sbr.rel (0) target = $region49
    $region48: #{feats_vae_forward.1} parent=1 // pred_region
      _
    $region49: #{feats_vae_forward.1} parent=1 // pred_fallthru
      _
    // Predicated region
    $region50: #{feats_vae_forward.1} parent=1 // pred_check
      _
    $region51: #{feats_vae_forward.1} parent=1 // pred_check_branch
      %48 = sbr.rel (0) target = $region53
    $region52: #{feats_vae_forward.1} parent=1 // pred_region
      _
    $region53: #{feats_vae_forward.1} parent=1 // pred_fallthru
      _
    // Predicated region
    $region54: #{feats_vae_forward.1} parent=1 // pred_check
      _
    $region55: #{feats_vae_forward.1} parent=1 // pred_check_branch
      %50 = sbr.rel (0) target = $region57
    $region56: #{feats_vae_forward.1} parent=1 // pred_region
      _
    $region57: #{feats_vae_forward.1} parent=1 // pred_fallthru
      _
    // Predicated region
    $region58: #{feats_vae_forward.1} parent=1 // pred_check
      _
    $region59: #{feats_vae_forward.1} parent=1 // pred_check_branch
      %52 = sbr.rel (0) target = $region61
    $region60: #{feats_vae_forward.1} parent=1 // pred_region
      _
    $region61: #{feats_vae_forward.1} parent=1 // pred_fallthru
      _
    %v54 = vld [vmem:[%s0] sm:$0xff]
    %v55 = vpack.c.bf16 %v54, %v54
    %v56 = vld [vmem:[%s4] sm:$0xff]
    %v57 = vld [vmem:[%s4 + $0x8] sm:$0xff]
    %v58 = vld [vmem:[%s4 + $0x10] sm:$0xff]
    %v59 = vld [vmem:[%s4 + $0x18] sm:$0xff]
    %v60 = vld [vmem:[%s4 + $0x20] sm:$0xff]
    %v61 = vld [vmem:[%s4 + $0x28] sm:$0xff]
    %v62 = vld [vmem:[%s4 + $0x30] sm:$0xff]
    %v63 = vld [vmem:[%s4 + $0x38] sm:$0xff]
    %v64 = vld [vmem:[%s4 + $0x40] sm:$0xff]
    %v65 = vld [vmem:[%s4 + $0x48] sm:$0xff]
    %v66 = vld [vmem:[%s4 + $0x50] sm:$0xff]
    %v67 = vld [vmem:[%s4 + $0x58] sm:$0xff]
    %v68 = vld [vmem:[%s4 + $0x60] sm:$0xff]
    %v69 = vld [vmem:[%s4 + $0x68] sm:$0xff]
    %v70 = vld [vmem:[%s4 + $0x70] sm:$0xff]
    %v71 = vld [vmem:[%s4 + $0x78] sm:$0xff]
    %v72 = vld [vmem:[%s4 + $0x80] sm:$0xff]
    %v73 = vld [vmem:[%s4 + $0x88] sm:$0xff]
    %v74 = vld [vmem:[%s4 + $0x90] sm:$0xff]
    %v75 = vld [vmem:[%s4 + $0x98] sm:$0xff]
    %v76 = vld [vmem:[%s4 + $0xa0] sm:$0xff]
    %v77 = vld [vmem:[%s4 + $0xa8] sm:$0xff]
    %v78 = vld [vmem:[%s4 + $0xb0] sm:$0xff]
    %v79 = vld [vmem:[%s4 + $0xb8] sm:$0xff]
    %v80 = vld [vmem:[%s4 + $0xc0] sm:$0xff]
    %v81 = vld [vmem:[%s4 + $0xc8] sm:$0xff]
    %v82 = vld [vmem:[%s4 + $0xd0] sm:$0xff]
    %v83 = vld [vmem:[%s4 + $0xd8] sm:$0xff]
    %v84 = vld [vmem:[%s4 + $0xe0] sm:$0xff]
    %v85 = vld [vmem:[%s4 + $0xe8] sm:$0xff]
    %v86 = vld [vmem:[%s4 + $0xf0] sm:$0xff]
    %v87 = vld [vmem:[%s4 + $0xf8] sm:$0xff]
    %v88 = vld [vmem:[%s4 + $0x100] sm:$0xff]
    %v89 = vld [vmem:[%s4 + $0x108] sm:$0xff]
    %v90 = vld [vmem:[%s4 + $0x110] sm:$0xff]
    %v91 = vld [vmem:[%s4 + $0x118] sm:$0xff]
    %v92 = vld [vmem:[%s4 + $0x120] sm:$0xff]
    %v93 = vld [vmem:[%s4 + $0x128] sm:$0xff]
    %v94 = vld [vmem:[%s4 + $0x130] sm:$0xff]
    %v95 = vld [vmem:[%s4 + $0x138] sm:$0xff]
    %v96 = vld [vmem:[%s4 + $0x140] sm:$0xff]
    %v97 = vld [vmem:[%s4 + $0x148] sm:$0xff]
    %v98 = vld [vmem:[%s4 + $0x150] sm:$0xff]
    %v99 = vld [vmem:[%s4 + $0x158] sm:$0xff]
    %v100 = vld [vmem:[%s4 + $0x160] sm:$0xff]
    %v101 = vld [vmem:[%s4 + $0x168] sm:$0xff]
    %v102 = vld [vmem:[%s4 + $0x170] sm:$0xff]
    %v103 = vld [vmem:[%s4 + $0x178] sm:$0xff]
    %v104 = vld [vmem:[%s4 + $0x180] sm:$0xff]
    %v105 = vld [vmem:[%s4 + $0x188] sm:$0xff]
    %v106 = vld [vmem:[%s4 + $0x190] sm:$0xff]
    %v107 = vld [vmem:[%s4 + $0x198] sm:$0xff]
    %v108 = vld [vmem:[%s4 + $0x1a0] sm:$0xff]
    %v109 = vld [vmem:[%s4 + $0x1a8] sm:$0xff]
    %v110 = vld [vmem:[%s4 + $0x1b0] sm:$0xff]
    %v111 = vld [vmem:[%s4 + $0x1b8] sm:$0xff]
    %v112 = vld [vmem:[%s4 + $0x1c0] sm:$0xff]
    %v113 = vld [vmem:[%s4 + $0x1c8] sm:$0xff]
    %v114 = vld [vmem:[%s4 + $0x1d0] sm:$0xff]
    %v115 = vld [vmem:[%s4 + $0x1d8] sm:$0xff]
    %v116 = vld [vmem:[%s4 + $0x1e0] sm:$0xff]
    %v117 = vld [vmem:[%s4 + $0x1e8] sm:$0xff]
    %v118 = vld [vmem:[%s4 + $0x1f0] sm:$0xff]
    %v119 = vld [vmem:[%s4 + $0x1f8] sm:$0xff]
    %v120 = vld [vmem:[%s4 + $0x200] sm:$0xff]
    %v121 = vld [vmem:[%s4 + $0x208] sm:$0xff]
    %v122 = vld [vmem:[%s4 + $0x210] sm:$0xff]
    %v123 = vld [vmem:[%s4 + $0x218] sm:$0xff]
    %v124 = vld [vmem:[%s4 + $0x220] sm:$0xff]
    %v125 = vld [vmem:[%s4 + $0x228] sm:$0xff]
    %v126 = vld [vmem:[%s4 + $0x230] sm:$0xff]
    %v127 = vld [vmem:[%s4 + $0x238] sm:$0xff]
    %v128 = vld [vmem:[%s4 + $0x240] sm:$0xff]
    %v129 = vld [vmem:[%s4 + $0x248] sm:$0xff]
    %v130 = vld [vmem:[%s4 + $0x250] sm:$0xff]
    %v131 = vld [vmem:[%s4 + $0x258] sm:$0xff]
    %v132 = vld [vmem:[%s4 + $0x260] sm:$0xff]
    %v133 = vld [vmem:[%s4 + $0x268] sm:$0xff]
    %v134 = vld [vmem:[%s4 + $0x270] sm:$0xff]
    %v135 = vld [vmem:[%s4 + $0x278] sm:$0xff]
    %v136 = vld [vmem:[%s4 + $0x280] sm:$0xff]
    %v137 = vld [vmem:[%s4 + $0x288] sm:$0xff]
    %v138 = vld [vmem:[%s4 + $0x290] sm:$0xff]
    %v139 = vld [vmem:[%s4 + $0x298] sm:$0xff]
    %v140 = vld [vmem:[%s4 + $0x2a0] sm:$0xff]
    %v141 = vld [vmem:[%s4 + $0x2a8] sm:$0xff]
    %v142 = vld [vmem:[%s4 + $0x2b0] sm:$0xff]
    %v143 = vld [vmem:[%s4 + $0x2b8] sm:$0xff]
    %v144 = vld [vmem:[%s4 + $0x2c0] sm:$0xff]
    %v145 = vld [vmem:[%s4 + $0x2c8] sm:$0xff]
    %v146 = vld [vmem:[%s4 + $0x2d0] sm:$0xff]
    %v147 = vld [vmem:[%s4 + $0x2d8] sm:$0xff]
    %v148 = vld [vmem:[%s4 + $0x2e0] sm:$0xff]
    %v149 = vld [vmem:[%s4 + $0x2e8] sm:$0xff]
    %v150 = vld [vmem:[%s4 + $0x2f0] sm:$0xff]
    %v151 = vld [vmem:[%s4 + $0x2f8] sm:$0xff]
    %v152 = vld [vmem:[%s4 + $0x300] sm:$0xff]
    %v153 = vld [vmem:[%s4 + $0x308] sm:$0xff]
    %v154 = vld [vmem:[%s4 + $0x310] sm:$0xff]
    %v155 = vld [vmem:[%s4 + $0x318] sm:$0xff]
    %v156 = vld [vmem:[%s4 + $0x320] sm:$0xff]
    %v157 = vld [vmem:[%s4 + $0x328] sm:$0xff]
    %v158 = vld [vmem:[%s4 + $0x330] sm:$0xff]
    %v159 = vld [vmem:[%s4 + $0x338] sm:$0xff]
    %v160 = vld [vmem:[%s4 + $0x340] sm:$0xff]
    %v161 = vld [vmem:[%s4 + $0x348] sm:$0xff]
    %v162 = vld [vmem:[%s4 + $0x350] sm:$0xff]
    %v163 = vld [vmem:[%s4 + $0x358] sm:$0xff]
    %v164 = vld [vmem:[%s4 + $0x360] sm:$0xff]
    %v165 = vld [vmem:[%s4 + $0x368] sm:$0xff]
    %v166 = vld [vmem:[%s4 + $0x370] sm:$0xff]
    %v167 = vld [vmem:[%s4 + $0x378] sm:$0xff]
    %v168 = vld [vmem:[%s4 + $0x380] sm:$0xff]
    %v169 = vld [vmem:[%s4 + $0x388] sm:$0xff]
    %v170 = vld [vmem:[%s4 + $0x390] sm:$0xff]
    %v171 = vld [vmem:[%s4 + $0x398] sm:$0xff]
    %v172 = vld [vmem:[%s4 + $0x3a0] sm:$0xff]
    %v173 = vld [vmem:[%s4 + $0x3a8] sm:$0xff]
    %v174 = vld [vmem:[%s4 + $0x3b0] sm:$0xff]
    %v175 = vld [vmem:[%s4 + $0x3b8] sm:$0xff]
    %v176 = vld [vmem:[%s4 + $0x3c0] sm:$0xff]
    %v177 = vld [vmem:[%s4 + $0x3c8] sm:$0xff]
    %v178 = vld [vmem:[%s4 + $0x3d0] sm:$0xff]
    %v179 = vld [vmem:[%s4 + $0x3d8] sm:$0xff]
    %v180 = vld [vmem:[%s4 + $0x3e0] sm:$0xff]
    %v181 = vld [vmem:[%s4 + $0x3e8] sm:$0xff]
    %v182 = vld [vmem:[%s4 + $0x3f0] sm:$0xff]
    %v183 = vld [vmem:[%s4 + $0x3f8] sm:$0xff]
    %v184 = vld [vmem:[%s1] sm:$0xff]
    %v185 = vpack.c.bf16 %v184, %v184
    %v186 = vld [vmem:[%s5] sm:$0xff]
    %v187 = vld [vmem:[%s5 + $0x8] sm:$0xff]
    %v188 = vld [vmem:[%s5 + $0x10] sm:$0xff]
    %v189 = vld [vmem:[%s5 + $0x18] sm:$0xff]
    %v190 = vld [vmem:[%s5 + $0x20] sm:$0xff]
    %v191 = vld [vmem:[%s5 + $0x28] sm:$0xff]
    %v192 = vld [vmem:[%s5 + $0x30] sm:$0xff]
    %v193 = vld [vmem:[%s5 + $0x38] sm:$0xff]
    %v194 = vld [vmem:[%s5 + $0x40] sm:$0xff]
    %v195 = vld [vmem:[%s5 + $0x48] sm:$0xff]
    %v196 = vld [vmem:[%s5 + $0x50] sm:$0xff]
    %v197 = vld [vmem:[%s5 + $0x58] sm:$0xff]
    %v198 = vld [vmem:[%s5 + $0x60] sm:$0xff]
    %v199 = vld [vmem:[%s5 + $0x68] sm:$0xff]
    %v200 = vld [vmem:[%s5 + $0x70] sm:$0xff]
    %v201 = vld [vmem:[%s5 + $0x78] sm:$0xff]
    %v202 = vld [vmem:[%s5 + $0x80] sm:$0xff]
    %v203 = vld [vmem:[%s5 + $0x88] sm:$0xff]
    %v204 = vld [vmem:[%s5 + $0x90] sm:$0xff]
    %v205 = vld [vmem:[%s5 + $0x98] sm:$0xff]
    %v206 = vld [vmem:[%s5 + $0xa0] sm:$0xff]
    %v207 = vld [vmem:[%s5 + $0xa8] sm:$0xff]
    %v208 = vld [vmem:[%s5 + $0xb0] sm:$0xff]
    %v209 = vld [vmem:[%s5 + $0xb8] sm:$0xff]
    %v210 = vld [vmem:[%s5 + $0xc0] sm:$0xff]
    %v211 = vld [vmem:[%s5 + $0xc8] sm:$0xff]
    %v212 = vld [vmem:[%s5 + $0xd0] sm:$0xff]
    %v213 = vld [vmem:[%s5 + $0xd8] sm:$0xff]
    %v214 = vld [vmem:[%s5 + $0xe0] sm:$0xff]
    %v215 = vld [vmem:[%s5 + $0xe8] sm:$0xff]
    %v216 = vld [vmem:[%s5 + $0xf0] sm:$0xff]
    %v217 = vld [vmem:[%s5 + $0xf8] sm:$0xff]
    %v218 = vld [vmem:[%s5 + $0x100] sm:$0xff]
    %v219 = vld [vmem:[%s5 + $0x108] sm:$0xff]
    %v220 = vld [vmem:[%s5 + $0x110] sm:$0xff]
    %v221 = vld [vmem:[%s5 + $0x118] sm:$0xff]
    %v222 = vld [vmem:[%s5 + $0x120] sm:$0xff]
    %v223 = vld [vmem:[%s5 + $0x128] sm:$0xff]
    %v224 = vld [vmem:[%s5 + $0x130] sm:$0xff]
    %v225 = vld [vmem:[%s5 + $0x138] sm:$0xff]
    %v226 = vld [vmem:[%s5 + $0x140] sm:$0xff]
    %v227 = vld [vmem:[%s5 + $0x148] sm:$0xff]
    %v228 = vld [vmem:[%s5 + $0x150] sm:$0xff]
    %v229 = vld [vmem:[%s5 + $0x158] sm:$0xff]
    %v230 = vld [vmem:[%s5 + $0x160] sm:$0xff]
    %v231 = vld [vmem:[%s5 + $0x168] sm:$0xff]
    %v232 = vld [vmem:[%s5 + $0x170] sm:$0xff]
    %v233 = vld [vmem:[%s5 + $0x178] sm:$0xff]
    %v234 = vld [vmem:[%s5 + $0x180] sm:$0xff]
    %v235 = vld [vmem:[%s5 + $0x188] sm:$0xff]
    %v236 = vld [vmem:[%s5 + $0x190] sm:$0xff]
    %v237 = vld [vmem:[%s5 + $0x198] sm:$0xff]
    %v238 = vld [vmem:[%s5 + $0x1a0] sm:$0xff]
    %v239 = vld [vmem:[%s5 + $0x1a8] sm:$0xff]
    %v240 = vld [vmem:[%s5 + $0x1b0] sm:$0xff]
    %v241 = vld [vmem:[%s5 + $0x1b8] sm:$0xff]
    %v242 = vld [vmem:[%s5 + $0x1c0] sm:$0xff]
    %v243 = vld [vmem:[%s5 + $0x1c8] sm:$0xff]
    %v244 = vld [vmem:[%s5 + $0x1d0] sm:$0xff]
    %v245 = vld [vmem:[%s5 + $0x1d8] sm:$0xff]
    %v246 = vld [vmem:[%s5 + $0x1e0] sm:$0xff]
    %v247 = vld [vmem:[%s5 + $0x1e8] sm:$0xff]
    %v248 = vld [vmem:[%s5 + $0x1f0] sm:$0xff]
    %v249 = vld [vmem:[%s5 + $0x1f8] sm:$0xff]
    %v314 = vunpack.c.l.b16 %v186
    %v315 = vunpack.c.h.b16 %v186
    %v316 = vunpack.c.l.b16 %v187
    %v317 = vunpack.c.h.b16 %v187
    %v318 = vunpack.c.l.b16 %v188
    %v319 = vunpack.c.h.b16 %v188
    %v320 = vunpack.c.l.b16 %v189
    %v321 = vunpack.c.h.b16 %v189
    %v322 = vunpack.c.l.b16 %v190
    %v323 = vunpack.c.h.b16 %v190
    %v324 = vunpack.c.l.b16 %v191
    %v325 = vunpack.c.h.b16 %v191
    %v326 = vunpack.c.l.b16 %v192
    %v327 = vunpack.c.h.b16 %v192
    %v328 = vunpack.c.l.b16 %v193
    %v329 = vunpack.c.h.b16 %v193
    %v330 = vunpack.c.l.b16 %v194
    %v331 = vunpack.c.h.b16 %v194
    %v332 = vunpack.c.l.b16 %v195
    %v333 = vunpack.c.h.b16 %v195
    %v334 = vunpack.c.l.b16 %v196
    %v335 = vunpack.c.h.b16 %v196
    %v336 = vunpack.c.l.b16 %v197
    %v337 = vunpack.c.h.b16 %v197
    %v338 = vunpack.c.l.b16 %v198
    %v339 = vunpack.c.h.b16 %v198
    %v340 = vunpack.c.l.b16 %v199
    %v341 = vunpack.c.h.b16 %v199
    %v342 = vunpack.c.l.b16 %v200
    %v343 = vunpack.c.h.b16 %v200
    %v344 = vunpack.c.l.b16 %v201
    %v345 = vunpack.c.h.b16 %v201
    %v346 = vunpack.c.l.b16 %v202
    %v347 = vunpack.c.h.b16 %v202
    %v348 = vunpack.c.l.b16 %v203
    %v349 = vunpack.c.h.b16 %v203
    %v350 = vunpack.c.l.b16 %v204
    %v351 = vunpack.c.h.b16 %v204
    %v352 = vunpack.c.l.b16 %v205
    %v353 = vunpack.c.h.b16 %v205
    %v354 = vunpack.c.l.b16 %v206
    %v355 = vunpack.c.h.b16 %v206
    %v356 = vunpack.c.l.b16 %v207
    %v357 = vunpack.c.h.b16 %v207
    %v358 = vunpack.c.l.b16 %v208
    %v359 = vunpack.c.h.b16 %v208
    %v360 = vunpack.c.l.b16 %v209
    %v361 = vunpack.c.h.b16 %v209
    %v362 = vunpack.c.l.b16 %v210
    %v363 = vunpack.c.h.b16 %v210
    %v364 = vunpack.c.l.b16 %v211
    %v365 = vunpack.c.h.b16 %v211
    %v366 = vunpack.c.l.b16 %v212
    %v367 = vunpack.c.h.b16 %v212
    %v368 = vunpack.c.l.b16 %v213
    %v369 = vunpack.c.h.b16 %v213
    %v370 = vunpack.c.l.b16 %v214
    %v371 = vunpack.c.h.b16 %v214
    %v372 = vunpack.c.l.b16 %v215
    %v373 = vunpack.c.h.b16 %v215
    %v374 = vunpack.c.l.b16 %v216
    %v375 = vunpack.c.h.b16 %v216
    %v376 = vunpack.c.l.b16 %v217
    %v377 = vunpack.c.h.b16 %v217
    %v378 = vunpack.c.l.b16 %v218
    %v379 = vunpack.c.h.b16 %v218
    %v380 = vunpack.c.l.b16 %v219
    %v381 = vunpack.c.h.b16 %v219
    %v382 = vunpack.c.l.b16 %v220
    %v383 = vunpack.c.h.b16 %v220
    %v384 = vunpack.c.l.b16 %v221
    %v385 = vunpack.c.h.b16 %v221
    %v386 = vunpack.c.l.b16 %v222
    %v387 = vunpack.c.h.b16 %v222
    %v388 = vunpack.c.l.b16 %v223
    %v389 = vunpack.c.h.b16 %v223
    %v390 = vunpack.c.l.b16 %v224
    %v391 = vunpack.c.h.b16 %v224
    %v392 = vunpack.c.l.b16 %v225
    %v393 = vunpack.c.h.b16 %v225
    %v394 = vunpack.c.l.b16 %v226
    %v395 = vunpack.c.h.b16 %v226
    %v396 = vunpack.c.l.b16 %v227
    %v397 = vunpack.c.h.b16 %v227
    %v398 = vunpack.c.l.b16 %v228
    %v399 = vunpack.c.h.b16 %v228
    %v400 = vunpack.c.l.b16 %v229
    %v401 = vunpack.c.h.b16 %v229
    %v402 = vunpack.c.l.b16 %v230
    %v403 = vunpack.c.h.b16 %v230
    %v404 = vunpack.c.l.b16 %v231
    %v405 = vunpack.c.h.b16 %v231
    %v406 = vunpack.c.l.b16 %v232
    %v407 = vunpack.c.h.b16 %v232
    %v408 = vunpack.c.l.b16 %v233
    %v409 = vunpack.c.h.b16 %v233
    %v410 = vunpack.c.l.b16 %v234
    %v411 = vunpack.c.h.b16 %v234
    %v412 = vunpack.c.l.b16 %v235
    %v413 = vunpack.c.h.b16 %v235
    %v414 = vunpack.c.l.b16 %v236
    %v415 = vunpack.c.h.b16 %v236
    %v416 = vunpack.c.l.b16 %v237
    %v417 = vunpack.c.h.b16 %v237
    %v418 = vunpack.c.l.b16 %v238
    %v419 = vunpack.c.h.b16 %v238
    %v420 = vunpack.c.l.b16 %v239
    %v421 = vunpack.c.h.b16 %v239
    %v422 = vunpack.c.l.b16 %v240
    %v423 = vunpack.c.h.b16 %v240
    %v424 = vunpack.c.l.b16 %v241
    %v425 = vunpack.c.h.b16 %v241
    %v426 = vunpack.c.l.b16 %v242
    %v427 = vunpack.c.h.b16 %v242
    %v428 = vunpack.c.l.b16 %v243
    %v429 = vunpack.c.h.b16 %v243
    %v430 = vunpack.c.l.b16 %v244
    %v431 = vunpack.c.h.b16 %v244
    %v432 = vunpack.c.l.b16 %v245
    %v433 = vunpack.c.h.b16 %v245
    %v434 = vunpack.c.l.b16 %v246
    %v435 = vunpack.c.h.b16 %v246
    %v436 = vunpack.c.l.b16 %v247
    %v437 = vunpack.c.h.b16 %v247
    %v438 = vunpack.c.l.b16 %v248
    %v439 = vunpack.c.h.b16 %v248
    %v440 = vunpack.c.l.b16 %v249
    %v441 = vunpack.c.h.b16 %v249
    %v442 = vpack.c.b16 %v346, %v314
    %v443 = vpack.c.b16 %v347, %v315
    %v444 = vpack.c.b16 %v348, %v316
    %v445 = vpack.c.b16 %v349, %v317
    %v446 = vpack.c.b16 %v350, %v318
    %v447 = vpack.c.b16 %v351, %v319
    %v448 = vpack.c.b16 %v352, %v320
    %v449 = vpack.c.b16 %v353, %v321
    %v450 = vpack.c.b16 %v354, %v322
    %v451 = vpack.c.b16 %v355, %v323
    %v452 = vpack.c.b16 %v356, %v324
    %v453 = vpack.c.b16 %v357, %v325
    %v454 = vpack.c.b16 %v358, %v326
    %v455 = vpack.c.b16 %v359, %v327
    %v456 = vpack.c.b16 %v360, %v328
    %v457 = vpack.c.b16 %v361, %v329
    %v458 = vpack.c.b16 %v362, %v330
    %v459 = vpack.c.b16 %v363, %v331
    %v460 = vpack.c.b16 %v364, %v332
    %v461 = vpack.c.b16 %v365, %v333
    %v462 = vpack.c.b16 %v366, %v334
    %v463 = vpack.c.b16 %v367, %v335
    %v464 = vpack.c.b16 %v368, %v336
    %v465 = vpack.c.b16 %v369, %v337
    %v466 = vpack.c.b16 %v370, %v338
    %v467 = vpack.c.b16 %v371, %v339
    %v468 = vpack.c.b16 %v372, %v340
    %v469 = vpack.c.b16 %v373, %v341
    %v470 = vpack.c.b16 %v374, %v342
    %v471 = vpack.c.b16 %v375, %v343
    %v472 = vpack.c.b16 %v376, %v344
    %v473 = vpack.c.b16 %v377, %v345
    %v474 = vpack.c.b16 %v410, %v378
    %v475 = vpack.c.b16 %v411, %v379
    %v476 = vpack.c.b16 %v412, %v380
    %v477 = vpack.c.b16 %v413, %v381
    %v478 = vpack.c.b16 %v414, %v382
    %v479 = vpack.c.b16 %v415, %v383
    %v480 = vpack.c.b16 %v416, %v384
    %v481 = vpack.c.b16 %v417, %v385
    %v482 = vpack.c.b16 %v418, %v386
    %v483 = vpack.c.b16 %v419, %v387
    %v484 = vpack.c.b16 %v420, %v388
    %v485 = vpack.c.b16 %v421, %v389
    %v486 = vpack.c.b16 %v422, %v390
    %v487 = vpack.c.b16 %v423, %v391
    %v488 = vpack.c.b16 %v424, %v392
    %v489 = vpack.c.b16 %v425, %v393
    %v490 = vpack.c.b16 %v426, %v394
    %v491 = vpack.c.b16 %v427, %v395
    %v492 = vpack.c.b16 %v428, %v396
    %v493 = vpack.c.b16 %v429, %v397
    %v494 = vpack.c.b16 %v430, %v398
    %v495 = vpack.c.b16 %v431, %v399
    %v496 = vpack.c.b16 %v432, %v400
    %v497 = vpack.c.b16 %v433, %v401
    %v498 = vpack.c.b16 %v434, %v402
    %v499 = vpack.c.b16 %v435, %v403
    %v500 = vpack.c.b16 %v436, %v404
    %v501 = vpack.c.b16 %v437, %v405
    %v502 = vpack.c.b16 %v438, %v406
    %v503 = vpack.c.b16 %v439, %v407
    %v504 = vpack.c.b16 %v440, %v408
    %v505 = vpack.c.b16 %v441, %v409
    %vm570 = vcmask 261120
    %v572 = vsel %vm570, %v185, 0
    %574 = vmatprep.subr.bf16.mxu0 %v443
    %575 = vmatpush1.bf16.msra.mxu0 %v442
    %576 = vmatprep.subr.bf16.mxu0 %v475
    %577 = vmatpush1.bf16.msra.mxu0 %v474
    %578 = vmatprep.subr.bf16.mxu0 0
    %579 = vmatpush1.bf16.msra.mxu0 0
    %580 = vmatprep.subr.bf16.mxu0 0
    %581 = vmatpush1.bf16.msra.mxu0 0
    %582 = vmatprep.subr.bf16.mxu0 0
    %583 = vmatpush1.bf16.msra.mxu0 0
    %584 = vmatprep.subr.bf16.mxu0 0
    %585 = vmatpush1.bf16.msra.mxu0 0
    %586 = vmatprep.subr.bf16.mxu0 0
    %587 = vmatpush1.bf16.msra.mxu0 0
    %588 = vmatprep.subr.bf16.mxu0 0
    %589 = vmatpush1.bf16.msra.mxu0 0
    %590 = vmatprep.subr.bf16.mxu0 0
    %591 = vmatpush1.bf16.msra.mxu0 0
    %592 = vmatprep.subr.bf16.mxu0 0
    %593 = vmatpush1.bf16.msra.mxu0 0
    %594 = vmatprep.subr.bf16.mxu0 0
    %595 = vmatpush1.bf16.msra.mxu0 0
    %596 = vmatprep.subr.bf16.mxu0 0
    %597 = vmatpush1.bf16.msra.mxu0 0
    %598 = vmatprep.subr.bf16.mxu0 0
    %599 = vmatpush1.bf16.msra.mxu0 0
    %600 = vmatprep.subr.bf16.mxu0 0
    %601 = vmatpush1.bf16.msra.mxu0 0
    %602 = vmatprep.subr.bf16.mxu0 0
    %603 = vmatpush1.bf16.msra.mxu0 0
    %604 = vmatprep.subr.bf16.mxu0 0
    %605 = vmatpush1.bf16.msra.mxu0 0
    %606 = vmatprep.mubr.bf16.mxu0 0
    %607 = vmatmul.mubr.bf16.gmra.mrb[0].mxu0 %v572
    %v608 = vpop.f32.mrb[0].mxu0
    %v609 = vadd.f32 0.0, %v608
    %v610 = vpop.f32.mrb[0].mxu0
    %v611 = vadd.f32 0.0, %v610
    %v612 = vpop.f32.mrb[0].mxu0
    %v613 = vpop.f32.mrb[0].mxu0
    %614 = vdwg.mxu0
    %615 = vmatprep.subr.bf16.mxu0 %v445
    %616 = vmatpush1.bf16.msra.mxu0 %v444
    %617 = vmatprep.subr.bf16.mxu0 %v477
    %618 = vmatpush1.bf16.msra.mxu0 %v476
    %619 = vmatprep.subr.bf16.mxu0 0
    %620 = vmatpush1.bf16.msra.mxu0 0
    %621 = vmatprep.subr.bf16.mxu0 0
    %622 = vmatpush1.bf16.msra.mxu0 0
    %623 = vmatprep.subr.bf16.mxu0 0
    %624 = vmatpush1.bf16.msra.mxu0 0
    %625 = vmatprep.subr.bf16.mxu0 0
    %626 = vmatpush1.bf16.msra.mxu0 0
    %627 = vmatprep.subr.bf16.mxu0 0
    %628 = vmatpush1.bf16.msra.mxu0 0
    %629 = vmatprep.subr.bf16.mxu0 0
    %630 = vmatpush1.bf16.msra.mxu0 0
    %631 = vmatprep.subr.bf16.mxu0 0
    %632 = vmatpush1.bf16.msra.mxu0 0
    %633 = vmatprep.subr.bf16.mxu0 0
    %634 = vmatpush1.bf16.msra.mxu0 0
    %635 = vmatprep.subr.bf16.mxu0 0
    %636 = vmatpush1.bf16.msra.mxu0 0
    %637 = vmatprep.subr.bf16.mxu0 0
    %638 = vmatpush1.bf16.msra.mxu0 0
    %639 = vmatprep.subr.bf16.mxu0 0
    %640 = vmatpush1.bf16.msra.mxu0 0
    %641 = vmatprep.subr.bf16.mxu0 0
    %642 = vmatpush1.bf16.msra.mxu0 0
    %643 = vmatprep.subr.bf16.mxu0 0
    %644 = vmatpush1.bf16.msra.mxu0 0
    %645 = vmatprep.subr.bf16.mxu0 0
    %646 = vmatpush1.bf16.msra.mxu0 0
    %647 = vmatprep.mubr.bf16.mxu0 0
    %648 = vmatmul.mubr.bf16.gmra.mrb[0].mxu0 %v572
    %v649 = vpop.f32.mrb[0].mxu0
    %v650 = vadd.f32 0.0, %v649
    %v651 = vpop.f32.mrb[0].mxu0
    %v652 = vadd.f32 0.0, %v651
    %v653 = vpop.f32.mrb[0].mxu0
    %v654 = vpop.f32.mrb[0].mxu0
    %655 = vdwg.mxu0
    %656 = vmatprep.subr.bf16.mxu0 %v447
    %657 = vmatpush1.bf16.msra.mxu0 %v446
    %658 = vmatprep.subr.bf16.mxu0 %v479
    %659 = vmatpush1.bf16.msra.mxu0 %v478
    %660 = vmatprep.subr.bf16.mxu0 0
    %661 = vmatpush1.bf16.msra.mxu0 0
    %662 = vmatprep.subr.bf16.mxu0 0
    %663 = vmatpush1.bf16.msra.mxu0 0
    %664 = vmatprep.subr.bf16.mxu0 0
    %665 = vmatpush1.bf16.msra.mxu0 0
    %666 = vmatprep.subr.bf16.mxu0 0
    %667 = vmatpush1.bf16.msra.mxu0 0
    %668 = vmatprep.subr.bf16.mxu0 0
    %669 = vmatpush1.bf16.msra.mxu0 0
    %670 = vmatprep.subr.bf16.mxu0 0
    %671 = vmatpush1.bf16.msra.mxu0 0
    %672 = vmatprep.subr.bf16.mxu0 0
    %673 = vmatpush1.bf16.msra.mxu0 0
    %674 = vmatprep.subr.bf16.mxu0 0
    %675 = vmatpush1.bf16.msra.mxu0 0
    %676 = vmatprep.subr.bf16.mxu0 0
    %677 = vmatpush1.bf16.msra.mxu0 0
    %678 = vmatprep.subr.bf16.mxu0 0
    %679 = vmatpush1.bf16.msra.mxu0 0
    %680 = vmatprep.subr.bf16.mxu0 0
    %681 = vmatpush1.bf16.msra.mxu0 0
    %682 = vmatprep.subr.bf16.mxu0 0
    %683 = vmatpush1.bf16.msra.mxu0 0
    %684 = vmatprep.subr.bf16.mxu0 0
    %685 = vmatpush1.bf16.msra.mxu0 0
    %686 = vmatprep.subr.bf16.mxu0 0
    %687 = vmatpush1.bf16.msra.mxu0 0
    %688 = vmatprep.mubr.bf16.mxu0 0
    %689 = vmatmul.mubr.bf16.gmra.mrb[0].mxu0 %v572
    %v690 = vpop.f32.mrb[0].mxu0
    %v691 = vadd.f32 0.0, %v690
    %v692 = vpop.f32.mrb[0].mxu0
    %v693 = vadd.f32 0.0, %v692
    %v694 = vpop.f32.mrb[0].mxu0
    %v695 = vpop.f32.mrb[0].mxu0
    %696 = vdwg.mxu0
    %697 = vmatprep.subr.bf16.mxu0 %v449
    %698 = vmatpush1.bf16.msra.mxu0 %v448
    %699 = vmatprep.subr.bf16.mxu0 %v481
    %700 = vmatpush1.bf16.msra.mxu0 %v480
    %701 = vmatprep.subr.bf16.mxu0 0
    %702 = vmatpush1.bf16.msra.mxu0 0
    %703 = vmatprep.subr.bf16.mxu0 0
    %704 = vmatpush1.bf16.msra.mxu0 0
    %705 = vmatprep.subr.bf16.mxu0 0
    %706 = vmatpush1.bf16.msra.mxu0 0
    %707 = vmatprep.subr.bf16.mxu0 0
    %708 = vmatpush1.bf16.msra.mxu0 0
    %709 = vmatprep.subr.bf16.mxu0 0
    %710 = vmatpush1.bf16.msra.mxu0 0
    %711 = vmatprep.subr.bf16.mxu0 0
    %712 = vmatpush1.bf16.msra.mxu0 0
    %713 = vmatprep.subr.bf16.mxu0 0
    %714 = vmatpush1.bf16.msra.mxu0 0
    %715 = vmatprep.subr.bf16.mxu0 0
    %716 = vmatpush1.bf16.msra.mxu0 0
    %717 = vmatprep.subr.bf16.mxu0 0
    %718 = vmatpush1.bf16.msra.mxu0 0
    %719 = vmatprep.subr.bf16.mxu0 0
    %720 = vmatpush1.bf16.msra.mxu0 0
    %721 = vmatprep.subr.bf16.mxu0 0
    %722 = vmatpush1.bf16.msra.mxu0 0
    %723 = vmatprep.subr.bf16.mxu0 0
    %724 = vmatpush1.bf16.msra.mxu0 0
    %725 = vmatprep.subr.bf16.mxu0 0
    %726 = vmatpush1.bf16.msra.mxu0 0
    %727 = vmatprep.subr.bf16.mxu0 0
    %728 = vmatpush1.bf16.msra.mxu0 0
    %729 = vmatprep.mubr.bf16.mxu0 0
    %730 = vmatmul.mubr.bf16.gmra.mrb[0].mxu0 %v572
    %v731 = vpop.f32.mrb[0].mxu0
    %v732 = vadd.f32 0.0, %v731
    %v733 = vpop.f32.mrb[0].mxu0
    %v734 = vadd.f32 0.0, %v733
    %v735 = vpop.f32.mrb[0].mxu0
    %v736 = vpop.f32.mrb[0].mxu0
    %737 = vdwg.mxu0
    %738 = vmatprep.subr.bf16.mxu0 %v451
    %739 = vmatpush1.bf16.msra.mxu0 %v450
    %740 = vmatprep.subr.bf16.mxu0 %v483
    %741 = vmatpush1.bf16.msra.mxu0 %v482
    %742 = vmatprep.subr.bf16.mxu0 0
    %743 = vmatpush1.bf16.msra.mxu0 0
    %744 = vmatprep.subr.bf16.mxu0 0
    %745 = vmatpush1.bf16.msra.mxu0 0
    %746 = vmatprep.subr.bf16.mxu0 0
    %747 = vmatpush1.bf16.msra.mxu0 0
    %748 = vmatprep.subr.bf16.mxu0 0
    %749 = vmatpush1.bf16.msra.mxu0 0
    %750 = vmatprep.subr.bf16.mxu0 0
    %751 = vmatpush1.bf16.msra.mxu0 0
    %752 = vmatprep.subr.bf16.mxu0 0
    %753 = vmatpush1.bf16.msra.mxu0 0
    %754 = vmatprep.subr.bf16.mxu0 0
    %755 = vmatpush1.bf16.msra.mxu0 0
    %756 = vmatprep.subr.bf16.mxu0 0
    %757 = vmatpush1.bf16.msra.mxu0 0
    %758 = vmatprep.subr.bf16.mxu0 0
    %759 = vmatpush1.bf16.msra.mxu0 0
    %760 = vmatprep.subr.bf16.mxu0 0
    %761 = vmatpush1.bf16.msra.mxu0 0
    %762 = vmatprep.subr.bf16.mxu0 0
    %763 = vmatpush1.bf16.msra.mxu0 0
    %764 = vmatprep.subr.bf16.mxu0 0
    %765 = vmatpush1.bf16.msra.mxu0 0
    %766 = vmatprep.subr.bf16.mxu0 0
    %767 = vmatpush1.bf16.msra.mxu0 0
    %768 = vmatprep.subr.bf16.mxu0 0
    %769 = vmatpush1.bf16.msra.mxu0 0
    %770 = vmatprep.mubr.bf16.mxu0 0
    %771 = vmatmul.mubr.bf16.gmra.mrb[0].mxu0 %v572
    %v772 = vpop.f32.mrb[0].mxu0
    %v773 = vadd.f32 0.0, %v772
    %v774 = vpop.f32.mrb[0].mxu0
    %v775 = vadd.f32 0.0, %v774
    %v776 = vpop.f32.mrb[0].mxu0
    %v777 = vpop.f32.mrb[0].mxu0
    %778 = vdwg.mxu0
    %779 = vmatprep.subr.bf16.mxu0 %v453
    %780 = vmatpush1.bf16.msra.mxu0 %v452
    %781 = vmatprep.subr.bf16.mxu0 %v485
    %782 = vmatpush1.bf16.msra.mxu0 %v484
    %783 = vmatprep.subr.bf16.mxu0 0
    %784 = vmatpush1.bf16.msra.mxu0 0
    %785 = vmatprep.subr.bf16.mxu0 0
    %786 = vmatpush1.bf16.msra.mxu0 0
    %787 = vmatprep.subr.bf16.mxu0 0
    %788 = vmatpush1.bf16.msra.mxu0 0
    %789 = vmatprep.subr.bf16.mxu0 0
    %790 = vmatpush1.bf16.msra.mxu0 0
    %791 = vmatprep.subr.bf16.mxu0 0
    %792 = vmatpush1.bf16.msra.mxu0 0
    %793 = vmatprep.subr.bf16.mxu0 0
    %794 = vmatpush1.bf16.msra.mxu0 0
    %795 = vmatprep.subr.bf16.mxu0 0
    %796 = vmatpush1.bf16.msra.mxu0 0
    %797 = vmatprep.subr.bf16.mxu0 0
    %798 = vmatpush1.bf16.msra.mxu0 0
    %799 = vmatprep.subr.bf16.mxu0 0
    %800 = vmatpush1.bf16.msra.mxu0 0
    %801 = vmatprep.subr.bf16.mxu0 0
    %802 = vmatpush1.bf16.msra.mxu0 0
    %803 = vmatprep.subr.bf16.mxu0 0
    %804 = vmatpush1.bf16.msra.mxu0 0
    %805 = vmatprep.subr.bf16.mxu0 0
    %806 = vmatpush1.bf16.msra.mxu0 0
    %807 = vmatprep.subr.bf16.mxu0 0
    %808 = vmatpush1.bf16.msra.mxu0 0
    %809 = vmatprep.subr.bf16.mxu0 0
    %810 = vmatpush1.bf16.msra.mxu0 0
    %811 = vmatprep.mubr.bf16.mxu0 0
    %812 = vmatmul.mubr.bf16.gmra.mrb[0].mxu0 %v572
    %v813 = vpop.f32.mrb[0].mxu0
    %v814 = vadd.f32 0.0, %v813
    %v815 = vpop.f32.mrb[0].mxu0
    %v816 = vadd.f32 0.0, %v815
    %v817 = vpop.f32.mrb[0].mxu0
    %v818 = vpop.f32.mrb[0].mxu0
    %819 = vdwg.mxu0
    %820 = vmatprep.subr.bf16.mxu0 %v455
    %821 = vmatpush1.bf16.msra.mxu0 %v454
    %822 = vmatprep.subr.bf16.mxu0 %v487
    %823 = vmatpush1.bf16.msra.mxu0 %v486
    %824 = vmatprep.subr.bf16.mxu0 0
    %825 = vmatpush1.bf16.msra.mxu0 0
    %826 = vmatprep.subr.bf16.mxu0 0
    %827 = vmatpush1.bf16.msra.mxu0 0
    %828 = vmatprep.subr.bf16.mxu0 0
    %829 = vmatpush1.bf16.msra.mxu0 0
    %830 = vmatprep.subr.bf16.mxu0 0
    %831 = vmatpush1.bf16.msra.mxu0 0
    %832 = vmatprep.subr.bf16.mxu0 0
    %833 = vmatpush1.bf16.msra.mxu0 0
    %834 = vmatprep.subr.bf16.mxu0 0
    %835 = vmatpush1.bf16.msra.mxu0 0
    %836 = vmatprep.subr.bf16.mxu0 0
    %837 = vmatpush1.bf16.msra.mxu0 0
    %838 = vmatprep.subr.bf16.mxu0 0
    %839 = vmatpush1.bf16.msra.mxu0 0
    %840 = vmatprep.subr.bf16.mxu0 0
    %841 = vmatpush1.bf16.msra.mxu0 0
    %842 = vmatprep.subr.bf16.mxu0 0
    %843 = vmatpush1.bf16.msra.mxu0 0
    %844 = vmatprep.subr.bf16.mxu0 0
    %845 = vmatpush1.bf16.msra.mxu0 0
    %846 = vmatprep.subr.bf16.mxu0 0
    %847 = vmatpush1.bf16.msra.mxu0 0
    %848 = vmatprep.subr.bf16.mxu0 0
    %849 = vmatpush1.bf16.msra.mxu0 0
    %850 = vmatprep.subr.bf16.mxu0 0
    %851 = vmatpush1.bf16.msra.mxu0 0
    %852 = vmatprep.mubr.bf16.mxu0 0
    %853 = vmatmul.mubr.bf16.gmra.mrb[0].mxu0 %v572
    %v854 = vpop.f32.mrb[0].mxu0
    %v855 = vadd.f32 0.0, %v854
    %v856 = vpop.f32.mrb[0].mxu0
    %v857 = vadd.f32 0.0, %v856
    %v858 = vpop.f32.mrb[0].mxu0
    %v859 = vpop.f32.mrb[0].mxu0
    %860 = vdwg.mxu0
    %861 = vmatprep.subr.bf16.mxu0 %v457
    %862 = vmatpush1.bf16.msra.mxu0 %v456
    %863 = vmatprep.subr.bf16.mxu0 %v489
    %864 = vmatpush1.bf16.msra.mxu0 %v488
    %865 = vmatprep.subr.bf16.mxu0 0
    %866 = vmatpush1.bf16.msra.mxu0 0
    %867 = vmatprep.subr.bf16.mxu0 0
    %868 = vmatpush1.bf16.msra.mxu0 0
    %869 = vmatprep.subr.bf16.mxu0 0
    %870 = vmatpush1.bf16.msra.mxu0 0
    %871 = vmatprep.subr.bf16.mxu0 0
    %872 = vmatpush1.bf16.msra.mxu0 0
    %873 = vmatprep.subr.bf16.mxu0 0
    %874 = vmatpush1.bf16.msra.mxu0 0
    %875 = vmatprep.subr.bf16.mxu0 0
    %876 = vmatpush1.bf16.msra.mxu0 0
    %877 = vmatprep.subr.bf16.mxu0 0
    %878 = vmatpush1.bf16.msra.mxu0 0
    %879 = vmatprep.subr.bf16.mxu0 0
    %880 = vmatpush1.bf16.msra.mxu0 0
    %881 = vmatprep.subr.bf16.mxu0 0
    %882 = vmatpush1.bf16.msra.mxu0 0
    %883 = vmatprep.subr.bf16.mxu0 0
    %884 = vmatpush1.bf16.msra.mxu0 0
    %885 = vmatprep.subr.bf16.mxu0 0
    %886 = vmatpush1.bf16.msra.mxu0 0
    %887 = vmatprep.subr.bf16.mxu0 0
    %888 = vmatpush1.bf16.msra.mxu0 0
    %889 = vmatprep.subr.bf16.mxu0 0
    %890 = vmatpush1.bf16.msra.mxu0 0
    %891 = vmatprep.subr.bf16.mxu0 0
    %892 = vmatpush1.bf16.msra.mxu0 0
    %893 = vmatprep.mubr.bf16.mxu0 0
    %894 = vmatmul.mubr.bf16.gmra.mrb[0].mxu0 %v572
    %v895 = vpop.f32.mrb[0].mxu0
    %v896 = vadd.f32 0.0, %v895
    %v897 = vpop.f32.mrb[0].mxu0
    %v898 = vadd.f32 0.0, %v897
    %v899 = vpop.f32.mrb[0].mxu0
    %v900 = vpop.f32.mrb[0].mxu0
    %901 = vdwg.mxu0
    %902 = vmatprep.subr.bf16.mxu0 %v459
    %903 = vmatpush1.bf16.msra.mxu0 %v458
    %904 = vmatprep.subr.bf16.mxu0 %v491
    %905 = vmatpush1.bf16.msra.mxu0 %v490
    %906 = vmatprep.subr.bf16.mxu0 0
    %907 = vmatpush1.bf16.msra.mxu0 0
    %908 = vmatprep.subr.bf16.mxu0 0
    %909 = vmatpush1.bf16.msra.mxu0 0
    %910 = vmatprep.subr.bf16.mxu0 0
    %911 = vmatpush1.bf16.msra.mxu0 0
    %912 = vmatprep.subr.bf16.mxu0 0
    %913 = vmatpush1.bf16.msra.mxu0 0
    %914 = vmatprep.subr.bf16.mxu0 0
    %915 = vmatpush1.bf16.msra.mxu0 0
    %916 = vmatprep.subr.bf16.mxu0 0
    %917 = vmatpush1.bf16.msra.mxu0 0
    %918 = vmatprep.subr.bf16.mxu0 0
    %919 = vmatpush1.bf16.msra.mxu0 0
    %920 = vmatprep.subr.bf16.mxu0 0
    %921 = vmatpush1.bf16.msra.mxu0 0
    %922 = vmatprep.subr.bf16.mxu0 0
    %923 = vmatpush1.bf16.msra.mxu0 0
    %924 = vmatprep.subr.bf16.mxu0 0
    %925 = vmatpush1.bf16.msra.mxu0 0
    %926 = vmatprep.subr.bf16.mxu0 0
    %927 = vmatpush1.bf16.msra.mxu0 0
    %928 = vmatprep.subr.bf16.mxu0 0
    %929 = vmatpush1.bf16.msra.mxu0 0
    %930 = vmatprep.subr.bf16.mxu0 0
    %931 = vmatpush1.bf16.msra.mxu0 0
    %932 = vmatprep.subr.bf16.mxu0 0
    %933 = vmatpush1.bf16.msra.mxu0 0
    %934 = vmatprep.mubr.bf16.mxu0 0
    %935 = vmatmul.mubr.bf16.gmra.mrb[0].mxu0 %v572
    %v936 = vpop.f32.mrb[0].mxu0
    %v937 = vadd.f32 0.0, %v936
    %v938 = vpop.f32.mrb[0].mxu0
    %v939 = vadd.f32 0.0, %v938
    %v940 = vpop.f32.mrb[0].mxu0
    %v941 = vpop.f32.mrb[0].mxu0
    %942 = vdwg.mxu0
    %943 = vmatprep.subr.bf16.mxu0 %v461
    %944 = vmatpush1.bf16.msra.mxu0 %v460
    %945 = vmatprep.subr.bf16.mxu0 %v493
    %946 = vmatpush1.bf16.msra.mxu0 %v492
    %947 = vmatprep.subr.bf16.mxu0 0
    %948 = vmatpush1.bf16.msra.mxu0 0
    %949 = vmatprep.subr.bf16.mxu0 0
    %950 = vmatpush1.bf16.msra.mxu0 0
    %951 = vmatprep.subr.bf16.mxu0 0
    %952 = vmatpush1.bf16.msra.mxu0 0
    %953 = vmatprep.subr.bf16.mxu0 0
    %954 = vmatpush1.bf16.msra.mxu0 0
    %955 = vmatprep.subr.bf16.mxu0 0
    %956 = vmatpush1.bf16.msra.mxu0 0
    %957 = vmatprep.subr.bf16.mxu0 0
    %958 = vmatpush1.bf16.msra.mxu0 0
    %959 = vmatprep.subr.bf16.mxu0 0
    %960 = vmatpush1.bf16.msra.mxu0 0
    %961 = vmatprep.subr.bf16.mxu0 0
    %962 = vmatpush1.bf16.msra.mxu0 0
    %963 = vmatprep.subr.bf16.mxu0 0
    %964 = vmatpush1.bf16.msra.mxu0 0
    %965 = vmatprep.subr.bf16.mxu0 0
    %966 = vmatpush1.bf16.msra.mxu0 0
    %967 = vmatprep.subr.bf16.mxu0 0
    %968 = vmatpush1.bf16.msra.mxu0 0
    %969 = vmatprep.subr.bf16.mxu0 0
    %970 = vmatpush1.bf16.msra.mxu0 0
    %971 = vmatprep.subr.bf16.mxu0 0
    %972 = vmatpush1.bf16.msra.mxu0 0
    %973 = vmatprep.subr.bf16.mxu0 0
    %974 = vmatpush1.bf16.msra.mxu0 0
    %975 = vmatprep.mubr.bf16.mxu0 0
    %976 = vmatmul.mubr.bf16.gmra.mrb[0].mxu0 %v572
    %v977 = vpop.f32.mrb[0].mxu0
    %v978 = vadd.f32 0.0, %v977
    %v979 = vpop.f32.mrb[0].mxu0
    %v980 = vadd.f32 0.0, %v979
    %v981 = vpop.f32.mrb[0].mxu0
    %v982 = vpop.f32.mrb[0].mxu0
    %983 = vdwg.mxu0
    %984 = vmatprep.subr.bf16.mxu0 %v463
    %985 = vmatpush1.bf16.msra.mxu0 %v462
    %986 = vmatprep.subr.bf16.mxu0 %v495
    %987 = vmatpush1.bf16.msra.mxu0 %v494
    %988 = vmatprep.subr.bf16.mxu0 0
    %989 = vmatpush1.bf16.msra.mxu0 0
    %990 = vmatprep.subr.bf16.mxu0 0
    %991 = vmatpush1.bf16.msra.mxu0 0
    %992 = vmatprep.subr.bf16.mxu0 0
    %993 = vmatpush1.bf16.msra.mxu0 0
    %994 = vmatprep.subr.bf16.mxu0 0
    %995 = vmatpush1.bf16.msra.mxu0 0
    %996 = vmatprep.subr.bf16.mxu0 0
    %997 = vmatpush1.bf16.msra.mxu0 0
    %998 = vmatprep.subr.bf16.mxu0 0
    %999 = vmatpush1.bf16.msra.mxu0 0
    %1000 = vmatprep.subr.bf16.mxu0 0
    %1001 = vmatpush1.bf16.msra.mxu0 0
    %1002 = vmatprep.subr.bf16.mxu0 0
    %1003 = vmatpush1.bf16.msra.mxu0 0
    %1004 = vmatprep.subr.bf16.mxu0 0
    %1005 = vmatpush1.bf16.msra.mxu0 0
    %1006 = vmatprep.subr.bf16.mxu0 0
    %1007 = vmatpush1.bf16.msra.mxu0 0
    %1008 = vmatprep.subr.bf16.mxu0 0
    %1009 = vmatpush1.bf16.msra.mxu0 0
    %1010 = vmatprep.subr.bf16.mxu0 0
    %1011 = vmatpush1.bf16.msra.mxu0 0
    %1012 = vmatprep.subr.bf16.mxu0 0
    %1013 = vmatpush1.bf16.msra.mxu0 0
    %1014 = vmatprep.subr.bf16.mxu0 0
    %1015 = vmatpush1.bf16.msra.mxu0 0
    %1016 = vmatprep.mubr.bf16.mxu0 0
    %1017 = vmatmul.mubr.bf16.gmra.mrb[0].mxu0 %v572
    %v1018 = vpop.f32.mrb[0].mxu0
    %v1019 = vadd.f32 0.0, %v1018
    %v1020 = vpop.f32.mrb[0].mxu0
    %v1021 = vadd.f32 0.0, %v1020
    %v1022 = vpop.f32.mrb[0].mxu0
    %v1023 = vpop.f32.mrb[0].mxu0
    %1024 = vdwg.mxu0
    %1025 = vmatprep.subr.bf16.mxu0 %v465
    %1026 = vmatpush1.bf16.msra.mxu0 %v464
    %1027 = vmatprep.subr.bf16.mxu0 %v497
    %1028 = vmatpush1.bf16.msra.mxu0 %v496
    %1029 = vmatprep.subr.bf16.mxu0 0
    %1030 = vmatpush1.bf16.msra.mxu0 0
    %1031 = vmatprep.subr.bf16.mxu0 0
    %1032 = vmatpush1.bf16.msra.mxu0 0
    %1033 = vmatprep.subr.bf16.mxu0 0
    %1034 = vmatpush1.bf16.msra.mxu0 0
    %1035 = vmatprep.subr.bf16.mxu0 0
    %1036 = vmatpush1.bf16.msra.mxu0 0
    %1037 = vmatprep.subr.bf16.mxu0 0
    %1038 = vmatpush1.bf16.msra.mxu0 0
    %1039 = vmatprep.subr.bf16.mxu0 0
    %1040 = vmatpush1.bf16.msra.mxu0 0
    %1041 = vmatprep.subr.bf16.mxu0 0
    %1042 = vmatpush1.bf16.msra.mxu0 0
    %1043 = vmatprep.subr.bf16.mxu0 0
    %1044 = vmatpush1.bf16.msra.mxu0 0
    %1045 = vmatprep.subr.bf16.mxu0 0
    %1046 = vmatpush1.bf16.msra.mxu0 0
    %1047 = vmatprep.subr.bf16.mxu0 0
    %1048 = vmatpush1.bf16.msra.mxu0 0
    %1049 = vmatprep.subr.bf16.mxu0 0
    %1050 = vmatpush1.bf16.msra.mxu0 0
    %1051 = vmatprep.subr.bf16.mxu0 0
    %1052 = vmatpush1.bf16.msra.mxu0 0
    %1053 = vmatprep.subr.bf16.mxu0 0
    %1054 = vmatpush1.bf16.msra.mxu0 0
    %1055 = vmatprep.subr.bf16.mxu0 0
    %1056 = vmatpush1.bf16.msra.mxu0 0
    %1057 = vmatprep.mubr.bf16.mxu0 0
    %1058 = vmatmul.mubr.bf16.gmra.mrb[0].mxu0 %v572
    %v1059 = vpop.f32.mrb[0].mxu0
    %v1060 = vadd.f32 0.0, %v1059
    %v1061 = vpop.f32.mrb[0].mxu0
    %v1062 = vadd.f32 0.0, %v1061
    %v1063 = vpop.f32.mrb[0].mxu0
    %v1064 = vpop.f32.mrb[0].mxu0
    %1065 = vdwg.mxu0
    %1066 = vmatprep.subr.bf16.mxu0 %v467
    %1067 = vmatpush1.bf16.msra.mxu0 %v466
    %1068 = vmatprep.subr.bf16.mxu0 %v499
    %1069 = vmatpush1.bf16.msra.mxu0 %v498
    %1070 = vmatprep.subr.bf16.mxu0 0
    %1071 = vmatpush1.bf16.msra.mxu0 0
    %1072 = vmatprep.subr.bf16.mxu0 0
    %1073 = vmatpush1.bf16.msra.mxu0 0
    %1074 = vmatprep.subr.bf16.mxu0 0
    %1075 = vmatpush1.bf16.msra.mxu0 0
    %1076 = vmatprep.subr.bf16.mxu0 0
    %1077 = vmatpush1.bf16.msra.mxu0 0
    %1078 = vmatprep.subr.bf16.mxu0 0
    %1079 = vmatpush1.bf16.msra.mxu0 0
    %1080 = vmatprep.subr.bf16.mxu0 0
    %1081 = vmatpush1.bf16.msra.mxu0 0
    %1082 = vmatprep.subr.bf16.mxu0 0
    %1083 = vmatpush1.bf16.msra.mxu0 0
    %1084 = vmatprep.subr.bf16.mxu0 0
    %1085 = vmatpush1.bf16.msra.mxu0 0
    %1086 = vmatprep.subr.bf16.mxu0 0
    %1087 = vmatpush1.bf16.msra.mxu0 0
    %1088 = vmatprep.subr.bf16.mxu0 0
    %1089 = vmatpush1.bf16.msra.mxu0 0
    %1090 = vmatprep.subr.bf16.mxu0 0
    %1091 = vmatpush1.bf16.msra.mxu0 0
    %1092 = vmatprep.subr.bf16.mxu0 0
    %1093 = vmatpush1.bf16.msra.mxu0 0
    %1094 = vmatprep.subr.bf16.mxu0 0
    %1095 = vmatpush1.bf16.msra.mxu0 0
    %1096 = vmatprep.subr.bf16.mxu0 0
    %1097 = vmatpush1.bf16.msra.mxu0 0
    %1098 = vmatprep.mubr.bf16.mxu0 0
    %1099 = vmatmul.mubr.bf16.gmra.mrb[0].mxu0 %v572
    %v1100 = vpop.f32.mrb[0].mxu0
    %v1101 = vadd.f32 0.0, %v1100
    %v1102 = vpop.f32.mrb[0].mxu0
    %v1103 = vadd.f32 0.0, %v1102
    %v1104 = vpop.f32.mrb[0].mxu0
    %v1105 = vpop.f32.mrb[0].mxu0
    %1106 = vdwg.mxu0
    %1107 = vmatprep.subr.bf16.mxu0 %v469
    %1108 = vmatpush1.bf16.msra.mxu0 %v468
    %1109 = vmatprep.subr.bf16.mxu0 %v501
    %1110 = vmatpush1.bf16.msra.mxu0 %v500
    %1111 = vmatprep.subr.bf16.mxu0 0
    %1112 = vmatpush1.bf16.msra.mxu0 0
    %1113 = vmatprep.subr.bf16.mxu0 0
    %1114 = vmatpush1.bf16.msra.mxu0 0
    %1115 = vmatprep.subr.bf16.mxu0 0
    %1116 = vmatpush1.bf16.msra.mxu0 0
    %1117 = vmatprep.subr.bf16.mxu0 0
    %1118 = vmatpush1.bf16.msra.mxu0 0
    %1119 = vmatprep.subr.bf16.mxu0 0
    %1120 = vmatpush1.bf16.msra.mxu0 0
    %1121 = vmatprep.subr.bf16.mxu0 0
    %1122 = vmatpush1.bf16.msra.mxu0 0
    %1123 = vmatprep.subr.bf16.mxu0 0
    %1124 = vmatpush1.bf16.msra.mxu0 0
    %1125 = vmatprep.subr.bf16.mxu0 0
    %1126 = vmatpush1.bf16.msra.mxu0 0
    %1127 = vmatprep.subr.bf16.mxu0 0
    %1128 = vmatpush1.bf16.msra.mxu0 0
    %1129 = vmatprep.subr.bf16.mxu0 0
    %1130 = vmatpush1.bf16.msra.mxu0 0
    %1131 = vmatprep.subr.bf16.mxu0 0
    %1132 = vmatpush1.bf16.msra.mxu0 0
    %1133 = vmatprep.subr.bf16.mxu0 0
    %1134 = vmatpush1.bf16.msra.mxu0 0
    %1135 = vmatprep.subr.bf16.mxu0 0
    %1136 = vmatpush1.bf16.msra.mxu0 0
    %1137 = vmatprep.subr.bf16.mxu0 0
    %1138 = vmatpush1.bf16.msra.mxu0 0
    %1139 = vmatprep.mubr.bf16.mxu0 0
    %1140 = vmatmul.mubr.bf16.gmra.mrb[0].mxu0 %v572
    %v1141 = vpop.f32.mrb[0].mxu0
    %v1142 = vadd.f32 0.0, %v1141
    %v1143 = vpop.f32.mrb[0].mxu0
    %v1144 = vadd.f32 0.0, %v1143
    %v1145 = vpop.f32.mrb[0].mxu0
    %v1146 = vpop.f32.mrb[0].mxu0
    %1147 = vdwg.mxu0
    %1148 = vmatprep.subr.bf16.mxu0 %v471
    %1149 = vmatpush1.bf16.msra.mxu0 %v470
    %1150 = vmatprep.subr.bf16.mxu0 %v503
    %1151 = vmatpush1.bf16.msra.mxu0 %v502
    %1152 = vmatprep.subr.bf16.mxu0 0
    %1153 = vmatpush1.bf16.msra.mxu0 0
    %1154 = vmatprep.subr.bf16.mxu0 0
    %1155 = vmatpush1.bf16.msra.mxu0 0
    %1156 = vmatprep.subr.bf16.mxu0 0
    %1157 = vmatpush1.bf16.msra.mxu0 0
    %1158 = vmatprep.subr.bf16.mxu0 0
    %1159 = vmatpush1.bf16.msra.mxu0 0
    %1160 = vmatprep.subr.bf16.mxu0 0
    %1161 = vmatpush1.bf16.msra.mxu0 0
    %1162 = vmatprep.subr.bf16.mxu0 0
    %1163 = vmatpush1.bf16.msra.mxu0 0
    %1164 = vmatprep.subr.bf16.mxu0 0
    %1165 = vmatpush1.bf16.msra.mxu0 0
    %1166 = vmatprep.subr.bf16.mxu0 0
    %1167 = vmatpush1.bf16.msra.mxu0 0
    %1168 = vmatprep.subr.bf16.mxu0 0
    %1169 = vmatpush1.bf16.msra.mxu0 0
    %1170 = vmatprep.subr.bf16.mxu0 0
    %1171 = vmatpush1.bf16.msra.mxu0 0
    %1172 = vmatprep.subr.bf16.mxu0 0
    %1173 = vmatpush1.bf16.msra.mxu0 0
    %1174 = vmatprep.subr.bf16.mxu0 0
    %1175 = vmatpush1.bf16.msra.mxu0 0
    %1176 = vmatprep.subr.bf16.mxu0 0
    %1177 = vmatpush1.bf16.msra.mxu0 0
    %1178 = vmatprep.subr.bf16.mxu0 0
    %1179 = vmatpush1.bf16.msra.mxu0 0
    %1180 = vmatprep.mubr.bf16.mxu0 0
    %1181 = vmatmul.mubr.bf16.gmra.mrb[0].mxu0 %v572
    %v1182 = vpop.f32.mrb[0].mxu0
    %v1183 = vadd.f32 0.0, %v1182
    %v1184 = vpop.f32.mrb[0].mxu0
    %v1185 = vadd.f32 0.0, %v1184
    %v1186 = vpop.f32.mrb[0].mxu0
    %v1187 = vpop.f32.mrb[0].mxu0
    %1188 = vdwg.mxu0
    %1189 = vmatprep.subr.bf16.mxu0 %v473
    %1190 = vmatpush1.bf16.msra.mxu0 %v472
    %1191 = vmatprep.subr.bf16.mxu0 %v505
    %1192 = vmatpush1.bf16.msra.mxu0 %v504
    %1193 = vmatprep.subr.bf16.mxu0 0
    %1194 = vmatpush1.bf16.msra.mxu0 0
    %1195 = vmatprep.subr.bf16.mxu0 0
    %1196 = vmatpush1.bf16.msra.mxu0 0
    %1197 = vmatprep.subr.bf16.mxu0 0
    %1198 = vmatpush1.bf16.msra.mxu0 0
    %1199 = vmatprep.subr.bf16.mxu0 0
    %1200 = vmatpush1.bf16.msra.mxu0 0
    %1201 = vmatprep.subr.bf16.mxu0 0
    %1202 = vmatpush1.bf16.msra.mxu0 0
    %1203 = vmatprep.subr.bf16.mxu0 0
    %1204 = vmatpush1.bf16.msra.mxu0 0
    %1205 = vmatprep.subr.bf16.mxu0 0
    %1206 = vmatpush1.bf16.msra.mxu0 0
    %1207 = vmatprep.subr.bf16.mxu0 0
    %1208 = vmatpush1.bf16.msra.mxu0 0
    %1209 = vmatprep.subr.bf16.mxu0 0
    %1210 = vmatpush1.bf16.msra.mxu0 0
    %1211 = vmatprep.subr.bf16.mxu0 0
    %1212 = vmatpush1.bf16.msra.mxu0 0
    %1213 = vmatprep.subr.bf16.mxu0 0
    %1214 = vmatpush1.bf16.msra.mxu0 0
    %1215 = vmatprep.subr.bf16.mxu0 0
    %1216 = vmatpush1.bf16.msra.mxu0 0
    %1217 = vmatprep.subr.bf16.mxu0 0
    %1218 = vmatpush1.bf16.msra.mxu0 0
    %1219 = vmatprep.subr.bf16.mxu0 0
    %1220 = vmatpush1.bf16.msra.mxu0 0
    %1221 = vmatprep.mubr.bf16.mxu0 0
    %1222 = vmatmul.mubr.bf16.gmra.mrb[0].mxu0 %v572
    %v1223 = vpop.f32.mrb[0].mxu0
    %v1224 = vadd.f32 0.0, %v1223
    %v1225 = vpop.f32.mrb[0].mxu0
    %v1226 = vadd.f32 0.0, %v1225
    %v1227 = vpop.f32.mrb[0].mxu0
    %v1228 = vpop.f32.mrb[0].mxu0
    %1229 = vdwg.mxu0
    %v1358 = vunpack.c.l.b16 %v56
    %v1359 = vunpack.c.h.b16 %v56
    %v1360 = vunpack.c.l.b16 %v57
    %v1361 = vunpack.c.h.b16 %v57
    %v1362 = vunpack.c.l.b16 %v58
    %v1363 = vunpack.c.h.b16 %v58
    %v1364 = vunpack.c.l.b16 %v59
    %v1365 = vunpack.c.h.b16 %v59
    %v1366 = vunpack.c.l.b16 %v60
    %v1367 = vunpack.c.h.b16 %v60
    %v1368 = vunpack.c.l.b16 %v61
    %v1369 = vunpack.c.h.b16 %v61
    %v1370 = vunpack.c.l.b16 %v62
    %v1371 = vunpack.c.h.b16 %v62
    %v1372 = vunpack.c.l.b16 %v63
    %v1373 = vunpack.c.h.b16 %v63
    %v1374 = vunpack.c.l.b16 %v64
    %v1375 = vunpack.c.h.b16 %v64
    %v1376 = vunpack.c.l.b16 %v65
    %v1377 = vunpack.c.h.b16 %v65
    %v1378 = vunpack.c.l.b16 %v66
    %v1379 = vunpack.c.h.b16 %v66
    %v1380 = vunpack.c.l.b16 %v67
    %v1381 = vunpack.c.h.b16 %v67
    %v1382 = vunpack.c.l.b16 %v68
    %v1383 = vunpack.c.h.b16 %v68
    %v1384 = vunpack.c.l.b16 %v69
    %v1385 = vunpack.c.h.b16 %v69
    %v1386 = vunpack.c.l.b16 %v70
    %v1387 = vunpack.c.h.b16 %v70
    %v1388 = vunpack.c.l.b16 %v71
    %v1389 = vunpack.c.h.b16 %v71
    %v1390 = vunpack.c.l.b16 %v72
    %v1391 = vunpack.c.h.b16 %v72
    %v1392 = vunpack.c.l.b16 %v73
    %v1393 = vunpack.c.h.b16 %v73
    %v1394 = vunpack.c.l.b16 %v74
    %v1395 = vunpack.c.h.b16 %v74
    %v1396 = vunpack.c.l.b16 %v75
    %v1397 = vunpack.c.h.b16 %v75
    %v1398 = vunpack.c.l.b16 %v76
    %v1399 = vunpack.c.h.b16 %v76
    %v1400 = vunpack.c.l.b16 %v77
    %v1401 = vunpack.c.h.b16 %v77
    %v1402 = vunpack.c.l.b16 %v78
    %v1403 = vunpack.c.h.b16 %v78
    %v1404 = vunpack.c.l.b16 %v79
    %v1405 = vunpack.c.h.b16 %v79
    %v1406 = vunpack.c.l.b16 %v80
    %v1407 = vunpack.c.h.b16 %v80
    %v1408 = vunpack.c.l.b16 %v81
    %v1409 = vunpack.c.h.b16 %v81
    %v1410 = vunpack.c.l.b16 %v82
    %v1411 = vunpack.c.h.b16 %v82
    %v1412 = vunpack.c.l.b16 %v83
    %v1413 = vunpack.c.h.b16 %v83
    %v1414 = vunpack.c.l.b16 %v84
    %v1415 = vunpack.c.h.b16 %v84
    %v1416 = vunpack.c.l.b16 %v85
    %v1417 = vunpack.c.h.b16 %v85
    %v1418 = vunpack.c.l.b16 %v86
    %v1419 = vunpack.c.h.b16 %v86
    %v1420 = vunpack.c.l.b16 %v87
    %v1421 = vunpack.c.h.b16 %v87
    %v1422 = vunpack.c.l.b16 %v88
    %v1423 = vunpack.c.h.b16 %v88
    %v1424 = vunpack.c.l.b16 %v89
    %v1425 = vunpack.c.h.b16 %v89
    %v1426 = vunpack.c.l.b16 %v90
    %v1427 = vunpack.c.h.b16 %v90
    %v1428 = vunpack.c.l.b16 %v91
    %v1429 = vunpack.c.h.b16 %v91
    %v1430 = vunpack.c.l.b16 %v92
    %v1431 = vunpack.c.h.b16 %v92
    %v1432 = vunpack.c.l.b16 %v93
    %v1433 = vunpack.c.h.b16 %v93
    %v1434 = vunpack.c.l.b16 %v94
    %v1435 = vunpack.c.h.b16 %v94
    %v1436 = vunpack.c.l.b16 %v95
    %v1437 = vunpack.c.h.b16 %v95
    %v1438 = vunpack.c.l.b16 %v96
    %v1439 = vunpack.c.h.b16 %v96
    %v1440 = vunpack.c.l.b16 %v97
    %v1441 = vunpack.c.h.b16 %v97
    %v1442 = vunpack.c.l.b16 %v98
    %v1443 = vunpack.c.h.b16 %v98
    %v1444 = vunpack.c.l.b16 %v99
    %v1445 = vunpack.c.h.b16 %v99
    %v1446 = vunpack.c.l.b16 %v100
    %v1447 = vunpack.c.h.b16 %v100
    %v1448 = vunpack.c.l.b16 %v101
    %v1449 = vunpack.c.h.b16 %v101
    %v1450 = vunpack.c.l.b16 %v102
    %v1451 = vunpack.c.h.b16 %v102
    %v1452 = vunpack.c.l.b16 %v103
    %v1453 = vunpack.c.h.b16 %v103
    %v1454 = vunpack.c.l.b16 %v104
    %v1455 = vunpack.c.h.b16 %v104
    %v1456 = vunpack.c.l.b16 %v105
    %v1457 = vunpack.c.h.b16 %v105
    %v1458 = vunpack.c.l.b16 %v106
    %v1459 = vunpack.c.h.b16 %v106
    %v1460 = vunpack.c.l.b16 %v107
    %v1461 = vunpack.c.h.b16 %v107
    %v1462 = vunpack.c.l.b16 %v108
    %v1463 = vunpack.c.h.b16 %v108
    %v1464 = vunpack.c.l.b16 %v109
    %v1465 = vunpack.c.h.b16 %v109
    %v1466 = vunpack.c.l.b16 %v110
    %v1467 = vunpack.c.h.b16 %v110
    %v1468 = vunpack.c.l.b16 %v111
    %v1469 = vunpack.c.h.b16 %v111
    %v1470 = vunpack.c.l.b16 %v112
    %v1471 = vunpack.c.h.b16 %v112
    %v1472 = vunpack.c.l.b16 %v113
    %v1473 = vunpack.c.h.b16 %v113
    %v1474 = vunpack.c.l.b16 %v114
    %v1475 = vunpack.c.h.b16 %v114
    %v1476 = vunpack.c.l.b16 %v115
    %v1477 = vunpack.c.h.b16 %v115
    %v1478 = vunpack.c.l.b16 %v116
    %v1479 = vunpack.c.h.b16 %v116
    %v1480 = vunpack.c.l.b16 %v117
    %v1481 = vunpack.c.h.b16 %v117
    %v1482 = vunpack.c.l.b16 %v118
    %v1483 = vunpack.c.h.b16 %v118
    %v1484 = vunpack.c.l.b16 %v119
    %v1485 = vunpack.c.h.b16 %v119
    %v1486 = vunpack.c.l.b16 %v120
    %v1487 = vunpack.c.h.b16 %v120
    %v1488 = vunpack.c.l.b16 %v121
    %v1489 = vunpack.c.h.b16 %v121
    %v1490 = vunpack.c.l.b16 %v122
    %v1491 = vunpack.c.h.b16 %v122
    %v1492 = vunpack.c.l.b16 %v123
    %v1493 = vunpack.c.h.b16 %v123
    %v1494 = vunpack.c.l.b16 %v124
    %v1495 = vunpack.c.h.b16 %v124
    %v1496 = vunpack.c.l.b16 %v125
    %v1497 = vunpack.c.h.b16 %v125
    %v1498 = vunpack.c.l.b16 %v126
    %v1499 = vunpack.c.h.b16 %v126
    %v1500 = vunpack.c.l.b16 %v127
    %v1501 = vunpack.c.h.b16 %v127
    %v1502 = vunpack.c.l.b16 %v128
    %v1503 = vunpack.c.h.b16 %v128
    %v1504 = vunpack.c.l.b16 %v129
    %v1505 = vunpack.c.h.b16 %v129
    %v1506 = vunpack.c.l.b16 %v130
    %v1507 = vunpack.c.h.b16 %v130
    %v1508 = vunpack.c.l.b16 %v131
    %v1509 = vunpack.c.h.b16 %v131
    %v1510 = vunpack.c.l.b16 %v132
    %v1511 = vunpack.c.h.b16 %v132
    %v1512 = vunpack.c.l.b16 %v133
    %v1513 = vunpack.c.h.b16 %v133
    %v1514 = vunpack.c.l.b16 %v134
    %v1515 = vunpack.c.h.b16 %v134
    %v1516 = vunpack.c.l.b16 %v135
    %v1517 = vunpack.c.h.b16 %v135
    %v1518 = vunpack.c.l.b16 %v136
    %v1519 = vunpack.c.h.b16 %v136
    %v1520 = vunpack.c.l.b16 %v137
    %v1521 = vunpack.c.h.b16 %v137
    %v1522 = vunpack.c.l.b16 %v138
    %v1523 = vunpack.c.h.b16 %v138
    %v1524 = vunpack.c.l.b16 %v139
    %v1525 = vunpack.c.h.b16 %v139
    %v1526 = vunpack.c.l.b16 %v140
    %v1527 = vunpack.c.h.b16 %v140
    %v1528 = vunpack.c.l.b16 %v141
    %v1529 = vunpack.c.h.b16 %v141
    %v1530 = vunpack.c.l.b16 %v142
    %v1531 = vunpack.c.h.b16 %v142
    %v1532 = vunpack.c.l.b16 %v143
    %v1533 = vunpack.c.h.b16 %v143
    %v1534 = vunpack.c.l.b16 %v144
    %v1535 = vunpack.c.h.b16 %v144
    %v1536 = vunpack.c.l.b16 %v145
    %v1537 = vunpack.c.h.b16 %v145
    %v1538 = vunpack.c.l.b16 %v146
    %v1539 = vunpack.c.h.b16 %v146
    %v1540 = vunpack.c.l.b16 %v147
    %v1541 = vunpack.c.h.b16 %v147
    %v1542 = vunpack.c.l.b16 %v148
    %v1543 = vunpack.c.h.b16 %v148
    %v1544 = vunpack.c.l.b16 %v149
    %v1545 = vunpack.c.h.b16 %v149
    %v1546 = vunpack.c.l.b16 %v150
    %v1547 = vunpack.c.h.b16 %v150
    %v1548 = vunpack.c.l.b16 %v151
    %v1549 = vunpack.c.h.b16 %v151
    %v1550 = vunpack.c.l.b16 %v152
    %v1551 = vunpack.c.h.b16 %v152
    %v1552 = vunpack.c.l.b16 %v153
    %v1553 = vunpack.c.h.b16 %v153
    %v1554 = vunpack.c.l.b16 %v154
    %v1555 = vunpack.c.h.b16 %v154
    %v1556 = vunpack.c.l.b16 %v155
    %v1557 = vunpack.c.h.b16 %v155
    %v1558 = vunpack.c.l.b16 %v156
    %v1559 = vunpack.c.h.b16 %v156
    %v1560 = vunpack.c.l.b16 %v157
    %v1561 = vunpack.c.h.b16 %v157
    %v1562 = vunpack.c.l.b16 %v158
    %v1563 = vunpack.c.h.b16 %v158
    %v1564 = vunpack.c.l.b16 %v159
    %v1565 = vunpack.c.h.b16 %v159
    %v1566 = vunpack.c.l.b16 %v160
    %v1567 = vunpack.c.h.b16 %v160
    %v1568 = vunpack.c.l.b16 %v161
    %v1569 = vunpack.c.h.b16 %v161
    %v1570 = vunpack.c.l.b16 %v162
    %v1571 = vunpack.c.h.b16 %v162
    %v1572 = vunpack.c.l.b16 %v163
    %v1573 = vunpack.c.h.b16 %v163
    %v1574 = vunpack.c.l.b16 %v164
    %v1575 = vunpack.c.h.b16 %v164
    %v1576 = vunpack.c.l.b16 %v165
    %v1577 = vunpack.c.h.b16 %v165
    %v1578 = vunpack.c.l.b16 %v166
    %v1579 = vunpack.c.h.b16 %v166
    %v1580 = vunpack.c.l.b16 %v167
    %v1581 = vunpack.c.h.b16 %v167
    %v1582 = vunpack.c.l.b16 %v168
    %v1583 = vunpack.c.h.b16 %v168
    %v1584 = vunpack.c.l.b16 %v169
    %v1585 = vunpack.c.h.b16 %v169
    %v1586 = vunpack.c.l.b16 %v170
    %v1587 = vunpack.c.h.b16 %v170
    %v1588 = vunpack.c.l.b16 %v171
    %v1589 = vunpack.c.h.b16 %v171
    %v1590 = vunpack.c.l.b16 %v172
    %v1591 = vunpack.c.h.b16 %v172
    %v1592 = vunpack.c.l.b16 %v173
    %v1593 = vunpack.c.h.b16 %v173
    %v1594 = vunpack.c.l.b16 %v174
    %v1595 = vunpack.c.h.b16 %v174
    %v1596 = vunpack.c.l.b16 %v175
    %v1597 = vunpack.c.h.b16 %v175
    %v1598 = vunpack.c.l.b16 %v176
    %v1599 = vunpack.c.h.b16 %v176
    %v1600 = vunpack.c.l.b16 %v177
    %v1601 = vunpack.c.h.b16 %v177
    %v1602 = vunpack.c.l.b16 %v178
    %v1603 = vunpack.c.h.b16 %v178
    %v1604 = vunpack.c.l.b16 %v179
    %v1605 = vunpack.c.h.b16 %v179
    %v1606 = vunpack.c.l.b16 %v180
    %v1607 = vunpack.c.h.b16 %v180
    %v1608 = vunpack.c.l.b16 %v181
    %v1609 = vunpack.c.h.b16 %v181
    %v1610 = vunpack.c.l.b16 %v182
    %v1611 = vunpack.c.h.b16 %v182
    %v1612 = vunpack.c.l.b16 %v183
    %v1613 = vunpack.c.h.b16 %v183
    %v1614 = vpack.c.b16 %v1390, %v1358
    %v1615 = vpack.c.b16 %v1391, %v1359
    %v1616 = vpack.c.b16 %v1392, %v1360
    %v1617 = vpack.c.b16 %v1393, %v1361
    %v1618 = vpack.c.b16 %v1394, %v1362
    %v1619 = vpack.c.b16 %v1395, %v1363
    %v1620 = vpack.c.b16 %v1396, %v1364
    %v1621 = vpack.c.b16 %v1397, %v1365
    %v1622 = vpack.c.b16 %v1398, %v1366
    %v1623 = vpack.c.b16 %v1399, %v1367
    %v1624 = vpack.c.b16 %v1400, %v1368
    %v1625 = vpack.c.b16 %v1401, %v1369
    %v1626 = vpack.c.b16 %v1402, %v1370
    %v1627 = vpack.c.b16 %v1403, %v1371
    %v1628 = vpack.c.b16 %v1404, %v1372
    %v1629 = vpack.c.b16 %v1405, %v1373
    %v1630 = vpack.c.b16 %v1406, %v1374
    %v1631 = vpack.c.b16 %v1407, %v1375
    %v1632 = vpack.c.b16 %v1408, %v1376
    %v1633 = vpack.c.b16 %v1409, %v1377
    %v1634 = vpack.c.b16 %v1410, %v1378
    %v1635 = vpack.c.b16 %v1411, %v1379
    %v1636 = vpack.c.b16 %v1412, %v1380
    %v1637 = vpack.c.b16 %v1413, %v1381
    %v1638 = vpack.c.b16 %v1414, %v1382
    %v1639 = vpack.c.b16 %v1415, %v1383
    %v1640 = vpack.c.b16 %v1416, %v1384
    %v1641 = vpack.c.b16 %v1417, %v1385
    %v1642 = vpack.c.b16 %v1418, %v1386
    %v1643 = vpack.c.b16 %v1419, %v1387
    %v1644 = vpack.c.b16 %v1420, %v1388
    %v1645 = vpack.c.b16 %v1421, %v1389
    %v1646 = vpack.c.b16 %v1454, %v1422
    %v1647 = vpack.c.b16 %v1455, %v1423
    %v1648 = vpack.c.b16 %v1456, %v1424
    %v1649 = vpack.c.b16 %v1457, %v1425
    %v1650 = vpack.c.b16 %v1458, %v1426
    %v1651 = vpack.c.b16 %v1459, %v1427
    %v1652 = vpack.c.b16 %v1460, %v1428
    %v1653 = vpack.c.b16 %v1461, %v1429
    %v1654 = vpack.c.b16 %v1462, %v1430
    %v1655 = vpack.c.b16 %v1463, %v1431
    %v1656 = vpack.c.b16 %v1464, %v1432
    %v1657 = vpack.c.b16 %v1465, %v1433
    %v1658 = vpack.c.b16 %v1466, %v1434
    %v1659 = vpack.c.b16 %v1467, %v1435
    %v1660 = vpack.c.b16 %v1468, %v1436
    %v1661 = vpack.c.b16 %v1469, %v1437
    %v1662 = vpack.c.b16 %v1470, %v1438
    %v1663 = vpack.c.b16 %v1471, %v1439
    %v1664 = vpack.c.b16 %v1472, %v1440
    %v1665 = vpack.c.b16 %v1473, %v1441
    %v1666 = vpack.c.b16 %v1474, %v1442
    %v1667 = vpack.c.b16 %v1475, %v1443
    %v1668 = vpack.c.b16 %v1476, %v1444
    %v1669 = vpack.c.b16 %v1477, %v1445
    %v1670 = vpack.c.b16 %v1478, %v1446
    %v1671 = vpack.c.b16 %v1479, %v1447
    %v1672 = vpack.c.b16 %v1480, %v1448
    %v1673 = vpack.c.b16 %v1481, %v1449
    %v1674 = vpack.c.b16 %v1482, %v1450
    %v1675 = vpack.c.b16 %v1483, %v1451
    %v1676 = vpack.c.b16 %v1484, %v1452
    %v1677 = vpack.c.b16 %v1485, %v1453
    %v1678 = vpack.c.b16 %v1518, %v1486
    %v1679 = vpack.c.b16 %v1519, %v1487
    %v1680 = vpack.c.b16 %v1520, %v1488
    %v1681 = vpack.c.b16 %v1521, %v1489
    %v1682 = vpack.c.b16 %v1522, %v1490
    %v1683 = vpack.c.b16 %v1523, %v1491
    %v1684 = vpack.c.b16 %v1524, %v1492
    %v1685 = vpack.c.b16 %v1525, %v1493
    %v1686 = vpack.c.b16 %v1526, %v1494
    %v1687 = vpack.c.b16 %v1527, %v1495
    %v1688 = vpack.c.b16 %v1528, %v1496
    %v1689 = vpack.c.b16 %v1529, %v1497
    %v1690 = vpack.c.b16 %v1530, %v1498
    %v1691 = vpack.c.b16 %v1531, %v1499
    %v1692 = vpack.c.b16 %v1532, %v1500
    %v1693 = vpack.c.b16 %v1533, %v1501
    %v1694 = vpack.c.b16 %v1534, %v1502
    %v1695 = vpack.c.b16 %v1535, %v1503
    %v1696 = vpack.c.b16 %v1536, %v1504
    %v1697 = vpack.c.b16 %v1537, %v1505
    %v1698 = vpack.c.b16 %v1538, %v1506
    %v1699 = vpack.c.b16 %v1539, %v1507
    %v1700 = vpack.c.b16 %v1540, %v1508
    %v1701 = vpack.c.b16 %v1541, %v1509
    %v1702 = vpack.c.b16 %v1542, %v1510
    %v1703 = vpack.c.b16 %v1543, %v1511
    %v1704 = vpack.c.b16 %v1544, %v1512
    %v1705 = vpack.c.b16 %v1545, %v1513
    %v1706 = vpack.c.b16 %v1546, %v1514
    %v1707 = vpack.c.b16 %v1547, %v1515
    %v1708 = vpack.c.b16 %v1548, %v1516
    %v1709 = vpack.c.b16 %v1549, %v1517
    %v1710 = vpack.c.b16 %v1582, %v1550
    %v1711 = vpack.c.b16 %v1583, %v1551
    %v1712 = vpack.c.b16 %v1584, %v1552
    %v1713 = vpack.c.b16 %v1585, %v1553
    %v1714 = vpack.c.b16 %v1586, %v1554
    %v1715 = vpack.c.b16 %v1587, %v1555
    %v1716 = vpack.c.b16 %v1588, %v1556
    %v1717 = vpack.c.b16 %v1589, %v1557
    %v1718 = vpack.c.b16 %v1590, %v1558
    %v1719 = vpack.c.b16 %v1591, %v1559
    %v1720 = vpack.c.b16 %v1592, %v1560
    %v1721 = vpack.c.b16 %v1593, %v1561
    %v1722 = vpack.c.b16 %v1594, %v1562
    %v1723 = vpack.c.b16 %v1595, %v1563
    %v1724 = vpack.c.b16 %v1596, %v1564
    %v1725 = vpack.c.b16 %v1597, %v1565
    %v1726 = vpack.c.b16 %v1598, %v1566
    %v1727 = vpack.c.b16 %v1599, %v1567
    %v1728 = vpack.c.b16 %v1600, %v1568
    %v1729 = vpack.c.b16 %v1601, %v1569
    %v1730 = vpack.c.b16 %v1602, %v1570
    %v1731 = vpack.c.b16 %v1603, %v1571
    %v1732 = vpack.c.b16 %v1604, %v1572
    %v1733 = vpack.c.b16 %v1605, %v1573
    %v1734 = vpack.c.b16 %v1606, %v1574
    %v1735 = vpack.c.b16 %v1607, %v1575
    %v1736 = vpack.c.b16 %v1608, %v1576
    %v1737 = vpack.c.b16 %v1609, %v1577
    %v1738 = vpack.c.b16 %v1610, %v1578
    %v1739 = vpack.c.b16 %v1611, %v1579
    %v1740 = vpack.c.b16 %v1612, %v1580
    %v1741 = vpack.c.b16 %v1613, %v1581
    %vm1870 = vcmask 523264
    %v1872 = vsel %vm1870, %v55, 0
    %1874 = vmatprep.subr.bf16.mxu0 %v1615
    %1875 = vmatpush1.bf16.msra.mxu0 %v1614
    %1876 = vmatprep.subr.bf16.mxu0 %v1647
    %1877 = vmatpush1.bf16.msra.mxu0 %v1646
    %1878 = vmatprep.subr.bf16.mxu0 %v1679
    %1879 = vmatpush1.bf16.msra.mxu0 %v1678
    %1880 = vmatprep.subr.bf16.mxu0 %v1711
    %1881 = vmatpush1.bf16.msra.mxu0 %v1710
    %1882 = vmatprep.subr.bf16.mxu0 0
    %1883 = vmatpush1.bf16.msra.mxu0 0
    %1884 = vmatprep.subr.bf16.mxu0 0
    %1885 = vmatpush1.bf16.msra.mxu0 0
    %1886 = vmatprep.subr.bf16.mxu0 0
    %1887 = vmatpush1.bf16.msra.mxu0 0
    %1888 = vmatprep.subr.bf16.mxu0 0
    %1889 = vmatpush1.bf16.msra.mxu0 0
    %1890 = vmatprep.subr.bf16.mxu0 0
    %1891 = vmatpush1.bf16.msra.mxu0 0
    %1892 = vmatprep.subr.bf16.mxu0 0
    %1893 = vmatpush1.bf16.msra.mxu0 0
    %1894 = vmatprep.subr.bf16.mxu0 0
    %1895 = vmatpush1.bf16.msra.mxu0 0
    %1896 = vmatprep.subr.bf16.mxu0 0
    %1897 = vmatpush1.bf16.msra.mxu0 0
    %1898 = vmatprep.subr.bf16.mxu0 0
    %1899 = vmatpush1.bf16.msra.mxu0 0
    %1900 = vmatprep.subr.bf16.mxu0 0
    %1901 = vmatpush1.bf16.msra.mxu0 0
    %1902 = vmatprep.subr.bf16.mxu0 0
    %1903 = vmatpush1.bf16.msra.mxu0 0
    %1904 = vmatprep.subr.bf16.mxu0 0
    %1905 = vmatpush1.bf16.msra.mxu0 0
    %1906 = vmatprep.mubr.bf16.mxu0 0
    %1907 = vmatmul.mubr.bf16.gmra.mrb[0].mxu0 %v1872
    %v1908 = vpop.f32.mrb[0].mxu0
    %v1909 = vadd.f32 %v609, %v1908
    %v1910 = vpop.f32.mrb[0].mxu0
    %v1911 = vadd.f32 %v611, %v1910
    %v1912 = vpop.f32.mrb[0].mxu0
    %v1913 = vpop.f32.mrb[0].mxu0
    %1914 = vdwg.mxu0
    %1915 = vmatprep.subr.bf16.mxu0 %v1617
    %1916 = vmatpush1.bf16.msra.mxu0 %v1616
    %1917 = vmatprep.subr.bf16.mxu0 %v1649
    %1918 = vmatpush1.bf16.msra.mxu0 %v1648
    %1919 = vmatprep.subr.bf16.mxu0 %v1681
    %1920 = vmatpush1.bf16.msra.mxu0 %v1680
    %1921 = vmatprep.subr.bf16.mxu0 %v1713
    %1922 = vmatpush1.bf16.msra.mxu0 %v1712
    %1923 = vmatprep.subr.bf16.mxu0 0
    %1924 = vmatpush1.bf16.msra.mxu0 0
    %1925 = vmatprep.subr.bf16.mxu0 0
    %1926 = vmatpush1.bf16.msra.mxu0 0
    %1927 = vmatprep.subr.bf16.mxu0 0
    %1928 = vmatpush1.bf16.msra.mxu0 0
    %1929 = vmatprep.subr.bf16.mxu0 0
    %1930 = vmatpush1.bf16.msra.mxu0 0
    %1931 = vmatprep.subr.bf16.mxu0 0
    %1932 = vmatpush1.bf16.msra.mxu0 0
    %1933 = vmatprep.subr.bf16.mxu0 0
    %1934 = vmatpush1.bf16.msra.mxu0 0
    %1935 = vmatprep.subr.bf16.mxu0 0
    %1936 = vmatpush1.bf16.msra.mxu0 0
    %1937 = vmatprep.subr.bf16.mxu0 0
    %1938 = vmatpush1.bf16.msra.mxu0 0
    %1939 = vmatprep.subr.bf16.mxu0 0
    %1940 = vmatpush1.bf16.msra.mxu0 0
    %1941 = vmatprep.subr.bf16.mxu0 0
    %1942 = vmatpush1.bf16.msra.mxu0 0
    %1943 = vmatprep.subr.bf16.mxu0 0
    %1944 = vmatpush1.bf16.msra.mxu0 0
    %1945 = vmatprep.subr.bf16.mxu0 0
    %1946 = vmatpush1.bf16.msra.mxu0 0
    %1947 = vmatprep.mubr.bf16.mxu0 0
    %1948 = vmatmul.mubr.bf16.gmra.mrb[0].mxu0 %v1872
    %v1949 = vpop.f32.mrb[0].mxu0
    %v1950 = vadd.f32 %v650, %v1949
    %v1951 = vpop.f32.mrb[0].mxu0
    %v1952 = vadd.f32 %v652, %v1951
    %v1953 = vpop.f32.mrb[0].mxu0
    %v1954 = vpop.f32.mrb[0].mxu0
    %1955 = vdwg.mxu0
    %1956 = vmatprep.subr.bf16.mxu0 %v1619
    %1957 = vmatpush1.bf16.msra.mxu0 %v1618
    %1958 = vmatprep.subr.bf16.mxu0 %v1651
    %1959 = vmatpush1.bf16.msra.mxu0 %v1650
    %1960 = vmatprep.subr.bf16.mxu0 %v1683
    %1961 = vmatpush1.bf16.msra.mxu0 %v1682
    %1962 = vmatprep.subr.bf16.mxu0 %v1715
    %1963 = vmatpush1.bf16.msra.mxu0 %v1714
    %1964 = vmatprep.subr.bf16.mxu0 0
    %1965 = vmatpush1.bf16.msra.mxu0 0
    %1966 = vmatprep.subr.bf16.mxu0 0
    %1967 = vmatpush1.bf16.msra.mxu0 0
    %1968 = vmatprep.subr.bf16.mxu0 0
    %1969 = vmatpush1.bf16.msra.mxu0 0
    %1970 = vmatprep.subr.bf16.mxu0 0
    %1971 = vmatpush1.bf16.msra.mxu0 0
    %1972 = vmatprep.subr.bf16.mxu0 0
    %1973 = vmatpush1.bf16.msra.mxu0 0
    %1974 = vmatprep.subr.bf16.mxu0 0
    %1975 = vmatpush1.bf16.msra.mxu0 0
    %1976 = vmatprep.subr.bf16.mxu0 0
    %1977 = vmatpush1.bf16.msra.mxu0 0
    %1978 = vmatprep.subr.bf16.mxu0 0
    %1979 = vmatpush1.bf16.msra.mxu0 0
    %1980 = vmatprep.subr.bf16.mxu0 0
    %1981 = vmatpush1.bf16.msra.mxu0 0
    %1982 = vmatprep.subr.bf16.mxu0 0
    %1983 = vmatpush1.bf16.msra.mxu0 0
    %1984 = vmatprep.subr.bf16.mxu0 0
    %1985 = vmatpush1.bf16.msra.mxu0 0
    %1986 = vmatprep.subr.bf16.mxu0 0
    %1987 = vmatpush1.bf16.msra.mxu0 0
    %1988 = vmatprep.mubr.bf16.mxu0 0
    %1989 = vmatmul.mubr.bf16.gmra.mrb[0].mxu0 %v1872
    %v1990 = vpop.f32.mrb[0].mxu0
    %v1991 = vadd.f32 %v691, %v1990
    %v1992 = vpop.f32.mrb[0].mxu0
    %v1993 = vadd.f32 %v693, %v1992
    %v1994 = vpop.f32.mrb[0].mxu0
    %v1995 = vpop.f32.mrb[0].mxu0
    %1996 = vdwg.mxu0
    %1997 = vmatprep.subr.bf16.mxu0 %v1621
    %1998 = vmatpush1.bf16.msra.mxu0 %v1620
    %1999 = vmatprep.subr.bf16.mxu0 %v1653
    %2000 = vmatpush1.bf16.msra.mxu0 %v1652
    %2001 = vmatprep.subr.bf16.mxu0 %v1685
    %2002 = vmatpush1.bf16.msra.mxu0 %v1684
    %2003 = vmatprep.subr.bf16.mxu0 %v1717
    %2004 = vmatpush1.bf16.msra.mxu0 %v1716
    %2005 = vmatprep.subr.bf16.mxu0 0
    %2006 = vmatpush1.bf16.msra.mxu0 0
    %2007 = vmatprep.subr.bf16.mxu0 0
    %2008 = vmatpush1.bf16.msra.mxu0 0
    %2009 = vmatprep.subr.bf16.mxu0 0
    %2010 = vmatpush1.bf16.msra.mxu0 0
    %2011 = vmatprep.subr.bf16.mxu0 0
    %2012 = vmatpush1.bf16.msra.mxu0 0
    %2013 = vmatprep.subr.bf16.mxu0 0
    %2014 = vmatpush1.bf16.msra.mxu0 0
    %2015 = vmatprep.subr.bf16.mxu0 0
    %2016 = vmatpush1.bf16.msra.mxu0 0
    %2017 = vmatprep.subr.bf16.mxu0 0
    %2018 = vmatpush1.bf16.msra.mxu0 0
    %2019 = vmatprep.subr.bf16.mxu0 0
    %2020 = vmatpush1.bf16.msra.mxu0 0
    %2021 = vmatprep.subr.bf16.mxu0 0
    %2022 = vmatpush1.bf16.msra.mxu0 0
    %2023 = vmatprep.subr.bf16.mxu0 0
    %2024 = vmatpush1.bf16.msra.mxu0 0
    %2025 = vmatprep.subr.bf16.mxu0 0
    %2026 = vmatpush1.bf16.msra.mxu0 0
    %2027 = vmatprep.subr.bf16.mxu0 0
    %2028 = vmatpush1.bf16.msra.mxu0 0
    %2029 = vmatprep.mubr.bf16.mxu0 0
    %2030 = vmatmul.mubr.bf16.gmra.mrb[0].mxu0 %v1872
    %v2031 = vpop.f32.mrb[0].mxu0
    %v2032 = vadd.f32 %v732, %v2031
    %v2033 = vpop.f32.mrb[0].mxu0
    %v2034 = vadd.f32 %v734, %v2033
    %v2035 = vpop.f32.mrb[0].mxu0
    %v2036 = vpop.f32.mrb[0].mxu0
    %2037 = vdwg.mxu0
    %2038 = vmatprep.subr.bf16.mxu0 %v1623
    %2039 = vmatpush1.bf16.msra.mxu0 %v1622
    %2040 = vmatprep.subr.bf16.mxu0 %v1655
    %2041 = vmatpush1.bf16.msra.mxu0 %v1654
    %2042 = vmatprep.subr.bf16.mxu0 %v1687
    %2043 = vmatpush1.bf16.msra.mxu0 %v1686
    %2044 = vmatprep.subr.bf16.mxu0 %v1719
    %2045 = vmatpush1.bf16.msra.mxu0 %v1718
    %2046 = vmatprep.subr.bf16.mxu0 0
    %2047 = vmatpush1.bf16.msra.mxu0 0
    %2048 = vmatprep.subr.bf16.mxu0 0
    %2049 = vmatpush1.bf16.msra.mxu0 0
    %2050 = vmatprep.subr.bf16.mxu0 0
    %2051 = vmatpush1.bf16.msra.mxu0 0
    %2052 = vmatprep.subr.bf16.mxu0 0
    %2053 = vmatpush1.bf16.msra.mxu0 0
    %2054 = vmatprep.subr.bf16.mxu0 0
    %2055 = vmatpush1.bf16.msra.mxu0 0
    %2056 = vmatprep.subr.bf16.mxu0 0
    %2057 = vmatpush1.bf16.msra.mxu0 0
    %2058 = vmatprep.subr.bf16.mxu0 0
    %2059 = vmatpush1.bf16.msra.mxu0 0
    %2060 = vmatprep.subr.bf16.mxu0 0
    %2061 = vmatpush1.bf16.msra.mxu0 0
    %2062 = vmatprep.subr.bf16.mxu0 0
    %2063 = vmatpush1.bf16.msra.mxu0 0
    %2064 = vmatprep.subr.bf16.mxu0 0
    %2065 = vmatpush1.bf16.msra.mxu0 0
    %2066 = vmatprep.subr.bf16.mxu0 0
    %2067 = vmatpush1.bf16.msra.mxu0 0
    %2068 = vmatprep.subr.bf16.mxu0 0
    %2069 = vmatpush1.bf16.msra.mxu0 0
    %2070 = vmatprep.mubr.bf16.mxu0 0
    %2071 = vmatmul.mubr.bf16.gmra.mrb[0].mxu0 %v1872
    %v2072 = vpop.f32.mrb[0].mxu0
    %v2073 = vadd.f32 %v773, %v2072
    %v2074 = vpop.f32.mrb[0].mxu0
    %v2075 = vadd.f32 %v775, %v2074
    %v2076 = vpop.f32.mrb[0].mxu0
    %v2077 = vpop.f32.mrb[0].mxu0
    %2078 = vdwg.mxu0
    %2079 = vmatprep.subr.bf16.mxu0 %v1625
    %2080 = vmatpush1.bf16.msra.mxu0 %v1624
    %2081 = vmatprep.subr.bf16.mxu0 %v1657
    %2082 = vmatpush1.bf16.msra.mxu0 %v1656
    %2083 = vmatprep.subr.bf16.mxu0 %v1689
    %2084 = vmatpush1.bf16.msra.mxu0 %v1688
    %2085 = vmatprep.subr.bf16.mxu0 %v1721
    %2086 = vmatpush1.bf16.msra.mxu0 %v1720
    %2087 = vmatprep.subr.bf16.mxu0 0
    %2088 = vmatpush1.bf16.msra.mxu0 0
    %2089 = vmatprep.subr.bf16.mxu0 0
    %2090 = vmatpush1.bf16.msra.mxu0 0
    %2091 = vmatprep.subr.bf16.mxu0 0
    %2092 = vmatpush1.bf16.msra.mxu0 0
    %2093 = vmatprep.subr.bf16.mxu0 0
    %2094 = vmatpush1.bf16.msra.mxu0 0
    %2095 = vmatprep.subr.bf16.mxu0 0
    %2096 = vmatpush1.bf16.msra.mxu0 0
    %2097 = vmatprep.subr.bf16.mxu0 0
    %2098 = vmatpush1.bf16.msra.mxu0 0
    %2099 = vmatprep.subr.bf16.mxu0 0
    %2100 = vmatpush1.bf16.msra.mxu0 0
    %2101 = vmatprep.subr.bf16.mxu0 0
    %2102 = vmatpush1.bf16.msra.mxu0 0
    %2103 = vmatprep.subr.bf16.mxu0 0
    %2104 = vmatpush1.bf16.msra.mxu0 0
    %2105 = vmatprep.subr.bf16.mxu0 0
    %2106 = vmatpush1.bf16.msra.mxu0 0
    %2107 = vmatprep.subr.bf16.mxu0 0
    %2108 = vmatpush1.bf16.msra.mxu0 0
    %2109 = vmatprep.subr.bf16.mxu0 0
    %2110 = vmatpush1.bf16.msra.mxu0 0
    %2111 = vmatprep.mubr.bf16.mxu0 0
    %2112 = vmatmul.mubr.bf16.gmra.mrb[0].mxu0 %v1872
    %v2113 = vpop.f32.mrb[0].mxu0
    %v2114 = vadd.f32 %v814, %v2113
    %v2115 = vpop.f32.mrb[0].mxu0
    %v2116 = vadd.f32 %v816, %v2115
    %v2117 = vpop.f32.mrb[0].mxu0
    %v2118 = vpop.f32.mrb[0].mxu0
    %2119 = vdwg.mxu0
    %2120 = vmatprep.subr.bf16.mxu0 %v1627
    %2121 = vmatpush1.bf16.msra.mxu0 %v1626
    %2122 = vmatprep.subr.bf16.mxu0 %v1659
    %2123 = vmatpush1.bf16.msra.mxu0 %v1658
    %2124 = vmatprep.subr.bf16.mxu0 %v1691
    %2125 = vmatpush1.bf16.msra.mxu0 %v1690
    %2126 = vmatprep.subr.bf16.mxu0 %v1723
    %2127 = vmatpush1.bf16.msra.mxu0 %v1722
    %2128 = vmatprep.subr.bf16.mxu0 0
    %2129 = vmatpush1.bf16.msra.mxu0 0
    %2130 = vmatprep.subr.bf16.mxu0 0
    %2131 = vmatpush1.bf16.msra.mxu0 0
    %2132 = vmatprep.subr.bf16.mxu0 0
    %2133 = vmatpush1.bf16.msra.mxu0 0
    %2134 = vmatprep.subr.bf16.mxu0 0
    %2135 = vmatpush1.bf16.msra.mxu0 0
    %2136 = vmatprep.subr.bf16.mxu0 0
    %2137 = vmatpush1.bf16.msra.mxu0 0
    %2138 = vmatprep.subr.bf16.mxu0 0
    %2139 = vmatpush1.bf16.msra.mxu0 0
    %2140 = vmatprep.subr.bf16.mxu0 0
    %2141 = vmatpush1.bf16.msra.mxu0 0
    %2142 = vmatprep.subr.bf16.mxu0 0
    %2143 = vmatpush1.bf16.msra.mxu0 0
    %2144 = vmatprep.subr.bf16.mxu0 0
    %2145 = vmatpush1.bf16.msra.mxu0 0
    %2146 = vmatprep.subr.bf16.mxu0 0
    %2147 = vmatpush1.bf16.msra.mxu0 0
    %2148 = vmatprep.subr.bf16.mxu0 0
    %2149 = vmatpush1.bf16.msra.mxu0 0
    %2150 = vmatprep.subr.bf16.mxu0 0
    %2151 = vmatpush1.bf16.msra.mxu0 0
    %2152 = vmatprep.mubr.bf16.mxu0 0
    %2153 = vmatmul.mubr.bf16.gmra.mrb[0].mxu0 %v1872
    %v2154 = vpop.f32.mrb[0].mxu0
    %v2155 = vadd.f32 %v855, %v2154
    %v2156 = vpop.f32.mrb[0].mxu0
    %v2157 = vadd.f32 %v857, %v2156
    %v2158 = vpop.f32.mrb[0].mxu0
    %v2159 = vpop.f32.mrb[0].mxu0
    %2160 = vdwg.mxu0
    %2161 = vmatprep.subr.bf16.mxu0 %v1629
    %2162 = vmatpush1.bf16.msra.mxu0 %v1628
    %2163 = vmatprep.subr.bf16.mxu0 %v1661
    %2164 = vmatpush1.bf16.msra.mxu0 %v1660
    %2165 = vmatprep.subr.bf16.mxu0 %v1693
    %2166 = vmatpush1.bf16.msra.mxu0 %v1692
    %2167 = vmatprep.subr.bf16.mxu0 %v1725
    %2168 = vmatpush1.bf16.msra.mxu0 %v1724
    %2169 = vmatprep.subr.bf16.mxu0 0
    %2170 = vmatpush1.bf16.msra.mxu0 0
    %2171 = vmatprep.subr.bf16.mxu0 0
    %2172 = vmatpush1.bf16.msra.mxu0 0
    %2173 = vmatprep.subr.bf16.mxu0 0
    %2174 = vmatpush1.bf16.msra.mxu0 0
    %2175 = vmatprep.subr.bf16.mxu0 0
    %2176 = vmatpush1.bf16.msra.mxu0 0
    %2177 = vmatprep.subr.bf16.mxu0 0
    %2178 = vmatpush1.bf16.msra.mxu0 0
    %2179 = vmatprep.subr.bf16.mxu0 0
    %2180 = vmatpush1.bf16.msra.mxu0 0
    %2181 = vmatprep.subr.bf16.mxu0 0
    %2182 = vmatpush1.bf16.msra.mxu0 0
    %2183 = vmatprep.subr.bf16.mxu0 0
    %2184 = vmatpush1.bf16.msra.mxu0 0
    %2185 = vmatprep.subr.bf16.mxu0 0
    %2186 = vmatpush1.bf16.msra.mxu0 0
    %2187 = vmatprep.subr.bf16.mxu0 0
    %2188 = vmatpush1.bf16.msra.mxu0 0
    %2189 = vmatprep.subr.bf16.mxu0 0
    %2190 = vmatpush1.bf16.msra.mxu0 0
    %2191 = vmatprep.subr.bf16.mxu0 0
    %2192 = vmatpush1.bf16.msra.mxu0 0
    %2193 = vmatprep.mubr.bf16.mxu0 0
    %2194 = vmatmul.mubr.bf16.gmra.mrb[0].mxu0 %v1872
    %v2195 = vpop.f32.mrb[0].mxu0
    %v2196 = vadd.f32 %v896, %v2195
    %v2197 = vpop.f32.mrb[0].mxu0
    %v2198 = vadd.f32 %v898, %v2197
    %v2199 = vpop.f32.mrb[0].mxu0
    %v2200 = vpop.f32.mrb[0].mxu0
    %2201 = vdwg.mxu0
    %2202 = vmatprep.subr.bf16.mxu0 %v1631
    %2203 = vmatpush1.bf16.msra.mxu0 %v1630
    %2204 = vmatprep.subr.bf16.mxu0 %v1663
    %2205 = vmatpush1.bf16.msra.mxu0 %v1662
    %2206 = vmatprep.subr.bf16.mxu0 %v1695
    %2207 = vmatpush1.bf16.msra.mxu0 %v1694
    %2208 = vmatprep.subr.bf16.mxu0 %v1727
    %2209 = vmatpush1.bf16.msra.mxu0 %v1726
    %2210 = vmatprep.subr.bf16.mxu0 0
    %2211 = vmatpush1.bf16.msra.mxu0 0
    %2212 = vmatprep.subr.bf16.mxu0 0
    %2213 = vmatpush1.bf16.msra.mxu0 0
    %2214 = vmatprep.subr.bf16.mxu0 0
    %2215 = vmatpush1.bf16.msra.mxu0 0
    %2216 = vmatprep.subr.bf16.mxu0 0
    %2217 = vmatpush1.bf16.msra.mxu0 0
    %2218 = vmatprep.subr.bf16.mxu0 0
    %2219 = vmatpush1.bf16.msra.mxu0 0
    %2220 = vmatprep.subr.bf16.mxu0 0
    %2221 = vmatpush1.bf16.msra.mxu0 0
    %2222 = vmatprep.subr.bf16.mxu0 0
    %2223 = vmatpush1.bf16.msra.mxu0 0
    %2224 = vmatprep.subr.bf16.mxu0 0
    %2225 = vmatpush1.bf16.msra.mxu0 0
    %2226 = vmatprep.subr.bf16.mxu0 0
    %2227 = vmatpush1.bf16.msra.mxu0 0
    %2228 = vmatprep.subr.bf16.mxu0 0
    %2229 = vmatpush1.bf16.msra.mxu0 0
    %2230 = vmatprep.subr.bf16.mxu0 0
    %2231 = vmatpush1.bf16.msra.mxu0 0
    %2232 = vmatprep.subr.bf16.mxu0 0
    %2233 = vmatpush1.bf16.msra.mxu0 0
    %2234 = vmatprep.mubr.bf16.mxu0 0
    %2235 = vmatmul.mubr.bf16.gmra.mrb[0].mxu0 %v1872
    %v2236 = vpop.f32.mrb[0].mxu0
    %v2237 = vadd.f32 %v937, %v2236
    %v2238 = vpop.f32.mrb[0].mxu0
    %v2239 = vadd.f32 %v939, %v2238
    %v2240 = vpop.f32.mrb[0].mxu0
    %v2241 = vpop.f32.mrb[0].mxu0
    %2242 = vdwg.mxu0
    %2243 = vmatprep.subr.bf16.mxu0 %v1633
    %2244 = vmatpush1.bf16.msra.mxu0 %v1632
    %2245 = vmatprep.subr.bf16.mxu0 %v1665
    %2246 = vmatpush1.bf16.msra.mxu0 %v1664
    %2247 = vmatprep.subr.bf16.mxu0 %v1697
    %2248 = vmatpush1.bf16.msra.mxu0 %v1696
    %2249 = vmatprep.subr.bf16.mxu0 %v1729
    %2250 = vmatpush1.bf16.msra.mxu0 %v1728
    %2251 = vmatprep.subr.bf16.mxu0 0
    %2252 = vmatpush1.bf16.msra.mxu0 0
    %2253 = vmatprep.subr.bf16.mxu0 0
    %2254 = vmatpush1.bf16.msra.mxu0 0
    %2255 = vmatprep.subr.bf16.mxu0 0
    %2256 = vmatpush1.bf16.msra.mxu0 0
    %2257 = vmatprep.subr.bf16.mxu0 0
    %2258 = vmatpush1.bf16.msra.mxu0 0
    %2259 = vmatprep.subr.bf16.mxu0 0
    %2260 = vmatpush1.bf16.msra.mxu0 0
    %2261 = vmatprep.subr.bf16.mxu0 0
    %2262 = vmatpush1.bf16.msra.mxu0 0
    %2263 = vmatprep.subr.bf16.mxu0 0
    %2264 = vmatpush1.bf16.msra.mxu0 0
    %2265 = vmatprep.subr.bf16.mxu0 0
    %2266 = vmatpush1.bf16.msra.mxu0 0
    %2267 = vmatprep.subr.bf16.mxu0 0
    %2268 = vmatpush1.bf16.msra.mxu0 0
    %2269 = vmatprep.subr.bf16.mxu0 0
    %2270 = vmatpush1.bf16.msra.mxu0 0
    %2271 = vmatprep.subr.bf16.mxu0 0
    %2272 = vmatpush1.bf16.msra.mxu0 0
    %2273 = vmatprep.subr.bf16.mxu0 0
    %2274 = vmatpush1.bf16.msra.mxu0 0
    %2275 = vmatprep.mubr.bf16.mxu0 0
    %2276 = vmatmul.mubr.bf16.gmra.mrb[0].mxu0 %v1872
    %v2277 = vpop.f32.mrb[0].mxu0
    %v2278 = vadd.f32 %v978, %v2277
    %v2279 = vpop.f32.mrb[0].mxu0
    %v2280 = vadd.f32 %v980, %v2279
    %v2281 = vpop.f32.mrb[0].mxu0
    %v2282 = vpop.f32.mrb[0].mxu0
    %2283 = vdwg.mxu0
    %2284 = vmatprep.subr.bf16.mxu0 %v1635
    %2285 = vmatpush1.bf16.msra.mxu0 %v1634
    %2286 = vmatprep.subr.bf16.mxu0 %v1667
    %2287 = vmatpush1.bf16.msra.mxu0 %v1666
    %2288 = vmatprep.subr.bf16.mxu0 %v1699
    %2289 = vmatpush1.bf16.msra.mxu0 %v1698
    %2290 = vmatprep.subr.bf16.mxu0 %v1731
    %2291 = vmatpush1.bf16.msra.mxu0 %v1730
    %2292 = vmatprep.subr.bf16.mxu0 0
    %2293 = vmatpush1.bf16.msra.mxu0 0
    %2294 = vmatprep.subr.bf16.mxu0 0
    %2295 = vmatpush1.bf16.msra.mxu0 0
    %2296 = vmatprep.subr.bf16.mxu0 0
    %2297 = vmatpush1.bf16.msra.mxu0 0
    %2298 = vmatprep.subr.bf16.mxu0 0
    %2299 = vmatpush1.bf16.msra.mxu0 0
    %2300 = vmatprep.subr.bf16.mxu0 0
    %2301 = vmatpush1.bf16.msra.mxu0 0
    %2302 = vmatprep.subr.bf16.mxu0 0
    %2303 = vmatpush1.bf16.msra.mxu0 0
    %2304 = vmatprep.subr.bf16.mxu0 0
    %2305 = vmatpush1.bf16.msra.mxu0 0
    %2306 = vmatprep.subr.bf16.mxu0 0
    %2307 = vmatpush1.bf16.msra.mxu0 0
    %2308 = vmatprep.subr.bf16.mxu0 0
    %2309 = vmatpush1.bf16.msra.mxu0 0
    %2310 = vmatprep.subr.bf16.mxu0 0
    %2311 = vmatpush1.bf16.msra.mxu0 0
    %2312 = vmatprep.subr.bf16.mxu0 0
    %2313 = vmatpush1.bf16.msra.mxu0 0
    %2314 = vmatprep.subr.bf16.mxu0 0
    %2315 = vmatpush1.bf16.msra.mxu0 0
    %2316 = vmatprep.mubr.bf16.mxu0 0
    %2317 = vmatmul.mubr.bf16.gmra.mrb[0].mxu0 %v1872
    %v2318 = vpop.f32.mrb[0].mxu0
    %v2319 = vadd.f32 %v1019, %v2318
    %v2320 = vpop.f32.mrb[0].mxu0
    %v2321 = vadd.f32 %v1021, %v2320
    %v2322 = vpop.f32.mrb[0].mxu0
    %v2323 = vpop.f32.mrb[0].mxu0
    %2324 = vdwg.mxu0
    %2325 = vmatprep.subr.bf16.mxu0 %v1637
    %2326 = vmatpush1.bf16.msra.mxu0 %v1636
    %2327 = vmatprep.subr.bf16.mxu0 %v1669
    %2328 = vmatpush1.bf16.msra.mxu0 %v1668
    %2329 = vmatprep.subr.bf16.mxu0 %v1701
    %2330 = vmatpush1.bf16.msra.mxu0 %v1700
    %2331 = vmatprep.subr.bf16.mxu0 %v1733
    %2332 = vmatpush1.bf16.msra.mxu0 %v1732
    %2333 = vmatprep.subr.bf16.mxu0 0
    %2334 = vmatpush1.bf16.msra.mxu0 0
    %2335 = vmatprep.subr.bf16.mxu0 0
    %2336 = vmatpush1.bf16.msra.mxu0 0
    %2337 = vmatprep.subr.bf16.mxu0 0
    %2338 = vmatpush1.bf16.msra.mxu0 0
    %2339 = vmatprep.subr.bf16.mxu0 0
    %2340 = vmatpush1.bf16.msra.mxu0 0
    %2341 = vmatprep.subr.bf16.mxu0 0
    %2342 = vmatpush1.bf16.msra.mxu0 0
    %2343 = vmatprep.subr.bf16.mxu0 0
    %2344 = vmatpush1.bf16.msra.mxu0 0
    %2345 = vmatprep.subr.bf16.mxu0 0
    %2346 = vmatpush1.bf16.msra.mxu0 0
    %2347 = vmatprep.subr.bf16.mxu0 0
    %2348 = vmatpush1.bf16.msra.mxu0 0
    %2349 = vmatprep.subr.bf16.mxu0 0
    %2350 = vmatpush1.bf16.msra.mxu0 0
    %2351 = vmatprep.subr.bf16.mxu0 0
    %2352 = vmatpush1.bf16.msra.mxu0 0
    %2353 = vmatprep.subr.bf16.mxu0 0
    %2354 = vmatpush1.bf16.msra.mxu0 0
    %2355 = vmatprep.subr.bf16.mxu0 0
    %2356 = vmatpush1.bf16.msra.mxu0 0
    %2357 = vmatprep.mubr.bf16.mxu0 0
    %2358 = vmatmul.mubr.bf16.gmra.mrb[0].mxu0 %v1872
    %v2359 = vpop.f32.mrb[0].mxu0
    %v2360 = vadd.f32 %v1060, %v2359
    %v2361 = vpop.f32.mrb[0].mxu0
    %v2362 = vadd.f32 %v1062, %v2361
    %v2363 = vpop.f32.mrb[0].mxu0
    %v2364 = vpop.f32.mrb[0].mxu0
    %2365 = vdwg.mxu0
    %2366 = vmatprep.subr.bf16.mxu0 %v1639
    %2367 = vmatpush1.bf16.msra.mxu0 %v1638
    %2368 = vmatprep.subr.bf16.mxu0 %v1671
    %2369 = vmatpush1.bf16.msra.mxu0 %v1670
    %2370 = vmatprep.subr.bf16.mxu0 %v1703
    %2371 = vmatpush1.bf16.msra.mxu0 %v1702
    %2372 = vmatprep.subr.bf16.mxu0 %v1735
    %2373 = vmatpush1.bf16.msra.mxu0 %v1734
    %2374 = vmatprep.subr.bf16.mxu0 0
    %2375 = vmatpush1.bf16.msra.mxu0 0
    %2376 = vmatprep.subr.bf16.mxu0 0
    %2377 = vmatpush1.bf16.msra.mxu0 0
    %2378 = vmatprep.subr.bf16.mxu0 0
    %2379 = vmatpush1.bf16.msra.mxu0 0
    %2380 = vmatprep.subr.bf16.mxu0 0
    %2381 = vmatpush1.bf16.msra.mxu0 0
    %2382 = vmatprep.subr.bf16.mxu0 0
    %2383 = vmatpush1.bf16.msra.mxu0 0
    %2384 = vmatprep.subr.bf16.mxu0 0
    %2385 = vmatpush1.bf16.msra.mxu0 0
    %2386 = vmatprep.subr.bf16.mxu0 0
    %2387 = vmatpush1.bf16.msra.mxu0 0
    %2388 = vmatprep.subr.bf16.mxu0 0
    %2389 = vmatpush1.bf16.msra.mxu0 0
    %2390 = vmatprep.subr.bf16.mxu0 0
    %2391 = vmatpush1.bf16.msra.mxu0 0
    %2392 = vmatprep.subr.bf16.mxu0 0
    %2393 = vmatpush1.bf16.msra.mxu0 0
    %2394 = vmatprep.subr.bf16.mxu0 0
    %2395 = vmatpush1.bf16.msra.mxu0 0
    %2396 = vmatprep.subr.bf16.mxu0 0
    %2397 = vmatpush1.bf16.msra.mxu0 0
    %2398 = vmatprep.mubr.bf16.mxu0 0
    %2399 = vmatmul.mubr.bf16.gmra.mrb[0].mxu0 %v1872
    %v2400 = vpop.f32.mrb[0].mxu0
    %v2401 = vadd.f32 %v1101, %v2400
    %v2402 = vpop.f32.mrb[0].mxu0
    %v2403 = vadd.f32 %v1103, %v2402
    %v2404 = vpop.f32.mrb[0].mxu0
    %v2405 = vpop.f32.mrb[0].mxu0
    %2406 = vdwg.mxu0
    %2407 = vmatprep.subr.bf16.mxu0 %v1641
    %2408 = vmatpush1.bf16.msra.mxu0 %v1640
    %2409 = vmatprep.subr.bf16.mxu0 %v1673
    %2410 = vmatpush1.bf16.msra.mxu0 %v1672
    %2411 = vmatprep.subr.bf16.mxu0 %v1705
    %2412 = vmatpush1.bf16.msra.mxu0 %v1704
    %2413 = vmatprep.subr.bf16.mxu0 %v1737
    %2414 = vmatpush1.bf16.msra.mxu0 %v1736
    %2415 = vmatprep.subr.bf16.mxu0 0
    %2416 = vmatpush1.bf16.msra.mxu0 0
    %2417 = vmatprep.subr.bf16.mxu0 0
    %2418 = vmatpush1.bf16.msra.mxu0 0
    %2419 = vmatprep.subr.bf16.mxu0 0
    %2420 = vmatpush1.bf16.msra.mxu0 0
    %2421 = vmatprep.subr.bf16.mxu0 0
    %2422 = vmatpush1.bf16.msra.mxu0 0
    %2423 = vmatprep.subr.bf16.mxu0 0
    %2424 = vmatpush1.bf16.msra.mxu0 0
    %2425 = vmatprep.subr.bf16.mxu0 0
    %2426 = vmatpush1.bf16.msra.mxu0 0
    %2427 = vmatprep.subr.bf16.mxu0 0
    %2428 = vmatpush1.bf16.msra.mxu0 0
    %2429 = vmatprep.subr.bf16.mxu0 0
    %2430 = vmatpush1.bf16.msra.mxu0 0
    %2431 = vmatprep.subr.bf16.mxu0 0
    %2432 = vmatpush1.bf16.msra.mxu0 0
    %2433 = vmatprep.subr.bf16.mxu0 0
    %2434 = vmatpush1.bf16.msra.mxu0 0
    %2435 = vmatprep.subr.bf16.mxu0 0
    %2436 = vmatpush1.bf16.msra.mxu0 0
    %2437 = vmatprep.subr.bf16.mxu0 0
    %2438 = vmatpush1.bf16.msra.mxu0 0
    %2439 = vmatprep.mubr.bf16.mxu0 0
    %2440 = vmatmul.mubr.bf16.gmra.mrb[0].mxu0 %v1872
    %v2441 = vpop.f32.mrb[0].mxu0
    %v2442 = vadd.f32 %v1142, %v2441
    %v2443 = vpop.f32.mrb[0].mxu0
    %v2444 = vadd.f32 %v1144, %v2443
    %v2445 = vpop.f32.mrb[0].mxu0
    %v2446 = vpop.f32.mrb[0].mxu0
    %2447 = vdwg.mxu0
    %2448 = vmatprep.subr.bf16.mxu0 %v1643
    %2449 = vmatpush1.bf16.msra.mxu0 %v1642
    %2450 = vmatprep.subr.bf16.mxu0 %v1675
    %2451 = vmatpush1.bf16.msra.mxu0 %v1674
    %2452 = vmatprep.subr.bf16.mxu0 %v1707
    %2453 = vmatpush1.bf16.msra.mxu0 %v1706
    %2454 = vmatprep.subr.bf16.mxu0 %v1739
    %2455 = vmatpush1.bf16.msra.mxu0 %v1738
    %2456 = vmatprep.subr.bf16.mxu0 0
    %2457 = vmatpush1.bf16.msra.mxu0 0
    %2458 = vmatprep.subr.bf16.mxu0 0
    %2459 = vmatpush1.bf16.msra.mxu0 0
    %2460 = vmatprep.subr.bf16.mxu0 0
    %2461 = vmatpush1.bf16.msra.mxu0 0
    %2462 = vmatprep.subr.bf16.mxu0 0
    %2463 = vmatpush1.bf16.msra.mxu0 0
    %2464 = vmatprep.subr.bf16.mxu0 0
    %2465 = vmatpush1.bf16.msra.mxu0 0
    %2466 = vmatprep.subr.bf16.mxu0 0
    %2467 = vmatpush1.bf16.msra.mxu0 0
    %2468 = vmatprep.subr.bf16.mxu0 0
    %2469 = vmatpush1.bf16.msra.mxu0 0
    %2470 = vmatprep.subr.bf16.mxu0 0
    %2471 = vmatpush1.bf16.msra.mxu0 0
    %2472 = vmatprep.subr.bf16.mxu0 0
    %2473 = vmatpush1.bf16.msra.mxu0 0
    %2474 = vmatprep.subr.bf16.mxu0 0
    %2475 = vmatpush1.bf16.msra.mxu0 0
    %2476 = vmatprep.subr.bf16.mxu0 0
    %2477 = vmatpush1.bf16.msra.mxu0 0
    %2478 = vmatprep.subr.bf16.mxu0 0
    %2479 = vmatpush1.bf16.msra.mxu0 0
    %2480 = vmatprep.mubr.bf16.mxu0 0
    %2481 = vmatmul.mubr.bf16.gmra.mrb[0].mxu0 %v1872
    %v2482 = vpop.f32.mrb[0].mxu0
    %v2483 = vadd.f32 %v1183, %v2482
    %v2484 = vpop.f32.mrb[0].mxu0
    %v2485 = vadd.f32 %v1185, %v2484
    %v2486 = vpop.f32.mrb[0].mxu0
    %v2487 = vpop.f32.mrb[0].mxu0
    %2488 = vdwg.mxu0
    %2489 = vmatprep.subr.bf16.mxu0 %v1645
    %2490 = vmatpush1.bf16.msra.mxu0 %v1644
    %2491 = vmatprep.subr.bf16.mxu0 %v1677
    %2492 = vmatpush1.bf16.msra.mxu0 %v1676
    %2493 = vmatprep.subr.bf16.mxu0 %v1709
    %2494 = vmatpush1.bf16.msra.mxu0 %v1708
    %2495 = vmatprep.subr.bf16.mxu0 %v1741
    %2496 = vmatpush1.bf16.msra.mxu0 %v1740
    %2497 = vmatprep.subr.bf16.mxu0 0
    %2498 = vmatpush1.bf16.msra.mxu0 0
    %2499 = vmatprep.subr.bf16.mxu0 0
    %2500 = vmatpush1.bf16.msra.mxu0 0
    %2501 = vmatprep.subr.bf16.mxu0 0
    %2502 = vmatpush1.bf16.msra.mxu0 0
    %2503 = vmatprep.subr.bf16.mxu0 0
    %2504 = vmatpush1.bf16.msra.mxu0 0
    %2505 = vmatprep.subr.bf16.mxu0 0
    %2506 = vmatpush1.bf16.msra.mxu0 0
    %2507 = vmatprep.subr.bf16.mxu0 0
    %2508 = vmatpush1.bf16.msra.mxu0 0
    %2509 = vmatprep.subr.bf16.mxu0 0
    %2510 = vmatpush1.bf16.msra.mxu0 0
    %2511 = vmatprep.subr.bf16.mxu0 0
    %2512 = vmatpush1.bf16.msra.mxu0 0
    %2513 = vmatprep.subr.bf16.mxu0 0
    %2514 = vmatpush1.bf16.msra.mxu0 0
    %2515 = vmatprep.subr.bf16.mxu0 0
    %2516 = vmatpush1.bf16.msra.mxu0 0
    %2517 = vmatprep.subr.bf16.mxu0 0
    %2518 = vmatpush1.bf16.msra.mxu0 0
    %2519 = vmatprep.subr.bf16.mxu0 0
    %2520 = vmatpush1.bf16.msra.mxu0 0
    %2521 = vmatprep.mubr.bf16.mxu0 0
    %2522 = vmatmul.mubr.bf16.gmra.mrb[0].mxu0 %v1872
    %v2523 = vpop.f32.mrb[0].mxu0
    %v2524 = vadd.f32 %v1224, %v2523
    %v2525 = vpop.f32.mrb[0].mxu0
    %v2526 = vadd.f32 %v1226, %v2525
    %v2527 = vpop.f32.mrb[0].mxu0
    %v2528 = vpop.f32.mrb[0].mxu0
    %2529 = vdwg.mxu0
    %v2530 = vld [vmem:[%s6] sm:$0xff]
    %v2531 = vld [vmem:[%s6 + $0x8] sm:$0xff]
    %v2532 = vld [vmem:[%s6 + $0x10] sm:$0xff]
    %v2533 = vld [vmem:[%s6 + $0x18] sm:$0xff]
    %v2538 = vlaneseq
    %v2539 = vshrl.u32 %v2538, 7
    %v2540 = vsub.s32 0, %v2539
    %v2541 = vrot.slane %v2530, %v2540
    %v2542 = vlaneseq
    %v2543 = vshrl.u32 %v2542, 7
    %v2544 = vsub.s32 1, %v2543
    %v2545 = vrot.slane %v2530, %v2544
    %v2546 = vlaneseq
    %v2547 = vshrl.u32 %v2546, 7
    %v2548 = vsub.s32 2, %v2547
    %v2549 = vrot.slane %v2530, %v2548
    %v2550 = vlaneseq
    %v2551 = vshrl.u32 %v2550, 7
    %v2552 = vsub.s32 3, %v2551
    %v2553 = vrot.slane %v2530, %v2552
    %v2554 = vlaneseq
    %v2555 = vshrl.u32 %v2554, 7
    %v2556 = vsub.s32 4, %v2555
    %v2557 = vrot.slane %v2530, %v2556
    %v2558 = vlaneseq
    %v2559 = vshrl.u32 %v2558, 7
    %v2560 = vsub.s32 5, %v2559
    %v2561 = vrot.slane %v2530, %v2560
    %v2562 = vlaneseq
    %v2563 = vshrl.u32 %v2562, 7
    %v2564 = vsub.s32 6, %v2563
    %v2565 = vrot.slane %v2530, %v2564
    %v2566 = vlaneseq
    %v2567 = vshrl.u32 %v2566, 7
    %v2568 = vsub.s32 7, %v2567
    %v2569 = vrot.slane %v2530, %v2568
    %v2570 = vlaneseq
    %v2571 = vshrl.u32 %v2570, 7
    %v2572 = vsub.s32 0, %v2571
    %v2573 = vrot.slane %v2531, %v2572
    %v2574 = vlaneseq
    %v2575 = vshrl.u32 %v2574, 7
    %v2576 = vsub.s32 1, %v2575
    %v2577 = vrot.slane %v2531, %v2576
    %v2578 = vlaneseq
    %v2579 = vshrl.u32 %v2578, 7
    %v2580 = vsub.s32 2, %v2579
    %v2581 = vrot.slane %v2531, %v2580
    %v2582 = vlaneseq
    %v2583 = vshrl.u32 %v2582, 7
    %v2584 = vsub.s32 3, %v2583
    %v2585 = vrot.slane %v2531, %v2584
    %v2586 = vlaneseq
    %v2587 = vshrl.u32 %v2586, 7
    %v2588 = vsub.s32 4, %v2587
    %v2589 = vrot.slane %v2531, %v2588
    %v2590 = vlaneseq
    %v2591 = vshrl.u32 %v2590, 7
    %v2592 = vsub.s32 5, %v2591
    %v2593 = vrot.slane %v2531, %v2592
    %v2594 = vlaneseq
    %v2595 = vshrl.u32 %v2594, 7
    %v2596 = vsub.s32 6, %v2595
    %v2597 = vrot.slane %v2531, %v2596
    %v2598 = vlaneseq
    %v2599 = vshrl.u32 %v2598, 7
    %v2600 = vsub.s32 7, %v2599
    %v2601 = vrot.slane %v2531, %v2600
    %v2602 = vlaneseq
    %v2603 = vshrl.u32 %v2602, 7
    %v2604 = vsub.s32 0, %v2603
    %v2605 = vrot.slane %v2532, %v2604
    %v2606 = vlaneseq
    %v2607 = vshrl.u32 %v2606, 7
    %v2608 = vsub.s32 1, %v2607
    %v2609 = vrot.slane %v2532, %v2608
    %v2610 = vlaneseq
    %v2611 = vshrl.u32 %v2610, 7
    %v2612 = vsub.s32 2, %v2611
    %v2613 = vrot.slane %v2532, %v2612
    %v2614 = vlaneseq
    %v2615 = vshrl.u32 %v2614, 7
    %v2616 = vsub.s32 3, %v2615
    %v2617 = vrot.slane %v2532, %v2616
    %v2618 = vlaneseq
    %v2619 = vshrl.u32 %v2618, 7
    %v2620 = vsub.s32 4, %v2619
    %v2621 = vrot.slane %v2532, %v2620
    %v2622 = vlaneseq
    %v2623 = vshrl.u32 %v2622, 7
    %v2624 = vsub.s32 5, %v2623
    %v2625 = vrot.slane %v2532, %v2624
    %v2626 = vlaneseq
    %v2627 = vshrl.u32 %v2626, 7
    %v2628 = vsub.s32 6, %v2627
    %v2629 = vrot.slane %v2532, %v2628
    %v2630 = vlaneseq
    %v2631 = vshrl.u32 %v2630, 7
    %v2632 = vsub.s32 7, %v2631
    %v2633 = vrot.slane %v2532, %v2632
    %v2634 = vlaneseq
    %v2635 = vshrl.u32 %v2634, 7
    %v2636 = vsub.s32 0, %v2635
    %v2637 = vrot.slane %v2533, %v2636
    %v2638 = vlaneseq
    %v2639 = vshrl.u32 %v2638, 7
    %v2640 = vsub.s32 1, %v2639
    %v2641 = vrot.slane %v2533, %v2640
    %v2642 = vlaneseq
    %v2643 = vshrl.u32 %v2642, 7
    %v2644 = vsub.s32 2, %v2643
    %v2645 = vrot.slane %v2533, %v2644
    %v2646 = vlaneseq
    %v2647 = vshrl.u32 %v2646, 7
    %v2648 = vsub.s32 3, %v2647
    %v2649 = vrot.slane %v2533, %v2648
    %v2650 = vlaneseq
    %v2651 = vshrl.u32 %v2650, 7
    %v2652 = vsub.s32 4, %v2651
    %v2653 = vrot.slane %v2533, %v2652
    %v2654 = vlaneseq
    %v2655 = vshrl.u32 %v2654, 7
    %v2656 = vsub.s32 5, %v2655
    %v2657 = vrot.slane %v2533, %v2656
    %v2658 = vlaneseq
    %v2659 = vshrl.u32 %v2658, 7
    %v2660 = vsub.s32 6, %v2659
    %v2661 = vrot.slane %v2533, %v2660
    %v2662 = vlaneseq
    %v2663 = vshrl.u32 %v2662, 7
    %v2664 = vsub.s32 7, %v2663
    %v2665 = vrot.slane %v2533, %v2664
    %v2698 = vadd.f32 %v1909, %v2541
    %v2699 = vadd.f32 %v1911, %v2545
    %v2700 = vadd.f32 %v1950, %v2549
    %v2701 = vadd.f32 %v1952, %v2553
    %v2702 = vadd.f32 %v1991, %v2557
    %v2703 = vadd.f32 %v1993, %v2561
    %v2704 = vadd.f32 %v2032, %v2565
    %v2705 = vadd.f32 %v2034, %v2569
    %v2706 = vadd.f32 %v2073, %v2573
    %v2707 = vadd.f32 %v2075, %v2577
    %v2708 = vadd.f32 %v2114, %v2581
    %v2709 = vadd.f32 %v2116, %v2585
    %v2710 = vadd.f32 %v2155, %v2589
    %v2711 = vadd.f32 %v2157, %v2593
    %v2712 = vadd.f32 %v2196, %v2597
    %v2713 = vadd.f32 %v2198, %v2601
    %v2714 = vadd.f32 %v2237, %v2605
    %v2715 = vadd.f32 %v2239, %v2609
    %v2716 = vadd.f32 %v2278, %v2613
    %v2717 = vadd.f32 %v2280, %v2617
    %v2718 = vadd.f32 %v2319, %v2621
    %v2719 = vadd.f32 %v2321, %v2625
    %v2720 = vadd.f32 %v2360, %v2629
    %v2721 = vadd.f32 %v2362, %v2633
    %v2722 = vadd.f32 %v2401, %v2637
    %v2723 = vadd.f32 %v2403, %v2641
    %v2724 = vadd.f32 %v2442, %v2645
    %v2725 = vadd.f32 %v2444, %v2649
    %v2726 = vadd.f32 %v2483, %v2653
    %v2727 = vadd.f32 %v2485, %v2657
    %v2728 = vadd.f32 %v2524, %v2661
    %v2729 = vadd.f32 %v2526, %v2665
    %vm2730 = vcmp.gt.f32.partialorder %v2698, 0.0
    %vm2731 = vcmp.gt.f32.partialorder %v2699, 0.0
    %vm2732 = vcmp.gt.f32.partialorder %v2700, 0.0
    %vm2733 = vcmp.gt.f32.partialorder %v2701, 0.0
    %vm2734 = vcmp.gt.f32.partialorder %v2702, 0.0
    %vm2735 = vcmp.gt.f32.partialorder %v2703, 0.0
    %vm2736 = vcmp.gt.f32.partialorder %v2704, 0.0
    %vm2737 = vcmp.gt.f32.partialorder %v2705, 0.0
    %vm2738 = vcmp.gt.f32.partialorder %v2706, 0.0
    %vm2739 = vcmp.gt.f32.partialorder %v2707, 0.0
    %vm2740 = vcmp.gt.f32.partialorder %v2708, 0.0
    %vm2741 = vcmp.gt.f32.partialorder %v2709, 0.0
    %vm2742 = vcmp.gt.f32.partialorder %v2710, 0.0
    %vm2743 = vcmp.gt.f32.partialorder %v2711, 0.0
    %vm2744 = vcmp.gt.f32.partialorder %v2712, 0.0
    %vm2745 = vcmp.gt.f32.partialorder %v2713, 0.0
    %vm2746 = vcmp.gt.f32.partialorder %v2714, 0.0
    %vm2747 = vcmp.gt.f32.partialorder %v2715, 0.0
    %vm2748 = vcmp.gt.f32.partialorder %v2716, 0.0
    %vm2749 = vcmp.gt.f32.partialorder %v2717, 0.0
    %vm2750 = vcmp.gt.f32.partialorder %v2718, 0.0
    %vm2751 = vcmp.gt.f32.partialorder %v2719, 0.0
    %vm2752 = vcmp.gt.f32.partialorder %v2720, 0.0
    %vm2753 = vcmp.gt.f32.partialorder %v2721, 0.0
    %vm2754 = vcmp.gt.f32.partialorder %v2722, 0.0
    %vm2755 = vcmp.gt.f32.partialorder %v2723, 0.0
    %vm2756 = vcmp.gt.f32.partialorder %v2724, 0.0
    %vm2757 = vcmp.gt.f32.partialorder %v2725, 0.0
    %vm2758 = vcmp.gt.f32.partialorder %v2726, 0.0
    %vm2759 = vcmp.gt.f32.partialorder %v2727, 0.0
    %vm2760 = vcmp.gt.f32.partialorder %v2728, 0.0
    %vm2761 = vcmp.gt.f32.partialorder %v2729, 0.0
    %v2762 = vmul.f32 %v2698, 0.01
    %v2763 = vmul.f32 %v2699, 0.01
    %v2764 = vmul.f32 %v2700, 0.01
    %v2765 = vmul.f32 %v2701, 0.01
    %v2766 = vmul.f32 %v2702, 0.01
    %v2767 = vmul.f32 %v2703, 0.01
    %v2768 = vmul.f32 %v2704, 0.01
    %v2769 = vmul.f32 %v2705, 0.01
    %v2770 = vmul.f32 %v2706, 0.01
    %v2771 = vmul.f32 %v2707, 0.01
    %v2772 = vmul.f32 %v2708, 0.01
    %v2773 = vmul.f32 %v2709, 0.01
    %v2774 = vmul.f32 %v2710, 0.01
    %v2775 = vmul.f32 %v2711, 0.01
    %v2776 = vmul.f32 %v2712, 0.01
    %v2777 = vmul.f32 %v2713, 0.01
    %v2778 = vmul.f32 %v2714, 0.01
    %v2779 = vmul.f32 %v2715, 0.01
    %v2780 = vmul.f32 %v2716, 0.01
    %v2781 = vmul.f32 %v2717, 0.01
    %v2782 = vmul.f32 %v2718, 0.01
    %v2783 = vmul.f32 %v2719, 0.01
    %v2784 = vmul.f32 %v2720, 0.01
    %v2785 = vmul.f32 %v2721, 0.01
    %v2786 = vmul.f32 %v2722, 0.01
    %v2787 = vmul.f32 %v2723, 0.01
    %v2788 = vmul.f32 %v2724, 0.01
    %v2789 = vmul.f32 %v2725, 0.01
    %v2790 = vmul.f32 %v2726, 0.01
    %v2791 = vmul.f32 %v2727, 0.01
    %v2792 = vmul.f32 %v2728, 0.01
    %v2793 = vmul.f32 %v2729, 0.01
    %v2794 = vsel %vm2730, %v2698, %v2762
    %v2795 = vsel %vm2731, %v2699, %v2763
    %v2796 = vsel %vm2732, %v2700, %v2764
    %v2797 = vsel %vm2733, %v2701, %v2765
    %v2798 = vsel %vm2734, %v2702, %v2766
    %v2799 = vsel %vm2735, %v2703, %v2767
    %v2800 = vsel %vm2736, %v2704, %v2768
    %v2801 = vsel %vm2737, %v2705, %v2769
    %v2802 = vsel %vm2738, %v2706, %v2770
    %v2803 = vsel %vm2739, %v2707, %v2771
    %v2804 = vsel %vm2740, %v2708, %v2772
    %v2805 = vsel %vm2741, %v2709, %v2773
    %v2806 = vsel %vm2742, %v2710, %v2774
    %v2807 = vsel %vm2743, %v2711, %v2775
    %v2808 = vsel %vm2744, %v2712, %v2776
    %v2809 = vsel %vm2745, %v2713, %v2777
    %v2810 = vsel %vm2746, %v2714, %v2778
    %v2811 = vsel %vm2747, %v2715, %v2779
    %v2812 = vsel %vm2748, %v2716, %v2780
    %v2813 = vsel %vm2749, %v2717, %v2781
    %v2814 = vsel %vm2750, %v2718, %v2782
    %v2815 = vsel %vm2751, %v2719, %v2783
    %v2816 = vsel %vm2752, %v2720, %v2784
    %v2817 = vsel %vm2753, %v2721, %v2785
    %v2818 = vsel %vm2754, %v2722, %v2786
    %v2819 = vsel %vm2755, %v2723, %v2787
    %v2820 = vsel %vm2756, %v2724, %v2788
    %v2821 = vsel %vm2757, %v2725, %v2789
    %v2822 = vsel %vm2758, %v2726, %v2790
    %v2823 = vsel %vm2759, %v2727, %v2791
    %v2824 = vsel %vm2760, %v2728, %v2792
    %v2825 = vsel %vm2761, %v2729, %v2793
    %v2826 = vpack.c.bf16 %v2794, %v2794
    %v2827 = vpack.c.bf16 %v2795, %v2795
    %v2828 = vpack.c.bf16 %v2796, %v2796
    %v2829 = vpack.c.bf16 %v2797, %v2797
    %v2830 = vpack.c.bf16 %v2798, %v2798
    %v2831 = vpack.c.bf16 %v2799, %v2799
    %v2832 = vpack.c.bf16 %v2800, %v2800
    %v2833 = vpack.c.bf16 %v2801, %v2801
    %v2834 = vpack.c.bf16 %v2802, %v2802
    %v2835 = vpack.c.bf16 %v2803, %v2803
    %v2836 = vpack.c.bf16 %v2804, %v2804
    %v2837 = vpack.c.bf16 %v2805, %v2805
    %v2838 = vpack.c.bf16 %v2806, %v2806
    %v2839 = vpack.c.bf16 %v2807, %v2807
    %v2840 = vpack.c.bf16 %v2808, %v2808
    %v2841 = vpack.c.bf16 %v2809, %v2809
    %v2842 = vpack.c.bf16 %v2810, %v2810
    %v2843 = vpack.c.bf16 %v2811, %v2811
    %v2844 = vpack.c.bf16 %v2812, %v2812
    %v2845 = vpack.c.bf16 %v2813, %v2813
    %v2846 = vpack.c.bf16 %v2814, %v2814
    %v2847 = vpack.c.bf16 %v2815, %v2815
    %v2848 = vpack.c.bf16 %v2816, %v2816
    %v2849 = vpack.c.bf16 %v2817, %v2817
    %v2850 = vpack.c.bf16 %v2818, %v2818
    %v2851 = vpack.c.bf16 %v2819, %v2819
    %v2852 = vpack.c.bf16 %v2820, %v2820
    %v2853 = vpack.c.bf16 %v2821, %v2821
    %v2854 = vpack.c.bf16 %v2822, %v2822
    %v2855 = vpack.c.bf16 %v2823, %v2823
    %v2856 = vpack.c.bf16 %v2824, %v2824
    %v2857 = vpack.c.bf16 %v2825, %v2825
    %v2858 = vld [vmem:[%s7] sm:$0xf]
    %v2859 = vld [vmem:[%s7 + $0x4] sm:$0xf]
    %v2860 = vld [vmem:[%s7 + $0x8] sm:$0xf]
    %v2861 = vld [vmem:[%s7 + $0xc] sm:$0xf]
    %v2862 = vld [vmem:[%s7 + $0x10] sm:$0xf]
    %v2863 = vld [vmem:[%s7 + $0x14] sm:$0xf]
    %v2864 = vld [vmem:[%s7 + $0x18] sm:$0xf]
    %v2865 = vld [vmem:[%s7 + $0x1c] sm:$0xf]
    %v2866 = vld [vmem:[%s7 + $0x20] sm:$0xf]
    %v2867 = vld [vmem:[%s7 + $0x24] sm:$0xf]
    %v2868 = vld [vmem:[%s7 + $0x28] sm:$0xf]
    %v2869 = vld [vmem:[%s7 + $0x2c] sm:$0xf]
    %v2870 = vld [vmem:[%s7 + $0x30] sm:$0xf]
    %v2871 = vld [vmem:[%s7 + $0x34] sm:$0xf]
    %v2872 = vld [vmem:[%s7 + $0x38] sm:$0xf]
    %v2873 = vld [vmem:[%s7 + $0x3c] sm:$0xf]
    %v2874 = vld [vmem:[%s7 + $0x40] sm:$0xf]
    %v2875 = vld [vmem:[%s7 + $0x44] sm:$0xf]
    %v2876 = vld [vmem:[%s7 + $0x48] sm:$0xf]
    %v2877 = vld [vmem:[%s7 + $0x4c] sm:$0xf]
    %v2878 = vld [vmem:[%s7 + $0x50] sm:$0xf]
    %v2879 = vld [vmem:[%s7 + $0x54] sm:$0xf]
    %v2880 = vld [vmem:[%s7 + $0x58] sm:$0xf]
    %v2881 = vld [vmem:[%s7 + $0x5c] sm:$0xf]
    %v2882 = vld [vmem:[%s7 + $0x60] sm:$0xf]
    %v2883 = vld [vmem:[%s7 + $0x64] sm:$0xf]
    %v2884 = vld [vmem:[%s7 + $0x68] sm:$0xf]
    %v2885 = vld [vmem:[%s7 + $0x6c] sm:$0xf]
    %v2886 = vld [vmem:[%s7 + $0x70] sm:$0xf]
    %v2887 = vld [vmem:[%s7 + $0x74] sm:$0xf]
    %v2888 = vld [vmem:[%s7 + $0x78] sm:$0xf]
    %v2889 = vld [vmem:[%s7 + $0x7c] sm:$0xf]
    %v2890 = vld [vmem:[%s7 + $0x80] sm:$0xf]
    %v2891 = vld [vmem:[%s7 + $0x84] sm:$0xf]
    %v2892 = vld [vmem:[%s7 + $0x88] sm:$0xf]
    %v2893 = vld [vmem:[%s7 + $0x8c] sm:$0xf]
    %v2894 = vld [vmem:[%s7 + $0x90] sm:$0xf]
    %v2895 = vld [vmem:[%s7 + $0x94] sm:$0xf]
    %v2896 = vld [vmem:[%s7 + $0x98] sm:$0xf]
    %v2897 = vld [vmem:[%s7 + $0x9c] sm:$0xf]
    %v2898 = vld [vmem:[%s7 + $0xa0] sm:$0xf]
    %v2899 = vld [vmem:[%s7 + $0xa4] sm:$0xf]
    %v2900 = vld [vmem:[%s7 + $0xa8] sm:$0xf]
    %v2901 = vld [vmem:[%s7 + $0xac] sm:$0xf]
    %v2902 = vld [vmem:[%s7 + $0xb0] sm:$0xf]
    %v2903 = vld [vmem:[%s7 + $0xb4] sm:$0xf]
    %v2904 = vld [vmem:[%s7 + $0xb8] sm:$0xf]
    %v2905 = vld [vmem:[%s7 + $0xbc] sm:$0xf]
    %v2906 = vld [vmem:[%s7 + $0xc0] sm:$0xf]
    %v2907 = vld [vmem:[%s7 + $0xc4] sm:$0xf]
    %v2908 = vld [vmem:[%s7 + $0xc8] sm:$0xf]
    %v2909 = vld [vmem:[%s7 + $0xcc] sm:$0xf]
    %v2910 = vld [vmem:[%s7 + $0xd0] sm:$0xf]
    %v2911 = vld [vmem:[%s7 + $0xd4] sm:$0xf]
    %v2912 = vld [vmem:[%s7 + $0xd8] sm:$0xf]
    %v2913 = vld [vmem:[%s7 + $0xdc] sm:$0xf]
    %v2914 = vld [vmem:[%s7 + $0xe0] sm:$0xf]
    %v2915 = vld [vmem:[%s7 + $0xe4] sm:$0xf]
    %v2916 = vld [vmem:[%s7 + $0xe8] sm:$0xf]
    %v2917 = vld [vmem:[%s7 + $0xec] sm:$0xf]
    %v2918 = vld [vmem:[%s7 + $0xf0] sm:$0xf]
    %v2919 = vld [vmem:[%s7 + $0xf4] sm:$0xf]
    %v2920 = vld [vmem:[%s7 + $0xf8] sm:$0xf]
    %v2921 = vld [vmem:[%s7 + $0xfc] sm:$0xf]
    %v2922 = vld [vmem:[%s7 + $0x100] sm:$0xf]
    %v2923 = vld [vmem:[%s7 + $0x104] sm:$0xf]
    %v2924 = vld [vmem:[%s7 + $0x108] sm:$0xf]
    %v2925 = vld [vmem:[%s7 + $0x10c] sm:$0xf]
    %v2926 = vld [vmem:[%s7 + $0x110] sm:$0xf]
    %v2927 = vld [vmem:[%s7 + $0x114] sm:$0xf]
    %v2928 = vld [vmem:[%s7 + $0x118] sm:$0xf]
    %v2929 = vld [vmem:[%s7 + $0x11c] sm:$0xf]
    %v2930 = vld [vmem:[%s7 + $0x120] sm:$0xf]
    %v2931 = vld [vmem:[%s7 + $0x124] sm:$0xf]
    %v2932 = vld [vmem:[%s7 + $0x128] sm:$0xf]
    %v2933 = vld [vmem:[%s7 + $0x12c] sm:$0xf]
    %v2934 = vld [vmem:[%s7 + $0x130] sm:$0xf]
    %v2935 = vld [vmem:[%s7 + $0x134] sm:$0xf]
    %v2936 = vld [vmem:[%s7 + $0x138] sm:$0xf]
    %v2937 = vld [vmem:[%s7 + $0x13c] sm:$0xf]
    %v2938 = vld [vmem:[%s7 + $0x140] sm:$0xf]
    %v2939 = vld [vmem:[%s7 + $0x144] sm:$0xf]
    %v2940 = vld [vmem:[%s7 + $0x148] sm:$0xf]
    %v2941 = vld [vmem:[%s7 + $0x14c] sm:$0xf]
    %v2942 = vld [vmem:[%s7 + $0x150] sm:$0xf]
    %v2943 = vld [vmem:[%s7 + $0x154] sm:$0xf]
    %v2944 = vld [vmem:[%s7 + $0x158] sm:$0xf]
    %v2945 = vld [vmem:[%s7 + $0x15c] sm:$0xf]
    %v2946 = vld [vmem:[%s7 + $0x160] sm:$0xf]
    %v2947 = vld [vmem:[%s7 + $0x164] sm:$0xf]
    %v2948 = vld [vmem:[%s7 + $0x168] sm:$0xf]
    %v2949 = vld [vmem:[%s7 + $0x16c] sm:$0xf]
    %v2950 = vld [vmem:[%s7 + $0x170] sm:$0xf]
    %v2951 = vld [vmem:[%s7 + $0x174] sm:$0xf]
    %v2952 = vld [vmem:[%s7 + $0x178] sm:$0xf]
    %v2953 = vld [vmem:[%s7 + $0x17c] sm:$0xf]
    %v2954 = vld [vmem:[%s7 + $0x180] sm:$0xf]
    %v2955 = vld [vmem:[%s7 + $0x184] sm:$0xf]
    %v2956 = vld [vmem:[%s7 + $0x188] sm:$0xf]
    %v2957 = vld [vmem:[%s7 + $0x18c] sm:$0xf]
    %v2958 = vld [vmem:[%s7 + $0x190] sm:$0xf]
    %v2959 = vld [vmem:[%s7 + $0x194] sm:$0xf]
    %v2960 = vld [vmem:[%s7 + $0x198] sm:$0xf]
    %v2961 = vld [vmem:[%s7 + $0x19c] sm:$0xf]
    %v2962 = vld [vmem:[%s7 + $0x1a0] sm:$0xf]
    %v2963 = vld [vmem:[%s7 + $0x1a4] sm:$0xf]
    %v2964 = vld [vmem:[%s7 + $0x1a8] sm:$0xf]
    %v2965 = vld [vmem:[%s7 + $0x1ac] sm:$0xf]
    %v2966 = vld [vmem:[%s7 + $0x1b0] sm:$0xf]
    %v2967 = vld [vmem:[%s7 + $0x1b4] sm:$0xf]
    %v2968 = vld [vmem:[%s7 + $0x1b8] sm:$0xf]
    %v2969 = vld [vmem:[%s7 + $0x1bc] sm:$0xf]
    %v2970 = vld [vmem:[%s7 + $0x1c0] sm:$0xf]
    %v2971 = vld [vmem:[%s7 + $0x1c4] sm:$0xf]
    %v2972 = vld [vmem:[%s7 + $0x1c8] sm:$0xf]
    %v2973 = vld [vmem:[%s7 + $0x1cc] sm:$0xf]
    %v2974 = vld [vmem:[%s7 + $0x1d0] sm:$0xf]
    %v2975 = vld [vmem:[%s7 + $0x1d4] sm:$0xf]
    %v2976 = vld [vmem:[%s7 + $0x1d8] sm:$0xf]
    %v2977 = vld [vmem:[%s7 + $0x1dc] sm:$0xf]
    %v2978 = vld [vmem:[%s7 + $0x1e0] sm:$0xf]
    %v2979 = vld [vmem:[%s7 + $0x1e4] sm:$0xf]
    %v2980 = vld [vmem:[%s7 + $0x1e8] sm:$0xf]
    %v2981 = vld [vmem:[%s7 + $0x1ec] sm:$0xf]
    %v2982 = vld [vmem:[%s7 + $0x1f0] sm:$0xf]
    %v2983 = vld [vmem:[%s7 + $0x1f4] sm:$0xf]
    %v2984 = vld [vmem:[%s7 + $0x1f8] sm:$0xf]
    %v2985 = vld [vmem:[%s7 + $0x1fc] sm:$0xf]
    %v2986 = vld [vmem:[%s7 + $0x200] sm:$0xf]
    %v2987 = vld [vmem:[%s7 + $0x204] sm:$0xf]
    %v2988 = vld [vmem:[%s7 + $0x208] sm:$0xf]
    %v2989 = vld [vmem:[%s7 + $0x20c] sm:$0xf]
    %v2990 = vld [vmem:[%s7 + $0x210] sm:$0xf]
    %v2991 = vld [vmem:[%s7 + $0x214] sm:$0xf]
    %v2992 = vld [vmem:[%s7 + $0x218] sm:$0xf]
    %v2993 = vld [vmem:[%s7 + $0x21c] sm:$0xf]
    %v2994 = vld [vmem:[%s7 + $0x220] sm:$0xf]
    %v2995 = vld [vmem:[%s7 + $0x224] sm:$0xf]
    %v2996 = vld [vmem:[%s7 + $0x228] sm:$0xf]
    %v2997 = vld [vmem:[%s7 + $0x22c] sm:$0xf]
    %v2998 = vld [vmem:[%s7 + $0x230] sm:$0xf]
    %v2999 = vld [vmem:[%s7 + $0x234] sm:$0xf]
    %v3000 = vld [vmem:[%s7 + $0x238] sm:$0xf]
    %v3001 = vld [vmem:[%s7 + $0x23c] sm:$0xf]
    %v3002 = vld [vmem:[%s7 + $0x240] sm:$0xf]
    %v3003 = vld [vmem:[%s7 + $0x244] sm:$0xf]
    %v3004 = vld [vmem:[%s7 + $0x248] sm:$0xf]
    %v3005 = vld [vmem:[%s7 + $0x24c] sm:$0xf]
    %v3006 = vld [vmem:[%s7 + $0x250] sm:$0xf]
    %v3007 = vld [vmem:[%s7 + $0x254] sm:$0xf]
    %v3008 = vld [vmem:[%s7 + $0x258] sm:$0xf]
    %v3009 = vld [vmem:[%s7 + $0x25c] sm:$0xf]
    %v3010 = vld [vmem:[%s7 + $0x260] sm:$0xf]
    %v3011 = vld [vmem:[%s7 + $0x264] sm:$0xf]
    %v3012 = vld [vmem:[%s7 + $0x268] sm:$0xf]
    %v3013 = vld [vmem:[%s7 + $0x26c] sm:$0xf]
    %v3014 = vld [vmem:[%s7 + $0x270] sm:$0xf]
    %v3015 = vld [vmem:[%s7 + $0x274] sm:$0xf]
    %v3016 = vld [vmem:[%s7 + $0x278] sm:$0xf]
    %v3017 = vld [vmem:[%s7 + $0x27c] sm:$0xf]
    %v3018 = vld [vmem:[%s7 + $0x280] sm:$0xf]
    %v3019 = vld [vmem:[%s7 + $0x284] sm:$0xf]
    %v3020 = vld [vmem:[%s7 + $0x288] sm:$0xf]
    %v3021 = vld [vmem:[%s7 + $0x28c] sm:$0xf]
    %v3022 = vld [vmem:[%s7 + $0x290] sm:$0xf]
    %v3023 = vld [vmem:[%s7 + $0x294] sm:$0xf]
    %v3024 = vld [vmem:[%s7 + $0x298] sm:$0xf]
    %v3025 = vld [vmem:[%s7 + $0x29c] sm:$0xf]
    %v3026 = vld [vmem:[%s7 + $0x2a0] sm:$0xf]
    %v3027 = vld [vmem:[%s7 + $0x2a4] sm:$0xf]
    %v3028 = vld [vmem:[%s7 + $0x2a8] sm:$0xf]
    %v3029 = vld [vmem:[%s7 + $0x2ac] sm:$0xf]
    %v3030 = vld [vmem:[%s7 + $0x2b0] sm:$0xf]
    %v3031 = vld [vmem:[%s7 + $0x2b4] sm:$0xf]
    %v3032 = vld [vmem:[%s7 + $0x2b8] sm:$0xf]
    %v3033 = vld [vmem:[%s7 + $0x2bc] sm:$0xf]
    %v3034 = vld [vmem:[%s7 + $0x2c0] sm:$0xf]
    %v3035 = vld [vmem:[%s7 + $0x2c4] sm:$0xf]
    %v3036 = vld [vmem:[%s7 + $0x2c8] sm:$0xf]
    %v3037 = vld [vmem:[%s7 + $0x2cc] sm:$0xf]
    %v3038 = vld [vmem:[%s7 + $0x2d0] sm:$0xf]
    %v3039 = vld [vmem:[%s7 + $0x2d4] sm:$0xf]
    %v3040 = vld [vmem:[%s7 + $0x2d8] sm:$0xf]
    %v3041 = vld [vmem:[%s7 + $0x2dc] sm:$0xf]
    %v3042 = vld [vmem:[%s7 + $0x2e0] sm:$0xf]
    %v3043 = vld [vmem:[%s7 + $0x2e4] sm:$0xf]
    %v3044 = vld [vmem:[%s7 + $0x2e8] sm:$0xf]
    %v3045 = vld [vmem:[%s7 + $0x2ec] sm:$0xf]
    %v3046 = vld [vmem:[%s7 + $0x2f0] sm:$0xf]
    %v3047 = vld [vmem:[%s7 + $0x2f4] sm:$0xf]
    %v3048 = vld [vmem:[%s7 + $0x2f8] sm:$0xf]
    %v3049 = vld [vmem:[%s7 + $0x2fc] sm:$0xf]
    %v3050 = vld [vmem:[%s7 + $0x300] sm:$0xf]
    %v3051 = vld [vmem:[%s7 + $0x304] sm:$0xf]
    %v3052 = vld [vmem:[%s7 + $0x308] sm:$0xf]
    %v3053 = vld [vmem:[%s7 + $0x30c] sm:$0xf]
    %v3054 = vld [vmem:[%s7 + $0x310] sm:$0xf]
    %v3055 = vld [vmem:[%s7 + $0x314] sm:$0xf]
    %v3056 = vld [vmem:[%s7 + $0x318] sm:$0xf]
    %v3057 = vld [vmem:[%s7 + $0x31c] sm:$0xf]
    %v3058 = vld [vmem:[%s7 + $0x320] sm:$0xf]
    %v3059 = vld [vmem:[%s7 + $0x324] sm:$0xf]
    %v3060 = vld [vmem:[%s7 + $0x328] sm:$0xf]
    %v3061 = vld [vmem:[%s7 + $0x32c] sm:$0xf]
    %v3062 = vld [vmem:[%s7 + $0x330] sm:$0xf]
    %v3063 = vld [vmem:[%s7 + $0x334] sm:$0xf]
    %v3064 = vld [vmem:[%s7 + $0x338] sm:$0xf]
    %v3065 = vld [vmem:[%s7 + $0x33c] sm:$0xf]
    %v3066 = vld [vmem:[%s7 + $0x340] sm:$0xf]
    %v3067 = vld [vmem:[%s7 + $0x344] sm:$0xf]
    %v3068 = vld [vmem:[%s7 + $0x348] sm:$0xf]
    %v3069 = vld [vmem:[%s7 + $0x34c] sm:$0xf]
    %v3070 = vld [vmem:[%s7 + $0x350] sm:$0xf]
    %v3071 = vld [vmem:[%s7 + $0x354] sm:$0xf]
    %v3072 = vld [vmem:[%s7 + $0x358] sm:$0xf]
    %v3073 = vld [vmem:[%s7 + $0x35c] sm:$0xf]
    %v3074 = vld [vmem:[%s7 + $0x360] sm:$0xf]
    %v3075 = vld [vmem:[%s7 + $0x364] sm:$0xf]
    %v3076 = vld [vmem:[%s7 + $0x368] sm:$0xf]
    %v3077 = vld [vmem:[%s7 + $0x36c] sm:$0xf]
    %v3078 = vld [vmem:[%s7 + $0x370] sm:$0xf]
    %v3079 = vld [vmem:[%s7 + $0x374] sm:$0xf]
    %v3080 = vld [vmem:[%s7 + $0x378] sm:$0xf]
    %v3081 = vld [vmem:[%s7 + $0x37c] sm:$0xf]
    %v3082 = vld [vmem:[%s7 + $0x380] sm:$0xf]
    %v3083 = vld [vmem:[%s7 + $0x384] sm:$0xf]
    %v3084 = vld [vmem:[%s7 + $0x388] sm:$0xf]
    %v3085 = vld [vmem:[%s7 + $0x38c] sm:$0xf]
    %v3086 = vld [vmem:[%s7 + $0x390] sm:$0xf]
    %v3087 = vld [vmem:[%s7 + $0x394] sm:$0xf]
    %v3088 = vld [vmem:[%s7 + $0x398] sm:$0xf]
    %v3089 = vld [vmem:[%s7 + $0x39c] sm:$0xf]
    %v3090 = vld [vmem:[%s7 + $0x3a0] sm:$0xf]
    %v3091 = vld [vmem:[%s7 + $0x3a4] sm:$0xf]
    %v3092 = vld [vmem:[%s7 + $0x3a8] sm:$0xf]
    %v3093 = vld [vmem:[%s7 + $0x3ac] sm:$0xf]
    %v3094 = vld [vmem:[%s7 + $0x3b0] sm:$0xf]
    %v3095 = vld [vmem:[%s7 + $0x3b4] sm:$0xf]
    %v3096 = vld [vmem:[%s7 + $0x3b8] sm:$0xf]
    %v3097 = vld [vmem:[%s7 + $0x3bc] sm:$0xf]
    %v3098 = vld [vmem:[%s7 + $0x3c0] sm:$0xf]
    %v3099 = vld [vmem:[%s7 + $0x3c4] sm:$0xf]
    %v3100 = vld [vmem:[%s7 + $0x3c8] sm:$0xf]
    %v3101 = vld [vmem:[%s7 + $0x3cc] sm:$0xf]
    %v3102 = vld [vmem:[%s7 + $0x3d0] sm:$0xf]
    %v3103 = vld [vmem:[%s7 + $0x3d4] sm:$0xf]
    %v3104 = vld [vmem:[%s7 + $0x3d8] sm:$0xf]
    %v3105 = vld [vmem:[%s7 + $0x3dc] sm:$0xf]
    %v3106 = vld [vmem:[%s7 + $0x3e0] sm:$0xf]
    %v3107 = vld [vmem:[%s7 + $0x3e4] sm:$0xf]
    %v3108 = vld [vmem:[%s7 + $0x3e8] sm:$0xf]
    %v3109 = vld [vmem:[%s7 + $0x3ec] sm:$0xf]
    %v3110 = vld [vmem:[%s7 + $0x3f0] sm:$0xf]
    %v3111 = vld [vmem:[%s7 + $0x3f4] sm:$0xf]
    %v3112 = vld [vmem:[%s7 + $0x3f8] sm:$0xf]
    %v3113 = vld [vmem:[%s7 + $0x3fc] sm:$0xf]
    %v3114 = vld [vmem:[%s7 + $0x400] sm:$0xf]
    %v3115 = vld [vmem:[%s7 + $0x404] sm:$0xf]
    %v3116 = vld [vmem:[%s7 + $0x408] sm:$0xf]
    %v3117 = vld [vmem:[%s7 + $0x40c] sm:$0xf]
    %v3118 = vld [vmem:[%s7 + $0x410] sm:$0xf]
    %v3119 = vld [vmem:[%s7 + $0x414] sm:$0xf]
    %v3120 = vld [vmem:[%s7 + $0x418] sm:$0xf]
    %v3121 = vld [vmem:[%s7 + $0x41c] sm:$0xf]
    %v3122 = vld [vmem:[%s7 + $0x420] sm:$0xf]
    %v3123 = vld [vmem:[%s7 + $0x424] sm:$0xf]
    %v3124 = vld [vmem:[%s7 + $0x428] sm:$0xf]
    %v3125 = vld [vmem:[%s7 + $0x42c] sm:$0xf]
    %v3126 = vld [vmem:[%s7 + $0x430] sm:$0xf]
    %v3127 = vld [vmem:[%s7 + $0x434] sm:$0xf]
    %v3128 = vld [vmem:[%s7 + $0x438] sm:$0xf]
    %v3129 = vld [vmem:[%s7 + $0x43c] sm:$0xf]
    %v3130 = vld [vmem:[%s7 + $0x440] sm:$0xf]
    %v3131 = vld [vmem:[%s7 + $0x444] sm:$0xf]
    %v3132 = vld [vmem:[%s7 + $0x448] sm:$0xf]
    %v3133 = vld [vmem:[%s7 + $0x44c] sm:$0xf]
    %v3134 = vld [vmem:[%s7 + $0x450] sm:$0xf]
    %v3135 = vld [vmem:[%s7 + $0x454] sm:$0xf]
    %v3136 = vld [vmem:[%s7 + $0x458] sm:$0xf]
    %v3137 = vld [vmem:[%s7 + $0x45c] sm:$0xf]
    %v3138 = vld [vmem:[%s7 + $0x460] sm:$0xf]
    %v3139 = vld [vmem:[%s7 + $0x464] sm:$0xf]
    %v3140 = vld [vmem:[%s7 + $0x468] sm:$0xf]
    %v3141 = vld [vmem:[%s7 + $0x46c] sm:$0xf]
    %v3142 = vld [vmem:[%s7 + $0x470] sm:$0xf]
    %v3143 = vld [vmem:[%s7 + $0x474] sm:$0xf]
    %v3144 = vld [vmem:[%s7 + $0x478] sm:$0xf]
    %v3145 = vld [vmem:[%s7 + $0x47c] sm:$0xf]
    %v3146 = vld [vmem:[%s7 + $0x480] sm:$0xf]
    %v3147 = vld [vmem:[%s7 + $0x484] sm:$0xf]
    %v3148 = vld [vmem:[%s7 + $0x488] sm:$0xf]
    %v3149 = vld [vmem:[%s7 + $0x48c] sm:$0xf]
    %v3150 = vld [vmem:[%s7 + $0x490] sm:$0xf]
    %v3151 = vld [vmem:[%s7 + $0x494] sm:$0xf]
    %v3152 = vld [vmem:[%s7 + $0x498] sm:$0xf]
    %v3153 = vld [vmem:[%s7 + $0x49c] sm:$0xf]
    %v3154 = vld [vmem:[%s7 + $0x4a0] sm:$0xf]
    %v3155 = vld [vmem:[%s7 + $0x4a4] sm:$0xf]
    %v3156 = vld [vmem:[%s7 + $0x4a8] sm:$0xf]
    %v3157 = vld [vmem:[%s7 + $0x4ac] sm:$0xf]
    %v3158 = vld [vmem:[%s7 + $0x4b0] sm:$0xf]
    %v3159 = vld [vmem:[%s7 + $0x4b4] sm:$0xf]
    %v3160 = vld [vmem:[%s7 + $0x4b8] sm:$0xf]
    %v3161 = vld [vmem:[%s7 + $0x4bc] sm:$0xf]
    %v3162 = vld [vmem:[%s7 + $0x4c0] sm:$0xf]
    %v3163 = vld [vmem:[%s7 + $0x4c4] sm:$0xf]
    %v3164 = vld [vmem:[%s7 + $0x4c8] sm:$0xf]
    %v3165 = vld [vmem:[%s7 + $0x4cc] sm:$0xf]
    %v3166 = vld [vmem:[%s7 + $0x4d0] sm:$0xf]
    %v3167 = vld [vmem:[%s7 + $0x4d4] sm:$0xf]
    %v3168 = vld [vmem:[%s7 + $0x4d8] sm:$0xf]
    %v3169 = vld [vmem:[%s7 + $0x4dc] sm:$0xf]
    %v3170 = vld [vmem:[%s7 + $0x4e0] sm:$0xf]
    %v3171 = vld [vmem:[%s7 + $0x4e4] sm:$0xf]
    %v3172 = vld [vmem:[%s7 + $0x4e8] sm:$0xf]
    %v3173 = vld [vmem:[%s7 + $0x4ec] sm:$0xf]
    %v3174 = vld [vmem:[%s7 + $0x4f0] sm:$0xf]
    %v3175 = vld [vmem:[%s7 + $0x4f4] sm:$0xf]
    %v3176 = vld [vmem:[%s7 + $0x4f8] sm:$0xf]
    %v3177 = vld [vmem:[%s7 + $0x4fc] sm:$0xf]
    %v3178 = vld [vmem:[%s7 + $0x500] sm:$0xf]
    %v3179 = vld [vmem:[%s7 + $0x504] sm:$0xf]
    %v3180 = vld [vmem:[%s7 + $0x508] sm:$0xf]
    %v3181 = vld [vmem:[%s7 + $0x50c] sm:$0xf]
    %v3182 = vld [vmem:[%s7 + $0x510] sm:$0xf]
    %v3183 = vld [vmem:[%s7 + $0x514] sm:$0xf]
    %v3184 = vld [vmem:[%s7 + $0x518] sm:$0xf]
    %v3185 = vld [vmem:[%s7 + $0x51c] sm:$0xf]
    %v3186 = vld [vmem:[%s7 + $0x520] sm:$0xf]
    %v3187 = vld [vmem:[%s7 + $0x524] sm:$0xf]
    %v3188 = vld [vmem:[%s7 + $0x528] sm:$0xf]
    %v3189 = vld [vmem:[%s7 + $0x52c] sm:$0xf]
    %v3190 = vld [vmem:[%s7 + $0x530] sm:$0xf]
    %v3191 = vld [vmem:[%s7 + $0x534] sm:$0xf]
    %v3192 = vld [vmem:[%s7 + $0x538] sm:$0xf]
    %v3193 = vld [vmem:[%s7 + $0x53c] sm:$0xf]
    %v3194 = vld [vmem:[%s7 + $0x540] sm:$0xf]
    %v3195 = vld [vmem:[%s7 + $0x544] sm:$0xf]
    %v3196 = vld [vmem:[%s7 + $0x548] sm:$0xf]
    %v3197 = vld [vmem:[%s7 + $0x54c] sm:$0xf]
    %v3198 = vld [vmem:[%s7 + $0x550] sm:$0xf]
    %v3199 = vld [vmem:[%s7 + $0x554] sm:$0xf]
    %v3200 = vld [vmem:[%s7 + $0x558] sm:$0xf]
    %v3201 = vld [vmem:[%s7 + $0x55c] sm:$0xf]
    %v3202 = vld [vmem:[%s7 + $0x560] sm:$0xf]
    %v3203 = vld [vmem:[%s7 + $0x564] sm:$0xf]
    %v3204 = vld [vmem:[%s7 + $0x568] sm:$0xf]
    %v3205 = vld [vmem:[%s7 + $0x56c] sm:$0xf]
    %v3206 = vld [vmem:[%s7 + $0x570] sm:$0xf]
    %v3207 = vld [vmem:[%s7 + $0x574] sm:$0xf]
    %v3208 = vld [vmem:[%s7 + $0x578] sm:$0xf]
    %v3209 = vld [vmem:[%s7 + $0x57c] sm:$0xf]
    %v3210 = vld [vmem:[%s7 + $0x580] sm:$0xf]
    %v3211 = vld [vmem:[%s7 + $0x584] sm:$0xf]
    %v3212 = vld [vmem:[%s7 + $0x588] sm:$0xf]
    %v3213 = vld [vmem:[%s7 + $0x58c] sm:$0xf]
    %v3214 = vld [vmem:[%s7 + $0x590] sm:$0xf]
    %v3215 = vld [vmem:[%s7 + $0x594] sm:$0xf]
    %v3216 = vld [vmem:[%s7 + $0x598] sm:$0xf]
    %v3217 = vld [vmem:[%s7 + $0x59c] sm:$0xf]
    %v3218 = vld [vmem:[%s7 + $0x5a0] sm:$0xf]
    %v3219 = vld [vmem:[%s7 + $0x5a4] sm:$0xf]
    %v3220 = vld [vmem:[%s7 + $0x5a8] sm:$0xf]
    %v3221 = vld [vmem:[%s7 + $0x5ac] sm:$0xf]
    %v3222 = vld [vmem:[%s7 + $0x5b0] sm:$0xf]
    %v3223 = vld [vmem:[%s7 + $0x5b4] sm:$0xf]
    %v3224 = vld [vmem:[%s7 + $0x5b8] sm:$0xf]
    %v3225 = vld [vmem:[%s7 + $0x5bc] sm:$0xf]
    %v3226 = vld [vmem:[%s7 + $0x5c0] sm:$0xf]
    %v3227 = vld [vmem:[%s7 + $0x5c4] sm:$0xf]
    %v3228 = vld [vmem:[%s7 + $0x5c8] sm:$0xf]
    %v3229 = vld [vmem:[%s7 + $0x5cc] sm:$0xf]
    %v3230 = vld [vmem:[%s7 + $0x5d0] sm:$0xf]
    %v3231 = vld [vmem:[%s7 + $0x5d4] sm:$0xf]
    %v3232 = vld [vmem:[%s7 + $0x5d8] sm:$0xf]
    %v3233 = vld [vmem:[%s7 + $0x5dc] sm:$0xf]
    %v3234 = vld [vmem:[%s7 + $0x5e0] sm:$0xf]
    %v3235 = vld [vmem:[%s7 + $0x5e4] sm:$0xf]
    %v3236 = vld [vmem:[%s7 + $0x5e8] sm:$0xf]
    %v3237 = vld [vmem:[%s7 + $0x5ec] sm:$0xf]
    %v3238 = vld [vmem:[%s7 + $0x5f0] sm:$0xf]
    %v3239 = vld [vmem:[%s7 + $0x5f4] sm:$0xf]
    %v3240 = vld [vmem:[%s7 + $0x5f8] sm:$0xf]
    %v3241 = vld [vmem:[%s7 + $0x5fc] sm:$0xf]
    %v3242 = vld [vmem:[%s7 + $0x600] sm:$0xf]
    %v3243 = vld [vmem:[%s7 + $0x604] sm:$0xf]
    %v3244 = vld [vmem:[%s7 + $0x608] sm:$0xf]
    %v3245 = vld [vmem:[%s7 + $0x60c] sm:$0xf]
    %v3246 = vld [vmem:[%s7 + $0x610] sm:$0xf]
    %v3247 = vld [vmem:[%s7 + $0x614] sm:$0xf]
    %v3248 = vld [vmem:[%s7 + $0x618] sm:$0xf]
    %v3249 = vld [vmem:[%s7 + $0x61c] sm:$0xf]
    %v3250 = vld [vmem:[%s7 + $0x620] sm:$0xf]
    %v3251 = vld [vmem:[%s7 + $0x624] sm:$0xf]
    %v3252 = vld [vmem:[%s7 + $0x628] sm:$0xf]
    %v3253 = vld [vmem:[%s7 + $0x62c] sm:$0xf]
    %v3254 = vld [vmem:[%s7 + $0x630] sm:$0xf]
    %v3255 = vld [vmem:[%s7 + $0x634] sm:$0xf]
    %v3256 = vld [vmem:[%s7 + $0x638] sm:$0xf]
    %v3257 = vld [vmem:[%s7 + $0x63c] sm:$0xf]
    %v3258 = vld [vmem:[%s7 + $0x640] sm:$0xf]
    %v3259 = vld [vmem:[%s7 + $0x644] sm:$0xf]
    %v3260 = vld [vmem:[%s7 + $0x648] sm:$0xf]
    %v3261 = vld [vmem:[%s7 + $0x64c] sm:$0xf]
    %v3262 = vld [vmem:[%s7 + $0x650] sm:$0xf]
    %v3263 = vld [vmem:[%s7 + $0x654] sm:$0xf]
    %v3264 = vld [vmem:[%s7 + $0x658] sm:$0xf]
    %v3265 = vld [vmem:[%s7 + $0x65c] sm:$0xf]
    %v3266 = vld [vmem:[%s7 + $0x660] sm:$0xf]
    %v3267 = vld [vmem:[%s7 + $0x664] sm:$0xf]
    %v3268 = vld [vmem:[%s7 + $0x668] sm:$0xf]
    %v3269 = vld [vmem:[%s7 + $0x66c] sm:$0xf]
    %v3270 = vld [vmem:[%s7 + $0x670] sm:$0xf]
    %v3271 = vld [vmem:[%s7 + $0x674] sm:$0xf]
    %v3272 = vld [vmem:[%s7 + $0x678] sm:$0xf]
    %v3273 = vld [vmem:[%s7 + $0x67c] sm:$0xf]
    %v3274 = vld [vmem:[%s7 + $0x680] sm:$0xf]
    %v3275 = vld [vmem:[%s7 + $0x684] sm:$0xf]
    %v3276 = vld [vmem:[%s7 + $0x688] sm:$0xf]
    %v3277 = vld [vmem:[%s7 + $0x68c] sm:$0xf]
    %v3278 = vld [vmem:[%s7 + $0x690] sm:$0xf]
    %v3279 = vld [vmem:[%s7 + $0x694] sm:$0xf]
    %v3280 = vld [vmem:[%s7 + $0x698] sm:$0xf]
    %v3281 = vld [vmem:[%s7 + $0x69c] sm:$0xf]
    %v3282 = vld [vmem:[%s7 + $0x6a0] sm:$0xf]
    %v3283 = vld [vmem:[%s7 + $0x6a4] sm:$0xf]
    %v3284 = vld [vmem:[%s7 + $0x6a8] sm:$0xf]
    %v3285 = vld [vmem:[%s7 + $0x6ac] sm:$0xf]
    %v3286 = vld [vmem:[%s7 + $0x6b0] sm:$0xf]
    %v3287 = vld [vmem:[%s7 + $0x6b4] sm:$0xf]
    %v3288 = vld [vmem:[%s7 + $0x6b8] sm:$0xf]
    %v3289 = vld [vmem:[%s7 + $0x6bc] sm:$0xf]
    %v3290 = vld [vmem:[%s7 + $0x6c0] sm:$0xf]
    %v3291 = vld [vmem:[%s7 + $0x6c4] sm:$0xf]
    %v3292 = vld [vmem:[%s7 + $0x6c8] sm:$0xf]
    %v3293 = vld [vmem:[%s7 + $0x6cc] sm:$0xf]
    %v3294 = vld [vmem:[%s7 + $0x6d0] sm:$0xf]
    %v3295 = vld [vmem:[%s7 + $0x6d4] sm:$0xf]
    %v3296 = vld [vmem:[%s7 + $0x6d8] sm:$0xf]
    %v3297 = vld [vmem:[%s7 + $0x6dc] sm:$0xf]
    %v3298 = vld [vmem:[%s7 + $0x6e0] sm:$0xf]
    %v3299 = vld [vmem:[%s7 + $0x6e4] sm:$0xf]
    %v3300 = vld [vmem:[%s7 + $0x6e8] sm:$0xf]
    %v3301 = vld [vmem:[%s7 + $0x6ec] sm:$0xf]
    %v3302 = vld [vmem:[%s7 + $0x6f0] sm:$0xf]
    %v3303 = vld [vmem:[%s7 + $0x6f4] sm:$0xf]
    %v3304 = vld [vmem:[%s7 + $0x6f8] sm:$0xf]
    %v3305 = vld [vmem:[%s7 + $0x6fc] sm:$0xf]
    %v3306 = vld [vmem:[%s7 + $0x700] sm:$0xf]
    %v3307 = vld [vmem:[%s7 + $0x704] sm:$0xf]
    %v3308 = vld [vmem:[%s7 + $0x708] sm:$0xf]
    %v3309 = vld [vmem:[%s7 + $0x70c] sm:$0xf]
    %v3310 = vld [vmem:[%s7 + $0x710] sm:$0xf]
    %v3311 = vld [vmem:[%s7 + $0x714] sm:$0xf]
    %v3312 = vld [vmem:[%s7 + $0x718] sm:$0xf]
    %v3313 = vld [vmem:[%s7 + $0x71c] sm:$0xf]
    %v3314 = vld [vmem:[%s7 + $0x720] sm:$0xf]
    %v3315 = vld [vmem:[%s7 + $0x724] sm:$0xf]
    %v3316 = vld [vmem:[%s7 + $0x728] sm:$0xf]
    %v3317 = vld [vmem:[%s7 + $0x72c] sm:$0xf]
    %v3318 = vld [vmem:[%s7 + $0x730] sm:$0xf]
    %v3319 = vld [vmem:[%s7 + $0x734] sm:$0xf]
    %v3320 = vld [vmem:[%s7 + $0x738] sm:$0xf]
    %v3321 = vld [vmem:[%s7 + $0x73c] sm:$0xf]
    %v3322 = vld [vmem:[%s7 + $0x740] sm:$0xf]
    %v3323 = vld [vmem:[%s7 + $0x744] sm:$0xf]
    %v3324 = vld [vmem:[%s7 + $0x748] sm:$0xf]
    %v3325 = vld [vmem:[%s7 + $0x74c] sm:$0xf]
    %v3326 = vld [vmem:[%s7 + $0x750] sm:$0xf]
    %v3327 = vld [vmem:[%s7 + $0x754] sm:$0xf]
    %v3328 = vld [vmem:[%s7 + $0x758] sm:$0xf]
    %v3329 = vld [vmem:[%s7 + $0x75c] sm:$0xf]
    %v3330 = vld [vmem:[%s7 + $0x760] sm:$0xf]
    %v3331 = vld [vmem:[%s7 + $0x764] sm:$0xf]
    %v3332 = vld [vmem:[%s7 + $0x768] sm:$0xf]
    %v3333 = vld [vmem:[%s7 + $0x76c] sm:$0xf]
    %v3334 = vld [vmem:[%s7 + $0x770] sm:$0xf]
    %v3335 = vld [vmem:[%s7 + $0x774] sm:$0xf]
    %v3336 = vld [vmem:[%s7 + $0x778] sm:$0xf]
    %v3337 = vld [vmem:[%s7 + $0x77c] sm:$0xf]
    %v3338 = vld [vmem:[%s7 + $0x780] sm:$0xf]
    %v3339 = vld [vmem:[%s7 + $0x784] sm:$0xf]
    %v3340 = vld [vmem:[%s7 + $0x788] sm:$0xf]
    %v3341 = vld [vmem:[%s7 + $0x78c] sm:$0xf]
    %v3342 = vld [vmem:[%s7 + $0x790] sm:$0xf]
    %v3343 = vld [vmem:[%s7 + $0x794] sm:$0xf]
    %v3344 = vld [vmem:[%s7 + $0x798] sm:$0xf]
    %v3345 = vld [vmem:[%s7 + $0x79c] sm:$0xf]
    %v3346 = vld [vmem:[%s7 + $0x7a0] sm:$0xf]
    %v3347 = vld [vmem:[%s7 + $0x7a4] sm:$0xf]
    %v3348 = vld [vmem:[%s7 + $0x7a8] sm:$0xf]
    %v3349 = vld [vmem:[%s7 + $0x7ac] sm:$0xf]
    %v3350 = vld [vmem:[%s7 + $0x7b0] sm:$0xf]
    %v3351 = vld [vmem:[%s7 + $0x7b4] sm:$0xf]
    %v3352 = vld [vmem:[%s7 + $0x7b8] sm:$0xf]
    %v3353 = vld [vmem:[%s7 + $0x7bc] sm:$0xf]
    %v3354 = vld [vmem:[%s7 + $0x7c0] sm:$0xf]
    %v3355 = vld [vmem:[%s7 + $0x7c4] sm:$0xf]
    %v3356 = vld [vmem:[%s7 + $0x7c8] sm:$0xf]
    %v3357 = vld [vmem:[%s7 + $0x7cc] sm:$0xf]
    %v3358 = vld [vmem:[%s7 + $0x7d0] sm:$0xf]
    %v3359 = vld [vmem:[%s7 + $0x7d4] sm:$0xf]
    %v3360 = vld [vmem:[%s7 + $0x7d8] sm:$0xf]
    %v3361 = vld [vmem:[%s7 + $0x7dc] sm:$0xf]
    %v3362 = vld [vmem:[%s7 + $0x7e0] sm:$0xf]
    %v3363 = vld [vmem:[%s7 + $0x7e4] sm:$0xf]
    %v3364 = vld [vmem:[%s7 + $0x7e8] sm:$0xf]
    %v3365 = vld [vmem:[%s7 + $0x7ec] sm:$0xf]
    %v3366 = vld [vmem:[%s7 + $0x7f0] sm:$0xf]
    %v3367 = vld [vmem:[%s7 + $0x7f4] sm:$0xf]
    %v3368 = vld [vmem:[%s7 + $0x7f8] sm:$0xf]
    %v3369 = vld [vmem:[%s7 + $0x7fc] sm:$0xf]
    %v3370 = vld [vmem:[%s8] sm:$0x1]
    %v3372 = vlaneseq
    %v3373 = vshrl.u32 %v3372, 7
    %v3374 = vsub.s32 0, %v3373
    %v3375 = vrot.slane %v3370, %v3374
    %v3889 = vunpack.c.l.b16 %v2858
    %v3890 = vunpack.c.l.b16 %v2859
    %v3891 = vunpack.c.l.b16 %v2860
    %v3892 = vunpack.c.l.b16 %v2861
    %v3893 = vunpack.c.l.b16 %v2862
    %v3894 = vunpack.c.l.b16 %v2863
    %v3895 = vunpack.c.l.b16 %v2864
    %v3896 = vunpack.c.l.b16 %v2865
    %v3897 = vunpack.c.l.b16 %v2866
    %v3898 = vunpack.c.l.b16 %v2867
    %v3899 = vunpack.c.l.b16 %v2868
    %v3900 = vunpack.c.l.b16 %v2869
    %v3901 = vunpack.c.l.b16 %v2870
    %v3902 = vunpack.c.l.b16 %v2871
    %v3903 = vunpack.c.l.b16 %v2872
    %v3904 = vunpack.c.l.b16 %v2873
    %v3905 = vunpack.c.l.b16 %v2874
    %v3906 = vunpack.c.l.b16 %v2875
    %v3907 = vunpack.c.l.b16 %v2876
    %v3908 = vunpack.c.l.b16 %v2877
    %v3909 = vunpack.c.l.b16 %v2878
    %v3910 = vunpack.c.l.b16 %v2879
    %v3911 = vunpack.c.l.b16 %v2880
    %v3912 = vunpack.c.l.b16 %v2881
    %v3913 = vunpack.c.l.b16 %v2882
    %v3914 = vunpack.c.l.b16 %v2883
    %v3915 = vunpack.c.l.b16 %v2884
    %v3916 = vunpack.c.l.b16 %v2885
    %v3917 = vunpack.c.l.b16 %v2886
    %v3918 = vunpack.c.l.b16 %v2887
    %v3919 = vunpack.c.l.b16 %v2888
    %v3920 = vunpack.c.l.b16 %v2889
    %v3921 = vunpack.c.l.b16 %v2890
    %v3922 = vunpack.c.l.b16 %v2891
    %v3923 = vunpack.c.l.b16 %v2892
    %v3924 = vunpack.c.l.b16 %v2893
    %v3925 = vunpack.c.l.b16 %v2894
    %v3926 = vunpack.c.l.b16 %v2895
    %v3927 = vunpack.c.l.b16 %v2896
    %v3928 = vunpack.c.l.b16 %v2897
    %v3929 = vunpack.c.l.b16 %v2898
    %v3930 = vunpack.c.l.b16 %v2899
    %v3931 = vunpack.c.l.b16 %v2900
    %v3932 = vunpack.c.l.b16 %v2901
    %v3933 = vunpack.c.l.b16 %v2902
    %v3934 = vunpack.c.l.b16 %v2903
    %v3935 = vunpack.c.l.b16 %v2904
    %v3936 = vunpack.c.l.b16 %v2905
    %v3937 = vunpack.c.l.b16 %v2906
    %v3938 = vunpack.c.l.b16 %v2907
    %v3939 = vunpack.c.l.b16 %v2908
    %v3940 = vunpack.c.l.b16 %v2909
    %v3941 = vunpack.c.l.b16 %v2910
    %v3942 = vunpack.c.l.b16 %v2911
    %v3943 = vunpack.c.l.b16 %v2912
    %v3944 = vunpack.c.l.b16 %v2913
    %v3945 = vunpack.c.l.b16 %v2914
    %v3946 = vunpack.c.l.b16 %v2915
    %v3947 = vunpack.c.l.b16 %v2916
    %v3948 = vunpack.c.l.b16 %v2917
    %v3949 = vunpack.c.l.b16 %v2918
    %v3950 = vunpack.c.l.b16 %v2919
    %v3951 = vunpack.c.l.b16 %v2920
    %v3952 = vunpack.c.l.b16 %v2921
    %v3953 = vunpack.c.l.b16 %v2922
    %v3954 = vunpack.c.l.b16 %v2923
    %v3955 = vunpack.c.l.b16 %v2924
    %v3956 = vunpack.c.l.b16 %v2925
    %v3957 = vunpack.c.l.b16 %v2926
    %v3958 = vunpack.c.l.b16 %v2927
    %v3959 = vunpack.c.l.b16 %v2928
    %v3960 = vunpack.c.l.b16 %v2929
    %v3961 = vunpack.c.l.b16 %v2930
    %v3962 = vunpack.c.l.b16 %v2931
    %v3963 = vunpack.c.l.b16 %v2932
    %v3964 = vunpack.c.l.b16 %v2933
    %v3965 = vunpack.c.l.b16 %v2934
    %v3966 = vunpack.c.l.b16 %v2935
    %v3967 = vunpack.c.l.b16 %v2936
    %v3968 = vunpack.c.l.b16 %v2937
    %v3969 = vunpack.c.l.b16 %v2938
    %v3970 = vunpack.c.l.b16 %v2939
    %v3971 = vunpack.c.l.b16 %v2940
    %v3972 = vunpack.c.l.b16 %v2941
    %v3973 = vunpack.c.l.b16 %v2942
    %v3974 = vunpack.c.l.b16 %v2943
    %v3975 = vunpack.c.l.b16 %v2944
    %v3976 = vunpack.c.l.b16 %v2945
    %v3977 = vunpack.c.l.b16 %v2946
    %v3978 = vunpack.c.l.b16 %v2947
    %v3979 = vunpack.c.l.b16 %v2948
    %v3980 = vunpack.c.l.b16 %v2949
    %v3981 = vunpack.c.l.b16 %v2950
    %v3982 = vunpack.c.l.b16 %v2951
    %v3983 = vunpack.c.l.b16 %v2952
    %v3984 = vunpack.c.l.b16 %v2953
    %v3985 = vunpack.c.l.b16 %v2954
    %v3986 = vunpack.c.l.b16 %v2955
    %v3987 = vunpack.c.l.b16 %v2956
    %v3988 = vunpack.c.l.b16 %v2957
    %v3989 = vunpack.c.l.b16 %v2958
    %v3990 = vunpack.c.l.b16 %v2959
    %v3991 = vunpack.c.l.b16 %v2960
    %v3992 = vunpack.c.l.b16 %v2961
    %v3993 = vunpack.c.l.b16 %v2962
    %v3994 = vunpack.c.l.b16 %v2963
    %v3995 = vunpack.c.l.b16 %v2964
    %v3996 = vunpack.c.l.b16 %v2965
    %v3997 = vunpack.c.l.b16 %v2966
    %v3998 = vunpack.c.l.b16 %v2967
    %v3999 = vunpack.c.l.b16 %v2968
    %v4000 = vunpack.c.l.b16 %v2969
    %v4001 = vunpack.c.l.b16 %v2970
    %v4002 = vunpack.c.l.b16 %v2971
    %v4003 = vunpack.c.l.b16 %v2972
    %v4004 = vunpack.c.l.b16 %v2973
    %v4005 = vunpack.c.l.b16 %v2974
    %v4006 = vunpack.c.l.b16 %v2975
    %v4007 = vunpack.c.l.b16 %v2976
    %v4008 = vunpack.c.l.b16 %v2977
    %v4009 = vunpack.c.l.b16 %v2978
    %v4010 = vunpack.c.l.b16 %v2979
    %v4011 = vunpack.c.l.b16 %v2980
    %v4012 = vunpack.c.l.b16 %v2981
    %v4013 = vunpack.c.l.b16 %v2982
    %v4014 = vunpack.c.l.b16 %v2983
    %v4015 = vunpack.c.l.b16 %v2984
    %v4016 = vunpack.c.l.b16 %v2985
    %v4017 = vunpack.c.l.b16 %v2986
    %v4018 = vunpack.c.l.b16 %v2987
    %v4019 = vunpack.c.l.b16 %v2988
    %v4020 = vunpack.c.l.b16 %v2989
    %v4021 = vunpack.c.l.b16 %v2990
    %v4022 = vunpack.c.l.b16 %v2991
    %v4023 = vunpack.c.l.b16 %v2992
    %v4024 = vunpack.c.l.b16 %v2993
    %v4025 = vunpack.c.l.b16 %v2994
    %v4026 = vunpack.c.l.b16 %v2995
    %v4027 = vunpack.c.l.b16 %v2996
    %v4028 = vunpack.c.l.b16 %v2997
    %v4029 = vunpack.c.l.b16 %v2998
    %v4030 = vunpack.c.l.b16 %v2999
    %v4031 = vunpack.c.l.b16 %v3000
    %v4032 = vunpack.c.l.b16 %v3001
    %v4033 = vunpack.c.l.b16 %v3002
    %v4034 = vunpack.c.l.b16 %v3003
    %v4035 = vunpack.c.l.b16 %v3004
    %v4036 = vunpack.c.l.b16 %v3005
    %v4037 = vunpack.c.l.b16 %v3006
    %v4038 = vunpack.c.l.b16 %v3007
    %v4039 = vunpack.c.l.b16 %v3008
    %v4040 = vunpack.c.l.b16 %v3009
    %v4041 = vunpack.c.l.b16 %v3010
    %v4042 = vunpack.c.l.b16 %v3011
    %v4043 = vunpack.c.l.b16 %v3012
    %v4044 = vunpack.c.l.b16 %v3013
    %v4045 = vunpack.c.l.b16 %v3014
    %v4046 = vunpack.c.l.b16 %v3015
    %v4047 = vunpack.c.l.b16 %v3016
    %v4048 = vunpack.c.l.b16 %v3017
    %v4049 = vunpack.c.l.b16 %v3018
    %v4050 = vunpack.c.l.b16 %v3019
    %v4051 = vunpack.c.l.b16 %v3020
    %v4052 = vunpack.c.l.b16 %v3021
    %v4053 = vunpack.c.l.b16 %v3022
    %v4054 = vunpack.c.l.b16 %v3023
    %v4055 = vunpack.c.l.b16 %v3024
    %v4056 = vunpack.c.l.b16 %v3025
    %v4057 = vunpack.c.l.b16 %v3026
    %v4058 = vunpack.c.l.b16 %v3027
    %v4059 = vunpack.c.l.b16 %v3028
    %v4060 = vunpack.c.l.b16 %v3029
    %v4061 = vunpack.c.l.b16 %v3030
    %v4062 = vunpack.c.l.b16 %v3031
    %v4063 = vunpack.c.l.b16 %v3032
    %v4064 = vunpack.c.l.b16 %v3033
    %v4065 = vunpack.c.l.b16 %v3034
    %v4066 = vunpack.c.l.b16 %v3035
    %v4067 = vunpack.c.l.b16 %v3036
    %v4068 = vunpack.c.l.b16 %v3037
    %v4069 = vunpack.c.l.b16 %v3038
    %v4070 = vunpack.c.l.b16 %v3039
    %v4071 = vunpack.c.l.b16 %v3040
    %v4072 = vunpack.c.l.b16 %v3041
    %v4073 = vunpack.c.l.b16 %v3042
    %v4074 = vunpack.c.l.b16 %v3043
    %v4075 = vunpack.c.l.b16 %v3044
    %v4076 = vunpack.c.l.b16 %v3045
    %v4077 = vunpack.c.l.b16 %v3046
    %v4078 = vunpack.c.l.b16 %v3047
    %v4079 = vunpack.c.l.b16 %v3048
    %v4080 = vunpack.c.l.b16 %v3049
    %v4081 = vunpack.c.l.b16 %v3050
    %v4082 = vunpack.c.l.b16 %v3051
    %v4083 = vunpack.c.l.b16 %v3052
    %v4084 = vunpack.c.l.b16 %v3053
    %v4085 = vunpack.c.l.b16 %v3054
    %v4086 = vunpack.c.l.b16 %v3055
    %v4087 = vunpack.c.l.b16 %v3056
    %v4088 = vunpack.c.l.b16 %v3057
    %v4089 = vunpack.c.l.b16 %v3058
    %v4090 = vunpack.c.l.b16 %v3059
    %v4091 = vunpack.c.l.b16 %v3060
    %v4092 = vunpack.c.l.b16 %v3061
    %v4093 = vunpack.c.l.b16 %v3062
    %v4094 = vunpack.c.l.b16 %v3063
    %v4095 = vunpack.c.l.b16 %v3064
    %v4096 = vunpack.c.l.b16 %v3065
    %v4097 = vunpack.c.l.b16 %v3066
    %v4098 = vunpack.c.l.b16 %v3067
    %v4099 = vunpack.c.l.b16 %v3068
    %v4100 = vunpack.c.l.b16 %v3069
    %v4101 = vunpack.c.l.b16 %v3070
    %v4102 = vunpack.c.l.b16 %v3071
    %v4103 = vunpack.c.l.b16 %v3072
    %v4104 = vunpack.c.l.b16 %v3073
    %v4105 = vunpack.c.l.b16 %v3074
    %v4106 = vunpack.c.l.b16 %v3075
    %v4107 = vunpack.c.l.b16 %v3076
    %v4108 = vunpack.c.l.b16 %v3077
    %v4109 = vunpack.c.l.b16 %v3078
    %v4110 = vunpack.c.l.b16 %v3079
    %v4111 = vunpack.c.l.b16 %v3080
    %v4112 = vunpack.c.l.b16 %v3081
    %v4113 = vunpack.c.l.b16 %v3082
    %v4114 = vunpack.c.l.b16 %v3083
    %v4115 = vunpack.c.l.b16 %v3084
    %v4116 = vunpack.c.l.b16 %v3085
    %v4117 = vunpack.c.l.b16 %v3086
    %v4118 = vunpack.c.l.b16 %v3087
    %v4119 = vunpack.c.l.b16 %v3088
    %v4120 = vunpack.c.l.b16 %v3089
    %v4121 = vunpack.c.l.b16 %v3090
    %v4122 = vunpack.c.l.b16 %v3091
    %v4123 = vunpack.c.l.b16 %v3092
    %v4124 = vunpack.c.l.b16 %v3093
    %v4125 = vunpack.c.l.b16 %v3094
    %v4126 = vunpack.c.l.b16 %v3095
    %v4127 = vunpack.c.l.b16 %v3096
    %v4128 = vunpack.c.l.b16 %v3097
    %v4129 = vunpack.c.l.b16 %v3098
    %v4130 = vunpack.c.l.b16 %v3099
    %v4131 = vunpack.c.l.b16 %v3100
    %v4132 = vunpack.c.l.b16 %v3101
    %v4133 = vunpack.c.l.b16 %v3102
    %v4134 = vunpack.c.l.b16 %v3103
    %v4135 = vunpack.c.l.b16 %v3104
    %v4136 = vunpack.c.l.b16 %v3105
    %v4137 = vunpack.c.l.b16 %v3106
    %v4138 = vunpack.c.l.b16 %v3107
    %v4139 = vunpack.c.l.b16 %v3108
    %v4140 = vunpack.c.l.b16 %v3109
    %v4141 = vunpack.c.l.b16 %v3110
    %v4142 = vunpack.c.l.b16 %v3111
    %v4143 = vunpack.c.l.b16 %v3112
    %v4144 = vunpack.c.l.b16 %v3113
    %v4145 = vunpack.c.l.b16 %v3114
    %v4146 = vunpack.c.l.b16 %v3115
    %v4147 = vunpack.c.l.b16 %v3116
    %v4148 = vunpack.c.l.b16 %v3117
    %v4149 = vunpack.c.l.b16 %v3118
    %v4150 = vunpack.c.l.b16 %v3119
    %v4151 = vunpack.c.l.b16 %v3120
    %v4152 = vunpack.c.l.b16 %v3121
    %v4153 = vunpack.c.l.b16 %v3122
    %v4154 = vunpack.c.l.b16 %v3123
    %v4155 = vunpack.c.l.b16 %v3124
    %v4156 = vunpack.c.l.b16 %v3125
    %v4157 = vunpack.c.l.b16 %v3126
    %v4158 = vunpack.c.l.b16 %v3127
    %v4159 = vunpack.c.l.b16 %v3128
    %v4160 = vunpack.c.l.b16 %v3129
    %v4161 = vunpack.c.l.b16 %v3130
    %v4162 = vunpack.c.l.b16 %v3131
    %v4163 = vunpack.c.l.b16 %v3132
    %v4164 = vunpack.c.l.b16 %v3133
    %v4165 = vunpack.c.l.b16 %v3134
    %v4166 = vunpack.c.l.b16 %v3135
    %v4167 = vunpack.c.l.b16 %v3136
    %v4168 = vunpack.c.l.b16 %v3137
    %v4169 = vunpack.c.l.b16 %v3138
    %v4170 = vunpack.c.l.b16 %v3139
    %v4171 = vunpack.c.l.b16 %v3140
    %v4172 = vunpack.c.l.b16 %v3141
    %v4173 = vunpack.c.l.b16 %v3142
    %v4174 = vunpack.c.l.b16 %v3143
    %v4175 = vunpack.c.l.b16 %v3144
    %v4176 = vunpack.c.l.b16 %v3145
    %v4177 = vunpack.c.l.b16 %v3146
    %v4178 = vunpack.c.l.b16 %v3147
    %v4179 = vunpack.c.l.b16 %v3148
    %v4180 = vunpack.c.l.b16 %v3149
    %v4181 = vunpack.c.l.b16 %v3150
    %v4182 = vunpack.c.l.b16 %v3151
    %v4183 = vunpack.c.l.b16 %v3152
    %v4184 = vunpack.c.l.b16 %v3153
    %v4185 = vunpack.c.l.b16 %v3154
    %v4186 = vunpack.c.l.b16 %v3155
    %v4187 = vunpack.c.l.b16 %v3156
    %v4188 = vunpack.c.l.b16 %v3157
    %v4189 = vunpack.c.l.b16 %v3158
    %v4190 = vunpack.c.l.b16 %v3159
    %v4191 = vunpack.c.l.b16 %v3160
    %v4192 = vunpack.c.l.b16 %v3161
    %v4193 = vunpack.c.l.b16 %v3162
    %v4194 = vunpack.c.l.b16 %v3163
    %v4195 = vunpack.c.l.b16 %v3164
    %v4196 = vunpack.c.l.b16 %v3165
    %v4197 = vunpack.c.l.b16 %v3166
    %v4198 = vunpack.c.l.b16 %v3167
    %v4199 = vunpack.c.l.b16 %v3168
    %v4200 = vunpack.c.l.b16 %v3169
    %v4201 = vunpack.c.l.b16 %v3170
    %v4202 = vunpack.c.l.b16 %v3171
    %v4203 = vunpack.c.l.b16 %v3172
    %v4204 = vunpack.c.l.b16 %v3173
    %v4205 = vunpack.c.l.b16 %v3174
    %v4206 = vunpack.c.l.b16 %v3175
    %v4207 = vunpack.c.l.b16 %v3176
    %v4208 = vunpack.c.l.b16 %v3177
    %v4209 = vunpack.c.l.b16 %v3178
    %v4210 = vunpack.c.l.b16 %v3179
    %v4211 = vunpack.c.l.b16 %v3180
    %v4212 = vunpack.c.l.b16 %v3181
    %v4213 = vunpack.c.l.b16 %v3182
    %v4214 = vunpack.c.l.b16 %v3183
    %v4215 = vunpack.c.l.b16 %v3184
    %v4216 = vunpack.c.l.b16 %v3185
    %v4217 = vunpack.c.l.b16 %v3186
    %v4218 = vunpack.c.l.b16 %v3187
    %v4219 = vunpack.c.l.b16 %v3188
    %v4220 = vunpack.c.l.b16 %v3189
    %v4221 = vunpack.c.l.b16 %v3190
    %v4222 = vunpack.c.l.b16 %v3191
    %v4223 = vunpack.c.l.b16 %v3192
    %v4224 = vunpack.c.l.b16 %v3193
    %v4225 = vunpack.c.l.b16 %v3194
    %v4226 = vunpack.c.l.b16 %v3195
    %v4227 = vunpack.c.l.b16 %v3196
    %v4228 = vunpack.c.l.b16 %v3197
    %v4229 = vunpack.c.l.b16 %v3198
    %v4230 = vunpack.c.l.b16 %v3199
    %v4231 = vunpack.c.l.b16 %v3200
    %v4232 = vunpack.c.l.b16 %v3201
    %v4233 = vunpack.c.l.b16 %v3202
    %v4234 = vunpack.c.l.b16 %v3203
    %v4235 = vunpack.c.l.b16 %v3204
    %v4236 = vunpack.c.l.b16 %v3205
    %v4237 = vunpack.c.l.b16 %v3206
    %v4238 = vunpack.c.l.b16 %v3207
    %v4239 = vunpack.c.l.b16 %v3208
    %v4240 = vunpack.c.l.b16 %v3209
    %v4241 = vunpack.c.l.b16 %v3210
    %v4242 = vunpack.c.l.b16 %v3211
    %v4243 = vunpack.c.l.b16 %v3212
    %v4244 = vunpack.c.l.b16 %v3213
    %v4245 = vunpack.c.l.b16 %v3214
    %v4246 = vunpack.c.l.b16 %v3215
    %v4247 = vunpack.c.l.b16 %v3216
    %v4248 = vunpack.c.l.b16 %v3217
    %v4249 = vunpack.c.l.b16 %v3218
    %v4250 = vunpack.c.l.b16 %v3219
    %v4251 = vunpack.c.l.b16 %v3220
    %v4252 = vunpack.c.l.b16 %v3221
    %v4253 = vunpack.c.l.b16 %v3222
    %v4254 = vunpack.c.l.b16 %v3223
    %v4255 = vunpack.c.l.b16 %v3224
    %v4256 = vunpack.c.l.b16 %v3225
    %v4257 = vunpack.c.l.b16 %v3226
    %v4258 = vunpack.c.l.b16 %v3227
    %v4259 = vunpack.c.l.b16 %v3228
    %v4260 = vunpack.c.l.b16 %v3229
    %v4261 = vunpack.c.l.b16 %v3230
    %v4262 = vunpack.c.l.b16 %v3231
    %v4263 = vunpack.c.l.b16 %v3232
    %v4264 = vunpack.c.l.b16 %v3233
    %v4265 = vunpack.c.l.b16 %v3234
    %v4266 = vunpack.c.l.b16 %v3235
    %v4267 = vunpack.c.l.b16 %v3236
    %v4268 = vunpack.c.l.b16 %v3237
    %v4269 = vunpack.c.l.b16 %v3238
    %v4270 = vunpack.c.l.b16 %v3239
    %v4271 = vunpack.c.l.b16 %v3240
    %v4272 = vunpack.c.l.b16 %v3241
    %v4273 = vunpack.c.l.b16 %v3242
    %v4274 = vunpack.c.l.b16 %v3243
    %v4275 = vunpack.c.l.b16 %v3244
    %v4276 = vunpack.c.l.b16 %v3245
    %v4277 = vunpack.c.l.b16 %v3246
    %v4278 = vunpack.c.l.b16 %v3247
    %v4279 = vunpack.c.l.b16 %v3248
    %v4280 = vunpack.c.l.b16 %v3249
    %v4281 = vunpack.c.l.b16 %v3250
    %v4282 = vunpack.c.l.b16 %v3251
    %v4283 = vunpack.c.l.b16 %v3252
    %v4284 = vunpack.c.l.b16 %v3253
    %v4285 = vunpack.c.l.b16 %v3254
    %v4286 = vunpack.c.l.b16 %v3255
    %v4287 = vunpack.c.l.b16 %v3256
    %v4288 = vunpack.c.l.b16 %v3257
    %v4289 = vunpack.c.l.b16 %v3258
    %v4290 = vunpack.c.l.b16 %v3259
    %v4291 = vunpack.c.l.b16 %v3260
    %v4292 = vunpack.c.l.b16 %v3261
    %v4293 = vunpack.c.l.b16 %v3262
    %v4294 = vunpack.c.l.b16 %v3263
    %v4295 = vunpack.c.l.b16 %v3264
    %v4296 = vunpack.c.l.b16 %v3265
    %v4297 = vunpack.c.l.b16 %v3266
    %v4298 = vunpack.c.l.b16 %v3267
    %v4299 = vunpack.c.l.b16 %v3268
    %v4300 = vunpack.c.l.b16 %v3269
    %v4301 = vunpack.c.l.b16 %v3270
    %v4302 = vunpack.c.l.b16 %v3271
    %v4303 = vunpack.c.l.b16 %v3272
    %v4304 = vunpack.c.l.b16 %v3273
    %v4305 = vunpack.c.l.b16 %v3274
    %v4306 = vunpack.c.l.b16 %v3275
    %v4307 = vunpack.c.l.b16 %v3276
    %v4308 = vunpack.c.l.b16 %v3277
    %v4309 = vunpack.c.l.b16 %v3278
    %v4310 = vunpack.c.l.b16 %v3279
    %v4311 = vunpack.c.l.b16 %v3280
    %v4312 = vunpack.c.l.b16 %v3281
    %v4313 = vunpack.c.l.b16 %v3282
    %v4314 = vunpack.c.l.b16 %v3283
    %v4315 = vunpack.c.l.b16 %v3284
    %v4316 = vunpack.c.l.b16 %v3285
    %v4317 = vunpack.c.l.b16 %v3286
    %v4318 = vunpack.c.l.b16 %v3287
    %v4319 = vunpack.c.l.b16 %v3288
    %v4320 = vunpack.c.l.b16 %v3289
    %v4321 = vunpack.c.l.b16 %v3290
    %v4322 = vunpack.c.l.b16 %v3291
    %v4323 = vunpack.c.l.b16 %v3292
    %v4324 = vunpack.c.l.b16 %v3293
    %v4325 = vunpack.c.l.b16 %v3294
    %v4326 = vunpack.c.l.b16 %v3295
    %v4327 = vunpack.c.l.b16 %v3296
    %v4328 = vunpack.c.l.b16 %v3297
    %v4329 = vunpack.c.l.b16 %v3298
    %v4330 = vunpack.c.l.b16 %v3299
    %v4331 = vunpack.c.l.b16 %v3300
    %v4332 = vunpack.c.l.b16 %v3301
    %v4333 = vunpack.c.l.b16 %v3302
    %v4334 = vunpack.c.l.b16 %v3303
    %v4335 = vunpack.c.l.b16 %v3304
    %v4336 = vunpack.c.l.b16 %v3305
    %v4337 = vunpack.c.l.b16 %v3306
    %v4338 = vunpack.c.l.b16 %v3307
    %v4339 = vunpack.c.l.b16 %v3308
    %v4340 = vunpack.c.l.b16 %v3309
    %v4341 = vunpack.c.l.b16 %v3310
    %v4342 = vunpack.c.l.b16 %v3311
    %v4343 = vunpack.c.l.b16 %v3312
    %v4344 = vunpack.c.l.b16 %v3313
    %v4345 = vunpack.c.l.b16 %v3314
    %v4346 = vunpack.c.l.b16 %v3315
    %v4347 = vunpack.c.l.b16 %v3316
    %v4348 = vunpack.c.l.b16 %v3317
    %v4349 = vunpack.c.l.b16 %v3318
    %v4350 = vunpack.c.l.b16 %v3319
    %v4351 = vunpack.c.l.b16 %v3320
    %v4352 = vunpack.c.l.b16 %v3321
    %v4353 = vunpack.c.l.b16 %v3322
    %v4354 = vunpack.c.l.b16 %v3323
    %v4355 = vunpack.c.l.b16 %v3324
    %v4356 = vunpack.c.l.b16 %v3325
    %v4357 = vunpack.c.l.b16 %v3326
    %v4358 = vunpack.c.l.b16 %v3327
    %v4359 = vunpack.c.l.b16 %v3328
    %v4360 = vunpack.c.l.b16 %v3329
    %v4361 = vunpack.c.l.b16 %v3330
    %v4362 = vunpack.c.l.b16 %v3331
    %v4363 = vunpack.c.l.b16 %v3332
    %v4364 = vunpack.c.l.b16 %v3333
    %v4365 = vunpack.c.l.b16 %v3334
    %v4366 = vunpack.c.l.b16 %v3335
    %v4367 = vunpack.c.l.b16 %v3336
    %v4368 = vunpack.c.l.b16 %v3337
    %v4369 = vunpack.c.l.b16 %v3338
    %v4370 = vunpack.c.l.b16 %v3339
    %v4371 = vunpack.c.l.b16 %v3340
    %v4372 = vunpack.c.l.b16 %v3341
    %v4373 = vunpack.c.l.b16 %v3342
    %v4374 = vunpack.c.l.b16 %v3343
    %v4375 = vunpack.c.l.b16 %v3344
    %v4376 = vunpack.c.l.b16 %v3345
    %v4377 = vunpack.c.l.b16 %v3346
    %v4378 = vunpack.c.l.b16 %v3347
    %v4379 = vunpack.c.l.b16 %v3348
    %v4380 = vunpack.c.l.b16 %v3349
    %v4381 = vunpack.c.l.b16 %v3350
    %v4382 = vunpack.c.l.b16 %v3351
    %v4383 = vunpack.c.l.b16 %v3352
    %v4384 = vunpack.c.l.b16 %v3353
    %v4385 = vunpack.c.l.b16 %v3354
    %v4386 = vunpack.c.l.b16 %v3355
    %v4387 = vunpack.c.l.b16 %v3356
    %v4388 = vunpack.c.l.b16 %v3357
    %v4389 = vunpack.c.l.b16 %v3358
    %v4390 = vunpack.c.l.b16 %v3359
    %v4391 = vunpack.c.l.b16 %v3360
    %v4392 = vunpack.c.l.b16 %v3361
    %v4393 = vunpack.c.l.b16 %v3362
    %v4394 = vunpack.c.l.b16 %v3363
    %v4395 = vunpack.c.l.b16 %v3364
    %v4396 = vunpack.c.l.b16 %v3365
    %v4397 = vunpack.c.l.b16 %v3366
    %v4398 = vunpack.c.l.b16 %v3367
    %v4399 = vunpack.c.l.b16 %v3368
    %v4400 = vunpack.c.l.b16 %v3369
    %v4401 = vpack.c.b16 %v3890, %v3889
    %v4402 = vpack.c.b16 %v3892, %v3891
    %v4403 = vpack.c.b16 %v3894, %v3893
    %v4404 = vpack.c.b16 %v3896, %v3895
    %v4405 = vpack.c.b16 %v3898, %v3897
    %v4406 = vpack.c.b16 %v3900, %v3899
    %v4407 = vpack.c.b16 %v3902, %v3901
    %v4408 = vpack.c.b16 %v3904, %v3903
    %v4409 = vpack.c.b16 %v3906, %v3905
    %v4410 = vpack.c.b16 %v3908, %v3907
    %v4411 = vpack.c.b16 %v3910, %v3909
    %v4412 = vpack.c.b16 %v3912, %v3911
    %v4413 = vpack.c.b16 %v3914, %v3913
    %v4414 = vpack.c.b16 %v3916, %v3915
    %v4415 = vpack.c.b16 %v3918, %v3917
    %v4416 = vpack.c.b16 %v3920, %v3919
    %v4417 = vpack.c.b16 %v3922, %v3921
    %v4418 = vpack.c.b16 %v3924, %v3923
    %v4419 = vpack.c.b16 %v3926, %v3925
    %v4420 = vpack.c.b16 %v3928, %v3927
    %v4421 = vpack.c.b16 %v3930, %v3929
    %v4422 = vpack.c.b16 %v3932, %v3931
    %v4423 = vpack.c.b16 %v3934, %v3933
    %v4424 = vpack.c.b16 %v3936, %v3935
    %v4425 = vpack.c.b16 %v3938, %v3937
    %v4426 = vpack.c.b16 %v3940, %v3939
    %v4427 = vpack.c.b16 %v3942, %v3941
    %v4428 = vpack.c.b16 %v3944, %v3943
    %v4429 = vpack.c.b16 %v3946, %v3945
    %v4430 = vpack.c.b16 %v3948, %v3947
    %v4431 = vpack.c.b16 %v3950, %v3949
    %v4432 = vpack.c.b16 %v3952, %v3951
    %v4433 = vpack.c.b16 %v3954, %v3953
    %v4434 = vpack.c.b16 %v3956, %v3955
    %v4435 = vpack.c.b16 %v3958, %v3957
    %v4436 = vpack.c.b16 %v3960, %v3959
    %v4437 = vpack.c.b16 %v3962, %v3961
    %v4438 = vpack.c.b16 %v3964, %v3963
    %v4439 = vpack.c.b16 %v3966, %v3965
    %v4440 = vpack.c.b16 %v3968, %v3967
    %v4441 = vpack.c.b16 %v3970, %v3969
    %v4442 = vpack.c.b16 %v3972, %v3971
    %v4443 = vpack.c.b16 %v3974, %v3973
    %v4444 = vpack.c.b16 %v3976, %v3975
    %v4445 = vpack.c.b16 %v3978, %v3977
    %v4446 = vpack.c.b16 %v3980, %v3979
    %v4447 = vpack.c.b16 %v3982, %v3981
    %v4448 = vpack.c.b16 %v3984, %v3983
    %v4449 = vpack.c.b16 %v3986, %v3985
    %v4450 = vpack.c.b16 %v3988, %v3987
    %v4451 = vpack.c.b16 %v3990, %v3989
    %v4452 = vpack.c.b16 %v3992, %v3991
    %v4453 = vpack.c.b16 %v3994, %v3993
    %v4454 = vpack.c.b16 %v3996, %v3995
    %v4455 = vpack.c.b16 %v3998, %v3997
    %v4456 = vpack.c.b16 %v4000, %v3999
    %v4457 = vpack.c.b16 %v4002, %v4001
    %v4458 = vpack.c.b16 %v4004, %v4003
    %v4459 = vpack.c.b16 %v4006, %v4005
    %v4460 = vpack.c.b16 %v4008, %v4007
    %v4461 = vpack.c.b16 %v4010, %v4009
    %v4462 = vpack.c.b16 %v4012, %v4011
    %v4463 = vpack.c.b16 %v4014, %v4013
    %v4464 = vpack.c.b16 %v4016, %v4015
    %v4465 = vpack.c.b16 %v4018, %v4017
    %v4466 = vpack.c.b16 %v4020, %v4019
    %v4467 = vpack.c.b16 %v4022, %v4021
    %v4468 = vpack.c.b16 %v4024, %v4023
    %v4469 = vpack.c.b16 %v4026, %v4025
    %v4470 = vpack.c.b16 %v4028, %v4027
    %v4471 = vpack.c.b16 %v4030, %v4029
    %v4472 = vpack.c.b16 %v4032, %v4031
    %v4473 = vpack.c.b16 %v4034, %v4033
    %v4474 = vpack.c.b16 %v4036, %v4035
    %v4475 = vpack.c.b16 %v4038, %v4037
    %v4476 = vpack.c.b16 %v4040, %v4039
    %v4477 = vpack.c.b16 %v4042, %v4041
    %v4478 = vpack.c.b16 %v4044, %v4043
    %v4479 = vpack.c.b16 %v4046, %v4045
    %v4480 = vpack.c.b16 %v4048, %v4047
    %v4481 = vpack.c.b16 %v4050, %v4049
    %v4482 = vpack.c.b16 %v4052, %v4051
    %v4483 = vpack.c.b16 %v4054, %v4053
    %v4484 = vpack.c.b16 %v4056, %v4055
    %v4485 = vpack.c.b16 %v4058, %v4057
    %v4486 = vpack.c.b16 %v4060, %v4059
    %v4487 = vpack.c.b16 %v4062, %v4061
    %v4488 = vpack.c.b16 %v4064, %v4063
    %v4489 = vpack.c.b16 %v4066, %v4065
    %v4490 = vpack.c.b16 %v4068, %v4067
    %v4491 = vpack.c.b16 %v4070, %v4069
    %v4492 = vpack.c.b16 %v4072, %v4071
    %v4493 = vpack.c.b16 %v4074, %v4073
    %v4494 = vpack.c.b16 %v4076, %v4075
    %v4495 = vpack.c.b16 %v4078, %v4077
    %v4496 = vpack.c.b16 %v4080, %v4079
    %v4497 = vpack.c.b16 %v4082, %v4081
    %v4498 = vpack.c.b16 %v4084, %v4083
    %v4499 = vpack.c.b16 %v4086, %v4085
    %v4500 = vpack.c.b16 %v4088, %v4087
    %v4501 = vpack.c.b16 %v4090, %v4089
    %v4502 = vpack.c.b16 %v4092, %v4091
    %v4503 = vpack.c.b16 %v4094, %v4093
    %v4504 = vpack.c.b16 %v4096, %v4095
    %v4505 = vpack.c.b16 %v4098, %v4097
    %v4506 = vpack.c.b16 %v4100, %v4099
    %v4507 = vpack.c.b16 %v4102, %v4101
    %v4508 = vpack.c.b16 %v4104, %v4103
    %v4509 = vpack.c.b16 %v4106, %v4105
    %v4510 = vpack.c.b16 %v4108, %v4107
    %v4511 = vpack.c.b16 %v4110, %v4109
    %v4512 = vpack.c.b16 %v4112, %v4111
    %v4513 = vpack.c.b16 %v4114, %v4113
    %v4514 = vpack.c.b16 %v4116, %v4115
    %v4515 = vpack.c.b16 %v4118, %v4117
    %v4516 = vpack.c.b16 %v4120, %v4119
    %v4517 = vpack.c.b16 %v4122, %v4121
    %v4518 = vpack.c.b16 %v4124, %v4123
    %v4519 = vpack.c.b16 %v4126, %v4125
    %v4520 = vpack.c.b16 %v4128, %v4127
    %v4521 = vpack.c.b16 %v4130, %v4129
    %v4522 = vpack.c.b16 %v4132, %v4131
    %v4523 = vpack.c.b16 %v4134, %v4133
    %v4524 = vpack.c.b16 %v4136, %v4135
    %v4525 = vpack.c.b16 %v4138, %v4137
    %v4526 = vpack.c.b16 %v4140, %v4139
    %v4527 = vpack.c.b16 %v4142, %v4141
    %v4528 = vpack.c.b16 %v4144, %v4143
    %v4529 = vpack.c.b16 %v4146, %v4145
    %v4530 = vpack.c.b16 %v4148, %v4147
    %v4531 = vpack.c.b16 %v4150, %v4149
    %v4532 = vpack.c.b16 %v4152, %v4151
    %v4533 = vpack.c.b16 %v4154, %v4153
    %v4534 = vpack.c.b16 %v4156, %v4155
    %v4535 = vpack.c.b16 %v4158, %v4157
    %v4536 = vpack.c.b16 %v4160, %v4159
    %v4537 = vpack.c.b16 %v4162, %v4161
    %v4538 = vpack.c.b16 %v4164, %v4163
    %v4539 = vpack.c.b16 %v4166, %v4165
    %v4540 = vpack.c.b16 %v4168, %v4167
    %v4541 = vpack.c.b16 %v4170, %v4169
    %v4542 = vpack.c.b16 %v4172, %v4171
    %v4543 = vpack.c.b16 %v4174, %v4173
    %v4544 = vpack.c.b16 %v4176, %v4175
    %v4545 = vpack.c.b16 %v4178, %v4177
    %v4546 = vpack.c.b16 %v4180, %v4179
    %v4547 = vpack.c.b16 %v4182, %v4181
    %v4548 = vpack.c.b16 %v4184, %v4183
    %v4549 = vpack.c.b16 %v4186, %v4185
    %v4550 = vpack.c.b16 %v4188, %v4187
    %v4551 = vpack.c.b16 %v4190, %v4189
    %v4552 = vpack.c.b16 %v4192, %v4191
    %v4553 = vpack.c.b16 %v4194, %v4193
    %v4554 = vpack.c.b16 %v4196, %v4195
    %v4555 = vpack.c.b16 %v4198, %v4197
    %v4556 = vpack.c.b16 %v4200, %v4199
    %v4557 = vpack.c.b16 %v4202, %v4201
    %v4558 = vpack.c.b16 %v4204, %v4203
    %v4559 = vpack.c.b16 %v4206, %v4205
    %v4560 = vpack.c.b16 %v4208, %v4207
    %v4561 = vpack.c.b16 %v4210, %v4209
    %v4562 = vpack.c.b16 %v4212, %v4211
    %v4563 = vpack.c.b16 %v4214, %v4213
    %v4564 = vpack.c.b16 %v4216, %v4215
    %v4565 = vpack.c.b16 %v4218, %v4217
    %v4566 = vpack.c.b16 %v4220, %v4219
    %v4567 = vpack.c.b16 %v4222, %v4221
    %v4568 = vpack.c.b16 %v4224, %v4223
    %v4569 = vpack.c.b16 %v4226, %v4225
    %v4570 = vpack.c.b16 %v4228, %v4227
    %v4571 = vpack.c.b16 %v4230, %v4229
    %v4572 = vpack.c.b16 %v4232, %v4231
    %v4573 = vpack.c.b16 %v4234, %v4233
    %v4574 = vpack.c.b16 %v4236, %v4235
    %v4575 = vpack.c.b16 %v4238, %v4237
    %v4576 = vpack.c.b16 %v4240, %v4239
    %v4577 = vpack.c.b16 %v4242, %v4241
    %v4578 = vpack.c.b16 %v4244, %v4243
    %v4579 = vpack.c.b16 %v4246, %v4245
    %v4580 = vpack.c.b16 %v4248, %v4247
    %v4581 = vpack.c.b16 %v4250, %v4249
    %v4582 = vpack.c.b16 %v4252, %v4251
    %v4583 = vpack.c.b16 %v4254, %v4253
    %v4584 = vpack.c.b16 %v4256, %v4255
    %v4585 = vpack.c.b16 %v4258, %v4257
    %v4586 = vpack.c.b16 %v4260, %v4259
    %v4587 = vpack.c.b16 %v4262, %v4261
    %v4588 = vpack.c.b16 %v4264, %v4263
    %v4589 = vpack.c.b16 %v4266, %v4265
    %v4590 = vpack.c.b16 %v4268, %v4267
    %v4591 = vpack.c.b16 %v4270, %v4269
    %v4592 = vpack.c.b16 %v4272, %v4271
    %v4593 = vpack.c.b16 %v4274, %v4273
    %v4594 = vpack.c.b16 %v4276, %v4275
    %v4595 = vpack.c.b16 %v4278, %v4277
    %v4596 = vpack.c.b16 %v4280, %v4279
    %v4597 = vpack.c.b16 %v4282, %v4281
    %v4598 = vpack.c.b16 %v4284, %v4283
    %v4599 = vpack.c.b16 %v4286, %v4285
    %v4600 = vpack.c.b16 %v4288, %v4287
    %v4601 = vpack.c.b16 %v4290, %v4289
    %v4602 = vpack.c.b16 %v4292, %v4291
    %v4603 = vpack.c.b16 %v4294, %v4293
    %v4604 = vpack.c.b16 %v4296, %v4295
    %v4605 = vpack.c.b16 %v4298, %v4297
    %v4606 = vpack.c.b16 %v4300, %v4299
    %v4607 = vpack.c.b16 %v4302, %v4301
    %v4608 = vpack.c.b16 %v4304, %v4303
    %v4609 = vpack.c.b16 %v4306, %v4305
    %v4610 = vpack.c.b16 %v4308, %v4307
    %v4611 = vpack.c.b16 %v4310, %v4309
    %v4612 = vpack.c.b16 %v4312, %v4311
    %v4613 = vpack.c.b16 %v4314, %v4313
    %v4614 = vpack.c.b16 %v4316, %v4315
    %v4615 = vpack.c.b16 %v4318, %v4317
    %v4616 = vpack.c.b16 %v4320, %v4319
    %v4617 = vpack.c.b16 %v4322, %v4321
    %v4618 = vpack.c.b16 %v4324, %v4323
    %v4619 = vpack.c.b16 %v4326, %v4325
    %v4620 = vpack.c.b16 %v4328, %v4327
    %v4621 = vpack.c.b16 %v4330, %v4329
    %v4622 = vpack.c.b16 %v4332, %v4331
    %v4623 = vpack.c.b16 %v4334, %v4333
    %v4624 = vpack.c.b16 %v4336, %v4335
    %v4625 = vpack.c.b16 %v4338, %v4337
    %v4626 = vpack.c.b16 %v4340, %v4339
    %v4627 = vpack.c.b16 %v4342, %v4341
    %v4628 = vpack.c.b16 %v4344, %v4343
    %v4629 = vpack.c.b16 %v4346, %v4345
    %v4630 = vpack.c.b16 %v4348, %v4347
    %v4631 = vpack.c.b16 %v4350, %v4349
    %v4632 = vpack.c.b16 %v4352, %v4351
    %v4633 = vpack.c.b16 %v4354, %v4353
    %v4634 = vpack.c.b16 %v4356, %v4355
    %v4635 = vpack.c.b16 %v4358, %v4357
    %v4636 = vpack.c.b16 %v4360, %v4359
    %v4637 = vpack.c.b16 %v4362, %v4361
    %v4638 = vpack.c.b16 %v4364, %v4363
    %v4639 = vpack.c.b16 %v4366, %v4365
    %v4640 = vpack.c.b16 %v4368, %v4367
    %v4641 = vpack.c.b16 %v4370, %v4369
    %v4642 = vpack.c.b16 %v4372, %v4371
    %v4643 = vpack.c.b16 %v4374, %v4373
    %v4644 = vpack.c.b16 %v4376, %v4375
    %v4645 = vpack.c.b16 %v4378, %v4377
    %v4646 = vpack.c.b16 %v4380, %v4379
    %v4647 = vpack.c.b16 %v4382, %v4381
    %v4648 = vpack.c.b16 %v4384, %v4383
    %v4649 = vpack.c.b16 %v4386, %v4385
    %v4650 = vpack.c.b16 %v4388, %v4387
    %v4651 = vpack.c.b16 %v4390, %v4389
    %v4652 = vpack.c.b16 %v4392, %v4391
    %v4653 = vpack.c.b16 %v4394, %v4393
    %v4654 = vpack.c.b16 %v4396, %v4395
    %v4655 = vpack.c.b16 %v4398, %v4397
    %v4656 = vpack.c.b16 %v4400, %v4399
    %4913 = vmatprep.subr.bf16.mxu0 0
    %4914 = vmatpush1.bf16.msra.mxu0 %v4401
    %4915 = vmatprep.subr.bf16.mxu0 0
    %4916 = vmatpush1.bf16.msra.mxu0 %v4402
    %4917 = vmatprep.subr.bf16.mxu0 0
    %4918 = vmatpush1.bf16.msra.mxu0 %v4403
    %4919 = vmatprep.subr.bf16.mxu0 0
    %4920 = vmatpush1.bf16.msra.mxu0 %v4404
    %4921 = vmatprep.subr.bf16.mxu0 0
    %4922 = vmatpush1.bf16.msra.mxu0 %v4405
    %4923 = vmatprep.subr.bf16.mxu0 0
    %4924 = vmatpush1.bf16.msra.mxu0 %v4406
    %4925 = vmatprep.subr.bf16.mxu0 0
    %4926 = vmatpush1.bf16.msra.mxu0 %v4407
    %4927 = vmatprep.subr.bf16.mxu0 0
    %4928 = vmatpush1.bf16.msra.mxu0 %v4408
    %4929 = vmatprep.subr.bf16.mxu0 0
    %4930 = vmatpush1.bf16.msra.mxu0 %v4409
    %4931 = vmatprep.subr.bf16.mxu0 0
    %4932 = vmatpush1.bf16.msra.mxu0 %v4410
    %4933 = vmatprep.subr.bf16.mxu0 0
    %4934 = vmatpush1.bf16.msra.mxu0 %v4411
    %4935 = vmatprep.subr.bf16.mxu0 0
    %4936 = vmatpush1.bf16.msra.mxu0 %v4412
    %4937 = vmatprep.subr.bf16.mxu0 0
    %4938 = vmatpush1.bf16.msra.mxu0 %v4413
    %4939 = vmatprep.subr.bf16.mxu0 0
    %4940 = vmatpush1.bf16.msra.mxu0 %v4414
    %4941 = vmatprep.subr.bf16.mxu0 0
    %4942 = vmatpush1.bf16.msra.mxu0 %v4415
    %4943 = vmatprep.subr.bf16.mxu0 0
    %4944 = vmatpush1.bf16.msra.mxu0 %v4416
    %4945 = vmatprep.mubr.bf16.mxu0 %v2827
    %4946 = vmatmul.mubr.bf16.gmra.mrb[0].mxu0 %v2826
    %v4947 = vpop.f32.mrb[0].mxu0
    %v4948 = vadd.f32 %v3375, %v4947
    %v4949 = vpop.f32.mrb[0].mxu0
    %v4950 = vpop.f32.mrb[0].mxu0
    %v4951 = vpop.f32.mrb[0].mxu0
    %4952 = vdwg.mxu0
    %4953 = vmatprep.subr.bf16.mxu0 0
    %4954 = vmatpush1.bf16.msra.mxu0 %v4417
    %4955 = vmatprep.subr.bf16.mxu0 0
    %4956 = vmatpush1.bf16.msra.mxu0 %v4418
    %4957 = vmatprep.subr.bf16.mxu0 0
    %4958 = vmatpush1.bf16.msra.mxu0 %v4419
    %4959 = vmatprep.subr.bf16.mxu0 0
    %4960 = vmatpush1.bf16.msra.mxu0 %v4420
    %4961 = vmatprep.subr.bf16.mxu0 0
    %4962 = vmatpush1.bf16.msra.mxu0 %v4421
    %4963 = vmatprep.subr.bf16.mxu0 0
    %4964 = vmatpush1.bf16.msra.mxu0 %v4422
    %4965 = vmatprep.subr.bf16.mxu0 0
    %4966 = vmatpush1.bf16.msra.mxu0 %v4423
    %4967 = vmatprep.subr.bf16.mxu0 0
    %4968 = vmatpush1.bf16.msra.mxu0 %v4424
    %4969 = vmatprep.subr.bf16.mxu0 0
    %4970 = vmatpush1.bf16.msra.mxu0 %v4425
    %4971 = vmatprep.subr.bf16.mxu0 0
    %4972 = vmatpush1.bf16.msra.mxu0 %v4426
    %4973 = vmatprep.subr.bf16.mxu0 0
    %4974 = vmatpush1.bf16.msra.mxu0 %v4427
    %4975 = vmatprep.subr.bf16.mxu0 0
    %4976 = vmatpush1.bf16.msra.mxu0 %v4428
    %4977 = vmatprep.subr.bf16.mxu0 0
    %4978 = vmatpush1.bf16.msra.mxu0 %v4429
    %4979 = vmatprep.subr.bf16.mxu0 0
    %4980 = vmatpush1.bf16.msra.mxu0 %v4430
    %4981 = vmatprep.subr.bf16.mxu0 0
    %4982 = vmatpush1.bf16.msra.mxu0 %v4431
    %4983 = vmatprep.subr.bf16.mxu0 0
    %4984 = vmatpush1.bf16.msra.mxu0 %v4432
    %4985 = vmatprep.mubr.bf16.mxu0 %v2829
    %4986 = vmatmul.mubr.bf16.gmra.mrb[0].mxu0 %v2828
    %v4987 = vpop.f32.mrb[0].mxu0
    %v4988 = vadd.f32 %v4948, %v4987
    %v4989 = vpop.f32.mrb[0].mxu0
    %v4990 = vpop.f32.mrb[0].mxu0
    %v4991 = vpop.f32.mrb[0].mxu0
    %4992 = vdwg.mxu0
    %4993 = vmatprep.subr.bf16.mxu0 0
    %4994 = vmatpush1.bf16.msra.mxu0 %v4433
    %4995 = vmatprep.subr.bf16.mxu0 0
    %4996 = vmatpush1.bf16.msra.mxu0 %v4434
    %4997 = vmatprep.subr.bf16.mxu0 0
    %4998 = vmatpush1.bf16.msra.mxu0 %v4435
    %4999 = vmatprep.subr.bf16.mxu0 0
    %5000 = vmatpush1.bf16.msra.mxu0 %v4436
    %5001 = vmatprep.subr.bf16.mxu0 0
    %5002 = vmatpush1.bf16.msra.mxu0 %v4437
    %5003 = vmatprep.subr.bf16.mxu0 0
    %5004 = vmatpush1.bf16.msra.mxu0 %v4438
    %5005 = vmatprep.subr.bf16.mxu0 0
    %5006 = vmatpush1.bf16.msra.mxu0 %v4439
    %5007 = vmatprep.subr.bf16.mxu0 0
    %5008 = vmatpush1.bf16.msra.mxu0 %v4440
    %5009 = vmatprep.subr.bf16.mxu0 0
    %5010 = vmatpush1.bf16.msra.mxu0 %v4441
    %5011 = vmatprep.subr.bf16.mxu0 0
    %5012 = vmatpush1.bf16.msra.mxu0 %v4442
    %5013 = vmatprep.subr.bf16.mxu0 0
    %5014 = vmatpush1.bf16.msra.mxu0 %v4443
    %5015 = vmatprep.subr.bf16.mxu0 0
    %5016 = vmatpush1.bf16.msra.mxu0 %v4444
    %5017 = vmatprep.subr.bf16.mxu0 0
    %5018 = vmatpush1.bf16.msra.mxu0 %v4445
    %5019 = vmatprep.subr.bf16.mxu0 0
    %5020 = vmatpush1.bf16.msra.mxu0 %v4446
    %5021 = vmatprep.subr.bf16.mxu0 0
    %5022 = vmatpush1.bf16.msra.mxu0 %v4447
    %5023 = vmatprep.subr.bf16.mxu0 0
    %5024 = vmatpush1.bf16.msra.mxu0 %v4448
    %5025 = vmatprep.mubr.bf16.mxu0 %v2831
    %5026 = vmatmul.mubr.bf16.gmra.mrb[0].mxu0 %v2830
    %v5027 = vpop.f32.mrb[0].mxu0
    %v5028 = vadd.f32 %v4988, %v5027
    %v5029 = vpop.f32.mrb[0].mxu0
    %v5030 = vpop.f32.mrb[0].mxu0
    %v5031 = vpop.f32.mrb[0].mxu0
    %5032 = vdwg.mxu0
    %5033 = vmatprep.subr.bf16.mxu0 0
    %5034 = vmatpush1.bf16.msra.mxu0 %v4449
    %5035 = vmatprep.subr.bf16.mxu0 0
    %5036 = vmatpush1.bf16.msra.mxu0 %v4450
    %5037 = vmatprep.subr.bf16.mxu0 0
    %5038 = vmatpush1.bf16.msra.mxu0 %v4451
    %5039 = vmatprep.subr.bf16.mxu0 0
    %5040 = vmatpush1.bf16.msra.mxu0 %v4452
    %5041 = vmatprep.subr.bf16.mxu0 0
    %5042 = vmatpush1.bf16.msra.mxu0 %v4453
    %5043 = vmatprep.subr.bf16.mxu0 0
    %5044 = vmatpush1.bf16.msra.mxu0 %v4454
    %5045 = vmatprep.subr.bf16.mxu0 0
    %5046 = vmatpush1.bf16.msra.mxu0 %v4455
    %5047 = vmatprep.subr.bf16.mxu0 0
    %5048 = vmatpush1.bf16.msra.mxu0 %v4456
    %5049 = vmatprep.subr.bf16.mxu0 0
    %5050 = vmatpush1.bf16.msra.mxu0 %v4457
    %5051 = vmatprep.subr.bf16.mxu0 0
    %5052 = vmatpush1.bf16.msra.mxu0 %v4458
    %5053 = vmatprep.subr.bf16.mxu0 0
    %5054 = vmatpush1.bf16.msra.mxu0 %v4459
    %5055 = vmatprep.subr.bf16.mxu0 0
    %5056 = vmatpush1.bf16.msra.mxu0 %v4460
    %5057 = vmatprep.subr.bf16.mxu0 0
    %5058 = vmatpush1.bf16.msra.mxu0 %v4461
    %5059 = vmatprep.subr.bf16.mxu0 0
    %5060 = vmatpush1.bf16.msra.mxu0 %v4462
    %5061 = vmatprep.subr.bf16.mxu0 0
    %5062 = vmatpush1.bf16.msra.mxu0 %v4463
    %5063 = vmatprep.subr.bf16.mxu0 0
    %5064 = vmatpush1.bf16.msra.mxu0 %v4464
    %5065 = vmatprep.mubr.bf16.mxu0 %v2833
    %5066 = vmatmul.mubr.bf16.gmra.mrb[0].mxu0 %v2832
    %v5067 = vpop.f32.mrb[0].mxu0
    %v5068 = vadd.f32 %v5028, %v5067
    %v5069 = vpop.f32.mrb[0].mxu0
    %v5070 = vpop.f32.mrb[0].mxu0
    %v5071 = vpop.f32.mrb[0].mxu0
    %5072 = vdwg.mxu0
    %5073 = vmatprep.subr.bf16.mxu0 0
    %5074 = vmatpush1.bf16.msra.mxu0 %v4465
    %5075 = vmatprep.subr.bf16.mxu0 0
    %5076 = vmatpush1.bf16.msra.mxu0 %v4466
    %5077 = vmatprep.subr.bf16.mxu0 0
    %5078 = vmatpush1.bf16.msra.mxu0 %v4467
    %5079 = vmatprep.subr.bf16.mxu0 0
    %5080 = vmatpush1.bf16.msra.mxu0 %v4468
    %5081 = vmatprep.subr.bf16.mxu0 0
    %5082 = vmatpush1.bf16.msra.mxu0 %v4469
    %5083 = vmatprep.subr.bf16.mxu0 0
    %5084 = vmatpush1.bf16.msra.mxu0 %v4470
    %5085 = vmatprep.subr.bf16.mxu0 0
    %5086 = vmatpush1.bf16.msra.mxu0 %v4471
    %5087 = vmatprep.subr.bf16.mxu0 0
    %5088 = vmatpush1.bf16.msra.mxu0 %v4472
    %5089 = vmatprep.subr.bf16.mxu0 0
    %5090 = vmatpush1.bf16.msra.mxu0 %v4473
    %5091 = vmatprep.subr.bf16.mxu0 0
    %5092 = vmatpush1.bf16.msra.mxu0 %v4474
    %5093 = vmatprep.subr.bf16.mxu0 0
    %5094 = vmatpush1.bf16.msra.mxu0 %v4475
    %5095 = vmatprep.subr.bf16.mxu0 0
    %5096 = vmatpush1.bf16.msra.mxu0 %v4476
    %5097 = vmatprep.subr.bf16.mxu0 0
    %5098 = vmatpush1.bf16.msra.mxu0 %v4477
    %5099 = vmatprep.subr.bf16.mxu0 0
    %5100 = vmatpush1.bf16.msra.mxu0 %v4478
    %5101 = vmatprep.subr.bf16.mxu0 0
    %5102 = vmatpush1.bf16.msra.mxu0 %v4479
    %5103 = vmatprep.subr.bf16.mxu0 0
    %5104 = vmatpush1.bf16.msra.mxu0 %v4480
    %5105 = vmatprep.mubr.bf16.mxu0 %v2835
    %5106 = vmatmul.mubr.bf16.gmra.mrb[0].mxu0 %v2834
    %v5107 = vpop.f32.mrb[0].mxu0
    %v5108 = vadd.f32 %v5068, %v5107
    %v5109 = vpop.f32.mrb[0].mxu0
    %v5110 = vpop.f32.mrb[0].mxu0
    %v5111 = vpop.f32.mrb[0].mxu0
    %5112 = vdwg.mxu0
    %5113 = vmatprep.subr.bf16.mxu0 0
    %5114 = vmatpush1.bf16.msra.mxu0 %v4481
    %5115 = vmatprep.subr.bf16.mxu0 0
    %5116 = vmatpush1.bf16.msra.mxu0 %v4482
    %5117 = vmatprep.subr.bf16.mxu0 0
    %5118 = vmatpush1.bf16.msra.mxu0 %v4483
    %5119 = vmatprep.subr.bf16.mxu0 0
    %5120 = vmatpush1.bf16.msra.mxu0 %v4484
    %5121 = vmatprep.subr.bf16.mxu0 0
    %5122 = vmatpush1.bf16.msra.mxu0 %v4485
    %5123 = vmatprep.subr.bf16.mxu0 0
    %5124 = vmatpush1.bf16.msra.mxu0 %v4486
    %5125 = vmatprep.subr.bf16.mxu0 0
    %5126 = vmatpush1.bf16.msra.mxu0 %v4487
    %5127 = vmatprep.subr.bf16.mxu0 0
    %5128 = vmatpush1.bf16.msra.mxu0 %v4488
    %5129 = vmatprep.subr.bf16.mxu0 0
    %5130 = vmatpush1.bf16.msra.mxu0 %v4489
    %5131 = vmatprep.subr.bf16.mxu0 0
    %5132 = vmatpush1.bf16.msra.mxu0 %v4490
    %5133 = vmatprep.subr.bf16.mxu0 0
    %5134 = vmatpush1.bf16.msra.mxu0 %v4491
    %5135 = vmatprep.subr.bf16.mxu0 0
    %5136 = vmatpush1.bf16.msra.mxu0 %v4492
    %5137 = vmatprep.subr.bf16.mxu0 0
    %5138 = vmatpush1.bf16.msra.mxu0 %v4493
    %5139 = vmatprep.subr.bf16.mxu0 0
    %5140 = vmatpush1.bf16.msra.mxu0 %v4494
    %5141 = vmatprep.subr.bf16.mxu0 0
    %5142 = vmatpush1.bf16.msra.mxu0 %v4495
    %5143 = vmatprep.subr.bf16.mxu0 0
    %5144 = vmatpush1.bf16.msra.mxu0 %v4496
    %5145 = vmatprep.mubr.bf16.mxu0 %v2837
    %5146 = vmatmul.mubr.bf16.gmra.mrb[0].mxu0 %v2836
    %v5147 = vpop.f32.mrb[0].mxu0
    %v5148 = vadd.f32 %v5108, %v5147
    %v5149 = vpop.f32.mrb[0].mxu0
    %v5150 = vpop.f32.mrb[0].mxu0
    %v5151 = vpop.f32.mrb[0].mxu0
    %5152 = vdwg.mxu0
    %5153 = vmatprep.subr.bf16.mxu0 0
    %5154 = vmatpush1.bf16.msra.mxu0 %v4497
    %5155 = vmatprep.subr.bf16.mxu0 0
    %5156 = vmatpush1.bf16.msra.mxu0 %v4498
    %5157 = vmatprep.subr.bf16.mxu0 0
    %5158 = vmatpush1.bf16.msra.mxu0 %v4499
    %5159 = vmatprep.subr.bf16.mxu0 0
    %5160 = vmatpush1.bf16.msra.mxu0 %v4500
    %5161 = vmatprep.subr.bf16.mxu0 0
    %5162 = vmatpush1.bf16.msra.mxu0 %v4501
    %5163 = vmatprep.subr.bf16.mxu0 0
    %5164 = vmatpush1.bf16.msra.mxu0 %v4502
    %5165 = vmatprep.subr.bf16.mxu0 0
    %5166 = vmatpush1.bf16.msra.mxu0 %v4503
    %5167 = vmatprep.subr.bf16.mxu0 0
    %5168 = vmatpush1.bf16.msra.mxu0 %v4504
    %5169 = vmatprep.subr.bf16.mxu0 0
    %5170 = vmatpush1.bf16.msra.mxu0 %v4505
    %5171 = vmatprep.subr.bf16.mxu0 0
    %5172 = vmatpush1.bf16.msra.mxu0 %v4506
    %5173 = vmatprep.subr.bf16.mxu0 0
    %5174 = vmatpush1.bf16.msra.mxu0 %v4507
    %5175 = vmatprep.subr.bf16.mxu0 0
    %5176 = vmatpush1.bf16.msra.mxu0 %v4508
    %5177 = vmatprep.subr.bf16.mxu0 0
    %5178 = vmatpush1.bf16.msra.mxu0 %v4509
    %5179 = vmatprep.subr.bf16.mxu0 0
    %5180 = vmatpush1.bf16.msra.mxu0 %v4510
    %5181 = vmatprep.subr.bf16.mxu0 0
    %5182 = vmatpush1.bf16.msra.mxu0 %v4511
    %5183 = vmatprep.subr.bf16.mxu0 0
    %5184 = vmatpush1.bf16.msra.mxu0 %v4512
    %5185 = vmatprep.mubr.bf16.mxu0 %v2839
    %5186 = vmatmul.mubr.bf16.gmra.mrb[0].mxu0 %v2838
    %v5187 = vpop.f32.mrb[0].mxu0
    %v5188 = vadd.f32 %v5148, %v5187
    %v5189 = vpop.f32.mrb[0].mxu0
    %v5190 = vpop.f32.mrb[0].mxu0
    %v5191 = vpop.f32.mrb[0].mxu0
    %5192 = vdwg.mxu0
    %5193 = vmatprep.subr.bf16.mxu0 0
    %5194 = vmatpush1.bf16.msra.mxu0 %v4513
    %5195 = vmatprep.subr.bf16.mxu0 0
    %5196 = vmatpush1.bf16.msra.mxu0 %v4514
    %5197 = vmatprep.subr.bf16.mxu0 0
    %5198 = vmatpush1.bf16.msra.mxu0 %v4515
    %5199 = vmatprep.subr.bf16.mxu0 0
    %5200 = vmatpush1.bf16.msra.mxu0 %v4516
    %5201 = vmatprep.subr.bf16.mxu0 0
    %5202 = vmatpush1.bf16.msra.mxu0 %v4517
    %5203 = vmatprep.subr.bf16.mxu0 0
    %5204 = vmatpush1.bf16.msra.mxu0 %v4518
    %5205 = vmatprep.subr.bf16.mxu0 0
    %5206 = vmatpush1.bf16.msra.mxu0 %v4519
    %5207 = vmatprep.subr.bf16.mxu0 0
    %5208 = vmatpush1.bf16.msra.mxu0 %v4520
    %5209 = vmatprep.subr.bf16.mxu0 0
    %5210 = vmatpush1.bf16.msra.mxu0 %v4521
    %5211 = vmatprep.subr.bf16.mxu0 0
    %5212 = vmatpush1.bf16.msra.mxu0 %v4522
    %5213 = vmatprep.subr.bf16.mxu0 0
    %5214 = vmatpush1.bf16.msra.mxu0 %v4523
    %5215 = vmatprep.subr.bf16.mxu0 0
    %5216 = vmatpush1.bf16.msra.mxu0 %v4524
    %5217 = vmatprep.subr.bf16.mxu0 0
    %5218 = vmatpush1.bf16.msra.mxu0 %v4525
    %5219 = vmatprep.subr.bf16.mxu0 0
    %5220 = vmatpush1.bf16.msra.mxu0 %v4526
    %5221 = vmatprep.subr.bf16.mxu0 0
    %5222 = vmatpush1.bf16.msra.mxu0 %v4527
    %5223 = vmatprep.subr.bf16.mxu0 0
    %5224 = vmatpush1.bf16.msra.mxu0 %v4528
    %5225 = vmatprep.mubr.bf16.mxu0 %v2841
    %5226 = vmatmul.mubr.bf16.gmra.mrb[0].mxu0 %v2840
    %v5227 = vpop.f32.mrb[0].mxu0
    %v5228 = vadd.f32 %v5188, %v5227
    %v5229 = vpop.f32.mrb[0].mxu0
    %v5230 = vpop.f32.mrb[0].mxu0
    %v5231 = vpop.f32.mrb[0].mxu0
    %5232 = vdwg.mxu0
    %5233 = vmatprep.subr.bf16.mxu0 0
    %5234 = vmatpush1.bf16.msra.mxu0 %v4529
    %5235 = vmatprep.subr.bf16.mxu0 0
    %5236 = vmatpush1.bf16.msra.mxu0 %v4530
    %5237 = vmatprep.subr.bf16.mxu0 0
    %5238 = vmatpush1.bf16.msra.mxu0 %v4531
    %5239 = vmatprep.subr.bf16.mxu0 0
    %5240 = vmatpush1.bf16.msra.mxu0 %v4532
    %5241 = vmatprep.subr.bf16.mxu0 0
    %5242 = vmatpush1.bf16.msra.mxu0 %v4533
    %5243 = vmatprep.subr.bf16.mxu0 0
    %5244 = vmatpush1.bf16.msra.mxu0 %v4534
    %5245 = vmatprep.subr.bf16.mxu0 0
    %5246 = vmatpush1.bf16.msra.mxu0 %v4535
    %5247 = vmatprep.subr.bf16.mxu0 0
    %5248 = vmatpush1.bf16.msra.mxu0 %v4536
    %5249 = vmatprep.subr.bf16.mxu0 0
    %5250 = vmatpush1.bf16.msra.mxu0 %v4537
    %5251 = vmatprep.subr.bf16.mxu0 0
    %5252 = vmatpush1.bf16.msra.mxu0 %v4538
    %5253 = vmatprep.subr.bf16.mxu0 0
    %5254 = vmatpush1.bf16.msra.mxu0 %v4539
    %5255 = vmatprep.subr.bf16.mxu0 0
    %5256 = vmatpush1.bf16.msra.mxu0 %v4540
    %5257 = vmatprep.subr.bf16.mxu0 0
    %5258 = vmatpush1.bf16.msra.mxu0 %v4541
    %5259 = vmatprep.subr.bf16.mxu0 0
    %5260 = vmatpush1.bf16.msra.mxu0 %v4542
    %5261 = vmatprep.subr.bf16.mxu0 0
    %5262 = vmatpush1.bf16.msra.mxu0 %v4543
    %5263 = vmatprep.subr.bf16.mxu0 0
    %5264 = vmatpush1.bf16.msra.mxu0 %v4544
    %5265 = vmatprep.mubr.bf16.mxu0 %v2843
    %5266 = vmatmul.mubr.bf16.gmra.mrb[0].mxu0 %v2842
    %v5267 = vpop.f32.mrb[0].mxu0
    %v5268 = vadd.f32 %v5228, %v5267
    %v5269 = vpop.f32.mrb[0].mxu0
    %v5270 = vpop.f32.mrb[0].mxu0
    %v5271 = vpop.f32.mrb[0].mxu0
    %5272 = vdwg.mxu0
    %5273 = vmatprep.subr.bf16.mxu0 0
    %5274 = vmatpush1.bf16.msra.mxu0 %v4545
    %5275 = vmatprep.subr.bf16.mxu0 0
    %5276 = vmatpush1.bf16.msra.mxu0 %v4546
    %5277 = vmatprep.subr.bf16.mxu0 0
    %5278 = vmatpush1.bf16.msra.mxu0 %v4547
    %5279 = vmatprep.subr.bf16.mxu0 0
    %5280 = vmatpush1.bf16.msra.mxu0 %v4548
    %5281 = vmatprep.subr.bf16.mxu0 0
    %5282 = vmatpush1.bf16.msra.mxu0 %v4549
    %5283 = vmatprep.subr.bf16.mxu0 0
    %5284 = vmatpush1.bf16.msra.mxu0 %v4550
    %5285 = vmatprep.subr.bf16.mxu0 0
    %5286 = vmatpush1.bf16.msra.mxu0 %v4551
    %5287 = vmatprep.subr.bf16.mxu0 0
    %5288 = vmatpush1.bf16.msra.mxu0 %v4552
    %5289 = vmatprep.subr.bf16.mxu0 0
    %5290 = vmatpush1.bf16.msra.mxu0 %v4553
    %5291 = vmatprep.subr.bf16.mxu0 0
    %5292 = vmatpush1.bf16.msra.mxu0 %v4554
    %5293 = vmatprep.subr.bf16.mxu0 0
    %5294 = vmatpush1.bf16.msra.mxu0 %v4555
    %5295 = vmatprep.subr.bf16.mxu0 0
    %5296 = vmatpush1.bf16.msra.mxu0 %v4556
    %5297 = vmatprep.subr.bf16.mxu0 0
    %5298 = vmatpush1.bf16.msra.mxu0 %v4557
    %5299 = vmatprep.subr.bf16.mxu0 0
    %5300 = vmatpush1.bf16.msra.mxu0 %v4558
    %5301 = vmatprep.subr.bf16.mxu0 0
    %5302 = vmatpush1.bf16.msra.mxu0 %v4559
    %5303 = vmatprep.subr.bf16.mxu0 0
    %5304 = vmatpush1.bf16.msra.mxu0 %v4560
    %5305 = vmatprep.mubr.bf16.mxu0 %v2845
    %5306 = vmatmul.mubr.bf16.gmra.mrb[0].mxu0 %v2844
    %v5307 = vpop.f32.mrb[0].mxu0
    %v5308 = vadd.f32 %v5268, %v5307
    %v5309 = vpop.f32.mrb[0].mxu0
    %v5310 = vpop.f32.mrb[0].mxu0
    %v5311 = vpop.f32.mrb[0].mxu0
    %5312 = vdwg.mxu0
    %5313 = vmatprep.subr.bf16.mxu0 0
    %5314 = vmatpush1.bf16.msra.mxu0 %v4561
    %5315 = vmatprep.subr.bf16.mxu0 0
    %5316 = vmatpush1.bf16.msra.mxu0 %v4562
    %5317 = vmatprep.subr.bf16.mxu0 0
    %5318 = vmatpush1.bf16.msra.mxu0 %v4563
    %5319 = vmatprep.subr.bf16.mxu0 0
    %5320 = vmatpush1.bf16.msra.mxu0 %v4564
    %5321 = vmatprep.subr.bf16.mxu0 0
    %5322 = vmatpush1.bf16.msra.mxu0 %v4565
    %5323 = vmatprep.subr.bf16.mxu0 0
    %5324 = vmatpush1.bf16.msra.mxu0 %v4566
    %5325 = vmatprep.subr.bf16.mxu0 0
    %5326 = vmatpush1.bf16.msra.mxu0 %v4567
    %5327 = vmatprep.subr.bf16.mxu0 0
    %5328 = vmatpush1.bf16.msra.mxu0 %v4568
    %5329 = vmatprep.subr.bf16.mxu0 0
    %5330 = vmatpush1.bf16.msra.mxu0 %v4569
    %5331 = vmatprep.subr.bf16.mxu0 0
    %5332 = vmatpush1.bf16.msra.mxu0 %v4570
    %5333 = vmatprep.subr.bf16.mxu0 0
    %5334 = vmatpush1.bf16.msra.mxu0 %v4571
    %5335 = vmatprep.subr.bf16.mxu0 0
    %5336 = vmatpush1.bf16.msra.mxu0 %v4572
    %5337 = vmatprep.subr.bf16.mxu0 0
    %5338 = vmatpush1.bf16.msra.mxu0 %v4573
    %5339 = vmatprep.subr.bf16.mxu0 0
    %5340 = vmatpush1.bf16.msra.mxu0 %v4574
    %5341 = vmatprep.subr.bf16.mxu0 0
    %5342 = vmatpush1.bf16.msra.mxu0 %v4575
    %5343 = vmatprep.subr.bf16.mxu0 0
    %5344 = vmatpush1.bf16.msra.mxu0 %v4576
    %5345 = vmatprep.mubr.bf16.mxu0 %v2847
    %5346 = vmatmul.mubr.bf16.gmra.mrb[0].mxu0 %v2846
    %v5347 = vpop.f32.mrb[0].mxu0
    %v5348 = vadd.f32 %v5308, %v5347
    %v5349 = vpop.f32.mrb[0].mxu0
    %v5350 = vpop.f32.mrb[0].mxu0
    %v5351 = vpop.f32.mrb[0].mxu0
    %5352 = vdwg.mxu0
    %5353 = vmatprep.subr.bf16.mxu0 0
    %5354 = vmatpush1.bf16.msra.mxu0 %v4577
    %5355 = vmatprep.subr.bf16.mxu0 0
    %5356 = vmatpush1.bf16.msra.mxu0 %v4578
    %5357 = vmatprep.subr.bf16.mxu0 0
    %5358 = vmatpush1.bf16.msra.mxu0 %v4579
    %5359 = vmatprep.subr.bf16.mxu0 0
    %5360 = vmatpush1.bf16.msra.mxu0 %v4580
    %5361 = vmatprep.subr.bf16.mxu0 0
    %5362 = vmatpush1.bf16.msra.mxu0 %v4581
    %5363 = vmatprep.subr.bf16.mxu0 0
    %5364 = vmatpush1.bf16.msra.mxu0 %v4582
    %5365 = vmatprep.subr.bf16.mxu0 0
    %5366 = vmatpush1.bf16.msra.mxu0 %v4583
    %5367 = vmatprep.subr.bf16.mxu0 0
    %5368 = vmatpush1.bf16.msra.mxu0 %v4584
    %5369 = vmatprep.subr.bf16.mxu0 0
    %5370 = vmatpush1.bf16.msra.mxu0 %v4585
    %5371 = vmatprep.subr.bf16.mxu0 0
    %5372 = vmatpush1.bf16.msra.mxu0 %v4586
    %5373 = vmatprep.subr.bf16.mxu0 0
    %5374 = vmatpush1.bf16.msra.mxu0 %v4587
    %5375 = vmatprep.subr.bf16.mxu0 0
    %5376 = vmatpush1.bf16.msra.mxu0 %v4588
    %5377 = vmatprep.subr.bf16.mxu0 0
    %5378 = vmatpush1.bf16.msra.mxu0 %v4589
    %5379 = vmatprep.subr.bf16.mxu0 0
    %5380 = vmatpush1.bf16.msra.mxu0 %v4590
    %5381 = vmatprep.subr.bf16.mxu0 0
    %5382 = vmatpush1.bf16.msra.mxu0 %v4591
    %5383 = vmatprep.subr.bf16.mxu0 0
    %5384 = vmatpush1.bf16.msra.mxu0 %v4592
    %5385 = vmatprep.mubr.bf16.mxu0 %v2849
    %5386 = vmatmul.mubr.bf16.gmra.mrb[0].mxu0 %v2848
    %v5387 = vpop.f32.mrb[0].mxu0
    %v5388 = vadd.f32 %v5348, %v5387
    %v5389 = vpop.f32.mrb[0].mxu0
    %v5390 = vpop.f32.mrb[0].mxu0
    %v5391 = vpop.f32.mrb[0].mxu0
    %5392 = vdwg.mxu0
    %5393 = vmatprep.subr.bf16.mxu0 0
    %5394 = vmatpush1.bf16.msra.mxu0 %v4593
    %5395 = vmatprep.subr.bf16.mxu0 0
    %5396 = vmatpush1.bf16.msra.mxu0 %v4594
    %5397 = vmatprep.subr.bf16.mxu0 0
    %5398 = vmatpush1.bf16.msra.mxu0 %v4595
    %5399 = vmatprep.subr.bf16.mxu0 0
    %5400 = vmatpush1.bf16.msra.mxu0 %v4596
    %5401 = vmatprep.subr.bf16.mxu0 0
    %5402 = vmatpush1.bf16.msra.mxu0 %v4597
    %5403 = vmatprep.subr.bf16.mxu0 0
    %5404 = vmatpush1.bf16.msra.mxu0 %v4598
    %5405 = vmatprep.subr.bf16.mxu0 0
    %5406 = vmatpush1.bf16.msra.mxu0 %v4599
    %5407 = vmatprep.subr.bf16.mxu0 0
    %5408 = vmatpush1.bf16.msra.mxu0 %v4600
    %5409 = vmatprep.subr.bf16.mxu0 0
    %5410 = vmatpush1.bf16.msra.mxu0 %v4601
    %5411 = vmatprep.subr.bf16.mxu0 0
    %5412 = vmatpush1.bf16.msra.mxu0 %v4602
    %5413 = vmatprep.subr.bf16.mxu0 0
    %5414 = vmatpush1.bf16.msra.mxu0 %v4603
    %5415 = vmatprep.subr.bf16.mxu0 0
    %5416 = vmatpush1.bf16.msra.mxu0 %v4604
    %5417 = vmatprep.subr.bf16.mxu0 0
    %5418 = vmatpush1.bf16.msra.mxu0 %v4605
    %5419 = vmatprep.subr.bf16.mxu0 0
    %5420 = vmatpush1.bf16.msra.mxu0 %v4606
    %5421 = vmatprep.subr.bf16.mxu0 0
    %5422 = vmatpush1.bf16.msra.mxu0 %v4607
    %5423 = vmatprep.subr.bf16.mxu0 0
    %5424 = vmatpush1.bf16.msra.mxu0 %v4608
    %5425 = vmatprep.mubr.bf16.mxu0 %v2851
    %5426 = vmatmul.mubr.bf16.gmra.mrb[0].mxu0 %v2850
    %v5427 = vpop.f32.mrb[0].mxu0
    %v5428 = vadd.f32 %v5388, %v5427
    %v5429 = vpop.f32.mrb[0].mxu0
    %v5430 = vpop.f32.mrb[0].mxu0
    %v5431 = vpop.f32.mrb[0].mxu0
    %5432 = vdwg.mxu0
    %5433 = vmatprep.subr.bf16.mxu0 0
    %5434 = vmatpush1.bf16.msra.mxu0 %v4609
    %5435 = vmatprep.subr.bf16.mxu0 0
    %5436 = vmatpush1.bf16.msra.mxu0 %v4610
    %5437 = vmatprep.subr.bf16.mxu0 0
    %5438 = vmatpush1.bf16.msra.mxu0 %v4611
    %5439 = vmatprep.subr.bf16.mxu0 0
    %5440 = vmatpush1.bf16.msra.mxu0 %v4612
    %5441 = vmatprep.subr.bf16.mxu0 0
    %5442 = vmatpush1.bf16.msra.mxu0 %v4613
    %5443 = vmatprep.subr.bf16.mxu0 0
    %5444 = vmatpush1.bf16.msra.mxu0 %v4614
    %5445 = vmatprep.subr.bf16.mxu0 0
    %5446 = vmatpush1.bf16.msra.mxu0 %v4615
    %5447 = vmatprep.subr.bf16.mxu0 0
    %5448 = vmatpush1.bf16.msra.mxu0 %v4616
    %5449 = vmatprep.subr.bf16.mxu0 0
    %5450 = vmatpush1.bf16.msra.mxu0 %v4617
    %5451 = vmatprep.subr.bf16.mxu0 0
    %5452 = vmatpush1.bf16.msra.mxu0 %v4618
    %5453 = vmatprep.subr.bf16.mxu0 0
    %5454 = vmatpush1.bf16.msra.mxu0 %v4619
    %5455 = vmatprep.subr.bf16.mxu0 0
    %5456 = vmatpush1.bf16.msra.mxu0 %v4620
    %5457 = vmatprep.subr.bf16.mxu0 0
    %5458 = vmatpush1.bf16.msra.mxu0 %v4621
    %5459 = vmatprep.subr.bf16.mxu0 0
    %5460 = vmatpush1.bf16.msra.mxu0 %v4622
    %5461 = vmatprep.subr.bf16.mxu0 0
    %5462 = vmatpush1.bf16.msra.mxu0 %v4623
    %5463 = vmatprep.subr.bf16.mxu0 0
    %5464 = vmatpush1.bf16.msra.mxu0 %v4624
    %5465 = vmatprep.mubr.bf16.mxu0 %v2853
    %5466 = vmatmul.mubr.bf16.gmra.mrb[0].mxu0 %v2852
    %v5467 = vpop.f32.mrb[0].mxu0
    %v5468 = vadd.f32 %v5428, %v5467
    %v5469 = vpop.f32.mrb[0].mxu0
    %v5470 = vpop.f32.mrb[0].mxu0
    %v5471 = vpop.f32.mrb[0].mxu0
    %5472 = vdwg.mxu0
    %5473 = vmatprep.subr.bf16.mxu0 0
    %5474 = vmatpush1.bf16.msra.mxu0 %v4625
    %5475 = vmatprep.subr.bf16.mxu0 0
    %5476 = vmatpush1.bf16.msra.mxu0 %v4626
    %5477 = vmatprep.subr.bf16.mxu0 0
    %5478 = vmatpush1.bf16.msra.mxu0 %v4627
    %5479 = vmatprep.subr.bf16.mxu0 0
    %5480 = vmatpush1.bf16.msra.mxu0 %v4628
    %5481 = vmatprep.subr.bf16.mxu0 0
    %5482 = vmatpush1.bf16.msra.mxu0 %v4629
    %5483 = vmatprep.subr.bf16.mxu0 0
    %5484 = vmatpush1.bf16.msra.mxu0 %v4630
    %5485 = vmatprep.subr.bf16.mxu0 0
    %5486 = vmatpush1.bf16.msra.mxu0 %v4631
    %5487 = vmatprep.subr.bf16.mxu0 0
    %5488 = vmatpush1.bf16.msra.mxu0 %v4632
    %5489 = vmatprep.subr.bf16.mxu0 0
    %5490 = vmatpush1.bf16.msra.mxu0 %v4633
    %5491 = vmatprep.subr.bf16.mxu0 0
    %5492 = vmatpush1.bf16.msra.mxu0 %v4634
    %5493 = vmatprep.subr.bf16.mxu0 0
    %5494 = vmatpush1.bf16.msra.mxu0 %v4635
    %5495 = vmatprep.subr.bf16.mxu0 0
    %5496 = vmatpush1.bf16.msra.mxu0 %v4636
    %5497 = vmatprep.subr.bf16.mxu0 0
    %5498 = vmatpush1.bf16.msra.mxu0 %v4637
    %5499 = vmatprep.subr.bf16.mxu0 0
    %5500 = vmatpush1.bf16.msra.mxu0 %v4638
    %5501 = vmatprep.subr.bf16.mxu0 0
    %5502 = vmatpush1.bf16.msra.mxu0 %v4639
    %5503 = vmatprep.subr.bf16.mxu0 0
    %5504 = vmatpush1.bf16.msra.mxu0 %v4640
    %5505 = vmatprep.mubr.bf16.mxu0 %v2855
    %5506 = vmatmul.mubr.bf16.gmra.mrb[0].mxu0 %v2854
    %v5507 = vpop.f32.mrb[0].mxu0
    %v5508 = vadd.f32 %v5468, %v5507
    %v5509 = vpop.f32.mrb[0].mxu0
    %v5510 = vpop.f32.mrb[0].mxu0
    %v5511 = vpop.f32.mrb[0].mxu0
    %5512 = vdwg.mxu0
    %5513 = vmatprep.subr.bf16.mxu0 0
    %5514 = vmatpush1.bf16.msra.mxu0 %v4641
    %5515 = vmatprep.subr.bf16.mxu0 0
    %5516 = vmatpush1.bf16.msra.mxu0 %v4642
    %5517 = vmatprep.subr.bf16.mxu0 0
    %5518 = vmatpush1.bf16.msra.mxu0 %v4643
    %5519 = vmatprep.subr.bf16.mxu0 0
    %5520 = vmatpush1.bf16.msra.mxu0 %v4644
    %5521 = vmatprep.subr.bf16.mxu0 0
    %5522 = vmatpush1.bf16.msra.mxu0 %v4645
    %5523 = vmatprep.subr.bf16.mxu0 0
    %5524 = vmatpush1.bf16.msra.mxu0 %v4646
    %5525 = vmatprep.subr.bf16.mxu0 0
    %5526 = vmatpush1.bf16.msra.mxu0 %v4647
    %5527 = vmatprep.subr.bf16.mxu0 0
    %5528 = vmatpush1.bf16.msra.mxu0 %v4648
    %5529 = vmatprep.subr.bf16.mxu0 0
    %5530 = vmatpush1.bf16.msra.mxu0 %v4649
    %5531 = vmatprep.subr.bf16.mxu0 0
    %5532 = vmatpush1.bf16.msra.mxu0 %v4650
    %5533 = vmatprep.subr.bf16.mxu0 0
    %5534 = vmatpush1.bf16.msra.mxu0 %v4651
    %5535 = vmatprep.subr.bf16.mxu0 0
    %5536 = vmatpush1.bf16.msra.mxu0 %v4652
    %5537 = vmatprep.subr.bf16.mxu0 0
    %5538 = vmatpush1.bf16.msra.mxu0 %v4653
    %5539 = vmatprep.subr.bf16.mxu0 0
    %5540 = vmatpush1.bf16.msra.mxu0 %v4654
    %5541 = vmatprep.subr.bf16.mxu0 0
    %5542 = vmatpush1.bf16.msra.mxu0 %v4655
    %5543 = vmatprep.subr.bf16.mxu0 0
    %5544 = vmatpush1.bf16.msra.mxu0 %v4656
    %5545 = vmatprep.mubr.bf16.mxu0 %v2857
    %5546 = vmatmul.mubr.bf16.gmra.mrb[0].mxu0 %v2856
    %v5547 = vpop.f32.mrb[0].mxu0
    %v5548 = vadd.f32 %v5508, %v5547
    %v5549 = vpop.f32.mrb[0].mxu0
    %v5550 = vpop.f32.mrb[0].mxu0
    %v5551 = vpop.f32.mrb[0].mxu0
    %5552 = vdwg.mxu0
    %v5553 = vmax.f32 %v5548, 0.0
    %5554 = vst.msk [vmem:[%s15] sm:$0xff] %vm1870, %v5553
    %v5555 = vlaneseq
    %v5556 = vshrl.u32 %v5555, 7
    %v5557 = vadd.s32 %v5556, 8
    %v5558 = vadd.s32 %v5556, 16
    %v5559 = vadd.s32 %v5556, 24
    %v5560 = vadd.s32 %v5556, 32
    %v5561 = vadd.s32 %v5556, 40
    %v5562 = vadd.s32 %v5556, 48
    %v5563 = vadd.s32 %v5556, 56
    %v5564 = vlaneseq
    %v5565 = vand.u32 %v5564, 127
    %v5566 = vadd.s32 %v5565, 32
    %vm5567 = vcmp.eq.s32.totalorder %v5556, %v5566
    %vm5568 = vcmp.eq.s32.totalorder %v5557, %v5566
    %vm5569 = vcmp.eq.s32.totalorder %v5558, %v5566
    %vm5570 = vcmp.eq.s32.totalorder %v5559, %v5566
    %vm5571 = vcmp.eq.s32.totalorder %v5560, %v5566
    %vm5572 = vcmp.eq.s32.totalorder %v5561, %v5566
    %vm5573 = vcmp.eq.s32.totalorder %v5562, %v5566
    %vm5574 = vcmp.eq.s32.totalorder %v5563, %v5566
    %v5575 = vsel %vm5567, 1, 0
    %v5576 = vsel %vm5568, 1, 0
    %v5577 = vsel %vm5569, 1, 0
    %v5578 = vsel %vm5570, 1, 0
    %v5579 = vsel %vm5571, 1, 0
    %v5580 = vsel %vm5572, 1, 0
    %v5581 = vsel %vm5573, 1, 0
    %v5582 = vsel %vm5574, 1, 0
    %v5583 = vcvt.s32.f32 %v5575
    %v5584 = vcvt.s32.f32 %v5576
    %v5585 = vcvt.s32.f32 %v5577
    %v5586 = vcvt.s32.f32 %v5578
    %v5587 = vcvt.s32.f32 %v5579
    %v5588 = vcvt.s32.f32 %v5580
    %v5589 = vcvt.s32.f32 %v5581
    %v5590 = vcvt.s32.f32 %v5582
    %v5592 = vsel %vm1870, %v5553, 0
    %5594 = vmatprep.subr.mxu0 0.0
    %5595 = vmatpush1.msra.mxu0 %v5583
    %5596 = vmatprep.subr.mxu0 0.0
    %5597 = vmatpush1.msra.mxu0 %v5584
    %5598 = vmatprep.subr.mxu0 0.0
    %5599 = vmatpush1.msra.mxu0 %v5585
    %5600 = vmatprep.subr.mxu0 0.0
    %5601 = vmatpush1.msra.mxu0 %v5586
    %5602 = vmatprep.subr.mxu0 0.0
    %5603 = vmatpush1.msra.mxu0 %v5587
    %5604 = vmatprep.subr.mxu0 0.0
    %5605 = vmatpush1.msra.mxu0 %v5588
    %5606 = vmatprep.subr.mxu0 0.0
    %5607 = vmatpush1.msra.mxu0 %v5589
    %5608 = vmatprep.subr.mxu0 0.0
    %5609 = vmatpush1.msra.mxu0 %v5590
    %5610 = vmatprep.subr.mxu0 0.0
    %5611 = vmatpush1.msra.mxu0 0.0
    %5612 = vmatprep.subr.mxu0 0.0
    %5613 = vmatpush1.msra.mxu0 0.0
    %5614 = vmatprep.subr.mxu0 0.0
    %5615 = vmatpush1.msra.mxu0 0.0
    %5616 = vmatprep.subr.mxu0 0.0
    %5617 = vmatpush1.msra.mxu0 0.0
    %5618 = vmatprep.subr.mxu0 0.0
    %5619 = vmatpush1.msra.mxu0 0.0
    %5620 = vmatprep.subr.mxu0 0.0
    %5621 = vmatpush1.msra.mxu0 0.0
    %5622 = vmatprep.subr.mxu0 0.0
    %5623 = vmatpush1.msra.mxu0 0.0
    %5624 = vmatprep.subr.mxu0 0.0
    %5625 = vmatpush1.msra.mxu0 0.0
    %5626 = vmatprep.subr.mxu0 0.0
    %5627 = vmatpush1.msra.mxu0 0.0
    %5628 = vmatprep.subr.mxu0 0.0
    %5629 = vmatpush1.msra.mxu0 0.0
    %5630 = vmatprep.subr.mxu0 0.0
    %5631 = vmatpush1.msra.mxu0 0.0
    %5632 = vmatprep.subr.mxu0 0.0
    %5633 = vmatpush1.msra.mxu0 0.0
    %5634 = vmatprep.subr.mxu0 0.0
    %5635 = vmatpush1.msra.mxu0 0.0
    %5636 = vmatprep.subr.mxu0 0.0
    %5637 = vmatpush1.msra.mxu0 0.0
    %5638 = vmatprep.subr.mxu0 0.0
    %5639 = vmatpush1.msra.mxu0 0.0
    %5640 = vmatprep.subr.mxu0 0.0
    %5641 = vmatpush1.msra.mxu0 0.0
    %5642 = vmatprep.subr.mxu0 0.0
    %5643 = vmatpush1.msra.mxu0 0.0
    %5644 = vmatprep.subr.mxu0 0.0
    %5645 = vmatpush1.msra.mxu0 0.0
    %5646 = vmatprep.subr.mxu0 0.0
    %5647 = vmatpush1.msra.mxu0 0.0
    %5648 = vmatprep.subr.mxu0 0.0
    %5649 = vmatpush1.msra.mxu0 0.0
    %5650 = vmatprep.subr.mxu0 0.0
    %5651 = vmatpush1.msra.mxu0 0.0
    %5652 = vmatprep.subr.mxu0 0.0
    %5653 = vmatpush1.msra.mxu0 0.0
    %5654 = vmatprep.subr.mxu0 0.0
    %5655 = vmatpush1.msra.mxu0 0.0
    %5656 = vmatprep.subr.mxu0 0.0
    %5657 = vmatpush1.msra.mxu0 0.0
    %5658 = vmatprep.mubr.f32.mxu0 0.0
    %5659 = vmatmul.mubr.f32.gmra.mrb[0].mxu0 %v5592
    %v5660 = vpop.f32.mrb[0].mxu0
    %v5661 = vadd.f32 0.0, %v5660
    %v5662 = vpop.f32.mrb[0].mxu0
    %5663 = vdwg.mxu0
    %v5664 = vld [vmem:[%s3] sm:$0xff]
    %v5665 = vmul.f32 %v5661, 0.5
    %v5666 = vmul.f32 %v5665, 1.442695
    %v5667 = vpow.pop %v5666
    %v5668 = vmul.f32 %v5664, %v5667
    %v5669 = vadd.f32 %v5553, %v5668
    %vm5670 = vcmp.lt.s32.totalorder %v5565, 32
    %v5671 = vld [vmem:[%s2] sm:$0xff]
    %v5672 = vsel %vm5670, %v5669, %v5671
    %v5673 = vpack.c.bf16 %v5672, %v5672
    %v5674 = vld [vmem:[%s9] sm:$0xff]
    %v5675 = vld [vmem:[%s9 + $0x8] sm:$0xff]
    %v5676 = vld [vmem:[%s9 + $0x10] sm:$0xff]
    %v5677 = vld [vmem:[%s9 + $0x18] sm:$0xff]
    %v5678 = vld [vmem:[%s9 + $0x20] sm:$0xff]
    %v5679 = vld [vmem:[%s9 + $0x28] sm:$0xff]
    %v5680 = vld [vmem:[%s9 + $0x30] sm:$0xff]
    %v5681 = vld [vmem:[%s9 + $0x38] sm:$0xff]
    %v5682 = vld [vmem:[%s9 + $0x40] sm:$0xff]
    %v5683 = vld [vmem:[%s9 + $0x48] sm:$0xff]
    %v5684 = vld [vmem:[%s9 + $0x50] sm:$0xff]
    %v5685 = vld [vmem:[%s9 + $0x58] sm:$0xff]
    %v5686 = vld [vmem:[%s9 + $0x60] sm:$0xff]
    %v5687 = vld [vmem:[%s9 + $0x68] sm:$0xff]
    %v5688 = vld [vmem:[%s9 + $0x70] sm:$0xff]
    %v5689 = vld [vmem:[%s9 + $0x78] sm:$0xff]
    %v5690 = vld [vmem:[%s9 + $0x80] sm:$0xff]
    %v5691 = vld [vmem:[%s9 + $0x88] sm:$0xff]
    %v5692 = vld [vmem:[%s9 + $0x90] sm:$0xff]
    %v5693 = vld [vmem:[%s9 + $0x98] sm:$0xff]
    %v5694 = vld [vmem:[%s9 + $0xa0] sm:$0xff]
    %v5695 = vld [vmem:[%s9 + $0xa8] sm:$0xff]
    %v5696 = vld [vmem:[%s9 + $0xb0] sm:$0xff]
    %v5697 = vld [vmem:[%s9 + $0xb8] sm:$0xff]
    %v5698 = vld [vmem:[%s9 + $0xc0] sm:$0xff]
    %v5699 = vld [vmem:[%s9 + $0xc8] sm:$0xff]
    %v5700 = vld [vmem:[%s9 + $0xd0] sm:$0xff]
    %v5701 = vld [vmem:[%s9 + $0xd8] sm:$0xff]
    %v5702 = vld [vmem:[%s9 + $0xe0] sm:$0xff]
    %v5703 = vld [vmem:[%s9 + $0xe8] sm:$0xff]
    %v5704 = vld [vmem:[%s9 + $0xf0] sm:$0xff]
    %v5705 = vld [vmem:[%s9 + $0xf8] sm:$0xff]
    %v5706 = vld [vmem:[%s9 + $0x100] sm:$0xff]
    %v5707 = vld [vmem:[%s9 + $0x108] sm:$0xff]
    %v5708 = vld [vmem:[%s9 + $0x110] sm:$0xff]
    %v5709 = vld [vmem:[%s9 + $0x118] sm:$0xff]
    %v5710 = vld [vmem:[%s9 + $0x120] sm:$0xff]
    %v5711 = vld [vmem:[%s9 + $0x128] sm:$0xff]
    %v5712 = vld [vmem:[%s9 + $0x130] sm:$0xff]
    %v5713 = vld [vmem:[%s9 + $0x138] sm:$0xff]
    %v5714 = vld [vmem:[%s9 + $0x140] sm:$0xff]
    %v5715 = vld [vmem:[%s9 + $0x148] sm:$0xff]
    %v5716 = vld [vmem:[%s9 + $0x150] sm:$0xff]
    %v5717 = vld [vmem:[%s9 + $0x158] sm:$0xff]
    %v5718 = vld [vmem:[%s9 + $0x160] sm:$0xff]
    %v5719 = vld [vmem:[%s9 + $0x168] sm:$0xff]
    %v5720 = vld [vmem:[%s9 + $0x170] sm:$0xff]
    %v5721 = vld [vmem:[%s9 + $0x178] sm:$0xff]
    %v5722 = vld [vmem:[%s9 + $0x180] sm:$0xff]
    %v5723 = vld [vmem:[%s9 + $0x188] sm:$0xff]
    %v5724 = vld [vmem:[%s9 + $0x190] sm:$0xff]
    %v5725 = vld [vmem:[%s9 + $0x198] sm:$0xff]
    %v5726 = vld [vmem:[%s9 + $0x1a0] sm:$0xff]
    %v5727 = vld [vmem:[%s9 + $0x1a8] sm:$0xff]
    %v5728 = vld [vmem:[%s9 + $0x1b0] sm:$0xff]
    %v5729 = vld [vmem:[%s9 + $0x1b8] sm:$0xff]
    %v5730 = vld [vmem:[%s9 + $0x1c0] sm:$0xff]
    %v5731 = vld [vmem:[%s9 + $0x1c8] sm:$0xff]
    %v5732 = vld [vmem:[%s9 + $0x1d0] sm:$0xff]
    %v5733 = vld [vmem:[%s9 + $0x1d8] sm:$0xff]
    %v5734 = vld [vmem:[%s9 + $0x1e0] sm:$0xff]
    %v5735 = vld [vmem:[%s9 + $0x1e8] sm:$0xff]
    %v5736 = vld [vmem:[%s9 + $0x1f0] sm:$0xff]
    %v5737 = vld [vmem:[%s9 + $0x1f8] sm:$0xff]
    %v5738 = vld [vmem:[%s9 + $0x200] sm:$0xff]
    %v5739 = vld [vmem:[%s9 + $0x208] sm:$0xff]
    %v5740 = vld [vmem:[%s9 + $0x210] sm:$0xff]
    %v5741 = vld [vmem:[%s9 + $0x218] sm:$0xff]
    %v5742 = vld [vmem:[%s9 + $0x220] sm:$0xff]
    %v5743 = vld [vmem:[%s9 + $0x228] sm:$0xff]
    %v5744 = vld [vmem:[%s9 + $0x230] sm:$0xff]
    %v5745 = vld [vmem:[%s9 + $0x238] sm:$0xff]
    %v5746 = vld [vmem:[%s9 + $0x240] sm:$0xff]
    %v5747 = vld [vmem:[%s9 + $0x248] sm:$0xff]
    %v5748 = vld [vmem:[%s9 + $0x250] sm:$0xff]
    %v5749 = vld [vmem:[%s9 + $0x258] sm:$0xff]
    %v5750 = vld [vmem:[%s9 + $0x260] sm:$0xff]
    %v5751 = vld [vmem:[%s9 + $0x268] sm:$0xff]
    %v5752 = vld [vmem:[%s9 + $0x270] sm:$0xff]
    %v5753 = vld [vmem:[%s9 + $0x278] sm:$0xff]
    %v5754 = vld [vmem:[%s9 + $0x280] sm:$0xff]
    %v5755 = vld [vmem:[%s9 + $0x288] sm:$0xff]
    %v5756 = vld [vmem:[%s9 + $0x290] sm:$0xff]
    %v5757 = vld [vmem:[%s9 + $0x298] sm:$0xff]
    %v5758 = vld [vmem:[%s9 + $0x2a0] sm:$0xff]
    %v5759 = vld [vmem:[%s9 + $0x2a8] sm:$0xff]
    %v5760 = vld [vmem:[%s9 + $0x2b0] sm:$0xff]
    %v5761 = vld [vmem:[%s9 + $0x2b8] sm:$0xff]
    %v5762 = vld [vmem:[%s9 + $0x2c0] sm:$0xff]
    %v5763 = vld [vmem:[%s9 + $0x2c8] sm:$0xff]
    %v5764 = vld [vmem:[%s9 + $0x2d0] sm:$0xff]
    %v5765 = vld [vmem:[%s9 + $0x2d8] sm:$0xff]
    %v5766 = vld [vmem:[%s9 + $0x2e0] sm:$0xff]
    %v5767 = vld [vmem:[%s9 + $0x2e8] sm:$0xff]
    %v5768 = vld [vmem:[%s9 + $0x2f0] sm:$0xff]
    %v5769 = vld [vmem:[%s9 + $0x2f8] sm:$0xff]
    %v5770 = vld [vmem:[%s9 + $0x300] sm:$0xff]
    %v5771 = vld [vmem:[%s9 + $0x308] sm:$0xff]
    %v5772 = vld [vmem:[%s9 + $0x310] sm:$0xff]
    %v5773 = vld [vmem:[%s9 + $0x318] sm:$0xff]
    %v5774 = vld [vmem:[%s9 + $0x320] sm:$0xff]
    %v5775 = vld [vmem:[%s9 + $0x328] sm:$0xff]
    %v5776 = vld [vmem:[%s9 + $0x330] sm:$0xff]
    %v5777 = vld [vmem:[%s9 + $0x338] sm:$0xff]
    %v5778 = vld [vmem:[%s9 + $0x340] sm:$0xff]
    %v5779 = vld [vmem:[%s9 + $0x348] sm:$0xff]
    %v5780 = vld [vmem:[%s9 + $0x350] sm:$0xff]
    %v5781 = vld [vmem:[%s9 + $0x358] sm:$0xff]
    %v5782 = vld [vmem:[%s9 + $0x360] sm:$0xff]
    %v5783 = vld [vmem:[%s9 + $0x368] sm:$0xff]
    %v5784 = vld [vmem:[%s9 + $0x370] sm:$0xff]
    %v5785 = vld [vmem:[%s9 + $0x378] sm:$0xff]
    %v5786 = vld [vmem:[%s9 + $0x380] sm:$0xff]
    %v5787 = vld [vmem:[%s9 + $0x388] sm:$0xff]
    %v5788 = vld [vmem:[%s9 + $0x390] sm:$0xff]
    %v5789 = vld [vmem:[%s9 + $0x398] sm:$0xff]
    %v5790 = vld [vmem:[%s9 + $0x3a0] sm:$0xff]
    %v5791 = vld [vmem:[%s9 + $0x3a8] sm:$0xff]
    %v5792 = vld [vmem:[%s9 + $0x3b0] sm:$0xff]
    %v5793 = vld [vmem:[%s9 + $0x3b8] sm:$0xff]
    %v5794 = vld [vmem:[%s9 + $0x3c0] sm:$0xff]
    %v5795 = vld [vmem:[%s9 + $0x3c8] sm:$0xff]
    %v5796 = vld [vmem:[%s9 + $0x3d0] sm:$0xff]
    %v5797 = vld [vmem:[%s9 + $0x3d8] sm:$0xff]
    %v5798 = vld [vmem:[%s9 + $0x3e0] sm:$0xff]
    %v5799 = vld [vmem:[%s9 + $0x3e8] sm:$0xff]
    %v5800 = vld [vmem:[%s9 + $0x3f0] sm:$0xff]
    %v5801 = vld [vmem:[%s9 + $0x3f8] sm:$0xff]
    %v5802 = vld [vmem:[%s10] sm:$0xff]
    %v5803 = vld [vmem:[%s10 + $0x8] sm:$0xff]
    %v5804 = vld [vmem:[%s10 + $0x10] sm:$0xff]
    %v5805 = vld [vmem:[%s10 + $0x18] sm:$0xff]
    %v5810 = vlaneseq
    %v5811 = vshrl.u32 %v5810, 7
    %v5812 = vsub.s32 0, %v5811
    %v5813 = vrot.slane %v5802, %v5812
    %v5814 = vlaneseq
    %v5815 = vshrl.u32 %v5814, 7
    %v5816 = vsub.s32 1, %v5815
    %v5817 = vrot.slane %v5802, %v5816
    %v5818 = vlaneseq
    %v5819 = vshrl.u32 %v5818, 7
    %v5820 = vsub.s32 2, %v5819
    %v5821 = vrot.slane %v5802, %v5820
    %v5822 = vlaneseq
    %v5823 = vshrl.u32 %v5822, 7
    %v5824 = vsub.s32 3, %v5823
    %v5825 = vrot.slane %v5802, %v5824
    %v5826 = vlaneseq
    %v5827 = vshrl.u32 %v5826, 7
    %v5828 = vsub.s32 4, %v5827
    %v5829 = vrot.slane %v5802, %v5828
    %v5830 = vlaneseq
    %v5831 = vshrl.u32 %v5830, 7
    %v5832 = vsub.s32 5, %v5831
    %v5833 = vrot.slane %v5802, %v5832
    %v5834 = vlaneseq
    %v5835 = vshrl.u32 %v5834, 7
    %v5836 = vsub.s32 6, %v5835
    %v5837 = vrot.slane %v5802, %v5836
    %v5838 = vlaneseq
    %v5839 = vshrl.u32 %v5838, 7
    %v5840 = vsub.s32 7, %v5839
    %v5841 = vrot.slane %v5802, %v5840
    %v5842 = vlaneseq
    %v5843 = vshrl.u32 %v5842, 7
    %v5844 = vsub.s32 0, %v5843
    %v5845 = vrot.slane %v5803, %v5844
    %v5846 = vlaneseq
    %v5847 = vshrl.u32 %v5846, 7
    %v5848 = vsub.s32 1, %v5847
    %v5849 = vrot.slane %v5803, %v5848
    %v5850 = vlaneseq
    %v5851 = vshrl.u32 %v5850, 7
    %v5852 = vsub.s32 2, %v5851
    %v5853 = vrot.slane %v5803, %v5852
    %v5854 = vlaneseq
    %v5855 = vshrl.u32 %v5854, 7
    %v5856 = vsub.s32 3, %v5855
    %v5857 = vrot.slane %v5803, %v5856
    %v5858 = vlaneseq
    %v5859 = vshrl.u32 %v5858, 7
    %v5860 = vsub.s32 4, %v5859
    %v5861 = vrot.slane %v5803, %v5860
    %v5862 = vlaneseq
    %v5863 = vshrl.u32 %v5862, 7
    %v5864 = vsub.s32 5, %v5863
    %v5865 = vrot.slane %v5803, %v5864
    %v5866 = vlaneseq
    %v5867 = vshrl.u32 %v5866, 7
    %v5868 = vsub.s32 6, %v5867
    %v5869 = vrot.slane %v5803, %v5868
    %v5870 = vlaneseq
    %v5871 = vshrl.u32 %v5870, 7
    %v5872 = vsub.s32 7, %v5871
    %v5873 = vrot.slane %v5803, %v5872
    %v5874 = vlaneseq
    %v5875 = vshrl.u32 %v5874, 7
    %v5876 = vsub.s32 0, %v5875
    %v5877 = vrot.slane %v5804, %v5876
    %v5878 = vlaneseq
    %v5879 = vshrl.u32 %v5878, 7
    %v5880 = vsub.s32 1, %v5879
    %v5881 = vrot.slane %v5804, %v5880
    %v5882 = vlaneseq
    %v5883 = vshrl.u32 %v5882, 7
    %v5884 = vsub.s32 2, %v5883
    %v5885 = vrot.slane %v5804, %v5884
    %v5886 = vlaneseq
    %v5887 = vshrl.u32 %v5886, 7
    %v5888 = vsub.s32 3, %v5887
    %v5889 = vrot.slane %v5804, %v5888
    %v5890 = vlaneseq
    %v5891 = vshrl.u32 %v5890, 7
    %v5892 = vsub.s32 4, %v5891
    %v5893 = vrot.slane %v5804, %v5892
    %v5894 = vlaneseq
    %v5895 = vshrl.u32 %v5894, 7
    %v5896 = vsub.s32 5, %v5895
    %v5897 = vrot.slane %v5804, %v5896
    %v5898 = vlaneseq
    %v5899 = vshrl.u32 %v5898, 7
    %v5900 = vsub.s32 6, %v5899
    %v5901 = vrot.slane %v5804, %v5900
    %v5902 = vlaneseq
    %v5903 = vshrl.u32 %v5902, 7
    %v5904 = vsub.s32 7, %v5903
    %v5905 = vrot.slane %v5804, %v5904
    %v5906 = vlaneseq
    %v5907 = vshrl.u32 %v5906, 7
    %v5908 = vsub.s32 0, %v5907
    %v5909 = vrot.slane %v5805, %v5908
    %v5910 = vlaneseq
    %v5911 = vshrl.u32 %v5910, 7
    %v5912 = vsub.s32 1, %v5911
    %v5913 = vrot.slane %v5805, %v5912
    %v5914 = vlaneseq
    %v5915 = vshrl.u32 %v5914, 7
    %v5916 = vsub.s32 2, %v5915
    %v5917 = vrot.slane %v5805, %v5916
    %v5918 = vlaneseq
    %v5919 = vshrl.u32 %v5918, 7
    %v5920 = vsub.s32 3, %v5919
    %v5921 = vrot.slane %v5805, %v5920
    %v5922 = vlaneseq
    %v5923 = vshrl.u32 %v5922, 7
    %v5924 = vsub.s32 4, %v5923
    %v5925 = vrot.slane %v5805, %v5924
    %v5926 = vlaneseq
    %v5927 = vshrl.u32 %v5926, 7
    %v5928 = vsub.s32 5, %v5927
    %v5929 = vrot.slane %v5805, %v5928
    %v5930 = vlaneseq
    %v5931 = vshrl.u32 %v5930, 7
    %v5932 = vsub.s32 6, %v5931
    %v5933 = vrot.slane %v5805, %v5932
    %v5934 = vlaneseq
    %v5935 = vshrl.u32 %v5934, 7
    %v5936 = vsub.s32 7, %v5935
    %v5937 = vrot.slane %v5805, %v5936
    %v6098 = vunpack.c.l.b16 %v5674
    %v6099 = vunpack.c.h.b16 %v5674
    %v6100 = vunpack.c.l.b16 %v5675
    %v6101 = vunpack.c.h.b16 %v5675
    %v6102 = vunpack.c.l.b16 %v5676
    %v6103 = vunpack.c.h.b16 %v5676
    %v6104 = vunpack.c.l.b16 %v5677
    %v6105 = vunpack.c.h.b16 %v5677
    %v6106 = vunpack.c.l.b16 %v5678
    %v6107 = vunpack.c.h.b16 %v5678
    %v6108 = vunpack.c.l.b16 %v5679
    %v6109 = vunpack.c.h.b16 %v5679
    %v6110 = vunpack.c.l.b16 %v5680
    %v6111 = vunpack.c.h.b16 %v5680
    %v6112 = vunpack.c.l.b16 %v5681
    %v6113 = vunpack.c.h.b16 %v5681
    %v6114 = vunpack.c.l.b16 %v5682
    %v6115 = vunpack.c.h.b16 %v5682
    %v6116 = vunpack.c.l.b16 %v5683
    %v6117 = vunpack.c.h.b16 %v5683
    %v6118 = vunpack.c.l.b16 %v5684
    %v6119 = vunpack.c.h.b16 %v5684
    %v6120 = vunpack.c.l.b16 %v5685
    %v6121 = vunpack.c.h.b16 %v5685
    %v6122 = vunpack.c.l.b16 %v5686
    %v6123 = vunpack.c.h.b16 %v5686
    %v6124 = vunpack.c.l.b16 %v5687
    %v6125 = vunpack.c.h.b16 %v5687
    %v6126 = vunpack.c.l.b16 %v5688
    %v6127 = vunpack.c.h.b16 %v5688
    %v6128 = vunpack.c.l.b16 %v5689
    %v6129 = vunpack.c.h.b16 %v5689
    %v6130 = vunpack.c.l.b16 %v5690
    %v6131 = vunpack.c.h.b16 %v5690
    %v6132 = vunpack.c.l.b16 %v5691
    %v6133 = vunpack.c.h.b16 %v5691
    %v6134 = vunpack.c.l.b16 %v5692
    %v6135 = vunpack.c.h.b16 %v5692
    %v6136 = vunpack.c.l.b16 %v5693
    %v6137 = vunpack.c.h.b16 %v5693
    %v6138 = vunpack.c.l.b16 %v5694
    %v6139 = vunpack.c.h.b16 %v5694
    %v6140 = vunpack.c.l.b16 %v5695
    %v6141 = vunpack.c.h.b16 %v5695
    %v6142 = vunpack.c.l.b16 %v5696
    %v6143 = vunpack.c.h.b16 %v5696
    %v6144 = vunpack.c.l.b16 %v5697
    %v6145 = vunpack.c.h.b16 %v5697
    %v6146 = vunpack.c.l.b16 %v5698
    %v6147 = vunpack.c.h.b16 %v5698
    %v6148 = vunpack.c.l.b16 %v5699
    %v6149 = vunpack.c.h.b16 %v5699
    %v6150 = vunpack.c.l.b16 %v5700
    %v6151 = vunpack.c.h.b16 %v5700
    %v6152 = vunpack.c.l.b16 %v5701
    %v6153 = vunpack.c.h.b16 %v5701
    %v6154 = vunpack.c.l.b16 %v5702
    %v6155 = vunpack.c.h.b16 %v5702
    %v6156 = vunpack.c.l.b16 %v5703
    %v6157 = vunpack.c.h.b16 %v5703
    %v6158 = vunpack.c.l.b16 %v5704
    %v6159 = vunpack.c.h.b16 %v5704
    %v6160 = vunpack.c.l.b16 %v5705
    %v6161 = vunpack.c.h.b16 %v5705
    %v6162 = vunpack.c.l.b16 %v5706
    %v6163 = vunpack.c.h.b16 %v5706
    %v6164 = vunpack.c.l.b16 %v5707
    %v6165 = vunpack.c.h.b16 %v5707
    %v6166 = vunpack.c.l.b16 %v5708
    %v6167 = vunpack.c.h.b16 %v5708
    %v6168 = vunpack.c.l.b16 %v5709
    %v6169 = vunpack.c.h.b16 %v5709
    %v6170 = vunpack.c.l.b16 %v5710
    %v6171 = vunpack.c.h.b16 %v5710
    %v6172 = vunpack.c.l.b16 %v5711
    %v6173 = vunpack.c.h.b16 %v5711
    %v6174 = vunpack.c.l.b16 %v5712
    %v6175 = vunpack.c.h.b16 %v5712
    %v6176 = vunpack.c.l.b16 %v5713
    %v6177 = vunpack.c.h.b16 %v5713
    %v6178 = vunpack.c.l.b16 %v5714
    %v6179 = vunpack.c.h.b16 %v5714
    %v6180 = vunpack.c.l.b16 %v5715
    %v6181 = vunpack.c.h.b16 %v5715
    %v6182 = vunpack.c.l.b16 %v5716
    %v6183 = vunpack.c.h.b16 %v5716
    %v6184 = vunpack.c.l.b16 %v5717
    %v6185 = vunpack.c.h.b16 %v5717
    %v6186 = vunpack.c.l.b16 %v5718
    %v6187 = vunpack.c.h.b16 %v5718
    %v6188 = vunpack.c.l.b16 %v5719
    %v6189 = vunpack.c.h.b16 %v5719
    %v6190 = vunpack.c.l.b16 %v5720
    %v6191 = vunpack.c.h.b16 %v5720
    %v6192 = vunpack.c.l.b16 %v5721
    %v6193 = vunpack.c.h.b16 %v5721
    %v6194 = vunpack.c.l.b16 %v5722
    %v6195 = vunpack.c.h.b16 %v5722
    %v6196 = vunpack.c.l.b16 %v5723
    %v6197 = vunpack.c.h.b16 %v5723
    %v6198 = vunpack.c.l.b16 %v5724
    %v6199 = vunpack.c.h.b16 %v5724
    %v6200 = vunpack.c.l.b16 %v5725
    %v6201 = vunpack.c.h.b16 %v5725
    %v6202 = vunpack.c.l.b16 %v5726
    %v6203 = vunpack.c.h.b16 %v5726
    %v6204 = vunpack.c.l.b16 %v5727
    %v6205 = vunpack.c.h.b16 %v5727
    %v6206 = vunpack.c.l.b16 %v5728
    %v6207 = vunpack.c.h.b16 %v5728
    %v6208 = vunpack.c.l.b16 %v5729
    %v6209 = vunpack.c.h.b16 %v5729
    %v6210 = vunpack.c.l.b16 %v5730
    %v6211 = vunpack.c.h.b16 %v5730
    %v6212 = vunpack.c.l.b16 %v5731
    %v6213 = vunpack.c.h.b16 %v5731
    %v6214 = vunpack.c.l.b16 %v5732
    %v6215 = vunpack.c.h.b16 %v5732
    %v6216 = vunpack.c.l.b16 %v5733
    %v6217 = vunpack.c.h.b16 %v5733
    %v6218 = vunpack.c.l.b16 %v5734
    %v6219 = vunpack.c.h.b16 %v5734
    %v6220 = vunpack.c.l.b16 %v5735
    %v6221 = vunpack.c.h.b16 %v5735
    %v6222 = vunpack.c.l.b16 %v5736
    %v6223 = vunpack.c.h.b16 %v5736
    %v6224 = vunpack.c.l.b16 %v5737
    %v6225 = vunpack.c.h.b16 %v5737
    %v6226 = vunpack.c.l.b16 %v5738
    %v6227 = vunpack.c.h.b16 %v5738
    %v6228 = vunpack.c.l.b16 %v5739
    %v6229 = vunpack.c.h.b16 %v5739
    %v6230 = vunpack.c.l.b16 %v5740
    %v6231 = vunpack.c.h.b16 %v5740
    %v6232 = vunpack.c.l.b16 %v5741
    %v6233 = vunpack.c.h.b16 %v5741
    %v6234 = vunpack.c.l.b16 %v5742
    %v6235 = vunpack.c.h.b16 %v5742
    %v6236 = vunpack.c.l.b16 %v5743
    %v6237 = vunpack.c.h.b16 %v5743
    %v6238 = vunpack.c.l.b16 %v5744
    %v6239 = vunpack.c.h.b16 %v5744
    %v6240 = vunpack.c.l.b16 %v5745
    %v6241 = vunpack.c.h.b16 %v5745
    %v6242 = vunpack.c.l.b16 %v5746
    %v6243 = vunpack.c.h.b16 %v5746
    %v6244 = vunpack.c.l.b16 %v5747
    %v6245 = vunpack.c.h.b16 %v5747
    %v6246 = vunpack.c.l.b16 %v5748
    %v6247 = vunpack.c.h.b16 %v5748
    %v6248 = vunpack.c.l.b16 %v5749
    %v6249 = vunpack.c.h.b16 %v5749
    %v6250 = vunpack.c.l.b16 %v5750
    %v6251 = vunpack.c.h.b16 %v5750
    %v6252 = vunpack.c.l.b16 %v5751
    %v6253 = vunpack.c.h.b16 %v5751
    %v6254 = vunpack.c.l.b16 %v5752
    %v6255 = vunpack.c.h.b16 %v5752
    %v6256 = vunpack.c.l.b16 %v5753
    %v6257 = vunpack.c.h.b16 %v5753
    %v6258 = vunpack.c.l.b16 %v5754
    %v6259 = vunpack.c.h.b16 %v5754
    %v6260 = vunpack.c.l.b16 %v5755
    %v6261 = vunpack.c.h.b16 %v5755
    %v6262 = vunpack.c.l.b16 %v5756
    %v6263 = vunpack.c.h.b16 %v5756
    %v6264 = vunpack.c.l.b16 %v5757
    %v6265 = vunpack.c.h.b16 %v5757
    %v6266 = vunpack.c.l.b16 %v5758
    %v6267 = vunpack.c.h.b16 %v5758
    %v6268 = vunpack.c.l.b16 %v5759
    %v6269 = vunpack.c.h.b16 %v5759
    %v6270 = vunpack.c.l.b16 %v5760
    %v6271 = vunpack.c.h.b16 %v5760
    %v6272 = vunpack.c.l.b16 %v5761
    %v6273 = vunpack.c.h.b16 %v5761
    %v6274 = vunpack.c.l.b16 %v5762
    %v6275 = vunpack.c.h.b16 %v5762
    %v6276 = vunpack.c.l.b16 %v5763
    %v6277 = vunpack.c.h.b16 %v5763
    %v6278 = vunpack.c.l.b16 %v5764
    %v6279 = vunpack.c.h.b16 %v5764
    %v6280 = vunpack.c.l.b16 %v5765
    %v6281 = vunpack.c.h.b16 %v5765
    %v6282 = vunpack.c.l.b16 %v5766
    %v6283 = vunpack.c.h.b16 %v5766
    %v6284 = vunpack.c.l.b16 %v5767
    %v6285 = vunpack.c.h.b16 %v5767
    %v6286 = vunpack.c.l.b16 %v5768
    %v6287 = vunpack.c.h.b16 %v5768
    %v6288 = vunpack.c.l.b16 %v5769
    %v6289 = vunpack.c.h.b16 %v5769
    %v6290 = vunpack.c.l.b16 %v5770
    %v6291 = vunpack.c.h.b16 %v5770
    %v6292 = vunpack.c.l.b16 %v5771
    %v6293 = vunpack.c.h.b16 %v5771
    %v6294 = vunpack.c.l.b16 %v5772
    %v6295 = vunpack.c.h.b16 %v5772
    %v6296 = vunpack.c.l.b16 %v5773
    %v6297 = vunpack.c.h.b16 %v5773
    %v6298 = vunpack.c.l.b16 %v5774
    %v6299 = vunpack.c.h.b16 %v5774
    %v6300 = vunpack.c.l.b16 %v5775
    %v6301 = vunpack.c.h.b16 %v5775
    %v6302 = vunpack.c.l.b16 %v5776
    %v6303 = vunpack.c.h.b16 %v5776
    %v6304 = vunpack.c.l.b16 %v5777
    %v6305 = vunpack.c.h.b16 %v5777
    %v6306 = vunpack.c.l.b16 %v5778
    %v6307 = vunpack.c.h.b16 %v5778
    %v6308 = vunpack.c.l.b16 %v5779
    %v6309 = vunpack.c.h.b16 %v5779
    %v6310 = vunpack.c.l.b16 %v5780
    %v6311 = vunpack.c.h.b16 %v5780
    %v6312 = vunpack.c.l.b16 %v5781
    %v6313 = vunpack.c.h.b16 %v5781
    %v6314 = vunpack.c.l.b16 %v5782
    %v6315 = vunpack.c.h.b16 %v5782
    %v6316 = vunpack.c.l.b16 %v5783
    %v6317 = vunpack.c.h.b16 %v5783
    %v6318 = vunpack.c.l.b16 %v5784
    %v6319 = vunpack.c.h.b16 %v5784
    %v6320 = vunpack.c.l.b16 %v5785
    %v6321 = vunpack.c.h.b16 %v5785
    %v6322 = vunpack.c.l.b16 %v5786
    %v6323 = vunpack.c.h.b16 %v5786
    %v6324 = vunpack.c.l.b16 %v5787
    %v6325 = vunpack.c.h.b16 %v5787
    %v6326 = vunpack.c.l.b16 %v5788
    %v6327 = vunpack.c.h.b16 %v5788
    %v6328 = vunpack.c.l.b16 %v5789
    %v6329 = vunpack.c.h.b16 %v5789
    %v6330 = vunpack.c.l.b16 %v5790
    %v6331 = vunpack.c.h.b16 %v5790
    %v6332 = vunpack.c.l.b16 %v5791
    %v6333 = vunpack.c.h.b16 %v5791
    %v6334 = vunpack.c.l.b16 %v5792
    %v6335 = vunpack.c.h.b16 %v5792
    %v6336 = vunpack.c.l.b16 %v5793
    %v6337 = vunpack.c.h.b16 %v5793
    %v6338 = vunpack.c.l.b16 %v5794
    %v6339 = vunpack.c.h.b16 %v5794
    %v6340 = vunpack.c.l.b16 %v5795
    %v6341 = vunpack.c.h.b16 %v5795
    %v6342 = vunpack.c.l.b16 %v5796
    %v6343 = vunpack.c.h.b16 %v5796
    %v6344 = vunpack.c.l.b16 %v5797
    %v6345 = vunpack.c.h.b16 %v5797
    %v6346 = vunpack.c.l.b16 %v5798
    %v6347 = vunpack.c.h.b16 %v5798
    %v6348 = vunpack.c.l.b16 %v5799
    %v6349 = vunpack.c.h.b16 %v5799
    %v6350 = vunpack.c.l.b16 %v5800
    %v6351 = vunpack.c.h.b16 %v5800
    %v6352 = vunpack.c.l.b16 %v5801
    %v6353 = vunpack.c.h.b16 %v5801
    %v6354 = vpack.c.b16 %v6130, %v6098
    %v6355 = vpack.c.b16 %v6131, %v6099
    %v6356 = vpack.c.b16 %v6132, %v6100
    %v6357 = vpack.c.b16 %v6133, %v6101
    %v6358 = vpack.c.b16 %v6134, %v6102
    %v6359 = vpack.c.b16 %v6135, %v6103
    %v6360 = vpack.c.b16 %v6136, %v6104
    %v6361 = vpack.c.b16 %v6137, %v6105
    %v6362 = vpack.c.b16 %v6138, %v6106
    %v6363 = vpack.c.b16 %v6139, %v6107
    %v6364 = vpack.c.b16 %v6140, %v6108
    %v6365 = vpack.c.b16 %v6141, %v6109
    %v6366 = vpack.c.b16 %v6142, %v6110
    %v6367 = vpack.c.b16 %v6143, %v6111
    %v6368 = vpack.c.b16 %v6144, %v6112
    %v6369 = vpack.c.b16 %v6145, %v6113
    %v6370 = vpack.c.b16 %v6146, %v6114
    %v6371 = vpack.c.b16 %v6147, %v6115
    %v6372 = vpack.c.b16 %v6148, %v6116
    %v6373 = vpack.c.b16 %v6149, %v6117
    %v6374 = vpack.c.b16 %v6150, %v6118
    %v6375 = vpack.c.b16 %v6151, %v6119
    %v6376 = vpack.c.b16 %v6152, %v6120
    %v6377 = vpack.c.b16 %v6153, %v6121
    %v6378 = vpack.c.b16 %v6154, %v6122
    %v6379 = vpack.c.b16 %v6155, %v6123
    %v6380 = vpack.c.b16 %v6156, %v6124
    %v6381 = vpack.c.b16 %v6157, %v6125
    %v6382 = vpack.c.b16 %v6158, %v6126
    %v6383 = vpack.c.b16 %v6159, %v6127
    %v6384 = vpack.c.b16 %v6160, %v6128
    %v6385 = vpack.c.b16 %v6161, %v6129
    %v6386 = vpack.c.b16 %v6194, %v6162
    %v6387 = vpack.c.b16 %v6195, %v6163
    %v6388 = vpack.c.b16 %v6196, %v6164
    %v6389 = vpack.c.b16 %v6197, %v6165
    %v6390 = vpack.c.b16 %v6198, %v6166
    %v6391 = vpack.c.b16 %v6199, %v6167
    %v6392 = vpack.c.b16 %v6200, %v6168
    %v6393 = vpack.c.b16 %v6201, %v6169
    %v6394 = vpack.c.b16 %v6202, %v6170
    %v6395 = vpack.c.b16 %v6203, %v6171
    %v6396 = vpack.c.b16 %v6204, %v6172
    %v6397 = vpack.c.b16 %v6205, %v6173
    %v6398 = vpack.c.b16 %v6206, %v6174
    %v6399 = vpack.c.b16 %v6207, %v6175
    %v6400 = vpack.c.b16 %v6208, %v6176
    %v6401 = vpack.c.b16 %v6209, %v6177
    %v6402 = vpack.c.b16 %v6210, %v6178
    %v6403 = vpack.c.b16 %v6211, %v6179
    %v6404 = vpack.c.b16 %v6212, %v6180
    %v6405 = vpack.c.b16 %v6213, %v6181
    %v6406 = vpack.c.b16 %v6214, %v6182
    %v6407 = vpack.c.b16 %v6215, %v6183
    %v6408 = vpack.c.b16 %v6216, %v6184
    %v6409 = vpack.c.b16 %v6217, %v6185
    %v6410 = vpack.c.b16 %v6218, %v6186
    %v6411 = vpack.c.b16 %v6219, %v6187
    %v6412 = vpack.c.b16 %v6220, %v6188
    %v6413 = vpack.c.b16 %v6221, %v6189
    %v6414 = vpack.c.b16 %v6222, %v6190
    %v6415 = vpack.c.b16 %v6223, %v6191
    %v6416 = vpack.c.b16 %v6224, %v6192
    %v6417 = vpack.c.b16 %v6225, %v6193
    %v6418 = vpack.c.b16 %v6258, %v6226
    %v6419 = vpack.c.b16 %v6259, %v6227
    %v6420 = vpack.c.b16 %v6260, %v6228
    %v6421 = vpack.c.b16 %v6261, %v6229
    %v6422 = vpack.c.b16 %v6262, %v6230
    %v6423 = vpack.c.b16 %v6263, %v6231
    %v6424 = vpack.c.b16 %v6264, %v6232
    %v6425 = vpack.c.b16 %v6265, %v6233
    %v6426 = vpack.c.b16 %v6266, %v6234
    %v6427 = vpack.c.b16 %v6267, %v6235
    %v6428 = vpack.c.b16 %v6268, %v6236
    %v6429 = vpack.c.b16 %v6269, %v6237
    %v6430 = vpack.c.b16 %v6270, %v6238
    %v6431 = vpack.c.b16 %v6271, %v6239
    %v6432 = vpack.c.b16 %v6272, %v6240
    %v6433 = vpack.c.b16 %v6273, %v6241
    %v6434 = vpack.c.b16 %v6274, %v6242
    %v6435 = vpack.c.b16 %v6275, %v6243
    %v6436 = vpack.c.b16 %v6276, %v6244
    %v6437 = vpack.c.b16 %v6277, %v6245
    %v6438 = vpack.c.b16 %v6278, %v6246
    %v6439 = vpack.c.b16 %v6279, %v6247
    %v6440 = vpack.c.b16 %v6280, %v6248
    %v6441 = vpack.c.b16 %v6281, %v6249
    %v6442 = vpack.c.b16 %v6282, %v6250
    %v6443 = vpack.c.b16 %v6283, %v6251
    %v6444 = vpack.c.b16 %v6284, %v6252
    %v6445 = vpack.c.b16 %v6285, %v6253
    %v6446 = vpack.c.b16 %v6286, %v6254
    %v6447 = vpack.c.b16 %v6287, %v6255
    %v6448 = vpack.c.b16 %v6288, %v6256
    %v6449 = vpack.c.b16 %v6289, %v6257
    %v6450 = vpack.c.b16 %v6322, %v6290
    %v6451 = vpack.c.b16 %v6323, %v6291
    %v6452 = vpack.c.b16 %v6324, %v6292
    %v6453 = vpack.c.b16 %v6325, %v6293
    %v6454 = vpack.c.b16 %v6326, %v6294
    %v6455 = vpack.c.b16 %v6327, %v6295
    %v6456 = vpack.c.b16 %v6328, %v6296
    %v6457 = vpack.c.b16 %v6329, %v6297
    %v6458 = vpack.c.b16 %v6330, %v6298
    %v6459 = vpack.c.b16 %v6331, %v6299
    %v6460 = vpack.c.b16 %v6332, %v6300
    %v6461 = vpack.c.b16 %v6333, %v6301
    %v6462 = vpack.c.b16 %v6334, %v6302
    %v6463 = vpack.c.b16 %v6335, %v6303
    %v6464 = vpack.c.b16 %v6336, %v6304
    %v6465 = vpack.c.b16 %v6337, %v6305
    %v6466 = vpack.c.b16 %v6338, %v6306
    %v6467 = vpack.c.b16 %v6339, %v6307
    %v6468 = vpack.c.b16 %v6340, %v6308
    %v6469 = vpack.c.b16 %v6341, %v6309
    %v6470 = vpack.c.b16 %v6342, %v6310
    %v6471 = vpack.c.b16 %v6343, %v6311
    %v6472 = vpack.c.b16 %v6344, %v6312
    %v6473 = vpack.c.b16 %v6345, %v6313
    %v6474 = vpack.c.b16 %v6346, %v6314
    %v6475 = vpack.c.b16 %v6347, %v6315
    %v6476 = vpack.c.b16 %v6348, %v6316
    %v6477 = vpack.c.b16 %v6349, %v6317
    %v6478 = vpack.c.b16 %v6350, %v6318
    %v6479 = vpack.c.b16 %v6351, %v6319
    %v6480 = vpack.c.b16 %v6352, %v6320
    %v6481 = vpack.c.b16 %v6353, %v6321
    %v6611 = vsel %vm1870, %v5673, 0
    %6613 = vmatprep.subr.bf16.mxu0 %v6355
    %6614 = vmatpush1.bf16.msra.mxu0 %v6354
    %6615 = vmatprep.subr.bf16.mxu0 %v6387
    %6616 = vmatpush1.bf16.msra.mxu0 %v6386
    %6617 = vmatprep.subr.bf16.mxu0 %v6419
    %6618 = vmatpush1.bf16.msra.mxu0 %v6418
    %6619 = vmatprep.subr.bf16.mxu0 %v6451
    %6620 = vmatpush1.bf16.msra.mxu0 %v6450
    %6621 = vmatprep.subr.bf16.mxu0 0
    %6622 = vmatpush1.bf16.msra.mxu0 0
    %6623 = vmatprep.subr.bf16.mxu0 0
    %6624 = vmatpush1.bf16.msra.mxu0 0
    %6625 = vmatprep.subr.bf16.mxu0 0
    %6626 = vmatpush1.bf16.msra.mxu0 0
    %6627 = vmatprep.subr.bf16.mxu0 0
    %6628 = vmatpush1.bf16.msra.mxu0 0
    %6629 = vmatprep.subr.bf16.mxu0 0
    %6630 = vmatpush1.bf16.msra.mxu0 0
    %6631 = vmatprep.subr.bf16.mxu0 0
    %6632 = vmatpush1.bf16.msra.mxu0 0
    %6633 = vmatprep.subr.bf16.mxu0 0
    %6634 = vmatpush1.bf16.msra.mxu0 0
    %6635 = vmatprep.subr.bf16.mxu0 0
    %6636 = vmatpush1.bf16.msra.mxu0 0
    %6637 = vmatprep.subr.bf16.mxu0 0
    %6638 = vmatpush1.bf16.msra.mxu0 0
    %6639 = vmatprep.subr.bf16.mxu0 0
    %6640 = vmatpush1.bf16.msra.mxu0 0
    %6641 = vmatprep.subr.bf16.mxu0 0
    %6642 = vmatpush1.bf16.msra.mxu0 0
    %6643 = vmatprep.subr.bf16.mxu0 0
    %6644 = vmatpush1.bf16.msra.mxu0 0
    %6645 = vmatprep.mubr.bf16.mxu0 0
    %6646 = vmatmul.mubr.bf16.gmra.mrb[0].mxu0 %v6611
    %v6647 = vpop.f32.mrb[0].mxu0
    %v6648 = vadd.f32 %v5813, %v6647
    %v6649 = vpop.f32.mrb[0].mxu0
    %v6650 = vadd.f32 %v5817, %v6649
    %v6651 = vpop.f32.mrb[0].mxu0
    %v6652 = vpop.f32.mrb[0].mxu0
    %6653 = vdwg.mxu0
    %6654 = vmatprep.subr.bf16.mxu0 %v6357
    %6655 = vmatpush1.bf16.msra.mxu0 %v6356
    %6656 = vmatprep.subr.bf16.mxu0 %v6389
    %6657 = vmatpush1.bf16.msra.mxu0 %v6388
    %6658 = vmatprep.subr.bf16.mxu0 %v6421
    %6659 = vmatpush1.bf16.msra.mxu0 %v6420
    %6660 = vmatprep.subr.bf16.mxu0 %v6453
    %6661 = vmatpush1.bf16.msra.mxu0 %v6452
    %6662 = vmatprep.subr.bf16.mxu0 0
    %6663 = vmatpush1.bf16.msra.mxu0 0
    %6664 = vmatprep.subr.bf16.mxu0 0
    %6665 = vmatpush1.bf16.msra.mxu0 0
    %6666 = vmatprep.subr.bf16.mxu0 0
    %6667 = vmatpush1.bf16.msra.mxu0 0
    %6668 = vmatprep.subr.bf16.mxu0 0
    %6669 = vmatpush1.bf16.msra.mxu0 0
    %6670 = vmatprep.subr.bf16.mxu0 0
    %6671 = vmatpush1.bf16.msra.mxu0 0
    %6672 = vmatprep.subr.bf16.mxu0 0
    %6673 = vmatpush1.bf16.msra.mxu0 0
    %6674 = vmatprep.subr.bf16.mxu0 0
    %6675 = vmatpush1.bf16.msra.mxu0 0
    %6676 = vmatprep.subr.bf16.mxu0 0
    %6677 = vmatpush1.bf16.msra.mxu0 0
    %6678 = vmatprep.subr.bf16.mxu0 0
    %6679 = vmatpush1.bf16.msra.mxu0 0
    %6680 = vmatprep.subr.bf16.mxu0 0
    %6681 = vmatpush1.bf16.msra.mxu0 0
    %6682 = vmatprep.subr.bf16.mxu0 0
    %6683 = vmatpush1.bf16.msra.mxu0 0
    %6684 = vmatprep.subr.bf16.mxu0 0
    %6685 = vmatpush1.bf16.msra.mxu0 0
    %6686 = vmatprep.mubr.bf16.mxu0 0
    %6687 = vmatmul.mubr.bf16.gmra.mrb[0].mxu0 %v6611
    %v6688 = vpop.f32.mrb[0].mxu0
    %v6689 = vadd.f32 %v5821, %v6688
    %v6690 = vpop.f32.mrb[0].mxu0
    %v6691 = vadd.f32 %v5825, %v6690
    %v6692 = vpop.f32.mrb[0].mxu0
    %v6693 = vpop.f32.mrb[0].mxu0
    %6694 = vdwg.mxu0
    %6695 = vmatprep.subr.bf16.mxu0 %v6359
    %6696 = vmatpush1.bf16.msra.mxu0 %v6358
    %6697 = vmatprep.subr.bf16.mxu0 %v6391
    %6698 = vmatpush1.bf16.msra.mxu0 %v6390
    %6699 = vmatprep.subr.bf16.mxu0 %v6423
    %6700 = vmatpush1.bf16.msra.mxu0 %v6422
    %6701 = vmatprep.subr.bf16.mxu0 %v6455
    %6702 = vmatpush1.bf16.msra.mxu0 %v6454
    %6703 = vmatprep.subr.bf16.mxu0 0
    %6704 = vmatpush1.bf16.msra.mxu0 0
    %6705 = vmatprep.subr.bf16.mxu0 0
    %6706 = vmatpush1.bf16.msra.mxu0 0
    %6707 = vmatprep.subr.bf16.mxu0 0
    %6708 = vmatpush1.bf16.msra.mxu0 0
    %6709 = vmatprep.subr.bf16.mxu0 0
    %6710 = vmatpush1.bf16.msra.mxu0 0
    %6711 = vmatprep.subr.bf16.mxu0 0
    %6712 = vmatpush1.bf16.msra.mxu0 0
    %6713 = vmatprep.subr.bf16.mxu0 0
    %6714 = vmatpush1.bf16.msra.mxu0 0
    %6715 = vmatprep.subr.bf16.mxu0 0
    %6716 = vmatpush1.bf16.msra.mxu0 0
    %6717 = vmatprep.subr.bf16.mxu0 0
    %6718 = vmatpush1.bf16.msra.mxu0 0
    %6719 = vmatprep.subr.bf16.mxu0 0
    %6720 = vmatpush1.bf16.msra.mxu0 0
    %6721 = vmatprep.subr.bf16.mxu0 0
    %6722 = vmatpush1.bf16.msra.mxu0 0
    %6723 = vmatprep.subr.bf16.mxu0 0
    %6724 = vmatpush1.bf16.msra.mxu0 0
    %6725 = vmatprep.subr.bf16.mxu0 0
    %6726 = vmatpush1.bf16.msra.mxu0 0
    %6727 = vmatprep.mubr.bf16.mxu0 0
    %6728 = vmatmul.mubr.bf16.gmra.mrb[0].mxu0 %v6611
    %v6729 = vpop.f32.mrb[0].mxu0
    %v6730 = vadd.f32 %v5829, %v6729
    %v6731 = vpop.f32.mrb[0].mxu0
    %v6732 = vadd.f32 %v5833, %v6731
    %v6733 = vpop.f32.mrb[0].mxu0
    %v6734 = vpop.f32.mrb[0].mxu0
    %6735 = vdwg.mxu0
    %6736 = vmatprep.subr.bf16.mxu0 %v6361
    %6737 = vmatpush1.bf16.msra.mxu0 %v6360
    %6738 = vmatprep.subr.bf16.mxu0 %v6393
    %6739 = vmatpush1.bf16.msra.mxu0 %v6392
    %6740 = vmatprep.subr.bf16.mxu0 %v6425
    %6741 = vmatpush1.bf16.msra.mxu0 %v6424
    %6742 = vmatprep.subr.bf16.mxu0 %v6457
    %6743 = vmatpush1.bf16.msra.mxu0 %v6456
    %6744 = vmatprep.subr.bf16.mxu0 0
    %6745 = vmatpush1.bf16.msra.mxu0 0
    %6746 = vmatprep.subr.bf16.mxu0 0
    %6747 = vmatpush1.bf16.msra.mxu0 0
    %6748 = vmatprep.subr.bf16.mxu0 0
    %6749 = vmatpush1.bf16.msra.mxu0 0
    %6750 = vmatprep.subr.bf16.mxu0 0
    %6751 = vmatpush1.bf16.msra.mxu0 0
    %6752 = vmatprep.subr.bf16.mxu0 0
    %6753 = vmatpush1.bf16.msra.mxu0 0
    %6754 = vmatprep.subr.bf16.mxu0 0
    %6755 = vmatpush1.bf16.msra.mxu0 0
    %6756 = vmatprep.subr.bf16.mxu0 0
    %6757 = vmatpush1.bf16.msra.mxu0 0
    %6758 = vmatprep.subr.bf16.mxu0 0
    %6759 = vmatpush1.bf16.msra.mxu0 0
    %6760 = vmatprep.subr.bf16.mxu0 0
    %6761 = vmatpush1.bf16.msra.mxu0 0
    %6762 = vmatprep.subr.bf16.mxu0 0
    %6763 = vmatpush1.bf16.msra.mxu0 0
    %6764 = vmatprep.subr.bf16.mxu0 0
    %6765 = vmatpush1.bf16.msra.mxu0 0
    %6766 = vmatprep.subr.bf16.mxu0 0
    %6767 = vmatpush1.bf16.msra.mxu0 0
    %6768 = vmatprep.mubr.bf16.mxu0 0
    %6769 = vmatmul.mubr.bf16.gmra.mrb[0].mxu0 %v6611
    %v6770 = vpop.f32.mrb[0].mxu0
    %v6771 = vadd.f32 %v5837, %v6770
    %v6772 = vpop.f32.mrb[0].mxu0
    %v6773 = vadd.f32 %v5841, %v6772
    %v6774 = vpop.f32.mrb[0].mxu0
    %v6775 = vpop.f32.mrb[0].mxu0
    %6776 = vdwg.mxu0
    %6777 = vmatprep.subr.bf16.mxu0 %v6363
    %6778 = vmatpush1.bf16.msra.mxu0 %v6362
    %6779 = vmatprep.subr.bf16.mxu0 %v6395
    %6780 = vmatpush1.bf16.msra.mxu0 %v6394
    %6781 = vmatprep.subr.bf16.mxu0 %v6427
    %6782 = vmatpush1.bf16.msra.mxu0 %v6426
    %6783 = vmatprep.subr.bf16.mxu0 %v6459
    %6784 = vmatpush1.bf16.msra.mxu0 %v6458
    %6785 = vmatprep.subr.bf16.mxu0 0
    %6786 = vmatpush1.bf16.msra.mxu0 0
    %6787 = vmatprep.subr.bf16.mxu0 0
    %6788 = vmatpush1.bf16.msra.mxu0 0
    %6789 = vmatprep.subr.bf16.mxu0 0
    %6790 = vmatpush1.bf16.msra.mxu0 0
    %6791 = vmatprep.subr.bf16.mxu0 0
    %6792 = vmatpush1.bf16.msra.mxu0 0
    %6793 = vmatprep.subr.bf16.mxu0 0
    %6794 = vmatpush1.bf16.msra.mxu0 0
    %6795 = vmatprep.subr.bf16.mxu0 0
    %6796 = vmatpush1.bf16.msra.mxu0 0
    %6797 = vmatprep.subr.bf16.mxu0 0
    %6798 = vmatpush1.bf16.msra.mxu0 0
    %6799 = vmatprep.subr.bf16.mxu0 0
    %6800 = vmatpush1.bf16.msra.mxu0 0
    %6801 = vmatprep.subr.bf16.mxu0 0
    %6802 = vmatpush1.bf16.msra.mxu0 0
    %6803 = vmatprep.subr.bf16.mxu0 0
    %6804 = vmatpush1.bf16.msra.mxu0 0
    %6805 = vmatprep.subr.bf16.mxu0 0
    %6806 = vmatpush1.bf16.msra.mxu0 0
    %6807 = vmatprep.subr.bf16.mxu0 0
    %6808 = vmatpush1.bf16.msra.mxu0 0
    %6809 = vmatprep.mubr.bf16.mxu0 0
    %6810 = vmatmul.mubr.bf16.gmra.mrb[0].mxu0 %v6611
    %v6811 = vpop.f32.mrb[0].mxu0
    %v6812 = vadd.f32 %v5845, %v6811
    %v6813 = vpop.f32.mrb[0].mxu0
    %v6814 = vadd.f32 %v5849, %v6813
    %v6815 = vpop.f32.mrb[0].mxu0
    %v6816 = vpop.f32.mrb[0].mxu0
    %6817 = vdwg.mxu0
    %6818 = vmatprep.subr.bf16.mxu0 %v6365
    %6819 = vmatpush1.bf16.msra.mxu0 %v6364
    %6820 = vmatprep.subr.bf16.mxu0 %v6397
    %6821 = vmatpush1.bf16.msra.mxu0 %v6396
    %6822 = vmatprep.subr.bf16.mxu0 %v6429
    %6823 = vmatpush1.bf16.msra.mxu0 %v6428
    %6824 = vmatprep.subr.bf16.mxu0 %v6461
    %6825 = vmatpush1.bf16.msra.mxu0 %v6460
    %6826 = vmatprep.subr.bf16.mxu0 0
    %6827 = vmatpush1.bf16.msra.mxu0 0
    %6828 = vmatprep.subr.bf16.mxu0 0
    %6829 = vmatpush1.bf16.msra.mxu0 0
    %6830 = vmatprep.subr.bf16.mxu0 0
    %6831 = vmatpush1.bf16.msra.mxu0 0
    %6832 = vmatprep.subr.bf16.mxu0 0
    %6833 = vmatpush1.bf16.msra.mxu0 0
    %6834 = vmatprep.subr.bf16.mxu0 0
    %6835 = vmatpush1.bf16.msra.mxu0 0
    %6836 = vmatprep.subr.bf16.mxu0 0
    %6837 = vmatpush1.bf16.msra.mxu0 0
    %6838 = vmatprep.subr.bf16.mxu0 0
    %6839 = vmatpush1.bf16.msra.mxu0 0
    %6840 = vmatprep.subr.bf16.mxu0 0
    %6841 = vmatpush1.bf16.msra.mxu0 0
    %6842 = vmatprep.subr.bf16.mxu0 0
    %6843 = vmatpush1.bf16.msra.mxu0 0
    %6844 = vmatprep.subr.bf16.mxu0 0
    %6845 = vmatpush1.bf16.msra.mxu0 0
    %6846 = vmatprep.subr.bf16.mxu0 0
    %6847 = vmatpush1.bf16.msra.mxu0 0
    %6848 = vmatprep.subr.bf16.mxu0 0
    %6849 = vmatpush1.bf16.msra.mxu0 0
    %6850 = vmatprep.mubr.bf16.mxu0 0
    %6851 = vmatmul.mubr.bf16.gmra.mrb[0].mxu0 %v6611
    %v6852 = vpop.f32.mrb[0].mxu0
    %v6853 = vadd.f32 %v5853, %v6852
    %v6854 = vpop.f32.mrb[0].mxu0
    %v6855 = vadd.f32 %v5857, %v6854
    %v6856 = vpop.f32.mrb[0].mxu0
    %v6857 = vpop.f32.mrb[0].mxu0
    %6858 = vdwg.mxu0
    %6859 = vmatprep.subr.bf16.mxu0 %v6367
    %6860 = vmatpush1.bf16.msra.mxu0 %v6366
    %6861 = vmatprep.subr.bf16.mxu0 %v6399
    %6862 = vmatpush1.bf16.msra.mxu0 %v6398
    %6863 = vmatprep.subr.bf16.mxu0 %v6431
    %6864 = vmatpush1.bf16.msra.mxu0 %v6430
    %6865 = vmatprep.subr.bf16.mxu0 %v6463
    %6866 = vmatpush1.bf16.msra.mxu0 %v6462
    %6867 = vmatprep.subr.bf16.mxu0 0
    %6868 = vmatpush1.bf16.msra.mxu0 0
    %6869 = vmatprep.subr.bf16.mxu0 0
    %6870 = vmatpush1.bf16.msra.mxu0 0
    %6871 = vmatprep.subr.bf16.mxu0 0
    %6872 = vmatpush1.bf16.msra.mxu0 0
    %6873 = vmatprep.subr.bf16.mxu0 0
    %6874 = vmatpush1.bf16.msra.mxu0 0
    %6875 = vmatprep.subr.bf16.mxu0 0
    %6876 = vmatpush1.bf16.msra.mxu0 0
    %6877 = vmatprep.subr.bf16.mxu0 0
    %6878 = vmatpush1.bf16.msra.mxu0 0
    %6879 = vmatprep.subr.bf16.mxu0 0
    %6880 = vmatpush1.bf16.msra.mxu0 0
    %6881 = vmatprep.subr.bf16.mxu0 0
    %6882 = vmatpush1.bf16.msra.mxu0 0
    %6883 = vmatprep.subr.bf16.mxu0 0
    %6884 = vmatpush1.bf16.msra.mxu0 0
    %6885 = vmatprep.subr.bf16.mxu0 0
    %6886 = vmatpush1.bf16.msra.mxu0 0
    %6887 = vmatprep.subr.bf16.mxu0 0
    %6888 = vmatpush1.bf16.msra.mxu0 0
    %6889 = vmatprep.subr.bf16.mxu0 0
    %6890 = vmatpush1.bf16.msra.mxu0 0
    %6891 = vmatprep.mubr.bf16.mxu0 0
    %6892 = vmatmul.mubr.bf16.gmra.mrb[0].mxu0 %v6611
    %v6893 = vpop.f32.mrb[0].mxu0
    %v6894 = vadd.f32 %v5861, %v6893
    %v6895 = vpop.f32.mrb[0].mxu0
    %v6896 = vadd.f32 %v5865, %v6895
    %v6897 = vpop.f32.mrb[0].mxu0
    %v6898 = vpop.f32.mrb[0].mxu0
    %6899 = vdwg.mxu0
    %6900 = vmatprep.subr.bf16.mxu0 %v6369
    %6901 = vmatpush1.bf16.msra.mxu0 %v6368
    %6902 = vmatprep.subr.bf16.mxu0 %v6401
    %6903 = vmatpush1.bf16.msra.mxu0 %v6400
    %6904 = vmatprep.subr.bf16.mxu0 %v6433
    %6905 = vmatpush1.bf16.msra.mxu0 %v6432
    %6906 = vmatprep.subr.bf16.mxu0 %v6465
    %6907 = vmatpush1.bf16.msra.mxu0 %v6464
    %6908 = vmatprep.subr.bf16.mxu0 0
    %6909 = vmatpush1.bf16.msra.mxu0 0
    %6910 = vmatprep.subr.bf16.mxu0 0
    %6911 = vmatpush1.bf16.msra.mxu0 0
    %6912 = vmatprep.subr.bf16.mxu0 0
    %6913 = vmatpush1.bf16.msra.mxu0 0
    %6914 = vmatprep.subr.bf16.mxu0 0
    %6915 = vmatpush1.bf16.msra.mxu0 0
    %6916 = vmatprep.subr.bf16.mxu0 0
    %6917 = vmatpush1.bf16.msra.mxu0 0
    %6918 = vmatprep.subr.bf16.mxu0 0
    %6919 = vmatpush1.bf16.msra.mxu0 0
    %6920 = vmatprep.subr.bf16.mxu0 0
    %6921 = vmatpush1.bf16.msra.mxu0 0
    %6922 = vmatprep.subr.bf16.mxu0 0
    %6923 = vmatpush1.bf16.msra.mxu0 0
    %6924 = vmatprep.subr.bf16.mxu0 0
    %6925 = vmatpush1.bf16.msra.mxu0 0
    %6926 = vmatprep.subr.bf16.mxu0 0
    %6927 = vmatpush1.bf16.msra.mxu0 0
    %6928 = vmatprep.subr.bf16.mxu0 0
    %6929 = vmatpush1.bf16.msra.mxu0 0
    %6930 = vmatprep.subr.bf16.mxu0 0
    %6931 = vmatpush1.bf16.msra.mxu0 0
    %6932 = vmatprep.mubr.bf16.mxu0 0
    %6933 = vmatmul.mubr.bf16.gmra.mrb[0].mxu0 %v6611
    %v6934 = vpop.f32.mrb[0].mxu0
    %v6935 = vadd.f32 %v5869, %v6934
    %v6936 = vpop.f32.mrb[0].mxu0
    %v6937 = vadd.f32 %v5873, %v6936
    %v6938 = vpop.f32.mrb[0].mxu0
    %v6939 = vpop.f32.mrb[0].mxu0
    %6940 = vdwg.mxu0
    %6941 = vmatprep.subr.bf16.mxu0 %v6371
    %6942 = vmatpush1.bf16.msra.mxu0 %v6370
    %6943 = vmatprep.subr.bf16.mxu0 %v6403
    %6944 = vmatpush1.bf16.msra.mxu0 %v6402
    %6945 = vmatprep.subr.bf16.mxu0 %v6435
    %6946 = vmatpush1.bf16.msra.mxu0 %v6434
    %6947 = vmatprep.subr.bf16.mxu0 %v6467
    %6948 = vmatpush1.bf16.msra.mxu0 %v6466
    %6949 = vmatprep.subr.bf16.mxu0 0
    %6950 = vmatpush1.bf16.msra.mxu0 0
    %6951 = vmatprep.subr.bf16.mxu0 0
    %6952 = vmatpush1.bf16.msra.mxu0 0
    %6953 = vmatprep.subr.bf16.mxu0 0
    %6954 = vmatpush1.bf16.msra.mxu0 0
    %6955 = vmatprep.subr.bf16.mxu0 0
    %6956 = vmatpush1.bf16.msra.mxu0 0
    %6957 = vmatprep.subr.bf16.mxu0 0
    %6958 = vmatpush1.bf16.msra.mxu0 0
    %6959 = vmatprep.subr.bf16.mxu0 0
    %6960 = vmatpush1.bf16.msra.mxu0 0
    %6961 = vmatprep.subr.bf16.mxu0 0
    %6962 = vmatpush1.bf16.msra.mxu0 0
    %6963 = vmatprep.subr.bf16.mxu0 0
    %6964 = vmatpush1.bf16.msra.mxu0 0
    %6965 = vmatprep.subr.bf16.mxu0 0
    %6966 = vmatpush1.bf16.msra.mxu0 0
    %6967 = vmatprep.subr.bf16.mxu0 0
    %6968 = vmatpush1.bf16.msra.mxu0 0
    %6969 = vmatprep.subr.bf16.mxu0 0
    %6970 = vmatpush1.bf16.msra.mxu0 0
    %6971 = vmatprep.subr.bf16.mxu0 0
    %6972 = vmatpush1.bf16.msra.mxu0 0
    %6973 = vmatprep.mubr.bf16.mxu0 0
    %6974 = vmatmul.mubr.bf16.gmra.mrb[0].mxu0 %v6611
    %v6975 = vpop.f32.mrb[0].mxu0
    %v6976 = vadd.f32 %v5877, %v6975
    %v6977 = vpop.f32.mrb[0].mxu0
    %v6978 = vadd.f32 %v5881, %v6977
    %v6979 = vpop.f32.mrb[0].mxu0
    %v6980 = vpop.f32.mrb[0].mxu0
    %6981 = vdwg.mxu0
    %6982 = vmatprep.subr.bf16.mxu0 %v6373
    %6983 = vmatpush1.bf16.msra.mxu0 %v6372
    %6984 = vmatprep.subr.bf16.mxu0 %v6405
    %6985 = vmatpush1.bf16.msra.mxu0 %v6404
    %6986 = vmatprep.subr.bf16.mxu0 %v6437
    %6987 = vmatpush1.bf16.msra.mxu0 %v6436
    %6988 = vmatprep.subr.bf16.mxu0 %v6469
    %6989 = vmatpush1.bf16.msra.mxu0 %v6468
    %6990 = vmatprep.subr.bf16.mxu0 0
    %6991 = vmatpush1.bf16.msra.mxu0 0
    %6992 = vmatprep.subr.bf16.mxu0 0
    %6993 = vmatpush1.bf16.msra.mxu0 0
    %6994 = vmatprep.subr.bf16.mxu0 0
    %6995 = vmatpush1.bf16.msra.mxu0 0
    %6996 = vmatprep.subr.bf16.mxu0 0
    %6997 = vmatpush1.bf16.msra.mxu0 0
    %6998 = vmatprep.subr.bf16.mxu0 0
    %6999 = vmatpush1.bf16.msra.mxu0 0
    %7000 = vmatprep.subr.bf16.mxu0 0
    %7001 = vmatpush1.bf16.msra.mxu0 0
    %7002 = vmatprep.subr.bf16.mxu0 0
    %7003 = vmatpush1.bf16.msra.mxu0 0
    %7004 = vmatprep.subr.bf16.mxu0 0
    %7005 = vmatpush1.bf16.msra.mxu0 0
    %7006 = vmatprep.subr.bf16.mxu0 0
    %7007 = vmatpush1.bf16.msra.mxu0 0
    %7008 = vmatprep.subr.bf16.mxu0 0
    %7009 = vmatpush1.bf16.msra.mxu0 0
    %7010 = vmatprep.subr.bf16.mxu0 0
    %7011 = vmatpush1.bf16.msra.mxu0 0
    %7012 = vmatprep.subr.bf16.mxu0 0
    %7013 = vmatpush1.bf16.msra.mxu0 0
    %7014 = vmatprep.mubr.bf16.mxu0 0
    %7015 = vmatmul.mubr.bf16.gmra.mrb[0].mxu0 %v6611
    %v7016 = vpop.f32.mrb[0].mxu0
    %v7017 = vadd.f32 %v5885, %v7016
    %v7018 = vpop.f32.mrb[0].mxu0
    %v7019 = vadd.f32 %v5889, %v7018
    %v7020 = vpop.f32.mrb[0].mxu0
    %v7021 = vpop.f32.mrb[0].mxu0
    %7022 = vdwg.mxu0
    %7023 = vmatprep.subr.bf16.mxu0 %v6375
    %7024 = vmatpush1.bf16.msra.mxu0 %v6374
    %7025 = vmatprep.subr.bf16.mxu0 %v6407
    %7026 = vmatpush1.bf16.msra.mxu0 %v6406
    %7027 = vmatprep.subr.bf16.mxu0 %v6439
    %7028 = vmatpush1.bf16.msra.mxu0 %v6438
    %7029 = vmatprep.subr.bf16.mxu0 %v6471
    %7030 = vmatpush1.bf16.msra.mxu0 %v6470
    %7031 = vmatprep.subr.bf16.mxu0 0
    %7032 = vmatpush1.bf16.msra.mxu0 0
    %7033 = vmatprep.subr.bf16.mxu0 0
    %7034 = vmatpush1.bf16.msra.mxu0 0
    %7035 = vmatprep.subr.bf16.mxu0 0
    %7036 = vmatpush1.bf16.msra.mxu0 0
    %7037 = vmatprep.subr.bf16.mxu0 0
    %7038 = vmatpush1.bf16.msra.mxu0 0
    %7039 = vmatprep.subr.bf16.mxu0 0
    %7040 = vmatpush1.bf16.msra.mxu0 0
    %7041 = vmatprep.subr.bf16.mxu0 0
    %7042 = vmatpush1.bf16.msra.mxu0 0
    %7043 = vmatprep.subr.bf16.mxu0 0
    %7044 = vmatpush1.bf16.msra.mxu0 0
    %7045 = vmatprep.subr.bf16.mxu0 0
    %7046 = vmatpush1.bf16.msra.mxu0 0
    %7047 = vmatprep.subr.bf16.mxu0 0
    %7048 = vmatpush1.bf16.msra.mxu0 0
    %7049 = vmatprep.subr.bf16.mxu0 0
    %7050 = vmatpush1.bf16.msra.mxu0 0
    %7051 = vmatprep.subr.bf16.mxu0 0
    %7052 = vmatpush1.bf16.msra.mxu0 0
    %7053 = vmatprep.subr.bf16.mxu0 0
    %7054 = vmatpush1.bf16.msra.mxu0 0
    %7055 = vmatprep.mubr.bf16.mxu0 0
    %7056 = vmatmul.mubr.bf16.gmra.mrb[0].mxu0 %v6611
    %v7057 = vpop.f32.mrb[0].mxu0
    %v7058 = vadd.f32 %v5893, %v7057
    %v7059 = vpop.f32.mrb[0].mxu0
    %v7060 = vadd.f32 %v5897, %v7059
    %v7061 = vpop.f32.mrb[0].mxu0
    %v7062 = vpop.f32.mrb[0].mxu0
    %7063 = vdwg.mxu0
    %7064 = vmatprep.subr.bf16.mxu0 %v6377
    %7065 = vmatpush1.bf16.msra.mxu0 %v6376
    %7066 = vmatprep.subr.bf16.mxu0 %v6409
    %7067 = vmatpush1.bf16.msra.mxu0 %v6408
    %7068 = vmatprep.subr.bf16.mxu0 %v6441
    %7069 = vmatpush1.bf16.msra.mxu0 %v6440
    %7070 = vmatprep.subr.bf16.mxu0 %v6473
    %7071 = vmatpush1.bf16.msra.mxu0 %v6472
    %7072 = vmatprep.subr.bf16.mxu0 0
    %7073 = vmatpush1.bf16.msra.mxu0 0
    %7074 = vmatprep.subr.bf16.mxu0 0
    %7075 = vmatpush1.bf16.msra.mxu0 0
    %7076 = vmatprep.subr.bf16.mxu0 0
    %7077 = vmatpush1.bf16.msra.mxu0 0
    %7078 = vmatprep.subr.bf16.mxu0 0
    %7079 = vmatpush1.bf16.msra.mxu0 0
    %7080 = vmatprep.subr.bf16.mxu0 0
    %7081 = vmatpush1.bf16.msra.mxu0 0
    %7082 = vmatprep.subr.bf16.mxu0 0
    %7083 = vmatpush1.bf16.msra.mxu0 0
    %7084 = vmatprep.subr.bf16.mxu0 0
    %7085 = vmatpush1.bf16.msra.mxu0 0
    %7086 = vmatprep.subr.bf16.mxu0 0
    %7087 = vmatpush1.bf16.msra.mxu0 0
    %7088 = vmatprep.subr.bf16.mxu0 0
    %7089 = vmatpush1.bf16.msra.mxu0 0
    %7090 = vmatprep.subr.bf16.mxu0 0
    %7091 = vmatpush1.bf16.msra.mxu0 0
    %7092 = vmatprep.subr.bf16.mxu0 0
    %7093 = vmatpush1.bf16.msra.mxu0 0
    %7094 = vmatprep.subr.bf16.mxu0 0
    %7095 = vmatpush1.bf16.msra.mxu0 0
    %7096 = vmatprep.mubr.bf16.mxu0 0
    %7097 = vmatmul.mubr.bf16.gmra.mrb[0].mxu0 %v6611
    %v7098 = vpop.f32.mrb[0].mxu0
    %v7099 = vadd.f32 %v5901, %v7098
    %v7100 = vpop.f32.mrb[0].mxu0
    %v7101 = vadd.f32 %v5905, %v7100
    %v7102 = vpop.f32.mrb[0].mxu0
    %v7103 = vpop.f32.mrb[0].mxu0
    %7104 = vdwg.mxu0
    %7105 = vmatprep.subr.bf16.mxu0 %v6379
    %7106 = vmatpush1.bf16.msra.mxu0 %v6378
    %7107 = vmatprep.subr.bf16.mxu0 %v6411
    %7108 = vmatpush1.bf16.msra.mxu0 %v6410
    %7109 = vmatprep.subr.bf16.mxu0 %v6443
    %7110 = vmatpush1.bf16.msra.mxu0 %v6442
    %7111 = vmatprep.subr.bf16.mxu0 %v6475
    %7112 = vmatpush1.bf16.msra.mxu0 %v6474
    %7113 = vmatprep.subr.bf16.mxu0 0
    %7114 = vmatpush1.bf16.msra.mxu0 0
    %7115 = vmatprep.subr.bf16.mxu0 0
    %7116 = vmatpush1.bf16.msra.mxu0 0
    %7117 = vmatprep.subr.bf16.mxu0 0
    %7118 = vmatpush1.bf16.msra.mxu0 0
    %7119 = vmatprep.subr.bf16.mxu0 0
    %7120 = vmatpush1.bf16.msra.mxu0 0
    %7121 = vmatprep.subr.bf16.mxu0 0
    %7122 = vmatpush1.bf16.msra.mxu0 0
    %7123 = vmatprep.subr.bf16.mxu0 0
    %7124 = vmatpush1.bf16.msra.mxu0 0
    %7125 = vmatprep.subr.bf16.mxu0 0
    %7126 = vmatpush1.bf16.msra.mxu0 0
    %7127 = vmatprep.subr.bf16.mxu0 0
    %7128 = vmatpush1.bf16.msra.mxu0 0
    %7129 = vmatprep.subr.bf16.mxu0 0
    %7130 = vmatpush1.bf16.msra.mxu0 0
    %7131 = vmatprep.subr.bf16.mxu0 0
    %7132 = vmatpush1.bf16.msra.mxu0 0
    %7133 = vmatprep.subr.bf16.mxu0 0
    %7134 = vmatpush1.bf16.msra.mxu0 0
    %7135 = vmatprep.subr.bf16.mxu0 0
    %7136 = vmatpush1.bf16.msra.mxu0 0
    %7137 = vmatprep.mubr.bf16.mxu0 0
    %7138 = vmatmul.mubr.bf16.gmra.mrb[0].mxu0 %v6611
    %v7139 = vpop.f32.mrb[0].mxu0
    %v7140 = vadd.f32 %v5909, %v7139
    %v7141 = vpop.f32.mrb[0].mxu0
    %v7142 = vadd.f32 %v5913, %v7141
    %v7143 = vpop.f32.mrb[0].mxu0
    %v7144 = vpop.f32.mrb[0].mxu0
    %7145 = vdwg.mxu0
    %7146 = vmatprep.subr.bf16.mxu0 %v6381
    %7147 = vmatpush1.bf16.msra.mxu0 %v6380
    %7148 = vmatprep.subr.bf16.mxu0 %v6413
    %7149 = vmatpush1.bf16.msra.mxu0 %v6412
    %7150 = vmatprep.subr.bf16.mxu0 %v6445
    %7151 = vmatpush1.bf16.msra.mxu0 %v6444
    %7152 = vmatprep.subr.bf16.mxu0 %v6477
    %7153 = vmatpush1.bf16.msra.mxu0 %v6476
    %7154 = vmatprep.subr.bf16.mxu0 0
    %7155 = vmatpush1.bf16.msra.mxu0 0
    %7156 = vmatprep.subr.bf16.mxu0 0
    %7157 = vmatpush1.bf16.msra.mxu0 0
    %7158 = vmatprep.subr.bf16.mxu0 0
    %7159 = vmatpush1.bf16.msra.mxu0 0
    %7160 = vmatprep.subr.bf16.mxu0 0
    %7161 = vmatpush1.bf16.msra.mxu0 0
    %7162 = vmatprep.subr.bf16.mxu0 0
    %7163 = vmatpush1.bf16.msra.mxu0 0
    %7164 = vmatprep.subr.bf16.mxu0 0
    %7165 = vmatpush1.bf16.msra.mxu0 0
    %7166 = vmatprep.subr.bf16.mxu0 0
    %7167 = vmatpush1.bf16.msra.mxu0 0
    %7168 = vmatprep.subr.bf16.mxu0 0
    %7169 = vmatpush1.bf16.msra.mxu0 0
    %7170 = vmatprep.subr.bf16.mxu0 0
    %7171 = vmatpush1.bf16.msra.mxu0 0
    %7172 = vmatprep.subr.bf16.mxu0 0
    %7173 = vmatpush1.bf16.msra.mxu0 0
    %7174 = vmatprep.subr.bf16.mxu0 0
    %7175 = vmatpush1.bf16.msra.mxu0 0
    %7176 = vmatprep.subr.bf16.mxu0 0
    %7177 = vmatpush1.bf16.msra.mxu0 0
    %7178 = vmatprep.mubr.bf16.mxu0 0
    %7179 = vmatmul.mubr.bf16.gmra.mrb[0].mxu0 %v6611
    %v7180 = vpop.f32.mrb[0].mxu0
    %v7181 = vadd.f32 %v5917, %v7180
    %v7182 = vpop.f32.mrb[0].mxu0
    %v7183 = vadd.f32 %v5921, %v7182
    %v7184 = vpop.f32.mrb[0].mxu0
    %v7185 = vpop.f32.mrb[0].mxu0
    %7186 = vdwg.mxu0
    %7187 = vmatprep.subr.bf16.mxu0 %v6383
    %7188 = vmatpush1.bf16.msra.mxu0 %v6382
    %7189 = vmatprep.subr.bf16.mxu0 %v6415
    %7190 = vmatpush1.bf16.msra.mxu0 %v6414
    %7191 = vmatprep.subr.bf16.mxu0 %v6447
    %7192 = vmatpush1.bf16.msra.mxu0 %v6446
    %7193 = vmatprep.subr.bf16.mxu0 %v6479
    %7194 = vmatpush1.bf16.msra.mxu0 %v6478
    %7195 = vmatprep.subr.bf16.mxu0 0
    %7196 = vmatpush1.bf16.msra.mxu0 0
    %7197 = vmatprep.subr.bf16.mxu0 0
    %7198 = vmatpush1.bf16.msra.mxu0 0
    %7199 = vmatprep.subr.bf16.mxu0 0
    %7200 = vmatpush1.bf16.msra.mxu0 0
    %7201 = vmatprep.subr.bf16.mxu0 0
    %7202 = vmatpush1.bf16.msra.mxu0 0
    %7203 = vmatprep.subr.bf16.mxu0 0
    %7204 = vmatpush1.bf16.msra.mxu0 0
    %7205 = vmatprep.subr.bf16.mxu0 0
    %7206 = vmatpush1.bf16.msra.mxu0 0
    %7207 = vmatprep.subr.bf16.mxu0 0
    %7208 = vmatpush1.bf16.msra.mxu0 0
    %7209 = vmatprep.subr.bf16.mxu0 0
    %7210 = vmatpush1.bf16.msra.mxu0 0
    %7211 = vmatprep.subr.bf16.mxu0 0
    %7212 = vmatpush1.bf16.msra.mxu0 0
    %7213 = vmatprep.subr.bf16.mxu0 0
    %7214 = vmatpush1.bf16.msra.mxu0 0
    %7215 = vmatprep.subr.bf16.mxu0 0
    %7216 = vmatpush1.bf16.msra.mxu0 0
    %7217 = vmatprep.subr.bf16.mxu0 0
    %7218 = vmatpush1.bf16.msra.mxu0 0
    %7219 = vmatprep.mubr.bf16.mxu0 0
    %7220 = vmatmul.mubr.bf16.gmra.mrb[0].mxu0 %v6611
    %v7221 = vpop.f32.mrb[0].mxu0
    %v7222 = vadd.f32 %v5925, %v7221
    %v7223 = vpop.f32.mrb[0].mxu0
    %v7224 = vadd.f32 %v5929, %v7223
    %v7225 = vpop.f32.mrb[0].mxu0
    %v7226 = vpop.f32.mrb[0].mxu0
    %7227 = vdwg.mxu0
    %7228 = vmatprep.subr.bf16.mxu0 %v6385
    %7229 = vmatpush1.bf16.msra.mxu0 %v6384
    %7230 = vmatprep.subr.bf16.mxu0 %v6417
    %7231 = vmatpush1.bf16.msra.mxu0 %v6416
    %7232 = vmatprep.subr.bf16.mxu0 %v6449
    %7233 = vmatpush1.bf16.msra.mxu0 %v6448
    %7234 = vmatprep.subr.bf16.mxu0 %v6481
    %7235 = vmatpush1.bf16.msra.mxu0 %v6480
    %7236 = vmatprep.subr.bf16.mxu0 0
    %7237 = vmatpush1.bf16.msra.mxu0 0
    %7238 = vmatprep.subr.bf16.mxu0 0
    %7239 = vmatpush1.bf16.msra.mxu0 0
    %7240 = vmatprep.subr.bf16.mxu0 0
    %7241 = vmatpush1.bf16.msra.mxu0 0
    %7242 = vmatprep.subr.bf16.mxu0 0
    %7243 = vmatpush1.bf16.msra.mxu0 0
    %7244 = vmatprep.subr.bf16.mxu0 0
    %7245 = vmatpush1.bf16.msra.mxu0 0
    %7246 = vmatprep.subr.bf16.mxu0 0
    %7247 = vmatpush1.bf16.msra.mxu0 0
    %7248 = vmatprep.subr.bf16.mxu0 0
    %7249 = vmatpush1.bf16.msra.mxu0 0
    %7250 = vmatprep.subr.bf16.mxu0 0
    %7251 = vmatpush1.bf16.msra.mxu0 0
    %7252 = vmatprep.subr.bf16.mxu0 0
    %7253 = vmatpush1.bf16.msra.mxu0 0
    %7254 = vmatprep.subr.bf16.mxu0 0
    %7255 = vmatpush1.bf16.msra.mxu0 0
    %7256 = vmatprep.subr.bf16.mxu0 0
    %7257 = vmatpush1.bf16.msra.mxu0 0
    %7258 = vmatprep.subr.bf16.mxu0 0
    %7259 = vmatpush1.bf16.msra.mxu0 0
    %7260 = vmatprep.mubr.bf16.mxu0 0
    %7261 = vmatmul.mubr.bf16.gmra.mrb[0].mxu0 %v6611
    %v7262 = vpop.f32.mrb[0].mxu0
    %v7263 = vadd.f32 %v5933, %v7262
    %v7264 = vpop.f32.mrb[0].mxu0
    %v7265 = vadd.f32 %v5937, %v7264
    %v7266 = vpop.f32.mrb[0].mxu0
    %v7267 = vpop.f32.mrb[0].mxu0
    %7268 = vdwg.mxu0
    %vm7269 = vcmp.gt.f32.partialorder %v6648, 0.0
    %vm7270 = vcmp.gt.f32.partialorder %v6650, 0.0
    %vm7271 = vcmp.gt.f32.partialorder %v6689, 0.0
    %vm7272 = vcmp.gt.f32.partialorder %v6691, 0.0
    %vm7273 = vcmp.gt.f32.partialorder %v6730, 0.0
    %vm7274 = vcmp.gt.f32.partialorder %v6732, 0.0
    %vm7275 = vcmp.gt.f32.partialorder %v6771, 0.0
    %vm7276 = vcmp.gt.f32.partialorder %v6773, 0.0
    %vm7277 = vcmp.gt.f32.partialorder %v6812, 0.0
    %vm7278 = vcmp.gt.f32.partialorder %v6814, 0.0
    %vm7279 = vcmp.gt.f32.partialorder %v6853, 0.0
    %vm7280 = vcmp.gt.f32.partialorder %v6855, 0.0
    %vm7281 = vcmp.gt.f32.partialorder %v6894, 0.0
    %vm7282 = vcmp.gt.f32.partialorder %v6896, 0.0
    %vm7283 = vcmp.gt.f32.partialorder %v6935, 0.0
    %vm7284 = vcmp.gt.f32.partialorder %v6937, 0.0
    %vm7285 = vcmp.gt.f32.partialorder %v6976, 0.0
    %vm7286 = vcmp.gt.f32.partialorder %v6978, 0.0
    %vm7287 = vcmp.gt.f32.partialorder %v7017, 0.0
    %vm7288 = vcmp.gt.f32.partialorder %v7019, 0.0
    %vm7289 = vcmp.gt.f32.partialorder %v7058, 0.0
    %vm7290 = vcmp.gt.f32.partialorder %v7060, 0.0
    %vm7291 = vcmp.gt.f32.partialorder %v7099, 0.0
    %vm7292 = vcmp.gt.f32.partialorder %v7101, 0.0
    %vm7293 = vcmp.gt.f32.partialorder %v7140, 0.0
    %vm7294 = vcmp.gt.f32.partialorder %v7142, 0.0
    %vm7295 = vcmp.gt.f32.partialorder %v7181, 0.0
    %vm7296 = vcmp.gt.f32.partialorder %v7183, 0.0
    %vm7297 = vcmp.gt.f32.partialorder %v7222, 0.0
    %vm7298 = vcmp.gt.f32.partialorder %v7224, 0.0
    %vm7299 = vcmp.gt.f32.partialorder %v7263, 0.0
    %vm7300 = vcmp.gt.f32.partialorder %v7265, 0.0
    %v7301 = vmul.f32 %v6648, 0.01
    %v7302 = vmul.f32 %v6650, 0.01
    %v7303 = vmul.f32 %v6689, 0.01
    %v7304 = vmul.f32 %v6691, 0.01
    %v7305 = vmul.f32 %v6730, 0.01
    %v7306 = vmul.f32 %v6732, 0.01
    %v7307 = vmul.f32 %v6771, 0.01
    %v7308 = vmul.f32 %v6773, 0.01
    %v7309 = vmul.f32 %v6812, 0.01
    %v7310 = vmul.f32 %v6814, 0.01
    %v7311 = vmul.f32 %v6853, 0.01
    %v7312 = vmul.f32 %v6855, 0.01
    %v7313 = vmul.f32 %v6894, 0.01
    %v7314 = vmul.f32 %v6896, 0.01
    %v7315 = vmul.f32 %v6935, 0.01
    %v7316 = vmul.f32 %v6937, 0.01
    %v7317 = vmul.f32 %v6976, 0.01
    %v7318 = vmul.f32 %v6978, 0.01
    %v7319 = vmul.f32 %v7017, 0.01
    %v7320 = vmul.f32 %v7019, 0.01
    %v7321 = vmul.f32 %v7058, 0.01
    %v7322 = vmul.f32 %v7060, 0.01
    %v7323 = vmul.f32 %v7099, 0.01
    %v7324 = vmul.f32 %v7101, 0.01
    %v7325 = vmul.f32 %v7140, 0.01
    %v7326 = vmul.f32 %v7142, 0.01
    %v7327 = vmul.f32 %v7181, 0.01
    %v7328 = vmul.f32 %v7183, 0.01
    %v7329 = vmul.f32 %v7222, 0.01
    %v7330 = vmul.f32 %v7224, 0.01
    %v7331 = vmul.f32 %v7263, 0.01
    %v7332 = vmul.f32 %v7265, 0.01
    %v7333 = vsel %vm7269, %v6648, %v7301
    %v7334 = vsel %vm7270, %v6650, %v7302
    %v7335 = vsel %vm7271, %v6689, %v7303
    %v7336 = vsel %vm7272, %v6691, %v7304
    %v7337 = vsel %vm7273, %v6730, %v7305
    %v7338 = vsel %vm7274, %v6732, %v7306
    %v7339 = vsel %vm7275, %v6771, %v7307
    %v7340 = vsel %vm7276, %v6773, %v7308
    %v7341 = vsel %vm7277, %v6812, %v7309
    %v7342 = vsel %vm7278, %v6814, %v7310
    %v7343 = vsel %vm7279, %v6853, %v7311
    %v7344 = vsel %vm7280, %v6855, %v7312
    %v7345 = vsel %vm7281, %v6894, %v7313
    %v7346 = vsel %vm7282, %v6896, %v7314
    %v7347 = vsel %vm7283, %v6935, %v7315
    %v7348 = vsel %vm7284, %v6937, %v7316
    %v7349 = vsel %vm7285, %v6976, %v7317
    %v7350 = vsel %vm7286, %v6978, %v7318
    %v7351 = vsel %vm7287, %v7017, %v7319
    %v7352 = vsel %vm7288, %v7019, %v7320
    %v7353 = vsel %vm7289, %v7058, %v7321
    %v7354 = vsel %vm7290, %v7060, %v7322
    %v7355 = vsel %vm7291, %v7099, %v7323
    %v7356 = vsel %vm7292, %v7101, %v7324
    %v7357 = vsel %vm7293, %v7140, %v7325
    %v7358 = vsel %vm7294, %v7142, %v7326
    %v7359 = vsel %vm7295, %v7181, %v7327
    %v7360 = vsel %vm7296, %v7183, %v7328
    %v7361 = vsel %vm7297, %v7222, %v7329
    %v7362 = vsel %vm7298, %v7224, %v7330
    %v7363 = vsel %vm7299, %v7263, %v7331
    %v7364 = vsel %vm7300, %v7265, %v7332
    %v7365 = vpack.c.bf16 %v7333, %v7333
    %v7366 = vpack.c.bf16 %v7334, %v7334
    %v7367 = vpack.c.bf16 %v7335, %v7335
    %v7368 = vpack.c.bf16 %v7336, %v7336
    %v7369 = vpack.c.bf16 %v7337, %v7337
    %v7370 = vpack.c.bf16 %v7338, %v7338
    %v7371 = vpack.c.bf16 %v7339, %v7339
    %v7372 = vpack.c.bf16 %v7340, %v7340
    %v7373 = vpack.c.bf16 %v7341, %v7341
    %v7374 = vpack.c.bf16 %v7342, %v7342
    %v7375 = vpack.c.bf16 %v7343, %v7343
    %v7376 = vpack.c.bf16 %v7344, %v7344
    %v7377 = vpack.c.bf16 %v7345, %v7345
    %v7378 = vpack.c.bf16 %v7346, %v7346
    %v7379 = vpack.c.bf16 %v7347, %v7347
    %v7380 = vpack.c.bf16 %v7348, %v7348
    %v7381 = vpack.c.bf16 %v7349, %v7349
    %v7382 = vpack.c.bf16 %v7350, %v7350
    %v7383 = vpack.c.bf16 %v7351, %v7351
    %v7384 = vpack.c.bf16 %v7352, %v7352
    %v7385 = vpack.c.bf16 %v7353, %v7353
    %v7386 = vpack.c.bf16 %v7354, %v7354
    %v7387 = vpack.c.bf16 %v7355, %v7355
    %v7388 = vpack.c.bf16 %v7356, %v7356
    %v7389 = vpack.c.bf16 %v7357, %v7357
    %v7390 = vpack.c.bf16 %v7358, %v7358
    %v7391 = vpack.c.bf16 %v7359, %v7359
    %v7392 = vpack.c.bf16 %v7360, %v7360
    %v7393 = vpack.c.bf16 %v7361, %v7361
    %v7394 = vpack.c.bf16 %v7362, %v7362
    %v7395 = vpack.c.bf16 %v7363, %v7363
    %v7396 = vpack.c.bf16 %v7364, %v7364
    %v7397 = vld [vmem:[%s11] sm:$0xf]
    %v7398 = vld [vmem:[%s11 + $0x4] sm:$0xf]
    %v7399 = vld [vmem:[%s11 + $0x8] sm:$0xf]
    %v7400 = vld [vmem:[%s11 + $0xc] sm:$0xf]
    %v7401 = vld [vmem:[%s11 + $0x10] sm:$0xf]
    %v7402 = vld [vmem:[%s11 + $0x14] sm:$0xf]
    %v7403 = vld [vmem:[%s11 + $0x18] sm:$0xf]
    %v7404 = vld [vmem:[%s11 + $0x1c] sm:$0xf]
    %v7405 = vld [vmem:[%s11 + $0x20] sm:$0xf]
    %v7406 = vld [vmem:[%s11 + $0x24] sm:$0xf]
    %v7407 = vld [vmem:[%s11 + $0x28] sm:$0xf]
    %v7408 = vld [vmem:[%s11 + $0x2c] sm:$0xf]
    %v7409 = vld [vmem:[%s11 + $0x30] sm:$0xf]
    %v7410 = vld [vmem:[%s11 + $0x34] sm:$0xf]
    %v7411 = vld [vmem:[%s11 + $0x38] sm:$0xf]
    %v7412 = vld [vmem:[%s11 + $0x3c] sm:$0xf]
    %v7413 = vld [vmem:[%s11 + $0x40] sm:$0xf]
    %v7414 = vld [vmem:[%s11 + $0x44] sm:$0xf]
    %v7415 = vld [vmem:[%s11 + $0x48] sm:$0xf]
    %v7416 = vld [vmem:[%s11 + $0x4c] sm:$0xf]
    %v7417 = vld [vmem:[%s11 + $0x50] sm:$0xf]
    %v7418 = vld [vmem:[%s11 + $0x54] sm:$0xf]
    %v7419 = vld [vmem:[%s11 + $0x58] sm:$0xf]
    %v7420 = vld [vmem:[%s11 + $0x5c] sm:$0xf]
    %v7421 = vld [vmem:[%s11 + $0x60] sm:$0xf]
    %v7422 = vld [vmem:[%s11 + $0x64] sm:$0xf]
    %v7423 = vld [vmem:[%s11 + $0x68] sm:$0xf]
    %v7424 = vld [vmem:[%s11 + $0x6c] sm:$0xf]
    %v7425 = vld [vmem:[%s11 + $0x70] sm:$0xf]
    %v7426 = vld [vmem:[%s11 + $0x74] sm:$0xf]
    %v7427 = vld [vmem:[%s11 + $0x78] sm:$0xf]
    %v7428 = vld [vmem:[%s11 + $0x7c] sm:$0xf]
    %v7429 = vld [vmem:[%s11 + $0x80] sm:$0xf]
    %v7430 = vld [vmem:[%s11 + $0x84] sm:$0xf]
    %v7431 = vld [vmem:[%s11 + $0x88] sm:$0xf]
    %v7432 = vld [vmem:[%s11 + $0x8c] sm:$0xf]
    %v7433 = vld [vmem:[%s11 + $0x90] sm:$0xf]
    %v7434 = vld [vmem:[%s11 + $0x94] sm:$0xf]
    %v7435 = vld [vmem:[%s11 + $0x98] sm:$0xf]
    %v7436 = vld [vmem:[%s11 + $0x9c] sm:$0xf]
    %v7437 = vld [vmem:[%s11 + $0xa0] sm:$0xf]
    %v7438 = vld [vmem:[%s11 + $0xa4] sm:$0xf]
    %v7439 = vld [vmem:[%s11 + $0xa8] sm:$0xf]
    %v7440 = vld [vmem:[%s11 + $0xac] sm:$0xf]
    %v7441 = vld [vmem:[%s11 + $0xb0] sm:$0xf]
    %v7442 = vld [vmem:[%s11 + $0xb4] sm:$0xf]
    %v7443 = vld [vmem:[%s11 + $0xb8] sm:$0xf]
    %v7444 = vld [vmem:[%s11 + $0xbc] sm:$0xf]
    %v7445 = vld [vmem:[%s11 + $0xc0] sm:$0xf]
    %v7446 = vld [vmem:[%s11 + $0xc4] sm:$0xf]
    %v7447 = vld [vmem:[%s11 + $0xc8] sm:$0xf]
    %v7448 = vld [vmem:[%s11 + $0xcc] sm:$0xf]
    %v7449 = vld [vmem:[%s11 + $0xd0] sm:$0xf]
    %v7450 = vld [vmem:[%s11 + $0xd4] sm:$0xf]
    %v7451 = vld [vmem:[%s11 + $0xd8] sm:$0xf]
    %v7452 = vld [vmem:[%s11 + $0xdc] sm:$0xf]
    %v7453 = vld [vmem:[%s11 + $0xe0] sm:$0xf]
    %v7454 = vld [vmem:[%s11 + $0xe4] sm:$0xf]
    %v7455 = vld [vmem:[%s11 + $0xe8] sm:$0xf]
    %v7456 = vld [vmem:[%s11 + $0xec] sm:$0xf]
    %v7457 = vld [vmem:[%s11 + $0xf0] sm:$0xf]
    %v7458 = vld [vmem:[%s11 + $0xf4] sm:$0xf]
    %v7459 = vld [vmem:[%s11 + $0xf8] sm:$0xf]
    %v7460 = vld [vmem:[%s11 + $0xfc] sm:$0xf]
    %v7461 = vld [vmem:[%s11 + $0x100] sm:$0xf]
    %v7462 = vld [vmem:[%s11 + $0x104] sm:$0xf]
    %v7463 = vld [vmem:[%s11 + $0x108] sm:$0xf]
    %v7464 = vld [vmem:[%s11 + $0x10c] sm:$0xf]
    %v7465 = vld [vmem:[%s11 + $0x110] sm:$0xf]
    %v7466 = vld [vmem:[%s11 + $0x114] sm:$0xf]
    %v7467 = vld [vmem:[%s11 + $0x118] sm:$0xf]
    %v7468 = vld [vmem:[%s11 + $0x11c] sm:$0xf]
    %v7469 = vld [vmem:[%s11 + $0x120] sm:$0xf]
    %v7470 = vld [vmem:[%s11 + $0x124] sm:$0xf]
    %v7471 = vld [vmem:[%s11 + $0x128] sm:$0xf]
    %v7472 = vld [vmem:[%s11 + $0x12c] sm:$0xf]
    %v7473 = vld [vmem:[%s11 + $0x130] sm:$0xf]
    %v7474 = vld [vmem:[%s11 + $0x134] sm:$0xf]
    %v7475 = vld [vmem:[%s11 + $0x138] sm:$0xf]
    %v7476 = vld [vmem:[%s11 + $0x13c] sm:$0xf]
    %v7477 = vld [vmem:[%s11 + $0x140] sm:$0xf]
    %v7478 = vld [vmem:[%s11 + $0x144] sm:$0xf]
    %v7479 = vld [vmem:[%s11 + $0x148] sm:$0xf]
    %v7480 = vld [vmem:[%s11 + $0x14c] sm:$0xf]
    %v7481 = vld [vmem:[%s11 + $0x150] sm:$0xf]
    %v7482 = vld [vmem:[%s11 + $0x154] sm:$0xf]
    %v7483 = vld [vmem:[%s11 + $0x158] sm:$0xf]
    %v7484 = vld [vmem:[%s11 + $0x15c] sm:$0xf]
    %v7485 = vld [vmem:[%s11 + $0x160] sm:$0xf]
    %v7486 = vld [vmem:[%s11 + $0x164] sm:$0xf]
    %v7487 = vld [vmem:[%s11 + $0x168] sm:$0xf]
    %v7488 = vld [vmem:[%s11 + $0x16c] sm:$0xf]
    %v7489 = vld [vmem:[%s11 + $0x170] sm:$0xf]
    %v7490 = vld [vmem:[%s11 + $0x174] sm:$0xf]
    %v7491 = vld [vmem:[%s11 + $0x178] sm:$0xf]
    %v7492 = vld [vmem:[%s11 + $0x17c] sm:$0xf]
    %v7493 = vld [vmem:[%s11 + $0x180] sm:$0xf]
    %v7494 = vld [vmem:[%s11 + $0x184] sm:$0xf]
    %v7495 = vld [vmem:[%s11 + $0x188] sm:$0xf]
    %v7496 = vld [vmem:[%s11 + $0x18c] sm:$0xf]
    %v7497 = vld [vmem:[%s11 + $0x190] sm:$0xf]
    %v7498 = vld [vmem:[%s11 + $0x194] sm:$0xf]
    %v7499 = vld [vmem:[%s11 + $0x198] sm:$0xf]
    %v7500 = vld [vmem:[%s11 + $0x19c] sm:$0xf]
    %v7501 = vld [vmem:[%s11 + $0x1a0] sm:$0xf]
    %v7502 = vld [vmem:[%s11 + $0x1a4] sm:$0xf]
    %v7503 = vld [vmem:[%s11 + $0x1a8] sm:$0xf]
    %v7504 = vld [vmem:[%s11 + $0x1ac] sm:$0xf]
    %v7505 = vld [vmem:[%s11 + $0x1b0] sm:$0xf]
    %v7506 = vld [vmem:[%s11 + $0x1b4] sm:$0xf]
    %v7507 = vld [vmem:[%s11 + $0x1b8] sm:$0xf]
    %v7508 = vld [vmem:[%s11 + $0x1bc] sm:$0xf]
    %v7509 = vld [vmem:[%s11 + $0x1c0] sm:$0xf]
    %v7510 = vld [vmem:[%s11 + $0x1c4] sm:$0xf]
    %v7511 = vld [vmem:[%s11 + $0x1c8] sm:$0xf]
    %v7512 = vld [vmem:[%s11 + $0x1cc] sm:$0xf]
    %v7513 = vld [vmem:[%s11 + $0x1d0] sm:$0xf]
    %v7514 = vld [vmem:[%s11 + $0x1d4] sm:$0xf]
    %v7515 = vld [vmem:[%s11 + $0x1d8] sm:$0xf]
    %v7516 = vld [vmem:[%s11 + $0x1dc] sm:$0xf]
    %v7517 = vld [vmem:[%s11 + $0x1e0] sm:$0xf]
    %v7518 = vld [vmem:[%s11 + $0x1e4] sm:$0xf]
    %v7519 = vld [vmem:[%s11 + $0x1e8] sm:$0xf]
    %v7520 = vld [vmem:[%s11 + $0x1ec] sm:$0xf]
    %v7521 = vld [vmem:[%s11 + $0x1f0] sm:$0xf]
    %v7522 = vld [vmem:[%s11 + $0x1f4] sm:$0xf]
    %v7523 = vld [vmem:[%s11 + $0x1f8] sm:$0xf]
    %v7524 = vld [vmem:[%s11 + $0x1fc] sm:$0xf]
    %v7525 = vld [vmem:[%s11 + $0x200] sm:$0xf]
    %v7526 = vld [vmem:[%s11 + $0x204] sm:$0xf]
    %v7527 = vld [vmem:[%s11 + $0x208] sm:$0xf]
    %v7528 = vld [vmem:[%s11 + $0x20c] sm:$0xf]
    %v7529 = vld [vmem:[%s11 + $0x210] sm:$0xf]
    %v7530 = vld [vmem:[%s11 + $0x214] sm:$0xf]
    %v7531 = vld [vmem:[%s11 + $0x218] sm:$0xf]
    %v7532 = vld [vmem:[%s11 + $0x21c] sm:$0xf]
    %v7533 = vld [vmem:[%s11 + $0x220] sm:$0xf]
    %v7534 = vld [vmem:[%s11 + $0x224] sm:$0xf]
    %v7535 = vld [vmem:[%s11 + $0x228] sm:$0xf]
    %v7536 = vld [vmem:[%s11 + $0x22c] sm:$0xf]
    %v7537 = vld [vmem:[%s11 + $0x230] sm:$0xf]
    %v7538 = vld [vmem:[%s11 + $0x234] sm:$0xf]
    %v7539 = vld [vmem:[%s11 + $0x238] sm:$0xf]
    %v7540 = vld [vmem:[%s11 + $0x23c] sm:$0xf]
    %v7541 = vld [vmem:[%s11 + $0x240] sm:$0xf]
    %v7542 = vld [vmem:[%s11 + $0x244] sm:$0xf]
    %v7543 = vld [vmem:[%s11 + $0x248] sm:$0xf]
    %v7544 = vld [vmem:[%s11 + $0x24c] sm:$0xf]
    %v7545 = vld [vmem:[%s11 + $0x250] sm:$0xf]
    %v7546 = vld [vmem:[%s11 + $0x254] sm:$0xf]
    %v7547 = vld [vmem:[%s11 + $0x258] sm:$0xf]
    %v7548 = vld [vmem:[%s11 + $0x25c] sm:$0xf]
    %v7549 = vld [vmem:[%s11 + $0x260] sm:$0xf]
    %v7550 = vld [vmem:[%s11 + $0x264] sm:$0xf]
    %v7551 = vld [vmem:[%s11 + $0x268] sm:$0xf]
    %v7552 = vld [vmem:[%s11 + $0x26c] sm:$0xf]
    %v7553 = vld [vmem:[%s11 + $0x270] sm:$0xf]
    %v7554 = vld [vmem:[%s11 + $0x274] sm:$0xf]
    %v7555 = vld [vmem:[%s11 + $0x278] sm:$0xf]
    %v7556 = vld [vmem:[%s11 + $0x27c] sm:$0xf]
    %v7557 = vld [vmem:[%s11 + $0x280] sm:$0xf]
    %v7558 = vld [vmem:[%s11 + $0x284] sm:$0xf]
    %v7559 = vld [vmem:[%s11 + $0x288] sm:$0xf]
    %v7560 = vld [vmem:[%s11 + $0x28c] sm:$0xf]
    %v7561 = vld [vmem:[%s11 + $0x290] sm:$0xf]
    %v7562 = vld [vmem:[%s11 + $0x294] sm:$0xf]
    %v7563 = vld [vmem:[%s11 + $0x298] sm:$0xf]
    %v7564 = vld [vmem:[%s11 + $0x29c] sm:$0xf]
    %v7565 = vld [vmem:[%s11 + $0x2a0] sm:$0xf]
    %v7566 = vld [vmem:[%s11 + $0x2a4] sm:$0xf]
    %v7567 = vld [vmem:[%s11 + $0x2a8] sm:$0xf]
    %v7568 = vld [vmem:[%s11 + $0x2ac] sm:$0xf]
    %v7569 = vld [vmem:[%s11 + $0x2b0] sm:$0xf]
    %v7570 = vld [vmem:[%s11 + $0x2b4] sm:$0xf]
    %v7571 = vld [vmem:[%s11 + $0x2b8] sm:$0xf]
    %v7572 = vld [vmem:[%s11 + $0x2bc] sm:$0xf]
    %v7573 = vld [vmem:[%s11 + $0x2c0] sm:$0xf]
    %v7574 = vld [vmem:[%s11 + $0x2c4] sm:$0xf]
    %v7575 = vld [vmem:[%s11 + $0x2c8] sm:$0xf]
    %v7576 = vld [vmem:[%s11 + $0x2cc] sm:$0xf]
    %v7577 = vld [vmem:[%s11 + $0x2d0] sm:$0xf]
    %v7578 = vld [vmem:[%s11 + $0x2d4] sm:$0xf]
    %v7579 = vld [vmem:[%s11 + $0x2d8] sm:$0xf]
    %v7580 = vld [vmem:[%s11 + $0x2dc] sm:$0xf]
    %v7581 = vld [vmem:[%s11 + $0x2e0] sm:$0xf]
    %v7582 = vld [vmem:[%s11 + $0x2e4] sm:$0xf]
    %v7583 = vld [vmem:[%s11 + $0x2e8] sm:$0xf]
    %v7584 = vld [vmem:[%s11 + $0x2ec] sm:$0xf]
    %v7585 = vld [vmem:[%s11 + $0x2f0] sm:$0xf]
    %v7586 = vld [vmem:[%s11 + $0x2f4] sm:$0xf]
    %v7587 = vld [vmem:[%s11 + $0x2f8] sm:$0xf]
    %v7588 = vld [vmem:[%s11 + $0x2fc] sm:$0xf]
    %v7589 = vld [vmem:[%s11 + $0x300] sm:$0xf]
    %v7590 = vld [vmem:[%s11 + $0x304] sm:$0xf]
    %v7591 = vld [vmem:[%s11 + $0x308] sm:$0xf]
    %v7592 = vld [vmem:[%s11 + $0x30c] sm:$0xf]
    %v7593 = vld [vmem:[%s11 + $0x310] sm:$0xf]
    %v7594 = vld [vmem:[%s11 + $0x314] sm:$0xf]
    %v7595 = vld [vmem:[%s11 + $0x318] sm:$0xf]
    %v7596 = vld [vmem:[%s11 + $0x31c] sm:$0xf]
    %v7597 = vld [vmem:[%s11 + $0x320] sm:$0xf]
    %v7598 = vld [vmem:[%s11 + $0x324] sm:$0xf]
    %v7599 = vld [vmem:[%s11 + $0x328] sm:$0xf]
    %v7600 = vld [vmem:[%s11 + $0x32c] sm:$0xf]
    %v7601 = vld [vmem:[%s11 + $0x330] sm:$0xf]
    %v7602 = vld [vmem:[%s11 + $0x334] sm:$0xf]
    %v7603 = vld [vmem:[%s11 + $0x338] sm:$0xf]
    %v7604 = vld [vmem:[%s11 + $0x33c] sm:$0xf]
    %v7605 = vld [vmem:[%s11 + $0x340] sm:$0xf]
    %v7606 = vld [vmem:[%s11 + $0x344] sm:$0xf]
    %v7607 = vld [vmem:[%s11 + $0x348] sm:$0xf]
    %v7608 = vld [vmem:[%s11 + $0x34c] sm:$0xf]
    %v7609 = vld [vmem:[%s11 + $0x350] sm:$0xf]
    %v7610 = vld [vmem:[%s11 + $0x354] sm:$0xf]
    %v7611 = vld [vmem:[%s11 + $0x358] sm:$0xf]
    %v7612 = vld [vmem:[%s11 + $0x35c] sm:$0xf]
    %v7613 = vld [vmem:[%s11 + $0x360] sm:$0xf]
    %v7614 = vld [vmem:[%s11 + $0x364] sm:$0xf]
    %v7615 = vld [vmem:[%s11 + $0x368] sm:$0xf]
    %v7616 = vld [vmem:[%s11 + $0x36c] sm:$0xf]
    %v7617 = vld [vmem:[%s11 + $0x370] sm:$0xf]
    %v7618 = vld [vmem:[%s11 + $0x374] sm:$0xf]
    %v7619 = vld [vmem:[%s11 + $0x378] sm:$0xf]
    %v7620 = vld [vmem:[%s11 + $0x37c] sm:$0xf]
    %v7621 = vld [vmem:[%s11 + $0x380] sm:$0xf]
    %v7622 = vld [vmem:[%s11 + $0x384] sm:$0xf]
    %v7623 = vld [vmem:[%s11 + $0x388] sm:$0xf]
    %v7624 = vld [vmem:[%s11 + $0x38c] sm:$0xf]
    %v7625 = vld [vmem:[%s11 + $0x390] sm:$0xf]
    %v7626 = vld [vmem:[%s11 + $0x394] sm:$0xf]
    %v7627 = vld [vmem:[%s11 + $0x398] sm:$0xf]
    %v7628 = vld [vmem:[%s11 + $0x39c] sm:$0xf]
    %v7629 = vld [vmem:[%s11 + $0x3a0] sm:$0xf]
    %v7630 = vld [vmem:[%s11 + $0x3a4] sm:$0xf]
    %v7631 = vld [vmem:[%s11 + $0x3a8] sm:$0xf]
    %v7632 = vld [vmem:[%s11 + $0x3ac] sm:$0xf]
    %v7633 = vld [vmem:[%s11 + $0x3b0] sm:$0xf]
    %v7634 = vld [vmem:[%s11 + $0x3b4] sm:$0xf]
    %v7635 = vld [vmem:[%s11 + $0x3b8] sm:$0xf]
    %v7636 = vld [vmem:[%s11 + $0x3bc] sm:$0xf]
    %v7637 = vld [vmem:[%s11 + $0x3c0] sm:$0xf]
    %v7638 = vld [vmem:[%s11 + $0x3c4] sm:$0xf]
    %v7639 = vld [vmem:[%s11 + $0x3c8] sm:$0xf]
    %v7640 = vld [vmem:[%s11 + $0x3cc] sm:$0xf]
    %v7641 = vld [vmem:[%s11 + $0x3d0] sm:$0xf]
    %v7642 = vld [vmem:[%s11 + $0x3d4] sm:$0xf]
    %v7643 = vld [vmem:[%s11 + $0x3d8] sm:$0xf]
    %v7644 = vld [vmem:[%s11 + $0x3dc] sm:$0xf]
    %v7645 = vld [vmem:[%s11 + $0x3e0] sm:$0xf]
    %v7646 = vld [vmem:[%s11 + $0x3e4] sm:$0xf]
    %v7647 = vld [vmem:[%s11 + $0x3e8] sm:$0xf]
    %v7648 = vld [vmem:[%s11 + $0x3ec] sm:$0xf]
    %v7649 = vld [vmem:[%s11 + $0x3f0] sm:$0xf]
    %v7650 = vld [vmem:[%s11 + $0x3f4] sm:$0xf]
    %v7651 = vld [vmem:[%s11 + $0x3f8] sm:$0xf]
    %v7652 = vld [vmem:[%s11 + $0x3fc] sm:$0xf]
    %v7653 = vld [vmem:[%s11 + $0x400] sm:$0xf]
    %v7654 = vld [vmem:[%s11 + $0x404] sm:$0xf]
    %v7655 = vld [vmem:[%s11 + $0x408] sm:$0xf]
    %v7656 = vld [vmem:[%s11 + $0x40c] sm:$0xf]
    %v7657 = vld [vmem:[%s11 + $0x410] sm:$0xf]
    %v7658 = vld [vmem:[%s11 + $0x414] sm:$0xf]
    %v7659 = vld [vmem:[%s11 + $0x418] sm:$0xf]
    %v7660 = vld [vmem:[%s11 + $0x41c] sm:$0xf]
    %v7661 = vld [vmem:[%s11 + $0x420] sm:$0xf]
    %v7662 = vld [vmem:[%s11 + $0x424] sm:$0xf]
    %v7663 = vld [vmem:[%s11 + $0x428] sm:$0xf]
    %v7664 = vld [vmem:[%s11 + $0x42c] sm:$0xf]
    %v7665 = vld [vmem:[%s11 + $0x430] sm:$0xf]
    %v7666 = vld [vmem:[%s11 + $0x434] sm:$0xf]
    %v7667 = vld [vmem:[%s11 + $0x438] sm:$0xf]
    %v7668 = vld [vmem:[%s11 + $0x43c] sm:$0xf]
    %v7669 = vld [vmem:[%s11 + $0x440] sm:$0xf]
    %v7670 = vld [vmem:[%s11 + $0x444] sm:$0xf]
    %v7671 = vld [vmem:[%s11 + $0x448] sm:$0xf]
    %v7672 = vld [vmem:[%s11 + $0x44c] sm:$0xf]
    %v7673 = vld [vmem:[%s11 + $0x450] sm:$0xf]
    %v7674 = vld [vmem:[%s11 + $0x454] sm:$0xf]
    %v7675 = vld [vmem:[%s11 + $0x458] sm:$0xf]
    %v7676 = vld [vmem:[%s11 + $0x45c] sm:$0xf]
    %v7677 = vld [vmem:[%s11 + $0x460] sm:$0xf]
    %v7678 = vld [vmem:[%s11 + $0x464] sm:$0xf]
    %v7679 = vld [vmem:[%s11 + $0x468] sm:$0xf]
    %v7680 = vld [vmem:[%s11 + $0x46c] sm:$0xf]
    %v7681 = vld [vmem:[%s11 + $0x470] sm:$0xf]
    %v7682 = vld [vmem:[%s11 + $0x474] sm:$0xf]
    %v7683 = vld [vmem:[%s11 + $0x478] sm:$0xf]
    %v7684 = vld [vmem:[%s11 + $0x47c] sm:$0xf]
    %v7685 = vld [vmem:[%s11 + $0x480] sm:$0xf]
    %v7686 = vld [vmem:[%s11 + $0x484] sm:$0xf]
    %v7687 = vld [vmem:[%s11 + $0x488] sm:$0xf]
    %v7688 = vld [vmem:[%s11 + $0x48c] sm:$0xf]
    %v7689 = vld [vmem:[%s11 + $0x490] sm:$0xf]
    %v7690 = vld [vmem:[%s11 + $0x494] sm:$0xf]
    %v7691 = vld [vmem:[%s11 + $0x498] sm:$0xf]
    %v7692 = vld [vmem:[%s11 + $0x49c] sm:$0xf]
    %v7693 = vld [vmem:[%s11 + $0x4a0] sm:$0xf]
    %v7694 = vld [vmem:[%s11 + $0x4a4] sm:$0xf]
    %v7695 = vld [vmem:[%s11 + $0x4a8] sm:$0xf]
    %v7696 = vld [vmem:[%s11 + $0x4ac] sm:$0xf]
    %v7697 = vld [vmem:[%s11 + $0x4b0] sm:$0xf]
    %v7698 = vld [vmem:[%s11 + $0x4b4] sm:$0xf]
    %v7699 = vld [vmem:[%s11 + $0x4b8] sm:$0xf]
    %v7700 = vld [vmem:[%s11 + $0x4bc] sm:$0xf]
    %v7701 = vld [vmem:[%s11 + $0x4c0] sm:$0xf]
    %v7702 = vld [vmem:[%s11 + $0x4c4] sm:$0xf]
    %v7703 = vld [vmem:[%s11 + $0x4c8] sm:$0xf]
    %v7704 = vld [vmem:[%s11 + $0x4cc] sm:$0xf]
    %v7705 = vld [vmem:[%s11 + $0x4d0] sm:$0xf]
    %v7706 = vld [vmem:[%s11 + $0x4d4] sm:$0xf]
    %v7707 = vld [vmem:[%s11 + $0x4d8] sm:$0xf]
    %v7708 = vld [vmem:[%s11 + $0x4dc] sm:$0xf]
    %v7709 = vld [vmem:[%s11 + $0x4e0] sm:$0xf]
    %v7710 = vld [vmem:[%s11 + $0x4e4] sm:$0xf]
    %v7711 = vld [vmem:[%s11 + $0x4e8] sm:$0xf]
    %v7712 = vld [vmem:[%s11 + $0x4ec] sm:$0xf]
    %v7713 = vld [vmem:[%s11 + $0x4f0] sm:$0xf]
    %v7714 = vld [vmem:[%s11 + $0x4f4] sm:$0xf]
    %v7715 = vld [vmem:[%s11 + $0x4f8] sm:$0xf]
    %v7716 = vld [vmem:[%s11 + $0x4fc] sm:$0xf]
    %v7717 = vld [vmem:[%s11 + $0x500] sm:$0xf]
    %v7718 = vld [vmem:[%s11 + $0x504] sm:$0xf]
    %v7719 = vld [vmem:[%s11 + $0x508] sm:$0xf]
    %v7720 = vld [vmem:[%s11 + $0x50c] sm:$0xf]
    %v7721 = vld [vmem:[%s11 + $0x510] sm:$0xf]
    %v7722 = vld [vmem:[%s11 + $0x514] sm:$0xf]
    %v7723 = vld [vmem:[%s11 + $0x518] sm:$0xf]
    %v7724 = vld [vmem:[%s11 + $0x51c] sm:$0xf]
    %v7725 = vld [vmem:[%s11 + $0x520] sm:$0xf]
    %v7726 = vld [vmem:[%s11 + $0x524] sm:$0xf]
    %v7727 = vld [vmem:[%s11 + $0x528] sm:$0xf]
    %v7728 = vld [vmem:[%s11 + $0x52c] sm:$0xf]
    %v7729 = vld [vmem:[%s11 + $0x530] sm:$0xf]
    %v7730 = vld [vmem:[%s11 + $0x534] sm:$0xf]
    %v7731 = vld [vmem:[%s11 + $0x538] sm:$0xf]
    %v7732 = vld [vmem:[%s11 + $0x53c] sm:$0xf]
    %v7733 = vld [vmem:[%s11 + $0x540] sm:$0xf]
    %v7734 = vld [vmem:[%s11 + $0x544] sm:$0xf]
    %v7735 = vld [vmem:[%s11 + $0x548] sm:$0xf]
    %v7736 = vld [vmem:[%s11 + $0x54c] sm:$0xf]
    %v7737 = vld [vmem:[%s11 + $0x550] sm:$0xf]
    %v7738 = vld [vmem:[%s11 + $0x554] sm:$0xf]
    %v7739 = vld [vmem:[%s11 + $0x558] sm:$0xf]
    %v7740 = vld [vmem:[%s11 + $0x55c] sm:$0xf]
    %v7741 = vld [vmem:[%s11 + $0x560] sm:$0xf]
    %v7742 = vld [vmem:[%s11 + $0x564] sm:$0xf]
    %v7743 = vld [vmem:[%s11 + $0x568] sm:$0xf]
    %v7744 = vld [vmem:[%s11 + $0x56c] sm:$0xf]
    %v7745 = vld [vmem:[%s11 + $0x570] sm:$0xf]
    %v7746 = vld [vmem:[%s11 + $0x574] sm:$0xf]
    %v7747 = vld [vmem:[%s11 + $0x578] sm:$0xf]
    %v7748 = vld [vmem:[%s11 + $0x57c] sm:$0xf]
    %v7749 = vld [vmem:[%s11 + $0x580] sm:$0xf]
    %v7750 = vld [vmem:[%s11 + $0x584] sm:$0xf]
    %v7751 = vld [vmem:[%s11 + $0x588] sm:$0xf]
    %v7752 = vld [vmem:[%s11 + $0x58c] sm:$0xf]
    %v7753 = vld [vmem:[%s11 + $0x590] sm:$0xf]
    %v7754 = vld [vmem:[%s11 + $0x594] sm:$0xf]
    %v7755 = vld [vmem:[%s11 + $0x598] sm:$0xf]
    %v7756 = vld [vmem:[%s11 + $0x59c] sm:$0xf]
    %v7757 = vld [vmem:[%s11 + $0x5a0] sm:$0xf]
    %v7758 = vld [vmem:[%s11 + $0x5a4] sm:$0xf]
    %v7759 = vld [vmem:[%s11 + $0x5a8] sm:$0xf]
    %v7760 = vld [vmem:[%s11 + $0x5ac] sm:$0xf]
    %v7761 = vld [vmem:[%s11 + $0x5b0] sm:$0xf]
    %v7762 = vld [vmem:[%s11 + $0x5b4] sm:$0xf]
    %v7763 = vld [vmem:[%s11 + $0x5b8] sm:$0xf]
    %v7764 = vld [vmem:[%s11 + $0x5bc] sm:$0xf]
    %v7765 = vld [vmem:[%s11 + $0x5c0] sm:$0xf]
    %v7766 = vld [vmem:[%s11 + $0x5c4] sm:$0xf]
    %v7767 = vld [vmem:[%s11 + $0x5c8] sm:$0xf]
    %v7768 = vld [vmem:[%s11 + $0x5cc] sm:$0xf]
    %v7769 = vld [vmem:[%s11 + $0x5d0] sm:$0xf]
    %v7770 = vld [vmem:[%s11 + $0x5d4] sm:$0xf]
    %v7771 = vld [vmem:[%s11 + $0x5d8] sm:$0xf]
    %v7772 = vld [vmem:[%s11 + $0x5dc] sm:$0xf]
    %v7773 = vld [vmem:[%s11 + $0x5e0] sm:$0xf]
    %v7774 = vld [vmem:[%s11 + $0x5e4] sm:$0xf]
    %v7775 = vld [vmem:[%s11 + $0x5e8] sm:$0xf]
    %v7776 = vld [vmem:[%s11 + $0x5ec] sm:$0xf]
    %v7777 = vld [vmem:[%s11 + $0x5f0] sm:$0xf]
    %v7778 = vld [vmem:[%s11 + $0x5f4] sm:$0xf]
    %v7779 = vld [vmem:[%s11 + $0x5f8] sm:$0xf]
    %v7780 = vld [vmem:[%s11 + $0x5fc] sm:$0xf]
    %v7781 = vld [vmem:[%s11 + $0x600] sm:$0xf]
    %v7782 = vld [vmem:[%s11 + $0x604] sm:$0xf]
    %v7783 = vld [vmem:[%s11 + $0x608] sm:$0xf]
    %v7784 = vld [vmem:[%s11 + $0x60c] sm:$0xf]
    %v7785 = vld [vmem:[%s11 + $0x610] sm:$0xf]
    %v7786 = vld [vmem:[%s11 + $0x614] sm:$0xf]
    %v7787 = vld [vmem:[%s11 + $0x618] sm:$0xf]
    %v7788 = vld [vmem:[%s11 + $0x61c] sm:$0xf]
    %v7789 = vld [vmem:[%s11 + $0x620] sm:$0xf]
    %v7790 = vld [vmem:[%s11 + $0x624] sm:$0xf]
    %v7791 = vld [vmem:[%s11 + $0x628] sm:$0xf]
    %v7792 = vld [vmem:[%s11 + $0x62c] sm:$0xf]
    %v7793 = vld [vmem:[%s11 + $0x630] sm:$0xf]
    %v7794 = vld [vmem:[%s11 + $0x634] sm:$0xf]
    %v7795 = vld [vmem:[%s11 + $0x638] sm:$0xf]
    %v7796 = vld [vmem:[%s11 + $0x63c] sm:$0xf]
    %v7797 = vld [vmem:[%s11 + $0x640] sm:$0xf]
    %v7798 = vld [vmem:[%s11 + $0x644] sm:$0xf]
    %v7799 = vld [vmem:[%s11 + $0x648] sm:$0xf]
    %v7800 = vld [vmem:[%s11 + $0x64c] sm:$0xf]
    %v7801 = vld [vmem:[%s11 + $0x650] sm:$0xf]
    %v7802 = vld [vmem:[%s11 + $0x654] sm:$0xf]
    %v7803 = vld [vmem:[%s11 + $0x658] sm:$0xf]
    %v7804 = vld [vmem:[%s11 + $0x65c] sm:$0xf]
    %v7805 = vld [vmem:[%s11 + $0x660] sm:$0xf]
    %v7806 = vld [vmem:[%s11 + $0x664] sm:$0xf]
    %v7807 = vld [vmem:[%s11 + $0x668] sm:$0xf]
    %v7808 = vld [vmem:[%s11 + $0x66c] sm:$0xf]
    %v7809 = vld [vmem:[%s11 + $0x670] sm:$0xf]
    %v7810 = vld [vmem:[%s11 + $0x674] sm:$0xf]
    %v7811 = vld [vmem:[%s11 + $0x678] sm:$0xf]
    %v7812 = vld [vmem:[%s11 + $0x67c] sm:$0xf]
    %v7813 = vld [vmem:[%s11 + $0x680] sm:$0xf]
    %v7814 = vld [vmem:[%s11 + $0x684] sm:$0xf]
    %v7815 = vld [vmem:[%s11 + $0x688] sm:$0xf]
    %v7816 = vld [vmem:[%s11 + $0x68c] sm:$0xf]
    %v7817 = vld [vmem:[%s11 + $0x690] sm:$0xf]
    %v7818 = vld [vmem:[%s11 + $0x694] sm:$0xf]
    %v7819 = vld [vmem:[%s11 + $0x698] sm:$0xf]
    %v7820 = vld [vmem:[%s11 + $0x69c] sm:$0xf]
    %v7821 = vld [vmem:[%s11 + $0x6a0] sm:$0xf]
    %v7822 = vld [vmem:[%s11 + $0x6a4] sm:$0xf]
    %v7823 = vld [vmem:[%s11 + $0x6a8] sm:$0xf]
    %v7824 = vld [vmem:[%s11 + $0x6ac] sm:$0xf]
    %v7825 = vld [vmem:[%s11 + $0x6b0] sm:$0xf]
    %v7826 = vld [vmem:[%s11 + $0x6b4] sm:$0xf]
    %v7827 = vld [vmem:[%s11 + $0x6b8] sm:$0xf]
    %v7828 = vld [vmem:[%s11 + $0x6bc] sm:$0xf]
    %v7829 = vld [vmem:[%s11 + $0x6c0] sm:$0xf]
    %v7830 = vld [vmem:[%s11 + $0x6c4] sm:$0xf]
    %v7831 = vld [vmem:[%s11 + $0x6c8] sm:$0xf]
    %v7832 = vld [vmem:[%s11 + $0x6cc] sm:$0xf]
    %v7833 = vld [vmem:[%s11 + $0x6d0] sm:$0xf]
    %v7834 = vld [vmem:[%s11 + $0x6d4] sm:$0xf]
    %v7835 = vld [vmem:[%s11 + $0x6d8] sm:$0xf]
    %v7836 = vld [vmem:[%s11 + $0x6dc] sm:$0xf]
    %v7837 = vld [vmem:[%s11 + $0x6e0] sm:$0xf]
    %v7838 = vld [vmem:[%s11 + $0x6e4] sm:$0xf]
    %v7839 = vld [vmem:[%s11 + $0x6e8] sm:$0xf]
    %v7840 = vld [vmem:[%s11 + $0x6ec] sm:$0xf]
    %v7841 = vld [vmem:[%s11 + $0x6f0] sm:$0xf]
    %v7842 = vld [vmem:[%s11 + $0x6f4] sm:$0xf]
    %v7843 = vld [vmem:[%s11 + $0x6f8] sm:$0xf]
    %v7844 = vld [vmem:[%s11 + $0x6fc] sm:$0xf]
    %v7845 = vld [vmem:[%s11 + $0x700] sm:$0xf]
    %v7846 = vld [vmem:[%s11 + $0x704] sm:$0xf]
    %v7847 = vld [vmem:[%s11 + $0x708] sm:$0xf]
    %v7848 = vld [vmem:[%s11 + $0x70c] sm:$0xf]
    %v7849 = vld [vmem:[%s11 + $0x710] sm:$0xf]
    %v7850 = vld [vmem:[%s11 + $0x714] sm:$0xf]
    %v7851 = vld [vmem:[%s11 + $0x718] sm:$0xf]
    %v7852 = vld [vmem:[%s11 + $0x71c] sm:$0xf]
    %v7853 = vld [vmem:[%s11 + $0x720] sm:$0xf]
    %v7854 = vld [vmem:[%s11 + $0x724] sm:$0xf]
    %v7855 = vld [vmem:[%s11 + $0x728] sm:$0xf]
    %v7856 = vld [vmem:[%s11 + $0x72c] sm:$0xf]
    %v7857 = vld [vmem:[%s11 + $0x730] sm:$0xf]
    %v7858 = vld [vmem:[%s11 + $0x734] sm:$0xf]
    %v7859 = vld [vmem:[%s11 + $0x738] sm:$0xf]
    %v7860 = vld [vmem:[%s11 + $0x73c] sm:$0xf]
    %v7861 = vld [vmem:[%s11 + $0x740] sm:$0xf]
    %v7862 = vld [vmem:[%s11 + $0x744] sm:$0xf]
    %v7863 = vld [vmem:[%s11 + $0x748] sm:$0xf]
    %v7864 = vld [vmem:[%s11 + $0x74c] sm:$0xf]
    %v7865 = vld [vmem:[%s11 + $0x750] sm:$0xf]
    %v7866 = vld [vmem:[%s11 + $0x754] sm:$0xf]
    %v7867 = vld [vmem:[%s11 + $0x758] sm:$0xf]
    %v7868 = vld [vmem:[%s11 + $0x75c] sm:$0xf]
    %v7869 = vld [vmem:[%s11 + $0x760] sm:$0xf]
    %v7870 = vld [vmem:[%s11 + $0x764] sm:$0xf]
    %v7871 = vld [vmem:[%s11 + $0x768] sm:$0xf]
    %v7872 = vld [vmem:[%s11 + $0x76c] sm:$0xf]
    %v7873 = vld [vmem:[%s11 + $0x770] sm:$0xf]
    %v7874 = vld [vmem:[%s11 + $0x774] sm:$0xf]
    %v7875 = vld [vmem:[%s11 + $0x778] sm:$0xf]
    %v7876 = vld [vmem:[%s11 + $0x77c] sm:$0xf]
    %v7877 = vld [vmem:[%s11 + $0x780] sm:$0xf]
    %v7878 = vld [vmem:[%s11 + $0x784] sm:$0xf]
    %v7879 = vld [vmem:[%s11 + $0x788] sm:$0xf]
    %v7880 = vld [vmem:[%s11 + $0x78c] sm:$0xf]
    %v7881 = vld [vmem:[%s11 + $0x790] sm:$0xf]
    %v7882 = vld [vmem:[%s11 + $0x794] sm:$0xf]
    %v7883 = vld [vmem:[%s11 + $0x798] sm:$0xf]
    %v7884 = vld [vmem:[%s11 + $0x79c] sm:$0xf]
    %v7885 = vld [vmem:[%s11 + $0x7a0] sm:$0xf]
    %v7886 = vld [vmem:[%s11 + $0x7a4] sm:$0xf]
    %v7887 = vld [vmem:[%s11 + $0x7a8] sm:$0xf]
    %v7888 = vld [vmem:[%s11 + $0x7ac] sm:$0xf]
    %v7889 = vld [vmem:[%s11 + $0x7b0] sm:$0xf]
    %v7890 = vld [vmem:[%s11 + $0x7b4] sm:$0xf]
    %v7891 = vld [vmem:[%s11 + $0x7b8] sm:$0xf]
    %v7892 = vld [vmem:[%s11 + $0x7bc] sm:$0xf]
    %v7893 = vld [vmem:[%s11 + $0x7c0] sm:$0xf]
    %v7894 = vld [vmem:[%s11 + $0x7c4] sm:$0xf]
    %v7895 = vld [vmem:[%s11 + $0x7c8] sm:$0xf]
    %v7896 = vld [vmem:[%s11 + $0x7cc] sm:$0xf]
    %v7897 = vld [vmem:[%s11 + $0x7d0] sm:$0xf]
    %v7898 = vld [vmem:[%s11 + $0x7d4] sm:$0xf]
    %v7899 = vld [vmem:[%s11 + $0x7d8] sm:$0xf]
    %v7900 = vld [vmem:[%s11 + $0x7dc] sm:$0xf]
    %v7901 = vld [vmem:[%s11 + $0x7e0] sm:$0xf]
    %v7902 = vld [vmem:[%s11 + $0x7e4] sm:$0xf]
    %v7903 = vld [vmem:[%s11 + $0x7e8] sm:$0xf]
    %v7904 = vld [vmem:[%s11 + $0x7ec] sm:$0xf]
    %v7905 = vld [vmem:[%s11 + $0x7f0] sm:$0xf]
    %v7906 = vld [vmem:[%s11 + $0x7f4] sm:$0xf]
    %v7907 = vld [vmem:[%s11 + $0x7f8] sm:$0xf]
    %v7908 = vld [vmem:[%s11 + $0x7fc] sm:$0xf]
    %v7909 = vld [vmem:[%s12] sm:$0x1]
    %v7911 = vlaneseq
    %v7912 = vshrl.u32 %v7911, 7
    %v7913 = vsub.s32 0, %v7912
    %v7914 = vrot.slane %v7909, %v7913
    %v8428 = vunpack.c.l.b16 %v7397
    %v8429 = vunpack.c.l.b16 %v7398
    %v8430 = vunpack.c.l.b16 %v7399
    %v8431 = vunpack.c.l.b16 %v7400
    %v8432 = vunpack.c.l.b16 %v7401
    %v8433 = vunpack.c.l.b16 %v7402
    %v8434 = vunpack.c.l.b16 %v7403
    %v8435 = vunpack.c.l.b16 %v7404
    %v8436 = vunpack.c.l.b16 %v7405
    %v8437 = vunpack.c.l.b16 %v7406
    %v8438 = vunpack.c.l.b16 %v7407
    %v8439 = vunpack.c.l.b16 %v7408
    %v8440 = vunpack.c.l.b16 %v7409
    %v8441 = vunpack.c.l.b16 %v7410
    %v8442 = vunpack.c.l.b16 %v7411
    %v8443 = vunpack.c.l.b16 %v7412
    %v8444 = vunpack.c.l.b16 %v7413
    %v8445 = vunpack.c.l.b16 %v7414
    %v8446 = vunpack.c.l.b16 %v7415
    %v8447 = vunpack.c.l.b16 %v7416
    %v8448 = vunpack.c.l.b16 %v7417
    %v8449 = vunpack.c.l.b16 %v7418
    %v8450 = vunpack.c.l.b16 %v7419
    %v8451 = vunpack.c.l.b16 %v7420
    %v8452 = vunpack.c.l.b16 %v7421
    %v8453 = vunpack.c.l.b16 %v7422
    %v8454 = vunpack.c.l.b16 %v7423
    %v8455 = vunpack.c.l.b16 %v7424
    %v8456 = vunpack.c.l.b16 %v7425
    %v8457 = vunpack.c.l.b16 %v7426
    %v8458 = vunpack.c.l.b16 %v7427
    %v8459 = vunpack.c.l.b16 %v7428
    %v8460 = vunpack.c.l.b16 %v7429
    %v8461 = vunpack.c.l.b16 %v7430
    %v8462 = vunpack.c.l.b16 %v7431
    %v8463 = vunpack.c.l.b16 %v7432
    %v8464 = vunpack.c.l.b16 %v7433
    %v8465 = vunpack.c.l.b16 %v7434
    %v8466 = vunpack.c.l.b16 %v7435
    %v8467 = vunpack.c.l.b16 %v7436
    %v8468 = vunpack.c.l.b16 %v7437
    %v8469 = vunpack.c.l.b16 %v7438
    %v8470 = vunpack.c.l.b16 %v7439
    %v8471 = vunpack.c.l.b16 %v7440
    %v8472 = vunpack.c.l.b16 %v7441
    %v8473 = vunpack.c.l.b16 %v7442
    %v8474 = vunpack.c.l.b16 %v7443
    %v8475 = vunpack.c.l.b16 %v7444
    %v8476 = vunpack.c.l.b16 %v7445
    %v8477 = vunpack.c.l.b16 %v7446
    %v8478 = vunpack.c.l.b16 %v7447
    %v8479 = vunpack.c.l.b16 %v7448
    %v8480 = vunpack.c.l.b16 %v7449
    %v8481 = vunpack.c.l.b16 %v7450
    %v8482 = vunpack.c.l.b16 %v7451
    %v8483 = vunpack.c.l.b16 %v7452
    %v8484 = vunpack.c.l.b16 %v7453
    %v8485 = vunpack.c.l.b16 %v7454
    %v8486 = vunpack.c.l.b16 %v7455
    %v8487 = vunpack.c.l.b16 %v7456
    %v8488 = vunpack.c.l.b16 %v7457
    %v8489 = vunpack.c.l.b16 %v7458
    %v8490 = vunpack.c.l.b16 %v7459
    %v8491 = vunpack.c.l.b16 %v7460
    %v8492 = vunpack.c.l.b16 %v7461
    %v8493 = vunpack.c.l.b16 %v7462
    %v8494 = vunpack.c.l.b16 %v7463
    %v8495 = vunpack.c.l.b16 %v7464
    %v8496 = vunpack.c.l.b16 %v7465
    %v8497 = vunpack.c.l.b16 %v7466
    %v8498 = vunpack.c.l.b16 %v7467
    %v8499 = vunpack.c.l.b16 %v7468
    %v8500 = vunpack.c.l.b16 %v7469
    %v8501 = vunpack.c.l.b16 %v7470
    %v8502 = vunpack.c.l.b16 %v7471
    %v8503 = vunpack.c.l.b16 %v7472
    %v8504 = vunpack.c.l.b16 %v7473
    %v8505 = vunpack.c.l.b16 %v7474
    %v8506 = vunpack.c.l.b16 %v7475
    %v8507 = vunpack.c.l.b16 %v7476
    %v8508 = vunpack.c.l.b16 %v7477
    %v8509 = vunpack.c.l.b16 %v7478
    %v8510 = vunpack.c.l.b16 %v7479
    %v8511 = vunpack.c.l.b16 %v7480
    %v8512 = vunpack.c.l.b16 %v7481
    %v8513 = vunpack.c.l.b16 %v7482
    %v8514 = vunpack.c.l.b16 %v7483
    %v8515 = vunpack.c.l.b16 %v7484
    %v8516 = vunpack.c.l.b16 %v7485
    %v8517 = vunpack.c.l.b16 %v7486
    %v8518 = vunpack.c.l.b16 %v7487
    %v8519 = vunpack.c.l.b16 %v7488
    %v8520 = vunpack.c.l.b16 %v7489
    %v8521 = vunpack.c.l.b16 %v7490
    %v8522 = vunpack.c.l.b16 %v7491
    %v8523 = vunpack.c.l.b16 %v7492
    %v8524 = vunpack.c.l.b16 %v7493
    %v8525 = vunpack.c.l.b16 %v7494
    %v8526 = vunpack.c.l.b16 %v7495
    %v8527 = vunpack.c.l.b16 %v7496
    %v8528 = vunpack.c.l.b16 %v7497
    %v8529 = vunpack.c.l.b16 %v7498
    %v8530 = vunpack.c.l.b16 %v7499
    %v8531 = vunpack.c.l.b16 %v7500
    %v8532 = vunpack.c.l.b16 %v7501
    %v8533 = vunpack.c.l.b16 %v7502
    %v8534 = vunpack.c.l.b16 %v7503
    %v8535 = vunpack.c.l.b16 %v7504
    %v8536 = vunpack.c.l.b16 %v7505
    %v8537 = vunpack.c.l.b16 %v7506
    %v8538 = vunpack.c.l.b16 %v7507
    %v8539 = vunpack.c.l.b16 %v7508
    %v8540 = vunpack.c.l.b16 %v7509
    %v8541 = vunpack.c.l.b16 %v7510
    %v8542 = vunpack.c.l.b16 %v7511
    %v8543 = vunpack.c.l.b16 %v7512
    %v8544 = vunpack.c.l.b16 %v7513
    %v8545 = vunpack.c.l.b16 %v7514
    %v8546 = vunpack.c.l.b16 %v7515
    %v8547 = vunpack.c.l.b16 %v7516
    %v8548 = vunpack.c.l.b16 %v7517
    %v8549 = vunpack.c.l.b16 %v7518
    %v8550 = vunpack.c.l.b16 %v7519
    %v8551 = vunpack.c.l.b16 %v7520
    %v8552 = vunpack.c.l.b16 %v7521
    %v8553 = vunpack.c.l.b16 %v7522
    %v8554 = vunpack.c.l.b16 %v7523
    %v8555 = vunpack.c.l.b16 %v7524
    %v8556 = vunpack.c.l.b16 %v7525
    %v8557 = vunpack.c.l.b16 %v7526
    %v8558 = vunpack.c.l.b16 %v7527
    %v8559 = vunpack.c.l.b16 %v7528
    %v8560 = vunpack.c.l.b16 %v7529
    %v8561 = vunpack.c.l.b16 %v7530
    %v8562 = vunpack.c.l.b16 %v7531
    %v8563 = vunpack.c.l.b16 %v7532
    %v8564 = vunpack.c.l.b16 %v7533
    %v8565 = vunpack.c.l.b16 %v7534
    %v8566 = vunpack.c.l.b16 %v7535
    %v8567 = vunpack.c.l.b16 %v7536
    %v8568 = vunpack.c.l.b16 %v7537
    %v8569 = vunpack.c.l.b16 %v7538
    %v8570 = vunpack.c.l.b16 %v7539
    %v8571 = vunpack.c.l.b16 %v7540
    %v8572 = vunpack.c.l.b16 %v7541
    %v8573 = vunpack.c.l.b16 %v7542
    %v8574 = vunpack.c.l.b16 %v7543
    %v8575 = vunpack.c.l.b16 %v7544
    %v8576 = vunpack.c.l.b16 %v7545
    %v8577 = vunpack.c.l.b16 %v7546
    %v8578 = vunpack.c.l.b16 %v7547
    %v8579 = vunpack.c.l.b16 %v7548
    %v8580 = vunpack.c.l.b16 %v7549
    %v8581 = vunpack.c.l.b16 %v7550
    %v8582 = vunpack.c.l.b16 %v7551
    %v8583 = vunpack.c.l.b16 %v7552
    %v8584 = vunpack.c.l.b16 %v7553
    %v8585 = vunpack.c.l.b16 %v7554
    %v8586 = vunpack.c.l.b16 %v7555
    %v8587 = vunpack.c.l.b16 %v7556
    %v8588 = vunpack.c.l.b16 %v7557
    %v8589 = vunpack.c.l.b16 %v7558
    %v8590 = vunpack.c.l.b16 %v7559
    %v8591 = vunpack.c.l.b16 %v7560
    %v8592 = vunpack.c.l.b16 %v7561
    %v8593 = vunpack.c.l.b16 %v7562
    %v8594 = vunpack.c.l.b16 %v7563
    %v8595 = vunpack.c.l.b16 %v7564
    %v8596 = vunpack.c.l.b16 %v7565
    %v8597 = vunpack.c.l.b16 %v7566
    %v8598 = vunpack.c.l.b16 %v7567
    %v8599 = vunpack.c.l.b16 %v7568
    %v8600 = vunpack.c.l.b16 %v7569
    %v8601 = vunpack.c.l.b16 %v7570
    %v8602 = vunpack.c.l.b16 %v7571
    %v8603 = vunpack.c.l.b16 %v7572
    %v8604 = vunpack.c.l.b16 %v7573
    %v8605 = vunpack.c.l.b16 %v7574
    %v8606 = vunpack.c.l.b16 %v7575
    %v8607 = vunpack.c.l.b16 %v7576
    %v8608 = vunpack.c.l.b16 %v7577
    %v8609 = vunpack.c.l.b16 %v7578
    %v8610 = vunpack.c.l.b16 %v7579
    %v8611 = vunpack.c.l.b16 %v7580
    %v8612 = vunpack.c.l.b16 %v7581
    %v8613 = vunpack.c.l.b16 %v7582
    %v8614 = vunpack.c.l.b16 %v7583
    %v8615 = vunpack.c.l.b16 %v7584
    %v8616 = vunpack.c.l.b16 %v7585
    %v8617 = vunpack.c.l.b16 %v7586
    %v8618 = vunpack.c.l.b16 %v7587
    %v8619 = vunpack.c.l.b16 %v7588
    %v8620 = vunpack.c.l.b16 %v7589
    %v8621 = vunpack.c.l.b16 %v7590
    %v8622 = vunpack.c.l.b16 %v7591
    %v8623 = vunpack.c.l.b16 %v7592
    %v8624 = vunpack.c.l.b16 %v7593
    %v8625 = vunpack.c.l.b16 %v7594
    %v8626 = vunpack.c.l.b16 %v7595
    %v8627 = vunpack.c.l.b16 %v7596
    %v8628 = vunpack.c.l.b16 %v7597
    %v8629 = vunpack.c.l.b16 %v7598
    %v8630 = vunpack.c.l.b16 %v7599
    %v8631 = vunpack.c.l.b16 %v7600
    %v8632 = vunpack.c.l.b16 %v7601
    %v8633 = vunpack.c.l.b16 %v7602
    %v8634 = vunpack.c.l.b16 %v7603
    %v8635 = vunpack.c.l.b16 %v7604
    %v8636 = vunpack.c.l.b16 %v7605
    %v8637 = vunpack.c.l.b16 %v7606
    %v8638 = vunpack.c.l.b16 %v7607
    %v8639 = vunpack.c.l.b16 %v7608
    %v8640 = vunpack.c.l.b16 %v7609
    %v8641 = vunpack.c.l.b16 %v7610
    %v8642 = vunpack.c.l.b16 %v7611
    %v8643 = vunpack.c.l.b16 %v7612
    %v8644 = vunpack.c.l.b16 %v7613
    %v8645 = vunpack.c.l.b16 %v7614
    %v8646 = vunpack.c.l.b16 %v7615
    %v8647 = vunpack.c.l.b16 %v7616
    %v8648 = vunpack.c.l.b16 %v7617
    %v8649 = vunpack.c.l.b16 %v7618
    %v8650 = vunpack.c.l.b16 %v7619
    %v8651 = vunpack.c.l.b16 %v7620
    %v8652 = vunpack.c.l.b16 %v7621
    %v8653 = vunpack.c.l.b16 %v7622
    %v8654 = vunpack.c.l.b16 %v7623
    %v8655 = vunpack.c.l.b16 %v7624
    %v8656 = vunpack.c.l.b16 %v7625
    %v8657 = vunpack.c.l.b16 %v7626
    %v8658 = vunpack.c.l.b16 %v7627
    %v8659 = vunpack.c.l.b16 %v7628
    %v8660 = vunpack.c.l.b16 %v7629
    %v8661 = vunpack.c.l.b16 %v7630
    %v8662 = vunpack.c.l.b16 %v7631
    %v8663 = vunpack.c.l.b16 %v7632
    %v8664 = vunpack.c.l.b16 %v7633
    %v8665 = vunpack.c.l.b16 %v7634
    %v8666 = vunpack.c.l.b16 %v7635
    %v8667 = vunpack.c.l.b16 %v7636
    %v8668 = vunpack.c.l.b16 %v7637
    %v8669 = vunpack.c.l.b16 %v7638
    %v8670 = vunpack.c.l.b16 %v7639
    %v8671 = vunpack.c.l.b16 %v7640
    %v8672 = vunpack.c.l.b16 %v7641
    %v8673 = vunpack.c.l.b16 %v7642
    %v8674 = vunpack.c.l.b16 %v7643
    %v8675 = vunpack.c.l.b16 %v7644
    %v8676 = vunpack.c.l.b16 %v7645
    %v8677 = vunpack.c.l.b16 %v7646
    %v8678 = vunpack.c.l.b16 %v7647
    %v8679 = vunpack.c.l.b16 %v7648
    %v8680 = vunpack.c.l.b16 %v7649
    %v8681 = vunpack.c.l.b16 %v7650
    %v8682 = vunpack.c.l.b16 %v7651
    %v8683 = vunpack.c.l.b16 %v7652
    %v8684 = vunpack.c.l.b16 %v7653
    %v8685 = vunpack.c.l.b16 %v7654
    %v8686 = vunpack.c.l.b16 %v7655
    %v8687 = vunpack.c.l.b16 %v7656
    %v8688 = vunpack.c.l.b16 %v7657
    %v8689 = vunpack.c.l.b16 %v7658
    %v8690 = vunpack.c.l.b16 %v7659
    %v8691 = vunpack.c.l.b16 %v7660
    %v8692 = vunpack.c.l.b16 %v7661
    %v8693 = vunpack.c.l.b16 %v7662
    %v8694 = vunpack.c.l.b16 %v7663
    %v8695 = vunpack.c.l.b16 %v7664
    %v8696 = vunpack.c.l.b16 %v7665
    %v8697 = vunpack.c.l.b16 %v7666
    %v8698 = vunpack.c.l.b16 %v7667
    %v8699 = vunpack.c.l.b16 %v7668
    %v8700 = vunpack.c.l.b16 %v7669
    %v8701 = vunpack.c.l.b16 %v7670
    %v8702 = vunpack.c.l.b16 %v7671
    %v8703 = vunpack.c.l.b16 %v7672
    %v8704 = vunpack.c.l.b16 %v7673
    %v8705 = vunpack.c.l.b16 %v7674
    %v8706 = vunpack.c.l.b16 %v7675
    %v8707 = vunpack.c.l.b16 %v7676
    %v8708 = vunpack.c.l.b16 %v7677
    %v8709 = vunpack.c.l.b16 %v7678
    %v8710 = vunpack.c.l.b16 %v7679
    %v8711 = vunpack.c.l.b16 %v7680
    %v8712 = vunpack.c.l.b16 %v7681
    %v8713 = vunpack.c.l.b16 %v7682
    %v8714 = vunpack.c.l.b16 %v7683
    %v8715 = vunpack.c.l.b16 %v7684
    %v8716 = vunpack.c.l.b16 %v7685
    %v8717 = vunpack.c.l.b16 %v7686
    %v8718 = vunpack.c.l.b16 %v7687
    %v8719 = vunpack.c.l.b16 %v7688
    %v8720 = vunpack.c.l.b16 %v7689
    %v8721 = vunpack.c.l.b16 %v7690
    %v8722 = vunpack.c.l.b16 %v7691
    %v8723 = vunpack.c.l.b16 %v7692
    %v8724 = vunpack.c.l.b16 %v7693
    %v8725 = vunpack.c.l.b16 %v7694
    %v8726 = vunpack.c.l.b16 %v7695
    %v8727 = vunpack.c.l.b16 %v7696
    %v8728 = vunpack.c.l.b16 %v7697
    %v8729 = vunpack.c.l.b16 %v7698
    %v8730 = vunpack.c.l.b16 %v7699
    %v8731 = vunpack.c.l.b16 %v7700
    %v8732 = vunpack.c.l.b16 %v7701
    %v8733 = vunpack.c.l.b16 %v7702
    %v8734 = vunpack.c.l.b16 %v7703
    %v8735 = vunpack.c.l.b16 %v7704
    %v8736 = vunpack.c.l.b16 %v7705
    %v8737 = vunpack.c.l.b16 %v7706
    %v8738 = vunpack.c.l.b16 %v7707
    %v8739 = vunpack.c.l.b16 %v7708
    %v8740 = vunpack.c.l.b16 %v7709
    %v8741 = vunpack.c.l.b16 %v7710
    %v8742 = vunpack.c.l.b16 %v7711
    %v8743 = vunpack.c.l.b16 %v7712
    %v8744 = vunpack.c.l.b16 %v7713
    %v8745 = vunpack.c.l.b16 %v7714
    %v8746 = vunpack.c.l.b16 %v7715
    %v8747 = vunpack.c.l.b16 %v7716
    %v8748 = vunpack.c.l.b16 %v7717
    %v8749 = vunpack.c.l.b16 %v7718
    %v8750 = vunpack.c.l.b16 %v7719
    %v8751 = vunpack.c.l.b16 %v7720
    %v8752 = vunpack.c.l.b16 %v7721
    %v8753 = vunpack.c.l.b16 %v7722
    %v8754 = vunpack.c.l.b16 %v7723
    %v8755 = vunpack.c.l.b16 %v7724
    %v8756 = vunpack.c.l.b16 %v7725
    %v8757 = vunpack.c.l.b16 %v7726
    %v8758 = vunpack.c.l.b16 %v7727
    %v8759 = vunpack.c.l.b16 %v7728
    %v8760 = vunpack.c.l.b16 %v7729
    %v8761 = vunpack.c.l.b16 %v7730
    %v8762 = vunpack.c.l.b16 %v7731
    %v8763 = vunpack.c.l.b16 %v7732
    %v8764 = vunpack.c.l.b16 %v7733
    %v8765 = vunpack.c.l.b16 %v7734
    %v8766 = vunpack.c.l.b16 %v7735
    %v8767 = vunpack.c.l.b16 %v7736
    %v8768 = vunpack.c.l.b16 %v7737
    %v8769 = vunpack.c.l.b16 %v7738
    %v8770 = vunpack.c.l.b16 %v7739
    %v8771 = vunpack.c.l.b16 %v7740
    %v8772 = vunpack.c.l.b16 %v7741
    %v8773 = vunpack.c.l.b16 %v7742
    %v8774 = vunpack.c.l.b16 %v7743
    %v8775 = vunpack.c.l.b16 %v7744
    %v8776 = vunpack.c.l.b16 %v7745
    %v8777 = vunpack.c.l.b16 %v7746
    %v8778 = vunpack.c.l.b16 %v7747
    %v8779 = vunpack.c.l.b16 %v7748
    %v8780 = vunpack.c.l.b16 %v7749
    %v8781 = vunpack.c.l.b16 %v7750
    %v8782 = vunpack.c.l.b16 %v7751
    %v8783 = vunpack.c.l.b16 %v7752
    %v8784 = vunpack.c.l.b16 %v7753
    %v8785 = vunpack.c.l.b16 %v7754
    %v8786 = vunpack.c.l.b16 %v7755
    %v8787 = vunpack.c.l.b16 %v7756
    %v8788 = vunpack.c.l.b16 %v7757
    %v8789 = vunpack.c.l.b16 %v7758
    %v8790 = vunpack.c.l.b16 %v7759
    %v8791 = vunpack.c.l.b16 %v7760
    %v8792 = vunpack.c.l.b16 %v7761
    %v8793 = vunpack.c.l.b16 %v7762
    %v8794 = vunpack.c.l.b16 %v7763
    %v8795 = vunpack.c.l.b16 %v7764
    %v8796 = vunpack.c.l.b16 %v7765
    %v8797 = vunpack.c.l.b16 %v7766
    %v8798 = vunpack.c.l.b16 %v7767
    %v8799 = vunpack.c.l.b16 %v7768
    %v8800 = vunpack.c.l.b16 %v7769
    %v8801 = vunpack.c.l.b16 %v7770
    %v8802 = vunpack.c.l.b16 %v7771
    %v8803 = vunpack.c.l.b16 %v7772
    %v8804 = vunpack.c.l.b16 %v7773
    %v8805 = vunpack.c.l.b16 %v7774
    %v8806 = vunpack.c.l.b16 %v7775
    %v8807 = vunpack.c.l.b16 %v7776
    %v8808 = vunpack.c.l.b16 %v7777
    %v8809 = vunpack.c.l.b16 %v7778
    %v8810 = vunpack.c.l.b16 %v7779
    %v8811 = vunpack.c.l.b16 %v7780
    %v8812 = vunpack.c.l.b16 %v7781
    %v8813 = vunpack.c.l.b16 %v7782
    %v8814 = vunpack.c.l.b16 %v7783
    %v8815 = vunpack.c.l.b16 %v7784
    %v8816 = vunpack.c.l.b16 %v7785
    %v8817 = vunpack.c.l.b16 %v7786
    %v8818 = vunpack.c.l.b16 %v7787
    %v8819 = vunpack.c.l.b16 %v7788
    %v8820 = vunpack.c.l.b16 %v7789
    %v8821 = vunpack.c.l.b16 %v7790
    %v8822 = vunpack.c.l.b16 %v7791
    %v8823 = vunpack.c.l.b16 %v7792
    %v8824 = vunpack.c.l.b16 %v7793
    %v8825 = vunpack.c.l.b16 %v7794
    %v8826 = vunpack.c.l.b16 %v7795
    %v8827 = vunpack.c.l.b16 %v7796
    %v8828 = vunpack.c.l.b16 %v7797
    %v8829 = vunpack.c.l.b16 %v7798
    %v8830 = vunpack.c.l.b16 %v7799
    %v8831 = vunpack.c.l.b16 %v7800
    %v8832 = vunpack.c.l.b16 %v7801
    %v8833 = vunpack.c.l.b16 %v7802
    %v8834 = vunpack.c.l.b16 %v7803
    %v8835 = vunpack.c.l.b16 %v7804
    %v8836 = vunpack.c.l.b16 %v7805
    %v8837 = vunpack.c.l.b16 %v7806
    %v8838 = vunpack.c.l.b16 %v7807
    %v8839 = vunpack.c.l.b16 %v7808
    %v8840 = vunpack.c.l.b16 %v7809
    %v8841 = vunpack.c.l.b16 %v7810
    %v8842 = vunpack.c.l.b16 %v7811
    %v8843 = vunpack.c.l.b16 %v7812
    %v8844 = vunpack.c.l.b16 %v7813
    %v8845 = vunpack.c.l.b16 %v7814
    %v8846 = vunpack.c.l.b16 %v7815
    %v8847 = vunpack.c.l.b16 %v7816
    %v8848 = vunpack.c.l.b16 %v7817
    %v8849 = vunpack.c.l.b16 %v7818
    %v8850 = vunpack.c.l.b16 %v7819
    %v8851 = vunpack.c.l.b16 %v7820
    %v8852 = vunpack.c.l.b16 %v7821
    %v8853 = vunpack.c.l.b16 %v7822
    %v8854 = vunpack.c.l.b16 %v7823
    %v8855 = vunpack.c.l.b16 %v7824
    %v8856 = vunpack.c.l.b16 %v7825
    %v8857 = vunpack.c.l.b16 %v7826
    %v8858 = vunpack.c.l.b16 %v7827
    %v8859 = vunpack.c.l.b16 %v7828
    %v8860 = vunpack.c.l.b16 %v7829
    %v8861 = vunpack.c.l.b16 %v7830
    %v8862 = vunpack.c.l.b16 %v7831
    %v8863 = vunpack.c.l.b16 %v7832
    %v8864 = vunpack.c.l.b16 %v7833
    %v8865 = vunpack.c.l.b16 %v7834
    %v8866 = vunpack.c.l.b16 %v7835
    %v8867 = vunpack.c.l.b16 %v7836
    %v8868 = vunpack.c.l.b16 %v7837
    %v8869 = vunpack.c.l.b16 %v7838
    %v8870 = vunpack.c.l.b16 %v7839
    %v8871 = vunpack.c.l.b16 %v7840
    %v8872 = vunpack.c.l.b16 %v7841
    %v8873 = vunpack.c.l.b16 %v7842
    %v8874 = vunpack.c.l.b16 %v7843
    %v8875 = vunpack.c.l.b16 %v7844
    %v8876 = vunpack.c.l.b16 %v7845
    %v8877 = vunpack.c.l.b16 %v7846
    %v8878 = vunpack.c.l.b16 %v7847
    %v8879 = vunpack.c.l.b16 %v7848
    %v8880 = vunpack.c.l.b16 %v7849
    %v8881 = vunpack.c.l.b16 %v7850
    %v8882 = vunpack.c.l.b16 %v7851
    %v8883 = vunpack.c.l.b16 %v7852
    %v8884 = vunpack.c.l.b16 %v7853
    %v8885 = vunpack.c.l.b16 %v7854
    %v8886 = vunpack.c.l.b16 %v7855
    %v8887 = vunpack.c.l.b16 %v7856
    %v8888 = vunpack.c.l.b16 %v7857
    %v8889 = vunpack.c.l.b16 %v7858
    %v8890 = vunpack.c.l.b16 %v7859
    %v8891 = vunpack.c.l.b16 %v7860
    %v8892 = vunpack.c.l.b16 %v7861
    %v8893 = vunpack.c.l.b16 %v7862
    %v8894 = vunpack.c.l.b16 %v7863
    %v8895 = vunpack.c.l.b16 %v7864
    %v8896 = vunpack.c.l.b16 %v7865
    %v8897 = vunpack.c.l.b16 %v7866
    %v8898 = vunpack.c.l.b16 %v7867
    %v8899 = vunpack.c.l.b16 %v7868
    %v8900 = vunpack.c.l.b16 %v7869
    %v8901 = vunpack.c.l.b16 %v7870
    %v8902 = vunpack.c.l.b16 %v7871
    %v8903 = vunpack.c.l.b16 %v7872
    %v8904 = vunpack.c.l.b16 %v7873
    %v8905 = vunpack.c.l.b16 %v7874
    %v8906 = vunpack.c.l.b16 %v7875
    %v8907 = vunpack.c.l.b16 %v7876
    %v8908 = vunpack.c.l.b16 %v7877
    %v8909 = vunpack.c.l.b16 %v7878
    %v8910 = vunpack.c.l.b16 %v7879
    %v8911 = vunpack.c.l.b16 %v7880
    %v8912 = vunpack.c.l.b16 %v7881
    %v8913 = vunpack.c.l.b16 %v7882
    %v8914 = vunpack.c.l.b16 %v7883
    %v8915 = vunpack.c.l.b16 %v7884
    %v8916 = vunpack.c.l.b16 %v7885
    %v8917 = vunpack.c.l.b16 %v7886
    %v8918 = vunpack.c.l.b16 %v7887
    %v8919 = vunpack.c.l.b16 %v7888
    %v8920 = vunpack.c.l.b16 %v7889
    %v8921 = vunpack.c.l.b16 %v7890
    %v8922 = vunpack.c.l.b16 %v7891
    %v8923 = vunpack.c.l.b16 %v7892
    %v8924 = vunpack.c.l.b16 %v7893
    %v8925 = vunpack.c.l.b16 %v7894
    %v8926 = vunpack.c.l.b16 %v7895
    %v8927 = vunpack.c.l.b16 %v7896
    %v8928 = vunpack.c.l.b16 %v7897
    %v8929 = vunpack.c.l.b16 %v7898
    %v8930 = vunpack.c.l.b16 %v7899
    %v8931 = vunpack.c.l.b16 %v7900
    %v8932 = vunpack.c.l.b16 %v7901
    %v8933 = vunpack.c.l.b16 %v7902
    %v8934 = vunpack.c.l.b16 %v7903
    %v8935 = vunpack.c.l.b16 %v7904
    %v8936 = vunpack.c.l.b16 %v7905
    %v8937 = vunpack.c.l.b16 %v7906
    %v8938 = vunpack.c.l.b16 %v7907
    %v8939 = vunpack.c.l.b16 %v7908
    %v8940 = vpack.c.b16 %v8429, %v8428
    %v8941 = vpack.c.b16 %v8431, %v8430
    %v8942 = vpack.c.b16 %v8433, %v8432
    %v8943 = vpack.c.b16 %v8435, %v8434
    %v8944 = vpack.c.b16 %v8437, %v8436
    %v8945 = vpack.c.b16 %v8439, %v8438
    %v8946 = vpack.c.b16 %v8441, %v8440
    %v8947 = vpack.c.b16 %v8443, %v8442
    %v8948 = vpack.c.b16 %v8445, %v8444
    %v8949 = vpack.c.b16 %v8447, %v8446
    %v8950 = vpack.c.b16 %v8449, %v8448
    %v8951 = vpack.c.b16 %v8451, %v8450
    %v8952 = vpack.c.b16 %v8453, %v8452
    %v8953 = vpack.c.b16 %v8455, %v8454
    %v8954 = vpack.c.b16 %v8457, %v8456
    %v8955 = vpack.c.b16 %v8459, %v8458
    %v8956 = vpack.c.b16 %v8461, %v8460
    %v8957 = vpack.c.b16 %v8463, %v8462
    %v8958 = vpack.c.b16 %v8465, %v8464
    %v8959 = vpack.c.b16 %v8467, %v8466
    %v8960 = vpack.c.b16 %v8469, %v8468
    %v8961 = vpack.c.b16 %v8471, %v8470
    %v8962 = vpack.c.b16 %v8473, %v8472
    %v8963 = vpack.c.b16 %v8475, %v8474
    %v8964 = vpack.c.b16 %v8477, %v8476
    %v8965 = vpack.c.b16 %v8479, %v8478
    %v8966 = vpack.c.b16 %v8481, %v8480
    %v8967 = vpack.c.b16 %v8483, %v8482
    %v8968 = vpack.c.b16 %v8485, %v8484
    %v8969 = vpack.c.b16 %v8487, %v8486
    %v8970 = vpack.c.b16 %v8489, %v8488
    %v8971 = vpack.c.b16 %v8491, %v8490
    %v8972 = vpack.c.b16 %v8493, %v8492
    %v8973 = vpack.c.b16 %v8495, %v8494
    %v8974 = vpack.c.b16 %v8497, %v8496
    %v8975 = vpack.c.b16 %v8499, %v8498
    %v8976 = vpack.c.b16 %v8501, %v8500
    %v8977 = vpack.c.b16 %v8503, %v8502
    %v8978 = vpack.c.b16 %v8505, %v8504
    %v8979 = vpack.c.b16 %v8507, %v8506
    %v8980 = vpack.c.b16 %v8509, %v8508
    %v8981 = vpack.c.b16 %v8511, %v8510
    %v8982 = vpack.c.b16 %v8513, %v8512
    %v8983 = vpack.c.b16 %v8515, %v8514
    %v8984 = vpack.c.b16 %v8517, %v8516
    %v8985 = vpack.c.b16 %v8519, %v8518
    %v8986 = vpack.c.b16 %v8521, %v8520
    %v8987 = vpack.c.b16 %v8523, %v8522
    %v8988 = vpack.c.b16 %v8525, %v8524
    %v8989 = vpack.c.b16 %v8527, %v8526
    %v8990 = vpack.c.b16 %v8529, %v8528
    %v8991 = vpack.c.b16 %v8531, %v8530
    %v8992 = vpack.c.b16 %v8533, %v8532
    %v8993 = vpack.c.b16 %v8535, %v8534
    %v8994 = vpack.c.b16 %v8537, %v8536
    %v8995 = vpack.c.b16 %v8539, %v8538
    %v8996 = vpack.c.b16 %v8541, %v8540
    %v8997 = vpack.c.b16 %v8543, %v8542
    %v8998 = vpack.c.b16 %v8545, %v8544
    %v8999 = vpack.c.b16 %v8547, %v8546
    %v9000 = vpack.c.b16 %v8549, %v8548
    %v9001 = vpack.c.b16 %v8551, %v8550
    %v9002 = vpack.c.b16 %v8553, %v8552
    %v9003 = vpack.c.b16 %v8555, %v8554
    %v9004 = vpack.c.b16 %v8557, %v8556
    %v9005 = vpack.c.b16 %v8559, %v8558
    %v9006 = vpack.c.b16 %v8561, %v8560
    %v9007 = vpack.c.b16 %v8563, %v8562
    %v9008 = vpack.c.b16 %v8565, %v8564
    %v9009 = vpack.c.b16 %v8567, %v8566
    %v9010 = vpack.c.b16 %v8569, %v8568
    %v9011 = vpack.c.b16 %v8571, %v8570
    %v9012 = vpack.c.b16 %v8573, %v8572
    %v9013 = vpack.c.b16 %v8575, %v8574
    %v9014 = vpack.c.b16 %v8577, %v8576
    %v9015 = vpack.c.b16 %v8579, %v8578
    %v9016 = vpack.c.b16 %v8581, %v8580
    %v9017 = vpack.c.b16 %v8583, %v8582
    %v9018 = vpack.c.b16 %v8585, %v8584
    %v9019 = vpack.c.b16 %v8587, %v8586
    %v9020 = vpack.c.b16 %v8589, %v8588
    %v9021 = vpack.c.b16 %v8591, %v8590
    %v9022 = vpack.c.b16 %v8593, %v8592
    %v9023 = vpack.c.b16 %v8595, %v8594
    %v9024 = vpack.c.b16 %v8597, %v8596
    %v9025 = vpack.c.b16 %v8599, %v8598
    %v9026 = vpack.c.b16 %v8601, %v8600
    %v9027 = vpack.c.b16 %v8603, %v8602
    %v9028 = vpack.c.b16 %v8605, %v8604
    %v9029 = vpack.c.b16 %v8607, %v8606
    %v9030 = vpack.c.b16 %v8609, %v8608
    %v9031 = vpack.c.b16 %v8611, %v8610
    %v9032 = vpack.c.b16 %v8613, %v8612
    %v9033 = vpack.c.b16 %v8615, %v8614
    %v9034 = vpack.c.b16 %v8617, %v8616
    %v9035 = vpack.c.b16 %v8619, %v8618
    %v9036 = vpack.c.b16 %v8621, %v8620
    %v9037 = vpack.c.b16 %v8623, %v8622
    %v9038 = vpack.c.b16 %v8625, %v8624
    %v9039 = vpack.c.b16 %v8627, %v8626
    %v9040 = vpack.c.b16 %v8629, %v8628
    %v9041 = vpack.c.b16 %v8631, %v8630
    %v9042 = vpack.c.b16 %v8633, %v8632
    %v9043 = vpack.c.b16 %v8635, %v8634
    %v9044 = vpack.c.b16 %v8637, %v8636
    %v9045 = vpack.c.b16 %v8639, %v8638
    %v9046 = vpack.c.b16 %v8641, %v8640
    %v9047 = vpack.c.b16 %v8643, %v8642
    %v9048 = vpack.c.b16 %v8645, %v8644
    %v9049 = vpack.c.b16 %v8647, %v8646
    %v9050 = vpack.c.b16 %v8649, %v8648
    %v9051 = vpack.c.b16 %v8651, %v8650
    %v9052 = vpack.c.b16 %v8653, %v8652
    %v9053 = vpack.c.b16 %v8655, %v8654
    %v9054 = vpack.c.b16 %v8657, %v8656
    %v9055 = vpack.c.b16 %v8659, %v8658
    %v9056 = vpack.c.b16 %v8661, %v8660
    %v9057 = vpack.c.b16 %v8663, %v8662
    %v9058 = vpack.c.b16 %v8665, %v8664
    %v9059 = vpack.c.b16 %v8667, %v8666
    %v9060 = vpack.c.b16 %v8669, %v8668
    %v9061 = vpack.c.b16 %v8671, %v8670
    %v9062 = vpack.c.b16 %v8673, %v8672
    %v9063 = vpack.c.b16 %v8675, %v8674
    %v9064 = vpack.c.b16 %v8677, %v8676
    %v9065 = vpack.c.b16 %v8679, %v8678
    %v9066 = vpack.c.b16 %v8681, %v8680
    %v9067 = vpack.c.b16 %v8683, %v8682
    %v9068 = vpack.c.b16 %v8685, %v8684
    %v9069 = vpack.c.b16 %v8687, %v8686
    %v9070 = vpack.c.b16 %v8689, %v8688
    %v9071 = vpack.c.b16 %v8691, %v8690
    %v9072 = vpack.c.b16 %v8693, %v8692
    %v9073 = vpack.c.b16 %v8695, %v8694
    %v9074 = vpack.c.b16 %v8697, %v8696
    %v9075 = vpack.c.b16 %v8699, %v8698
    %v9076 = vpack.c.b16 %v8701, %v8700
    %v9077 = vpack.c.b16 %v8703, %v8702
    %v9078 = vpack.c.b16 %v8705, %v8704
    %v9079 = vpack.c.b16 %v8707, %v8706
    %v9080 = vpack.c.b16 %v8709, %v8708
    %v9081 = vpack.c.b16 %v8711, %v8710
    %v9082 = vpack.c.b16 %v8713, %v8712
    %v9083 = vpack.c.b16 %v8715, %v8714
    %v9084 = vpack.c.b16 %v8717, %v8716
    %v9085 = vpack.c.b16 %v8719, %v8718
    %v9086 = vpack.c.b16 %v8721, %v8720
    %v9087 = vpack.c.b16 %v8723, %v8722
    %v9088 = vpack.c.b16 %v8725, %v8724
    %v9089 = vpack.c.b16 %v8727, %v8726
    %v9090 = vpack.c.b16 %v8729, %v8728
    %v9091 = vpack.c.b16 %v8731, %v8730
    %v9092 = vpack.c.b16 %v8733, %v8732
    %v9093 = vpack.c.b16 %v8735, %v8734
    %v9094 = vpack.c.b16 %v8737, %v8736
    %v9095 = vpack.c.b16 %v8739, %v8738
    %v9096 = vpack.c.b16 %v8741, %v8740
    %v9097 = vpack.c.b16 %v8743, %v8742
    %v9098 = vpack.c.b16 %v8745, %v8744
    %v9099 = vpack.c.b16 %v8747, %v8746
    %v9100 = vpack.c.b16 %v8749, %v8748
    %v9101 = vpack.c.b16 %v8751, %v8750
    %v9102 = vpack.c.b16 %v8753, %v8752
    %v9103 = vpack.c.b16 %v8755, %v8754
    %v9104 = vpack.c.b16 %v8757, %v8756
    %v9105 = vpack.c.b16 %v8759, %v8758
    %v9106 = vpack.c.b16 %v8761, %v8760
    %v9107 = vpack.c.b16 %v8763, %v8762
    %v9108 = vpack.c.b16 %v8765, %v8764
    %v9109 = vpack.c.b16 %v8767, %v8766
    %v9110 = vpack.c.b16 %v8769, %v8768
    %v9111 = vpack.c.b16 %v8771, %v8770
    %v9112 = vpack.c.b16 %v8773, %v8772
    %v9113 = vpack.c.b16 %v8775, %v8774
    %v9114 = vpack.c.b16 %v8777, %v8776
    %v9115 = vpack.c.b16 %v8779, %v8778
    %v9116 = vpack.c.b16 %v8781, %v8780
    %v9117 = vpack.c.b16 %v8783, %v8782
    %v9118 = vpack.c.b16 %v8785, %v8784
    %v9119 = vpack.c.b16 %v8787, %v8786
    %v9120 = vpack.c.b16 %v8789, %v8788
    %v9121 = vpack.c.b16 %v8791, %v8790
    %v9122 = vpack.c.b16 %v8793, %v8792
    %v9123 = vpack.c.b16 %v8795, %v8794
    %v9124 = vpack.c.b16 %v8797, %v8796
    %v9125 = vpack.c.b16 %v8799, %v8798
    %v9126 = vpack.c.b16 %v8801, %v8800
    %v9127 = vpack.c.b16 %v8803, %v8802
    %v9128 = vpack.c.b16 %v8805, %v8804
    %v9129 = vpack.c.b16 %v8807, %v8806
    %v9130 = vpack.c.b16 %v8809, %v8808
    %v9131 = vpack.c.b16 %v8811, %v8810
    %v9132 = vpack.c.b16 %v8813, %v8812
    %v9133 = vpack.c.b16 %v8815, %v8814
    %v9134 = vpack.c.b16 %v8817, %v8816
    %v9135 = vpack.c.b16 %v8819, %v8818
    %v9136 = vpack.c.b16 %v8821, %v8820
    %v9137 = vpack.c.b16 %v8823, %v8822
    %v9138 = vpack.c.b16 %v8825, %v8824
    %v9139 = vpack.c.b16 %v8827, %v8826
    %v9140 = vpack.c.b16 %v8829, %v8828
    %v9141 = vpack.c.b16 %v8831, %v8830
    %v9142 = vpack.c.b16 %v8833, %v8832
    %v9143 = vpack.c.b16 %v8835, %v8834
    %v9144 = vpack.c.b16 %v8837, %v8836
    %v9145 = vpack.c.b16 %v8839, %v8838
    %v9146 = vpack.c.b16 %v8841, %v8840
    %v9147 = vpack.c.b16 %v8843, %v8842
    %v9148 = vpack.c.b16 %v8845, %v8844
    %v9149 = vpack.c.b16 %v8847, %v8846
    %v9150 = vpack.c.b16 %v8849, %v8848
    %v9151 = vpack.c.b16 %v8851, %v8850
    %v9152 = vpack.c.b16 %v8853, %v8852
    %v9153 = vpack.c.b16 %v8855, %v8854
    %v9154 = vpack.c.b16 %v8857, %v8856
    %v9155 = vpack.c.b16 %v8859, %v8858
    %v9156 = vpack.c.b16 %v8861, %v8860
    %v9157 = vpack.c.b16 %v8863, %v8862
    %v9158 = vpack.c.b16 %v8865, %v8864
    %v9159 = vpack.c.b16 %v8867, %v8866
    %v9160 = vpack.c.b16 %v8869, %v8868
    %v9161 = vpack.c.b16 %v8871, %v8870
    %v9162 = vpack.c.b16 %v8873, %v8872
    %v9163 = vpack.c.b16 %v8875, %v8874
    %v9164 = vpack.c.b16 %v8877, %v8876
    %v9165 = vpack.c.b16 %v8879, %v8878
    %v9166 = vpack.c.b16 %v8881, %v8880
    %v9167 = vpack.c.b16 %v8883, %v8882
    %v9168 = vpack.c.b16 %v8885, %v8884
    %v9169 = vpack.c.b16 %v8887, %v8886
    %v9170 = vpack.c.b16 %v8889, %v8888
    %v9171 = vpack.c.b16 %v8891, %v8890
    %v9172 = vpack.c.b16 %v8893, %v8892
    %v9173 = vpack.c.b16 %v8895, %v8894
    %v9174 = vpack.c.b16 %v8897, %v8896
    %v9175 = vpack.c.b16 %v8899, %v8898
    %v9176 = vpack.c.b16 %v8901, %v8900
    %v9177 = vpack.c.b16 %v8903, %v8902
    %v9178 = vpack.c.b16 %v8905, %v8904
    %v9179 = vpack.c.b16 %v8907, %v8906
    %v9180 = vpack.c.b16 %v8909, %v8908
    %v9181 = vpack.c.b16 %v8911, %v8910
    %v9182 = vpack.c.b16 %v8913, %v8912
    %v9183 = vpack.c.b16 %v8915, %v8914
    %v9184 = vpack.c.b16 %v8917, %v8916
    %v9185 = vpack.c.b16 %v8919, %v8918
    %v9186 = vpack.c.b16 %v8921, %v8920
    %v9187 = vpack.c.b16 %v8923, %v8922
    %v9188 = vpack.c.b16 %v8925, %v8924
    %v9189 = vpack.c.b16 %v8927, %v8926
    %v9190 = vpack.c.b16 %v8929, %v8928
    %v9191 = vpack.c.b16 %v8931, %v8930
    %v9192 = vpack.c.b16 %v8933, %v8932
    %v9193 = vpack.c.b16 %v8935, %v8934
    %v9194 = vpack.c.b16 %v8937, %v8936
    %v9195 = vpack.c.b16 %v8939, %v8938
    %9452 = vmatprep.subr.bf16.mxu0 0
    %9453 = vmatpush1.bf16.msra.mxu0 %v8940
    %9454 = vmatprep.subr.bf16.mxu0 0
    %9455 = vmatpush1.bf16.msra.mxu0 %v8941
    %9456 = vmatprep.subr.bf16.mxu0 0
    %9457 = vmatpush1.bf16.msra.mxu0 %v8942
    %9458 = vmatprep.subr.bf16.mxu0 0
    %9459 = vmatpush1.bf16.msra.mxu0 %v8943
    %9460 = vmatprep.subr.bf16.mxu0 0
    %9461 = vmatpush1.bf16.msra.mxu0 %v8944
    %9462 = vmatprep.subr.bf16.mxu0 0
    %9463 = vmatpush1.bf16.msra.mxu0 %v8945
    %9464 = vmatprep.subr.bf16.mxu0 0
    %9465 = vmatpush1.bf16.msra.mxu0 %v8946
    %9466 = vmatprep.subr.bf16.mxu0 0
    %9467 = vmatpush1.bf16.msra.mxu0 %v8947
    %9468 = vmatprep.subr.bf16.mxu0 0
    %9469 = vmatpush1.bf16.msra.mxu0 %v8948
    %9470 = vmatprep.subr.bf16.mxu0 0
    %9471 = vmatpush1.bf16.msra.mxu0 %v8949
    %9472 = vmatprep.subr.bf16.mxu0 0
    %9473 = vmatpush1.bf16.msra.mxu0 %v8950
    %9474 = vmatprep.subr.bf16.mxu0 0
    %9475 = vmatpush1.bf16.msra.mxu0 %v8951
    %9476 = vmatprep.subr.bf16.mxu0 0
    %9477 = vmatpush1.bf16.msra.mxu0 %v8952
    %9478 = vmatprep.subr.bf16.mxu0 0
    %9479 = vmatpush1.bf16.msra.mxu0 %v8953
    %9480 = vmatprep.subr.bf16.mxu0 0
    %9481 = vmatpush1.bf16.msra.mxu0 %v8954
    %9482 = vmatprep.subr.bf16.mxu0 0
    %9483 = vmatpush1.bf16.msra.mxu0 %v8955
    %9484 = vmatprep.mubr.bf16.mxu0 %v7366
    %9485 = vmatmul.mubr.bf16.gmra.mrb[0].mxu0 %v7365
    %v9486 = vpop.f32.mrb[0].mxu0
    %v9487 = vadd.f32 %v7914, %v9486
    %v9488 = vpop.f32.mrb[0].mxu0
    %v9489 = vpop.f32.mrb[0].mxu0
    %v9490 = vpop.f32.mrb[0].mxu0
    %9491 = vdwg.mxu0
    %9492 = vmatprep.subr.bf16.mxu0 0
    %9493 = vmatpush1.bf16.msra.mxu0 %v8956
    %9494 = vmatprep.subr.bf16.mxu0 0
    %9495 = vmatpush1.bf16.msra.mxu0 %v8957
    %9496 = vmatprep.subr.bf16.mxu0 0
    %9497 = vmatpush1.bf16.msra.mxu0 %v8958
    %9498 = vmatprep.subr.bf16.mxu0 0
    %9499 = vmatpush1.bf16.msra.mxu0 %v8959
    %9500 = vmatprep.subr.bf16.mxu0 0
    %9501 = vmatpush1.bf16.msra.mxu0 %v8960
    %9502 = vmatprep.subr.bf16.mxu0 0
    %9503 = vmatpush1.bf16.msra.mxu0 %v8961
    %9504 = vmatprep.subr.bf16.mxu0 0
    %9505 = vmatpush1.bf16.msra.mxu0 %v8962
    %9506 = vmatprep.subr.bf16.mxu0 0
    %9507 = vmatpush1.bf16.msra.mxu0 %v8963
    %9508 = vmatprep.subr.bf16.mxu0 0
    %9509 = vmatpush1.bf16.msra.mxu0 %v8964
    %9510 = vmatprep.subr.bf16.mxu0 0
    %9511 = vmatpush1.bf16.msra.mxu0 %v8965
    %9512 = vmatprep.subr.bf16.mxu0 0
    %9513 = vmatpush1.bf16.msra.mxu0 %v8966
    %9514 = vmatprep.subr.bf16.mxu0 0
    %9515 = vmatpush1.bf16.msra.mxu0 %v8967
    %9516 = vmatprep.subr.bf16.mxu0 0
    %9517 = vmatpush1.bf16.msra.mxu0 %v8968
    %9518 = vmatprep.subr.bf16.mxu0 0
    %9519 = vmatpush1.bf16.msra.mxu0 %v8969
    %9520 = vmatprep.subr.bf16.mxu0 0
    %9521 = vmatpush1.bf16.msra.mxu0 %v8970
    %9522 = vmatprep.subr.bf16.mxu0 0
    %9523 = vmatpush1.bf16.msra.mxu0 %v8971
    %9524 = vmatprep.mubr.bf16.mxu0 %v7368
    %9525 = vmatmul.mubr.bf16.gmra.mrb[0].mxu0 %v7367
    %v9526 = vpop.f32.mrb[0].mxu0
    %v9527 = vadd.f32 %v9487, %v9526
    %v9528 = vpop.f32.mrb[0].mxu0
    %v9529 = vpop.f32.mrb[0].mxu0
    %v9530 = vpop.f32.mrb[0].mxu0
    %9531 = vdwg.mxu0
    %9532 = vmatprep.subr.bf16.mxu0 0
    %9533 = vmatpush1.bf16.msra.mxu0 %v8972
    %9534 = vmatprep.subr.bf16.mxu0 0
    %9535 = vmatpush1.bf16.msra.mxu0 %v8973
    %9536 = vmatprep.subr.bf16.mxu0 0
    %9537 = vmatpush1.bf16.msra.mxu0 %v8974
    %9538 = vmatprep.subr.bf16.mxu0 0
    %9539 = vmatpush1.bf16.msra.mxu0 %v8975
    %9540 = vmatprep.subr.bf16.mxu0 0
    %9541 = vmatpush1.bf16.msra.mxu0 %v8976
    %9542 = vmatprep.subr.bf16.mxu0 0
    %9543 = vmatpush1.bf16.msra.mxu0 %v8977
    %9544 = vmatprep.subr.bf16.mxu0 0
    %9545 = vmatpush1.bf16.msra.mxu0 %v8978
    %9546 = vmatprep.subr.bf16.mxu0 0
    %9547 = vmatpush1.bf16.msra.mxu0 %v8979
    %9548 = vmatprep.subr.bf16.mxu0 0
    %9549 = vmatpush1.bf16.msra.mxu0 %v8980
    %9550 = vmatprep.subr.bf16.mxu0 0
    %9551 = vmatpush1.bf16.msra.mxu0 %v8981
    %9552 = vmatprep.subr.bf16.mxu0 0
    %9553 = vmatpush1.bf16.msra.mxu0 %v8982
    %9554 = vmatprep.subr.bf16.mxu0 0
    %9555 = vmatpush1.bf16.msra.mxu0 %v8983
    %9556 = vmatprep.subr.bf16.mxu0 0
    %9557 = vmatpush1.bf16.msra.mxu0 %v8984
    %9558 = vmatprep.subr.bf16.mxu0 0
    %9559 = vmatpush1.bf16.msra.mxu0 %v8985
    %9560 = vmatprep.subr.bf16.mxu0 0
    %9561 = vmatpush1.bf16.msra.mxu0 %v8986
    %9562 = vmatprep.subr.bf16.mxu0 0
    %9563 = vmatpush1.bf16.msra.mxu0 %v8987
    %9564 = vmatprep.mubr.bf16.mxu0 %v7370
    %9565 = vmatmul.mubr.bf16.gmra.mrb[0].mxu0 %v7369
    %v9566 = vpop.f32.mrb[0].mxu0
    %v9567 = vadd.f32 %v9527, %v9566
    %v9568 = vpop.f32.mrb[0].mxu0
    %v9569 = vpop.f32.mrb[0].mxu0
    %v9570 = vpop.f32.mrb[0].mxu0
    %9571 = vdwg.mxu0
    %9572 = vmatprep.subr.bf16.mxu0 0
    %9573 = vmatpush1.bf16.msra.mxu0 %v8988
    %9574 = vmatprep.subr.bf16.mxu0 0
    %9575 = vmatpush1.bf16.msra.mxu0 %v8989
    %9576 = vmatprep.subr.bf16.mxu0 0
    %9577 = vmatpush1.bf16.msra.mxu0 %v8990
    %9578 = vmatprep.subr.bf16.mxu0 0
    %9579 = vmatpush1.bf16.msra.mxu0 %v8991
    %9580 = vmatprep.subr.bf16.mxu0 0
    %9581 = vmatpush1.bf16.msra.mxu0 %v8992
    %9582 = vmatprep.subr.bf16.mxu0 0
    %9583 = vmatpush1.bf16.msra.mxu0 %v8993
    %9584 = vmatprep.subr.bf16.mxu0 0
    %9585 = vmatpush1.bf16.msra.mxu0 %v8994
    %9586 = vmatprep.subr.bf16.mxu0 0
    %9587 = vmatpush1.bf16.msra.mxu0 %v8995
    %9588 = vmatprep.subr.bf16.mxu0 0
    %9589 = vmatpush1.bf16.msra.mxu0 %v8996
    %9590 = vmatprep.subr.bf16.mxu0 0
    %9591 = vmatpush1.bf16.msra.mxu0 %v8997
    %9592 = vmatprep.subr.bf16.mxu0 0
    %9593 = vmatpush1.bf16.msra.mxu0 %v8998
    %9594 = vmatprep.subr.bf16.mxu0 0
    %9595 = vmatpush1.bf16.msra.mxu0 %v8999
    %9596 = vmatprep.subr.bf16.mxu0 0
    %9597 = vmatpush1.bf16.msra.mxu0 %v9000
    %9598 = vmatprep.subr.bf16.mxu0 0
    %9599 = vmatpush1.bf16.msra.mxu0 %v9001
    %9600 = vmatprep.subr.bf16.mxu0 0
    %9601 = vmatpush1.bf16.msra.mxu0 %v9002
    %9602 = vmatprep.subr.bf16.mxu0 0
    %9603 = vmatpush1.bf16.msra.mxu0 %v9003
    %9604 = vmatprep.mubr.bf16.mxu0 %v7372
    %9605 = vmatmul.mubr.bf16.gmra.mrb[0].mxu0 %v7371
    %v9606 = vpop.f32.mrb[0].mxu0
    %v9607 = vadd.f32 %v9567, %v9606
    %v9608 = vpop.f32.mrb[0].mxu0
    %v9609 = vpop.f32.mrb[0].mxu0
    %v9610 = vpop.f32.mrb[0].mxu0
    %9611 = vdwg.mxu0
    %9612 = vmatprep.subr.bf16.mxu0 0
    %9613 = vmatpush1.bf16.msra.mxu0 %v9004
    %9614 = vmatprep.subr.bf16.mxu0 0
    %9615 = vmatpush1.bf16.msra.mxu0 %v9005
    %9616 = vmatprep.subr.bf16.mxu0 0
    %9617 = vmatpush1.bf16.msra.mxu0 %v9006
    %9618 = vmatprep.subr.bf16.mxu0 0
    %9619 = vmatpush1.bf16.msra.mxu0 %v9007
    %9620 = vmatprep.subr.bf16.mxu0 0
    %9621 = vmatpush1.bf16.msra.mxu0 %v9008
    %9622 = vmatprep.subr.bf16.mxu0 0
    %9623 = vmatpush1.bf16.msra.mxu0 %v9009
    %9624 = vmatprep.subr.bf16.mxu0 0
    %9625 = vmatpush1.bf16.msra.mxu0 %v9010
    %9626 = vmatprep.subr.bf16.mxu0 0
    %9627 = vmatpush1.bf16.msra.mxu0 %v9011
    %9628 = vmatprep.subr.bf16.mxu0 0
    %9629 = vmatpush1.bf16.msra.mxu0 %v9012
    %9630 = vmatprep.subr.bf16.mxu0 0
    %9631 = vmatpush1.bf16.msra.mxu0 %v9013
    %9632 = vmatprep.subr.bf16.mxu0 0
    %9633 = vmatpush1.bf16.msra.mxu0 %v9014
    %9634 = vmatprep.subr.bf16.mxu0 0
    %9635 = vmatpush1.bf16.msra.mxu0 %v9015
    %9636 = vmatprep.subr.bf16.mxu0 0
    %9637 = vmatpush1.bf16.msra.mxu0 %v9016
    %9638 = vmatprep.subr.bf16.mxu0 0
    %9639 = vmatpush1.bf16.msra.mxu0 %v9017
    %9640 = vmatprep.subr.bf16.mxu0 0
    %9641 = vmatpush1.bf16.msra.mxu0 %v9018
    %9642 = vmatprep.subr.bf16.mxu0 0
    %9643 = vmatpush1.bf16.msra.mxu0 %v9019
    %9644 = vmatprep.mubr.bf16.mxu0 %v7374
    %9645 = vmatmul.mubr.bf16.gmra.mrb[0].mxu0 %v7373
    %v9646 = vpop.f32.mrb[0].mxu0
    %v9647 = vadd.f32 %v9607, %v9646
    %v9648 = vpop.f32.mrb[0].mxu0
    %v9649 = vpop.f32.mrb[0].mxu0
    %v9650 = vpop.f32.mrb[0].mxu0
    %9651 = vdwg.mxu0
    %9652 = vmatprep.subr.bf16.mxu0 0
    %9653 = vmatpush1.bf16.msra.mxu0 %v9020
    %9654 = vmatprep.subr.bf16.mxu0 0
    %9655 = vmatpush1.bf16.msra.mxu0 %v9021
    %9656 = vmatprep.subr.bf16.mxu0 0
    %9657 = vmatpush1.bf16.msra.mxu0 %v9022
    %9658 = vmatprep.subr.bf16.mxu0 0
    %9659 = vmatpush1.bf16.msra.mxu0 %v9023
    %9660 = vmatprep.subr.bf16.mxu0 0
    %9661 = vmatpush1.bf16.msra.mxu0 %v9024
    %9662 = vmatprep.subr.bf16.mxu0 0
    %9663 = vmatpush1.bf16.msra.mxu0 %v9025
    %9664 = vmatprep.subr.bf16.mxu0 0
    %9665 = vmatpush1.bf16.msra.mxu0 %v9026
    %9666 = vmatprep.subr.bf16.mxu0 0
    %9667 = vmatpush1.bf16.msra.mxu0 %v9027
    %9668 = vmatprep.subr.bf16.mxu0 0
    %9669 = vmatpush1.bf16.msra.mxu0 %v9028
    %9670 = vmatprep.subr.bf16.mxu0 0
    %9671 = vmatpush1.bf16.msra.mxu0 %v9029
    %9672 = vmatprep.subr.bf16.mxu0 0
    %9673 = vmatpush1.bf16.msra.mxu0 %v9030
    %9674 = vmatprep.subr.bf16.mxu0 0
    %9675 = vmatpush1.bf16.msra.mxu0 %v9031
    %9676 = vmatprep.subr.bf16.mxu0 0
    %9677 = vmatpush1.bf16.msra.mxu0 %v9032
    %9678 = vmatprep.subr.bf16.mxu0 0
    %9679 = vmatpush1.bf16.msra.mxu0 %v9033
    %9680 = vmatprep.subr.bf16.mxu0 0
    %9681 = vmatpush1.bf16.msra.mxu0 %v9034
    %9682 = vmatprep.subr.bf16.mxu0 0
    %9683 = vmatpush1.bf16.msra.mxu0 %v9035
    %9684 = vmatprep.mubr.bf16.mxu0 %v7376
    %9685 = vmatmul.mubr.bf16.gmra.mrb[0].mxu0 %v7375
    %v9686 = vpop.f32.mrb[0].mxu0
    %v9687 = vadd.f32 %v9647, %v9686
    %v9688 = vpop.f32.mrb[0].mxu0
    %v9689 = vpop.f32.mrb[0].mxu0
    %v9690 = vpop.f32.mrb[0].mxu0
    %9691 = vdwg.mxu0
    %9692 = vmatprep.subr.bf16.mxu0 0
    %9693 = vmatpush1.bf16.msra.mxu0 %v9036
    %9694 = vmatprep.subr.bf16.mxu0 0
    %9695 = vmatpush1.bf16.msra.mxu0 %v9037
    %9696 = vmatprep.subr.bf16.mxu0 0
    %9697 = vmatpush1.bf16.msra.mxu0 %v9038
    %9698 = vmatprep.subr.bf16.mxu0 0
    %9699 = vmatpush1.bf16.msra.mxu0 %v9039
    %9700 = vmatprep.subr.bf16.mxu0 0
    %9701 = vmatpush1.bf16.msra.mxu0 %v9040
    %9702 = vmatprep.subr.bf16.mxu0 0
    %9703 = vmatpush1.bf16.msra.mxu0 %v9041
    %9704 = vmatprep.subr.bf16.mxu0 0
    %9705 = vmatpush1.bf16.msra.mxu0 %v9042
    %9706 = vmatprep.subr.bf16.mxu0 0
    %9707 = vmatpush1.bf16.msra.mxu0 %v9043
    %9708 = vmatprep.subr.bf16.mxu0 0
    %9709 = vmatpush1.bf16.msra.mxu0 %v9044
    %9710 = vmatprep.subr.bf16.mxu0 0
    %9711 = vmatpush1.bf16.msra.mxu0 %v9045
    %9712 = vmatprep.subr.bf16.mxu0 0
    %9713 = vmatpush1.bf16.msra.mxu0 %v9046
    %9714 = vmatprep.subr.bf16.mxu0 0
    %9715 = vmatpush1.bf16.msra.mxu0 %v9047
    %9716 = vmatprep.subr.bf16.mxu0 0
    %9717 = vmatpush1.bf16.msra.mxu0 %v9048
    %9718 = vmatprep.subr.bf16.mxu0 0
    %9719 = vmatpush1.bf16.msra.mxu0 %v9049
    %9720 = vmatprep.subr.bf16.mxu0 0
    %9721 = vmatpush1.bf16.msra.mxu0 %v9050
    %9722 = vmatprep.subr.bf16.mxu0 0
    %9723 = vmatpush1.bf16.msra.mxu0 %v9051
    %9724 = vmatprep.mubr.bf16.mxu0 %v7378
    %9725 = vmatmul.mubr.bf16.gmra.mrb[0].mxu0 %v7377
    %v9726 = vpop.f32.mrb[0].mxu0
    %v9727 = vadd.f32 %v9687, %v9726
    %v9728 = vpop.f32.mrb[0].mxu0
    %v9729 = vpop.f32.mrb[0].mxu0
    %v9730 = vpop.f32.mrb[0].mxu0
    %9731 = vdwg.mxu0
    %9732 = vmatprep.subr.bf16.mxu0 0
    %9733 = vmatpush1.bf16.msra.mxu0 %v9052
    %9734 = vmatprep.subr.bf16.mxu0 0
    %9735 = vmatpush1.bf16.msra.mxu0 %v9053
    %9736 = vmatprep.subr.bf16.mxu0 0
    %9737 = vmatpush1.bf16.msra.mxu0 %v9054
    %9738 = vmatprep.subr.bf16.mxu0 0
    %9739 = vmatpush1.bf16.msra.mxu0 %v9055
    %9740 = vmatprep.subr.bf16.mxu0 0
    %9741 = vmatpush1.bf16.msra.mxu0 %v9056
    %9742 = vmatprep.subr.bf16.mxu0 0
    %9743 = vmatpush1.bf16.msra.mxu0 %v9057
    %9744 = vmatprep.subr.bf16.mxu0 0
    %9745 = vmatpush1.bf16.msra.mxu0 %v9058
    %9746 = vmatprep.subr.bf16.mxu0 0
    %9747 = vmatpush1.bf16.msra.mxu0 %v9059
    %9748 = vmatprep.subr.bf16.mxu0 0
    %9749 = vmatpush1.bf16.msra.mxu0 %v9060
    %9750 = vmatprep.subr.bf16.mxu0 0
    %9751 = vmatpush1.bf16.msra.mxu0 %v9061
    %9752 = vmatprep.subr.bf16.mxu0 0
    %9753 = vmatpush1.bf16.msra.mxu0 %v9062
    %9754 = vmatprep.subr.bf16.mxu0 0
    %9755 = vmatpush1.bf16.msra.mxu0 %v9063
    %9756 = vmatprep.subr.bf16.mxu0 0
    %9757 = vmatpush1.bf16.msra.mxu0 %v9064
    %9758 = vmatprep.subr.bf16.mxu0 0
    %9759 = vmatpush1.bf16.msra.mxu0 %v9065
    %9760 = vmatprep.subr.bf16.mxu0 0
    %9761 = vmatpush1.bf16.msra.mxu0 %v9066
    %9762 = vmatprep.subr.bf16.mxu0 0
    %9763 = vmatpush1.bf16.msra.mxu0 %v9067
    %9764 = vmatprep.mubr.bf16.mxu0 %v7380
    %9765 = vmatmul.mubr.bf16.gmra.mrb[0].mxu0 %v7379
    %v9766 = vpop.f32.mrb[0].mxu0
    %v9767 = vadd.f32 %v9727, %v9766
    %v9768 = vpop.f32.mrb[0].mxu0
    %v9769 = vpop.f32.mrb[0].mxu0
    %v9770 = vpop.f32.mrb[0].mxu0
    %9771 = vdwg.mxu0
    %9772 = vmatprep.subr.bf16.mxu0 0
    %9773 = vmatpush1.bf16.msra.mxu0 %v9068
    %9774 = vmatprep.subr.bf16.mxu0 0
    %9775 = vmatpush1.bf16.msra.mxu0 %v9069
    %9776 = vmatprep.subr.bf16.mxu0 0
    %9777 = vmatpush1.bf16.msra.mxu0 %v9070
    %9778 = vmatprep.subr.bf16.mxu0 0
    %9779 = vmatpush1.bf16.msra.mxu0 %v9071
    %9780 = vmatprep.subr.bf16.mxu0 0
    %9781 = vmatpush1.bf16.msra.mxu0 %v9072
    %9782 = vmatprep.subr.bf16.mxu0 0
    %9783 = vmatpush1.bf16.msra.mxu0 %v9073
    %9784 = vmatprep.subr.bf16.mxu0 0
    %9785 = vmatpush1.bf16.msra.mxu0 %v9074
    %9786 = vmatprep.subr.bf16.mxu0 0
    %9787 = vmatpush1.bf16.msra.mxu0 %v9075
    %9788 = vmatprep.subr.bf16.mxu0 0
    %9789 = vmatpush1.bf16.msra.mxu0 %v9076
    %9790 = vmatprep.subr.bf16.mxu0 0
    %9791 = vmatpush1.bf16.msra.mxu0 %v9077
    %9792 = vmatprep.subr.bf16.mxu0 0
    %9793 = vmatpush1.bf16.msra.mxu0 %v9078
    %9794 = vmatprep.subr.bf16.mxu0 0
    %9795 = vmatpush1.bf16.msra.mxu0 %v9079
    %9796 = vmatprep.subr.bf16.mxu0 0
    %9797 = vmatpush1.bf16.msra.mxu0 %v9080
    %9798 = vmatprep.subr.bf16.mxu0 0
    %9799 = vmatpush1.bf16.msra.mxu0 %v9081
    %9800 = vmatprep.subr.bf16.mxu0 0
    %9801 = vmatpush1.bf16.msra.mxu0 %v9082
    %9802 = vmatprep.subr.bf16.mxu0 0
    %9803 = vmatpush1.bf16.msra.mxu0 %v9083
    %9804 = vmatprep.mubr.bf16.mxu0 %v7382
    %9805 = vmatmul.mubr.bf16.gmra.mrb[0].mxu0 %v7381
    %v9806 = vpop.f32.mrb[0].mxu0
    %v9807 = vadd.f32 %v9767, %v9806
    %v9808 = vpop.f32.mrb[0].mxu0
    %v9809 = vpop.f32.mrb[0].mxu0
    %v9810 = vpop.f32.mrb[0].mxu0
    %9811 = vdwg.mxu0
    %9812 = vmatprep.subr.bf16.mxu0 0
    %9813 = vmatpush1.bf16.msra.mxu0 %v9084
    %9814 = vmatprep.subr.bf16.mxu0 0
    %9815 = vmatpush1.bf16.msra.mxu0 %v9085
    %9816 = vmatprep.subr.bf16.mxu0 0
    %9817 = vmatpush1.bf16.msra.mxu0 %v9086
    %9818 = vmatprep.subr.bf16.mxu0 0
    %9819 = vmatpush1.bf16.msra.mxu0 %v9087
    %9820 = vmatprep.subr.bf16.mxu0 0
    %9821 = vmatpush1.bf16.msra.mxu0 %v9088
    %9822 = vmatprep.subr.bf16.mxu0 0
    %9823 = vmatpush1.bf16.msra.mxu0 %v9089
    %9824 = vmatprep.subr.bf16.mxu0 0
    %9825 = vmatpush1.bf16.msra.mxu0 %v9090
    %9826 = vmatprep.subr.bf16.mxu0 0
    %9827 = vmatpush1.bf16.msra.mxu0 %v9091
    %9828 = vmatprep.subr.bf16.mxu0 0
    %9829 = vmatpush1.bf16.msra.mxu0 %v9092
    %9830 = vmatprep.subr.bf16.mxu0 0
    %9831 = vmatpush1.bf16.msra.mxu0 %v9093
    %9832 = vmatprep.subr.bf16.mxu0 0
    %9833 = vmatpush1.bf16.msra.mxu0 %v9094
    %9834 = vmatprep.subr.bf16.mxu0 0
    %9835 = vmatpush1.bf16.msra.mxu0 %v9095
    %9836 = vmatprep.subr.bf16.mxu0 0
    %9837 = vmatpush1.bf16.msra.mxu0 %v9096
    %9838 = vmatprep.subr.bf16.mxu0 0
    %9839 = vmatpush1.bf16.msra.mxu0 %v9097
    %9840 = vmatprep.subr.bf16.mxu0 0
    %9841 = vmatpush1.bf16.msra.mxu0 %v9098
    %9842 = vmatprep.subr.bf16.mxu0 0
    %9843 = vmatpush1.bf16.msra.mxu0 %v9099
    %9844 = vmatprep.mubr.bf16.mxu0 %v7384
    %9845 = vmatmul.mubr.bf16.gmra.mrb[0].mxu0 %v7383
    %v9846 = vpop.f32.mrb[0].mxu0
    %v9847 = vadd.f32 %v9807, %v9846
    %v9848 = vpop.f32.mrb[0].mxu0
    %v9849 = vpop.f32.mrb[0].mxu0
    %v9850 = vpop.f32.mrb[0].mxu0
    %9851 = vdwg.mxu0
    %9852 = vmatprep.subr.bf16.mxu0 0
    %9853 = vmatpush1.bf16.msra.mxu0 %v9100
    %9854 = vmatprep.subr.bf16.mxu0 0
    %9855 = vmatpush1.bf16.msra.mxu0 %v9101
    %9856 = vmatprep.subr.bf16.mxu0 0
    %9857 = vmatpush1.bf16.msra.mxu0 %v9102
    %9858 = vmatprep.subr.bf16.mxu0 0
    %9859 = vmatpush1.bf16.msra.mxu0 %v9103
    %9860 = vmatprep.subr.bf16.mxu0 0
    %9861 = vmatpush1.bf16.msra.mxu0 %v9104
    %9862 = vmatprep.subr.bf16.mxu0 0
    %9863 = vmatpush1.bf16.msra.mxu0 %v9105
    %9864 = vmatprep.subr.bf16.mxu0 0
    %9865 = vmatpush1.bf16.msra.mxu0 %v9106
    %9866 = vmatprep.subr.bf16.mxu0 0
    %9867 = vmatpush1.bf16.msra.mxu0 %v9107
    %9868 = vmatprep.subr.bf16.mxu0 0
    %9869 = vmatpush1.bf16.msra.mxu0 %v9108
    %9870 = vmatprep.subr.bf16.mxu0 0
    %9871 = vmatpush1.bf16.msra.mxu0 %v9109
    %9872 = vmatprep.subr.bf16.mxu0 0
    %9873 = vmatpush1.bf16.msra.mxu0 %v9110
    %9874 = vmatprep.subr.bf16.mxu0 0
    %9875 = vmatpush1.bf16.msra.mxu0 %v9111
    %9876 = vmatprep.subr.bf16.mxu0 0
    %9877 = vmatpush1.bf16.msra.mxu0 %v9112
    %9878 = vmatprep.subr.bf16.mxu0 0
    %9879 = vmatpush1.bf16.msra.mxu0 %v9113
    %9880 = vmatprep.subr.bf16.mxu0 0
    %9881 = vmatpush1.bf16.msra.mxu0 %v9114
    %9882 = vmatprep.subr.bf16.mxu0 0
    %9883 = vmatpush1.bf16.msra.mxu0 %v9115
    %9884 = vmatprep.mubr.bf16.mxu0 %v7386
    %9885 = vmatmul.mubr.bf16.gmra.mrb[0].mxu0 %v7385
    %v9886 = vpop.f32.mrb[0].mxu0
    %v9887 = vadd.f32 %v9847, %v9886
    %v9888 = vpop.f32.mrb[0].mxu0
    %v9889 = vpop.f32.mrb[0].mxu0
    %v9890 = vpop.f32.mrb[0].mxu0
    %9891 = vdwg.mxu0
    %9892 = vmatprep.subr.bf16.mxu0 0
    %9893 = vmatpush1.bf16.msra.mxu0 %v9116
    %9894 = vmatprep.subr.bf16.mxu0 0
    %9895 = vmatpush1.bf16.msra.mxu0 %v9117
    %9896 = vmatprep.subr.bf16.mxu0 0
    %9897 = vmatpush1.bf16.msra.mxu0 %v9118
    %9898 = vmatprep.subr.bf16.mxu0 0
    %9899 = vmatpush1.bf16.msra.mxu0 %v9119
    %9900 = vmatprep.subr.bf16.mxu0 0
    %9901 = vmatpush1.bf16.msra.mxu0 %v9120
    %9902 = vmatprep.subr.bf16.mxu0 0
    %9903 = vmatpush1.bf16.msra.mxu0 %v9121
    %9904 = vmatprep.subr.bf16.mxu0 0
    %9905 = vmatpush1.bf16.msra.mxu0 %v9122
    %9906 = vmatprep.subr.bf16.mxu0 0
    %9907 = vmatpush1.bf16.msra.mxu0 %v9123
    %9908 = vmatprep.subr.bf16.mxu0 0
    %9909 = vmatpush1.bf16.msra.mxu0 %v9124
    %9910 = vmatprep.subr.bf16.mxu0 0
    %9911 = vmatpush1.bf16.msra.mxu0 %v9125
    %9912 = vmatprep.subr.bf16.mxu0 0
    %9913 = vmatpush1.bf16.msra.mxu0 %v9126
    %9914 = vmatprep.subr.bf16.mxu0 0
    %9915 = vmatpush1.bf16.msra.mxu0 %v9127
    %9916 = vmatprep.subr.bf16.mxu0 0
    %9917 = vmatpush1.bf16.msra.mxu0 %v9128
    %9918 = vmatprep.subr.bf16.mxu0 0
    %9919 = vmatpush1.bf16.msra.mxu0 %v9129
    %9920 = vmatprep.subr.bf16.mxu0 0
    %9921 = vmatpush1.bf16.msra.mxu0 %v9130
    %9922 = vmatprep.subr.bf16.mxu0 0
    %9923 = vmatpush1.bf16.msra.mxu0 %v9131
    %9924 = vmatprep.mubr.bf16.mxu0 %v7388
    %9925 = vmatmul.mubr.bf16.gmra.mrb[0].mxu0 %v7387
    %v9926 = vpop.f32.mrb[0].mxu0
    %v9927 = vadd.f32 %v9887, %v9926
    %v9928 = vpop.f32.mrb[0].mxu0
    %v9929 = vpop.f32.mrb[0].mxu0
    %v9930 = vpop.f32.mrb[0].mxu0
    %9931 = vdwg.mxu0
    %9932 = vmatprep.subr.bf16.mxu0 0
    %9933 = vmatpush1.bf16.msra.mxu0 %v9132
    %9934 = vmatprep.subr.bf16.mxu0 0
    %9935 = vmatpush1.bf16.msra.mxu0 %v9133
    %9936 = vmatprep.subr.bf16.mxu0 0
    %9937 = vmatpush1.bf16.msra.mxu0 %v9134
    %9938 = vmatprep.subr.bf16.mxu0 0
    %9939 = vmatpush1.bf16.msra.mxu0 %v9135
    %9940 = vmatprep.subr.bf16.mxu0 0
    %9941 = vmatpush1.bf16.msra.mxu0 %v9136
    %9942 = vmatprep.subr.bf16.mxu0 0
    %9943 = vmatpush1.bf16.msra.mxu0 %v9137
    %9944 = vmatprep.subr.bf16.mxu0 0
    %9945 = vmatpush1.bf16.msra.mxu0 %v9138
    %9946 = vmatprep.subr.bf16.mxu0 0
    %9947 = vmatpush1.bf16.msra.mxu0 %v9139
    %9948 = vmatprep.subr.bf16.mxu0 0
    %9949 = vmatpush1.bf16.msra.mxu0 %v9140
    %9950 = vmatprep.subr.bf16.mxu0 0
    %9951 = vmatpush1.bf16.msra.mxu0 %v9141
    %9952 = vmatprep.subr.bf16.mxu0 0
    %9953 = vmatpush1.bf16.msra.mxu0 %v9142
    %9954 = vmatprep.subr.bf16.mxu0 0
    %9955 = vmatpush1.bf16.msra.mxu0 %v9143
    %9956 = vmatprep.subr.bf16.mxu0 0
    %9957 = vmatpush1.bf16.msra.mxu0 %v9144
    %9958 = vmatprep.subr.bf16.mxu0 0
    %9959 = vmatpush1.bf16.msra.mxu0 %v9145
    %9960 = vmatprep.subr.bf16.mxu0 0
    %9961 = vmatpush1.bf16.msra.mxu0 %v9146
    %9962 = vmatprep.subr.bf16.mxu0 0
    %9963 = vmatpush1.bf16.msra.mxu0 %v9147
    %9964 = vmatprep.mubr.bf16.mxu0 %v7390
    %9965 = vmatmul.mubr.bf16.gmra.mrb[0].mxu0 %v7389
    %v9966 = vpop.f32.mrb[0].mxu0
    %v9967 = vadd.f32 %v9927, %v9966
    %v9968 = vpop.f32.mrb[0].mxu0
    %v9969 = vpop.f32.mrb[0].mxu0
    %v9970 = vpop.f32.mrb[0].mxu0
    %9971 = vdwg.mxu0
    %9972 = vmatprep.subr.bf16.mxu0 0
    %9973 = vmatpush1.bf16.msra.mxu0 %v9148
    %9974 = vmatprep.subr.bf16.mxu0 0
    %9975 = vmatpush1.bf16.msra.mxu0 %v9149
    %9976 = vmatprep.subr.bf16.mxu0 0
    %9977 = vmatpush1.bf16.msra.mxu0 %v9150
    %9978 = vmatprep.subr.bf16.mxu0 0
    %9979 = vmatpush1.bf16.msra.mxu0 %v9151
    %9980 = vmatprep.subr.bf16.mxu0 0
    %9981 = vmatpush1.bf16.msra.mxu0 %v9152
    %9982 = vmatprep.subr.bf16.mxu0 0
    %9983 = vmatpush1.bf16.msra.mxu0 %v9153
    %9984 = vmatprep.subr.bf16.mxu0 0
    %9985 = vmatpush1.bf16.msra.mxu0 %v9154
    %9986 = vmatprep.subr.bf16.mxu0 0
    %9987 = vmatpush1.bf16.msra.mxu0 %v9155
    %9988 = vmatprep.subr.bf16.mxu0 0
    %9989 = vmatpush1.bf16.msra.mxu0 %v9156
    %9990 = vmatprep.subr.bf16.mxu0 0
    %9991 = vmatpush1.bf16.msra.mxu0 %v9157
    %9992 = vmatprep.subr.bf16.mxu0 0
    %9993 = vmatpush1.bf16.msra.mxu0 %v9158
    %9994 = vmatprep.subr.bf16.mxu0 0
    %9995 = vmatpush1.bf16.msra.mxu0 %v9159
    %9996 = vmatprep.subr.bf16.mxu0 0
    %9997 = vmatpush1.bf16.msra.mxu0 %v9160
    %9998 = vmatprep.subr.bf16.mxu0 0
    %9999 = vmatpush1.bf16.msra.mxu0 %v9161
    %10000 = vmatprep.subr.bf16.mxu0 0
    %10001 = vmatpush1.bf16.msra.mxu0 %v9162
    %10002 = vmatprep.subr.bf16.mxu0 0
    %10003 = vmatpush1.bf16.msra.mxu0 %v9163
    %10004 = vmatprep.mubr.bf16.mxu0 %v7392
    %10005 = vmatmul.mubr.bf16.gmra.mrb[0].mxu0 %v7391
    %v10006 = vpop.f32.mrb[0].mxu0
    %v10007 = vadd.f32 %v9967, %v10006
    %v10008 = vpop.f32.mrb[0].mxu0
    %v10009 = vpop.f32.mrb[0].mxu0
    %v10010 = vpop.f32.mrb[0].mxu0
    %10011 = vdwg.mxu0
    %10012 = vmatprep.subr.bf16.mxu0 0
    %10013 = vmatpush1.bf16.msra.mxu0 %v9164
    %10014 = vmatprep.subr.bf16.mxu0 0
    %10015 = vmatpush1.bf16.msra.mxu0 %v9165
    %10016 = vmatprep.subr.bf16.mxu0 0
    %10017 = vmatpush1.bf16.msra.mxu0 %v9166
    %10018 = vmatprep.subr.bf16.mxu0 0
    %10019 = vmatpush1.bf16.msra.mxu0 %v9167
    %10020 = vmatprep.subr.bf16.mxu0 0
    %10021 = vmatpush1.bf16.msra.mxu0 %v9168
    %10022 = vmatprep.subr.bf16.mxu0 0
    %10023 = vmatpush1.bf16.msra.mxu0 %v9169
    %10024 = vmatprep.subr.bf16.mxu0 0
    %10025 = vmatpush1.bf16.msra.mxu0 %v9170
    %10026 = vmatprep.subr.bf16.mxu0 0
    %10027 = vmatpush1.bf16.msra.mxu0 %v9171
    %10028 = vmatprep.subr.bf16.mxu0 0
    %10029 = vmatpush1.bf16.msra.mxu0 %v9172
    %10030 = vmatprep.subr.bf16.mxu0 0
    %10031 = vmatpush1.bf16.msra.mxu0 %v9173
    %10032 = vmatprep.subr.bf16.mxu0 0
    %10033 = vmatpush1.bf16.msra.mxu0 %v9174
    %10034 = vmatprep.subr.bf16.mxu0 0
    %10035 = vmatpush1.bf16.msra.mxu0 %v9175
    %10036 = vmatprep.subr.bf16.mxu0 0
    %10037 = vmatpush1.bf16.msra.mxu0 %v9176
    %10038 = vmatprep.subr.bf16.mxu0 0
    %10039 = vmatpush1.bf16.msra.mxu0 %v9177
    %10040 = vmatprep.subr.bf16.mxu0 0
    %10041 = vmatpush1.bf16.msra.mxu0 %v9178
    %10042 = vmatprep.subr.bf16.mxu0 0
    %10043 = vmatpush1.bf16.msra.mxu0 %v9179
    %10044 = vmatprep.mubr.bf16.mxu0 %v7394
    %10045 = vmatmul.mubr.bf16.gmra.mrb[0].mxu0 %v7393
    %v10046 = vpop.f32.mrb[0].mxu0
    %v10047 = vadd.f32 %v10007, %v10046
    %v10048 = vpop.f32.mrb[0].mxu0
    %v10049 = vpop.f32.mrb[0].mxu0
    %v10050 = vpop.f32.mrb[0].mxu0
    %10051 = vdwg.mxu0
    %10052 = vmatprep.subr.bf16.mxu0 0
    %10053 = vmatpush1.bf16.msra.mxu0 %v9180
    %10054 = vmatprep.subr.bf16.mxu0 0
    %10055 = vmatpush1.bf16.msra.mxu0 %v9181
    %10056 = vmatprep.subr.bf16.mxu0 0
    %10057 = vmatpush1.bf16.msra.mxu0 %v9182
    %10058 = vmatprep.subr.bf16.mxu0 0
    %10059 = vmatpush1.bf16.msra.mxu0 %v9183
    %10060 = vmatprep.subr.bf16.mxu0 0
    %10061 = vmatpush1.bf16.msra.mxu0 %v9184
    %10062 = vmatprep.subr.bf16.mxu0 0
    %10063 = vmatpush1.bf16.msra.mxu0 %v9185
    %10064 = vmatprep.subr.bf16.mxu0 0
    %10065 = vmatpush1.bf16.msra.mxu0 %v9186
    %10066 = vmatprep.subr.bf16.mxu0 0
    %10067 = vmatpush1.bf16.msra.mxu0 %v9187
    %10068 = vmatprep.subr.bf16.mxu0 0
    %10069 = vmatpush1.bf16.msra.mxu0 %v9188
    %10070 = vmatprep.subr.bf16.mxu0 0
    %10071 = vmatpush1.bf16.msra.mxu0 %v9189
    %10072 = vmatprep.subr.bf16.mxu0 0
    %10073 = vmatpush1.bf16.msra.mxu0 %v9190
    %10074 = vmatprep.subr.bf16.mxu0 0
    %10075 = vmatpush1.bf16.msra.mxu0 %v9191
    %10076 = vmatprep.subr.bf16.mxu0 0
    %10077 = vmatpush1.bf16.msra.mxu0 %v9192
    %10078 = vmatprep.subr.bf16.mxu0 0
    %10079 = vmatpush1.bf16.msra.mxu0 %v9193
    %10080 = vmatprep.subr.bf16.mxu0 0
    %10081 = vmatpush1.bf16.msra.mxu0 %v9194
    %10082 = vmatprep.subr.bf16.mxu0 0
    %10083 = vmatpush1.bf16.msra.mxu0 %v9195
    %10084 = vmatprep.mubr.bf16.mxu0 %v7396
    %10085 = vmatmul.mubr.bf16.gmra.mrb[0].mxu0 %v7395
    %v10086 = vpop.f32.mrb[0].mxu0
    %v10087 = vadd.f32 %v10047, %v10086
    %v10088 = vpop.f32.mrb[0].mxu0
    %v10089 = vpop.f32.mrb[0].mxu0
    %v10090 = vpop.f32.mrb[0].mxu0
    %10091 = vdwg.mxu0
    %v10092 = vsel %vm1870, %v10087, 0.0
    %v10093 = vrot.slane %v10092, 4
    %v10094 = vadd.f32 %v10092, %v10093
    %v10095 = vrot.slane %v10094, 2
    %v10096 = vadd.f32 %v10094, %v10095
    %v10097 = vrot.slane %v10096, 1
    %v10098 = vadd.f32 %v10096, %v10097
    %v10099 = vrcp.pop 8.0
    %v10100 = vmul.f32 %v10098, %v10099
    %v10101 = vsub.f32 %v10087, %v10100
    %v10102 = vmul.f32 %v10101, %v10101
    %v10103 = vsel %vm1870, %v10102, 0.0
    %v10104 = vrot.slane %v10103, 4
    %v10105 = vadd.f32 %v10103, %v10104
    %v10106 = vrot.slane %v10105, 2
    %v10107 = vadd.f32 %v10105, %v10106
    %v10108 = vrot.slane %v10107, 1
    %v10109 = vadd.f32 %v10107, %v10108
    %v10110 = vmul.f32 %v10109, %v10099
    %v10111 = vadd.f32 %v10110, 1e-05
    %v10112 = vrsqrt.pop %v10111
    %v10113 = vmul.f32 %v10101, %v10112
    %v10114 = vld [vmem:[%s13] sm:$0x1]
    %v10116 = vlaneseq
    %v10117 = vshrl.u32 %v10116, 7
    %v10118 = vsub.s32 0, %v10117
    %v10119 = vrot.slane %v10114, %v10118
    %v10121 = vmul.f32 %v10119, %v10113
    %v10122 = vld [vmem:[%s14] sm:$0x1]
    %v10124 = vlaneseq
    %v10125 = vshrl.u32 %v10124, 7
    %v10126 = vsub.s32 0, %v10125
    %v10127 = vrot.slane %v10122, %v10126
    %v10129 = vadd.f32 %v10121, %v10127
    %v10130 = vmax.f32 %v10129, 0.0
    %10131 = vst.msk [vmem:[#allocation2] sm:$0xff] %vm1870, %v10130
    // Predicated region
    $region62: #{feats_vae_forward.1} parent=1 // pred_check
      _
    $region63: #{feats_vae_forward.1} parent=1 // pred_check_branch
      %10133 = sbr.rel (0) target = $region65
    $region64: #{feats_vae_forward.1} parent=1 // pred_region
      _
    $region65: #{feats_vae_forward.1} parent=1 // pred_fallthru
      _
    // Predicated region
    $region66: #{feats_vae_forward.1} parent=1 // pred_check
      _
    $region67: #{feats_vae_forward.1} parent=1 // pred_check_branch
      %10135 = sbr.rel (0) target = $region69
    $region68: #{feats_vae_forward.1} parent=1 // pred_region
      %s10137 = ssub.s32 128, 128
      %10138 = vsyncadd [#allocation3], %s10137
      %s10140 = sshll.u32 [#allocation2], 4
      %s10141 = int_to_ptr.vmem [resolvable:$true] %s10140
      %10143 = dma.vmem_to_hbm [thread:$0]  %s10141, 128, %s16, [#allocation3]
    $region69: #{feats_vae_forward.1} parent=1 // pred_fallthru
      _
    // Predicated region
    $region70: #{feats_vae_forward.1} parent=1 // pred_check
      _
    $region71: #{feats_vae_forward.1} parent=1 // pred_check_branch
      %10145 = sbr.rel (0) target = $region73
    $region72: #{feats_vae_forward.1} parent=1 // pred_region
      _
    $region73: #{feats_vae_forward.1} parent=1 // pred_fallthru
      _
    // Predicated region
    $region74: #{feats_vae_forward.1} parent=1 // pred_check
      _
    $region75: #{feats_vae_forward.1} parent=1 // pred_check_branch
      %10147 = sbr.rel (0) target = $region77
    $region76: #{feats_vae_forward.1} parent=1 // pred_region
      %10148 = dma.done [#allocation3], 128
    $region77: #{feats_vae_forward.1} parent=1 // pred_fallthru
      _
    %10149 = vsyncpa [#allocation3], 1

</llo_original>
